<compile_context>
chip_gen: v6e
topology: v6e:2x2x1
jax: 0.10.0
libtpu: 0.0.40
codegen_flags: <defaults>
</compile_context>

<pallas_src>
import functools
import numpy as np

import jax
import jax.numpy as jnp
from jax.experimental import pallas as pl
from jax.experimental.pallas import tpu as pltpu

# ----------------------------- configuration --------------------------------
B = 2            # batch
N_SEQ = 6        # text sequence length (includes [CLS]/[SEP])
N_IMG = N_SEQ - 2
IN_CHANS = 3
IMG_SIZE = 16
PATCH = 8
NUM_PATCHES = (IMG_SIZE // PATCH) ** 2        # 4
VIT_TOKENS = NUM_PATCHES + 1                  # 5 (cls token)
EMBED_DIM = 32                                # vit_embed_dim == bert hidden
VIT_DEPTH = 2
VIT_HEADS = 4
MLP_HIDDEN = 4 * EMBED_DIM                    # 128

NUM_CLASSES = 7
VOCAB_SIZE = NUM_CLASSES + 5                  # 12

BERT_LAYERS = 2
BERT_HEADS = 4
BERT_INTERMEDIATE = 64
BERT_WORD_VOCAB = 30
BERT_MAX_POS = 16
VIT_LN_EPS = 1e-6
BERT_LN_EPS = 1e-12

BF = B * N_IMG                                # 8 images  (ViT cls rows)
TV = BF * VIT_TOKENS                          # 40 ViT tokens total
TB = B * N_SEQ                                # 12 BERT tokens total
PATCH_DIM = IN_CHANS * PATCH * PATCH          # 192
LANES = 128
OUT_ROWS = 16                                 # 8 logit rows + 1 loss row, padded to 16
NEG = -1e9


# ------------------------ in-kernel math helpers ------------------------------
def _layernorm(x, g, b, eps):
    x = x.astype(jnp.float32)
    mu = jnp.mean(x, axis=-1, keepdims=True)
    var = jnp.mean(jnp.square(x - mu), axis=-1, keepdims=True)
    return (x - mu) * jax.lax.rsqrt(var + eps) * g + b


def _erf(x):
    # TODO(synk): lax.erf has no guaranteed Mosaic lowering; exact-erf GELU is
    # approximated with Abramowitz & Stegun 7.1.26 (|err| < 1.5e-7), exp-only.
    a1, a2, a3, a4, a5 = 0.254829592, -0.284496736, 1.421413741, -1.453152027, 1.061405429
    pp = 0.3275911
    s = jnp.where(x >= 0.0, 1.0, -1.0)
    ax = jnp.abs(x)
    t = 1.0 / (1.0 + pp * ax)
    poly = ((((a5 * t + a4) * t + a3) * t + a2) * t + a1) * t
    return s * (1.0 - poly * jnp.exp(-ax * ax))


def _gelu(x):
    return 0.5 * x * (1.0 + _erf(x * 0.7071067811865476))


def _softmax(s):
    s = s - jnp.max(s, axis=-1, keepdims=True)
    e = jnp.exp(s)
    return e * pl.reciprocal(jnp.sum(e, axis=-1, keepdims=True), approx=True)


def _mha(x, wqkv, bqkv, wo, bo, n_heads, bias):
    """x: (T, D); wqkv: (D, 3D) with columns [q|k|v], heads in dh-wide blocks.
    bias: (T, T) additive attention bias (block-diagonal + reference mask)."""
    T, D = x.shape
    dh = D // n_heads
    scale = float(dh) ** -0.5
    qkv = jnp.dot(x, wqkv, preferred_element_type=jnp.float32) + bqkv          # (T, 3D)
    heads = []
    # TODO(synk): per-head score/softmax/PV kept as a 4-wide unrolled loop; QKV and the
    # output projection are merged GEMMs per the review.
    for h in range(n_heads):
        q = qkv[:, h * dh:(h + 1) * dh]
        k = qkv[:, D + h * dh:D + (h + 1) * dh]
        v = qkv[:, 2 * D + h * dh:2 * D + (h + 1) * dh]
        s = jax.lax.dot_general(q, k, (((1,), (1,)), ((), ())),
                                preferred_element_type=jnp.float32) * scale + bias
        heads.append(jnp.dot(_softmax(s), v, preferred_element_type=jnp.float32))
    o = jnp.concatenate(heads, axis=-1)                                         # (T, D)
    return jnp.dot(o, wo, preferred_element_type=jnp.float32) + bo


def _ffn(x, w1, b1, w2, b2):
    h = _gelu(jnp.dot(x, w1, preferred_element_type=jnp.float32) + b1)
    return jnp.dot(h, w2, preferred_element_type=jnp.float32) + b2


# ------------------------------- fused kernel ----------------------------------
def _fused_kernel(meta, patches_ref, ids_ref, bbias_ref, labels_ref, scal_ref, w_ref, out_ref):
    def W(name):
        off, r, c = meta[name]
        return w_ref[off:off + r, 0:c]

    # ---- ViT: all 8 image sequences batched as one (40, 32) activation matrix ----
    # patches rows 0..7 are zero (cls slots); W('vit_pos') carries cls_token+pos0 on
    # those rows and pos+patch_bias on patch rows, so no iota/where is needed.
    x = jnp.dot(patches_ref[...], W('patch_w'), preferred_element_type=jnp.float32) + W('vit_pos')
    vmask = W('vit_mask')                                                       # (40, 40) block-diag
    for i in range(VIT_DEPTH):
        p = f'v{i}_'
        h = _layernorm(x, W(p + 'n1g'), W(p + 'n1b'), VIT_LN_EPS)
        x = x + _mha(h, W(p + 'wqkv'), W(p + 'bqkv'), W(p + 'wo'), W(p + 'bo'), VIT_HEADS, vmask)
        h = _layernorm(x, W(p + 'n2g'), W(p + 'n2b'), VIT_LN_EPS)
        x = x + _ffn(h, W(p + 'fc1w'), W(p + 'fc1b'), W(p + 'fc2w'), W(p + 'fc2b'))
    x = _layernorm(x, W('vit_ng'), W('vit_nb'), VIT_LN_EPS)
    cls = x[0:BF, :]                                                            # (8, 32) pre_logits
    logits_vit = jnp.dot(cls, W('head_w'), preferred_element_type=jnp.float32) + W('head_b')  # (8,128)

    # ---- BERT: both batch rows batched as one (12, 32) activation matrix ----
    onehot_ids = (jax.lax.broadcasted_iota(jnp.int32, (TB, BERT_WORD_VOCAB), 1)
                  == ids_ref[...]).astype(jnp.float32)                          # (12, 30)
    word = jnp.dot(onehot_ids, W('word_emb'), preferred_element_type=jnp.float32)
    t = _layernorm(word + W('bert_pos'), W('emb_lng'), W('emb_lnb'), BERT_LN_EPS)
    img_pad = jnp.dot(W('img_scat'), cls, preferred_element_type=jnp.float32)   # (12, 32) padded img embeds
    ew = scal_ref[0]
    y = ew * t + (1.0 - ew) * img_pad
    bbias = bbias_ref[...]                                                      # (12, 12)
    for i in range(BERT_LAYERS):
        p = f'b{i}_'
        a = _mha(y, W(p + 'wqkv'), W(p + 'bqkv'), W(p + 'wo'), W(p + 'bo'), BERT_HEADS, bbias)
        y = _layernorm(a + y, W(p + 'aog'), W(p + 'aob'), BERT_LN_EPS)
        h = _ffn(y, W(p + 'iw'), W(p + 'ib'), W(p + 'ow'), W(p + 'ob'))
        y = _layernorm(h + y, W(p + 'olng'), W(p + 'olnb'), BERT_LN_EPS)
    logits_text = jnp.dot(y, W('mlm_w'), preferred_element_type=jnp.float32) + W('mlm_b')     # (12, 128)
    lt_mid = jnp.dot(W('mid_gather'), logits_text, preferred_element_type=jnp.float32)        # (8, 128)

    # ---- combine + fused masked-mean cross-entropies ----
    lw = scal_ref[1]
    lmid = lw * logits_vit + (1.0 - lw) * lt_mid                                # (8, 128)

    lbl = labels_ref[...]                                                       # (8, 1) int32
    valid = (lbl != -100).astype(jnp.float32)
    nvalid = jnp.maximum(jnp.sum(valid, axis=0, keepdims=True), 1.0)            # (1, 1)
    onehot_lbl = (jax.lax.broadcasted_iota(jnp.int32, (BF, LANES), 1) == lbl).astype(jnp.float32)
    lane_neg = W('lane_neg')                                                    # (1,128): 0 on vocab lanes, -1e9 beyond

    # TODO(synk): boolean-mask gather (logits[labels != -100]) is dynamic-shape;
    # equivalent masked-mean cross-entropy computed over lane-dense 128-wide logits.
    def masked_ce(l):
        lm = l + lane_neg
        m = jnp.max(lm, axis=-1, keepdims=True)
        lse = jnp.log(jnp.sum(jnp.exp(lm - m), axis=-1, keepdims=True)) + m
        tgt = jnp.sum(l * onehot_lbl, axis=-1, keepdims=True)
        return jnp.sum((lse - tgt) * valid, axis=0, keepdims=True) / nvalid     # (1, 1)

    loss_mm = masked_ce(lmid)
    loss_vit = masked_ce(logits_vit)
    loss_text = masked_ce(lt_mid)

    # lane-dense output slab: rows 0..7 combined middle logits, row 8 the loss scalars.
    out_ref[0:BF, :] = lmid
    ri = jax.lax.broadcasted_iota(jnp.int32, (OUT_ROWS - BF, LANES), 0)
    li = jax.lax.broadcasted_iota(jnp.int32, (OUT_ROWS - BF, LANES), 1)
    out_ref[BF:OUT_ROWS, :] = (jnp.where((ri == 0) & (li == 0), loss_mm, 0.0)
                               + jnp.where((ri == 0) & (li == 1), loss_vit, 0.0)
                               + jnp.where((ri == 0) & (li == 2), loss_text, 0.0))


# --------------------- trace-time parameter slab packing -----------------------
class _SlabPacker:
    """Packs every parameter (matrices and row vectors) into one lane-dense
    (rows, 128) f32 slab; row offsets are 8-aligned so in-kernel static slices
    stay tile-friendly.  Kernel accesses via static (offset, rows, cols) meta."""

    def __init__(self):
        self.parts, self.meta, self.off = [], {}, 0

    def add(self, name, arr):
        a = jnp.asarray(arr, jnp.float32)
        if a.ndim == 1:
            a = a.reshape(1, -1)
        r, c = a.shape
        rp = ((r + 7) // 8) * 8
        self.parts.append(jnp.pad(a, ((0, rp - r), (0, LANES - c))))
        self.meta[name] = (self.off, r, c)
        self.off += rp

    def pack(self):
        return jnp.concatenate(self.parts, axis=0), self.meta


def pack_params(params):
    slab = _SlabPacker()
    vit = params['vit']
    D = EMBED_DIM

    slab.add('patch_w', vit['patch_w'])                                   # (192, 32)
    pos = vit['pos_embed'].reshape(VIT_TOKENS, D)
    cls_rows = jnp.broadcast_to(vit['cls_token'].reshape(1, D) + pos[0:1], (BF, D))
    patch_rows = jnp.tile(pos[1:], (BF, 1)) + vit['patch_b'].reshape(1, D)
    slab.add('vit_pos', jnp.concatenate([cls_rows, patch_rows], axis=0))  # (40, 32)

    img_of = np.concatenate([np.arange(BF), np.repeat(np.arange(BF), NUM_PATCHES)])
    slab.add('vit_mask', np.where(img_of[:, None] == img_of[None, :], 0.0, NEG).astype(np.float32))

    for i, blk in enumerate(vit['blocks']):
        p = f'v{i}_'
        slab.add(p + 'n1g', blk['norm1_g']); slab.add(p + 'n1b', blk['norm1_b'])
        slab.add(p + 'wqkv', blk['qkv_w']);  slab.add(p + 'bqkv', blk['qkv_b'])
        slab.add(p + 'wo', blk['proj_w']);   slab.add(p + 'bo', blk['proj_b'])
        slab.add(p + 'n2g', blk['norm2_g']); slab.add(p + 'n2b', blk['norm2_b'])
        slab.add(p + 'fc1w', blk['fc1_w']);  slab.add(p + 'fc1b', blk['fc1_b'])
        slab.add(p + 'fc2w', blk['fc2_w']);  slab.add(p + 'fc2b', blk['fc2_b'])
    slab.add('vit_ng', vit['norm_g']); slab.add('vit_nb', vit['norm_b'])
    slab.add('head_w', jnp.pad(vit['head_w'], ((0, 0), (0, LANES - NUM_CLASSES))))   # pad -> 128 lanes
    slab.add('head_b', jnp.pad(vit['head_b'], (0, LANES - NUM_CLASSES)))

    emb = params['bert_emb']
    slab.add('word_emb', emb['word_emb'])                                 # (30, 32)
    slab.add('bert_pos', jnp.tile(emb['pos_emb'][:N_SEQ], (B, 1)) + emb['type_emb'][0:1])
    slab.add('emb_lng', emb['ln_g']); slab.add('emb_lnb', emb['ln_b'])

    # constant scatter (cls -> padded img-embed rows) and gather (middle text rows) matrices
    scat = np.zeros((TB, BF), np.float32)
    gath = np.zeros((BF, TB), np.float32)
    for b in range(B):
        for j in range(N_IMG):
            scat[b * N_SEQ + 1 + j, b * N_IMG + j] = 1.0
            gath[b * N_IMG + j, b * N_SEQ + 1 + j] = 1.0
    slab.add('img_scat', scat)
    slab.add('mid_gather', gath)

    for i, lp in enumerate(params['bert_layers']):
        p = f'b{i}_'
        slab.add(p + 'wqkv', jnp.concatenate([lp['q_w'], lp['k_w'], lp['v_w']], axis=1))
        slab.add(p + 'bqkv', jnp.concatenate([lp['q_b'], lp['k_b'], lp['v_b']], axis=0))
        slab.add(p + 'wo', lp['ao_w']);      slab.add(p + 'bo', lp['ao_b'])
        slab.add(p + 'aog', lp['ao_ln_g']);  slab.add(p + 'aob', lp['ao_ln_b'])
        slab.add(p + 'iw', lp['i_w']);       slab.add(p + 'ib', lp['i_b'])
        slab.add(p + 'ow', lp['o_w']);       slab.add(p + 'ob', lp['o_b'])
        slab.add(p + 'olng', lp['o_ln_g']);  slab.add(p + 'olnb', lp['o_ln_b'])
    slab.add('mlm_w', jnp.pad(params['mlm_w'], ((0, 0), (0, LANES - VOCAB_SIZE))))
    slab.add('mlm_b', jnp.pad(params['mlm_b'], (0, LANES - VOCAB_SIZE)))
    slab.add('lane_neg', np.where(np.arange(LANES) < VOCAB_SIZE, 0.0, NEG).astype(np.float32))

    wslab, meta = slab.pack()
    scalars = jnp.stack([jnp.asarray(params['embed_weight'], jnp.float32),
                         jnp.asarray(params['logits_weight'], jnp.float32)])
    return wslab, scalars, meta


# --------------------------- pallas_call wrapper --------------------------------
def _run_fused(meta, patches, ids, bert_bias, labels_mid, scalars, wslab):
    kernel = functools.partial(_fused_kernel, meta)
    return pl.pallas_call(
        kernel,
        grid=(1,),
        in_specs=[
            pl.BlockSpec(patches.shape, lambda i: (0, 0)),
            pl.BlockSpec(ids.shape, lambda i: (0, 0)),
            pl.BlockSpec(bert_bias.shape, lambda i: (0, 0)),
            pl.BlockSpec(labels_mid.shape, lambda i: (0, 0)),
            pl.BlockSpec(memory_space=pltpu.MemorySpace.SMEM),       # (2,) scalars in SMEM
            pl.BlockSpec(wslab.shape, lambda i: (0, 0)),
        ],
        out_specs=pl.BlockSpec((OUT_ROWS, LANES), lambda i: (0, 0)),
        out_shape=jax.ShapeDtypeStruct((OUT_ROWS, LANES), jnp.float32),
        compiler_params=pltpu.CompilerParams(dimension_semantics=("arbitrary",)),
    )(patches, ids, bert_bias, labels_mid, scalars, wslab)


# ------------------------------- forward ---------------------------------------
def vit_bert_forward(meta, wslab, scalars, images, input_ids, attention_mask, labels):
    b, n_img, c, hh, ww = images.shape
    gh, gw = hh // PATCH, ww // PATCH

    # XLA glue: stride==kernel conv unrolled into patch rows; rows 0..BF-1 left zero (cls slots).
    pt = images.reshape(b * n_img, c, gh, PATCH, gw, PATCH)
    pt = pt.transpose(0, 2, 4, 1, 3, 5).reshape(b * n_img * gh * gw, c * PATCH * PATCH)
    patches = jnp.pad(pt, ((BF, 0), (0, 0)))                               # (40, 192)

    ids = input_ids.reshape(TB, 1).astype(jnp.int32)
    labels_mid = labels[:, 1:-1].reshape(BF, 1).astype(jnp.int32)

    # Additive attention bias: raw 0/1 mask within a batch row (faithful to the reference,
    # which adds the raw mask) and -1e9 across batch rows (independent sequences fused
    # into one (12, 12) score matrix).
    batch_of = np.repeat(np.arange(B), N_SEQ)
    same = batch_of[:, None] == batch_of[None, :]
    key_bias = attention_mask.astype(jnp.float32).reshape(1, TB)
    bert_bias = jnp.where(same, key_bias, NEG)

    out = _run_fused(meta, patches, ids, bert_bias, labels_mid, scalars, wslab)

    lmid = out[:BF, :VOCAB_SIZE].reshape(b, N_IMG, VOCAB_SIZE)
    logits = jnp.pad(lmid, ((0, 0), (1, 1), (0, 0)))
    loss_mm, loss_vit, loss_text = out[BF, 0], out[BF, 1], out[BF, 2]
    return {'loss': loss_mm, 'loss_multimodal': loss_mm,
            'loss_vit': loss_vit, 'loss_text': loss_text, 'logits': logits}


# ----------------------------- parameter init ----------------------------------
def init_params(key):
    keys = iter(jax.random.split(key, 256))

    def nrm(shape, scale=0.02):
        return scale * jax.random.normal(next(keys), shape, jnp.float32)

    def vit_block_params():
        return dict(
            norm1_g=jnp.ones((EMBED_DIM,), jnp.float32), norm1_b=jnp.zeros((EMBED_DIM,), jnp.float32),
            qkv_w=nrm((EMBED_DIM, 3 * EMBED_DIM)), qkv_b=jnp.zeros((3 * EMBED_DIM,), jnp.float32),
            proj_w=nrm((EMBED_DIM, EMBED_DIM)), proj_b=jnp.zeros((EMBED_DIM,), jnp.float32),
            norm2_g=jnp.ones((EMBED_DIM,), jnp.float32), norm2_b=jnp.zeros((EMBED_DIM,), jnp.float32),
            fc1_w=nrm((EMBED_DIM, MLP_HIDDEN)), fc1_b=jnp.zeros((MLP_HIDDEN,), jnp.float32),
            fc2_w=nrm((MLP_HIDDEN, EMBED_DIM)), fc2_b=jnp.zeros((EMBED_DIM,), jnp.float32),
        )

    vit = dict(
        patch_w=nrm((IN_CHANS * PATCH * PATCH, EMBED_DIM)),
        patch_b=jnp.zeros((EMBED_DIM,), jnp.float32),
        cls_token=nrm((1, 1, EMBED_DIM)),
        pos_embed=nrm((1, VIT_TOKENS, EMBED_DIM)),
        blocks=[vit_block_params() for _ in range(VIT_DEPTH)],
        norm_g=jnp.ones((EMBED_DIM,), jnp.float32), norm_b=jnp.zeros((EMBED_DIM,), jnp.float32),
        head_w=nrm((EMBED_DIM, NUM_CLASSES)), head_b=jnp.zeros((NUM_CLASSES,), jnp.float32),
    )

    bert_emb = dict(
        word_emb=nrm((BERT_WORD_VOCAB, EMBED_DIM)),
        pos_emb=nrm((BERT_MAX_POS, EMBED_DIM)),
        type_emb=nrm((2, EMBED_DIM)),
        ln_g=jnp.ones((EMBED_DIM,), jnp.float32), ln_b=jnp.zeros((EMBED_DIM,), jnp.float32),
    )

    def bert_layer_params():
        return dict(
            q_w=nrm((EMBED_DIM, EMBED_DIM)), q_b=jnp.zeros((EMBED_DIM,), jnp.float32),
            k_w=nrm((EMBED_DIM, EMBED_DIM)), k_b=jnp.zeros((EMBED_DIM,), jnp.float32),
            v_w=nrm((EMBED_DIM, EMBED_DIM)), v_b=jnp.zeros((EMBED_DIM,), jnp.float32),
            ao_w=nrm((EMBED_DIM, EMBED_DIM)), ao_b=jnp.zeros((EMBED_DIM,), jnp.float32),
            ao_ln_g=jnp.ones((EMBED_DIM,), jnp.float32), ao_ln_b=jnp.zeros((EMBED_DIM,), jnp.float32),
            i_w=nrm((EMBED_DIM, BERT_INTERMEDIATE)), i_b=jnp.zeros((BERT_INTERMEDIATE,), jnp.float32),
            o_w=nrm((BERT_INTERMEDIATE, EMBED_DIM)), o_b=jnp.zeros((EMBED_DIM,), jnp.float32),
            o_ln_g=jnp.ones((EMBED_DIM,), jnp.float32), o_ln_b=jnp.zeros((EMBED_DIM,), jnp.float32),
        )

    return dict(
        vit=vit,
        bert_emb=bert_emb,
        bert_layers=[bert_layer_params() for _ in range(BERT_LAYERS)],
        mlm_w=nrm((EMBED_DIM, VOCAB_SIZE)), mlm_b=jnp.zeros((VOCAB_SIZE,), jnp.float32),
        embed_weight=jnp.float32(0.5),
        logits_weight=jnp.float32(0.5),
    )


# ----------------------------------- main ---------------------------------------
if __name__ == "__main__":
    key = jax.random.PRNGKey(0)
    kp, ki, kt, kl = jax.random.split(key, 4)

    params = init_params(kp)

    images = jax.random.normal(ki, (B, N_IMG, IN_CHANS, IMG_SIZE, IMG_SIZE), jnp.float32)
    input_ids = jax.random.randint(kt, (B, N_SEQ), 0, BERT_WORD_VOCAB, dtype=jnp.int32)
    attention_mask = jnp.ones((B, N_SEQ), jnp.int32).at[1, -1].set(0)
    labels = jax.random.randint(kl, (B, N_SEQ), 0, NUM_CLASSES, dtype=jnp.int32)
    labels = labels.at[0, 2].set(-100)   # some ignored positions, like MLM labels

    # One-time weight packing into a single lane-dense VMEM slab (outside the hot path).
    wslab, scalars, meta = pack_params(params)
    fwd = jax.jit(functools.partial(vit_bert_forward, meta))
    out = fwd(wslab, scalars, images, input_ids, attention_mask, labels)
    jax.block_until_ready(out)

    assert out['logits'].shape == (B, N_SEQ, VOCAB_SIZE)
    assert np.isfinite(float(out['loss']))
    print("KERNEL_OK")
</pallas_src>

<mosaic_0001>
module attributes {stable_mosaic.version = 11 : i64} {
  func.func @_fused_kernel(%arg0: i32, %arg1: memref<40x192xf32, #tpu.memory_space<vmem>>, %arg2: memref<12x1xi32, #tpu.memory_space<vmem>>, %arg3: memref<12x12xf32, #tpu.memory_space<vmem>>, %arg4: memref<8x1xi32, #tpu.memory_space<vmem>>, %arg5: memref<2xf32, #tpu.memory_space<smem>>, %arg6: memref<1488x128xf32, #tpu.memory_space<vmem>>, %arg7: memref<16x128xf32, #tpu.memory_space<vmem>>) attributes {dimension_semantics = [#tpu.dimension_semantics<arbitrary>], iteration_bounds = array<i64: 1>, scalar_prefetch = 0 : i64, scratch_operands = 0 : i64, tpu.core_type = #tpu.core_type<tc>, window_params = [{pipeline_mode = #tpu.pipeline_mode<synchronous>, transform_indices = @transform_0, window_bounds = array<i64: 40, 192>}, {pipeline_mode = #tpu.pipeline_mode<synchronous>, transform_indices = @transform_1, window_bounds = array<i64: 12, 1>}, {pipeline_mode = #tpu.pipeline_mode<synchronous>, transform_indices = @transform_2, window_bounds = array<i64: 12, 12>}, {pipeline_mode = #tpu.pipeline_mode<synchronous>, transform_indices = @transform_3, window_bounds = array<i64: 8, 1>}, {transform_indices = @transform_4, window_bounds = array<i64: 2>}, {pipeline_mode = #tpu.pipeline_mode<synchronous>, transform_indices = @transform_5, window_bounds = array<i64: 1488, 128>}, {pipeline_mode = #tpu.pipeline_mode<synchronous>, transform_indices = @transform_6, window_bounds = array<i64: 16, 128>}]} {
    %c0 = arith.constant 0 : index
    %c0_0 = arith.constant 0 : index
    %0 = vector.load %arg1[%c0, %c0_0] : memref<40x192xf32, #tpu.memory_space<vmem>>, vector<40x192xf32>
    %c0_1 = arith.constant 0 : index
    %c0_2 = arith.constant 0 : index
    %1 = vector.load %arg6[%c0_1, %c0_2] : memref<1488x128xf32, #tpu.memory_space<vmem>>, vector<192x32xf32>
    %cst = arith.constant dense<0.000000e+00> : vector<40x32xf32>
    %2 = tpu.matmul %0, %1, %cst {dimension_numbers = #tpu.dot_dimension_numbers<[1], [0], [0], [1], [0, 0, 1, 1], [], []>} : vector<40x192xf32>, vector<192x32xf32>, vector<40x32xf32> -> vector<40x32xf32>
    %c192 = arith.constant 192 : index
    %c0_3 = arith.constant 0 : index
    %3 = vector.load %arg6[%c192, %c0_3] : memref<1488x128xf32, #tpu.memory_space<vmem>>, vector<40x32xf32>
    %4 = arith.addf %2, %3 : vector<40x32xf32>
    %c232 = arith.constant 232 : index
    %c0_4 = arith.constant 0 : index
    %5 = vector.load %arg6[%c232, %c0_4] : memref<1488x128xf32, #tpu.memory_space<vmem>>, vector<40x40xf32>
    %c272 = arith.constant 272 : index
    %c0_5 = arith.constant 0 : index
    %6 = vector.load %arg6[%c272, %c0_5] : memref<1488x128xf32, #tpu.memory_space<vmem>>, vector<1x32xf32>
    %c280 = arith.constant 280 : index
    %c0_6 = arith.constant 0 : index
    %7 = vector.load %arg6[%c280, %c0_6] : memref<1488x128xf32, #tpu.memory_space<vmem>>, vector<1x32xf32>
    %cst_7 = arith.constant dense<0.000000e+00> : vector<40xf32>
    %8 = vector.multi_reduction <add>, %4, %cst_7 [1] : vector<40x32xf32> to vector<40xf32>
    %9 = vector.shape_cast %8 : vector<40xf32> to vector<40x1xf32>
    %cst_8 = arith.constant 3.200000e+01 : f32
    %10 = vector.broadcast %cst_8 : f32 to vector<40x1xf32>
    %11 = arith.divf %9, %10 : vector<40x1xf32>
    %12 = vector.broadcast %11 : vector<40x1xf32> to vector<40x32xf32>
    %13 = arith.subf %4, %12 : vector<40x32xf32>
    %14 = arith.mulf %13, %13 : vector<40x32xf32>
    %cst_9 = arith.constant dense<0.000000e+00> : vector<40xf32>
    %15 = vector.multi_reduction <add>, %14, %cst_9 [1] : vector<40x32xf32> to vector<40xf32>
    %16 = vector.shape_cast %15 : vector<40xf32> to vector<40x1xf32>
    %cst_10 = arith.constant 3.200000e+01 : f32
    %17 = vector.broadcast %cst_10 : f32 to vector<40x1xf32>
    %18 = arith.divf %16, %17 : vector<40x1xf32>
    %19 = vector.broadcast %11 : vector<40x1xf32> to vector<40x32xf32>
    %20 = arith.subf %4, %19 : vector<40x32xf32>
    %cst_11 = arith.constant 9.99999997E-7 : f32
    %21 = vector.broadcast %cst_11 : f32 to vector<40x1xf32>
    %22 = arith.addf %18, %21 : vector<40x1xf32>
    %23 = math.rsqrt %22 : vector<40x1xf32>
    %24 = vector.broadcast %23 : vector<40x1xf32> to vector<40x32xf32>
    %25 = arith.mulf %20, %24 : vector<40x32xf32>
    %26 = vector.broadcast %6 : vector<1x32xf32> to vector<40x32xf32>
    %27 = arith.mulf %25, %26 : vector<40x32xf32>
    %28 = vector.broadcast %7 : vector<1x32xf32> to vector<40x32xf32>
    %29 = arith.addf %27, %28 : vector<40x32xf32>
    %c288 = arith.constant 288 : index
    %c0_12 = arith.constant 0 : index
    %30 = vector.load %arg6[%c288, %c0_12] : memref<1488x128xf32, #tpu.memory_space<vmem>>, vector<32x96xf32>
    %c320 = arith.constant 320 : index
    %c0_13 = arith.constant 0 : index
    %31 = vector.load %arg6[%c320, %c0_13] : memref<1488x128xf32, #tpu.memory_space<vmem>>, vector<1x96xf32>
    %c328 = arith.constant 328 : index
    %c0_14 = arith.constant 0 : index
    %32 = vector.load %arg6[%c328, %c0_14] : memref<1488x128xf32, #tpu.memory_space<vmem>>, vector<32x32xf32>
    %c360 = arith.constant 360 : index
    %c0_15 = arith.constant 0 : index
    %33 = vector.load %arg6[%c360, %c0_15] : memref<1488x128xf32, #tpu.memory_space<vmem>>, vector<1x32xf32>
    %cst_16 = arith.constant dense<0.000000e+00> : vector<40x96xf32>
    %34 = tpu.matmul %29, %30, %cst_16 {dimension_numbers = #tpu.dot_dimension_numbers<[1], [0], [0], [1], [0, 0, 1, 1], [], []>} : vector<40x32xf32>, vector<32x96xf32>, vector<40x96xf32> -> vector<40x96xf32>
    %35 = vector.broadcast %31 : vector<1x96xf32> to vector<40x96xf32>
    %36 = arith.addf %34, %35 : vector<40x96xf32>
    %37 = vector.extract_strided_slice %36 {offsets = [0, 0], sizes = [40, 8], strides = [1, 1]} : vector<40x96xf32> to vector<40x8xf32>
    %38 = vector.extract_strided_slice %36 {offsets = [0, 32], sizes = [40, 8], strides = [1, 1]} : vector<40x96xf32> to vector<40x8xf32>
    %39 = vector.extract_strided_slice %36 {offsets = [0, 64], sizes = [40, 8], strides = [1, 1]} : vector<40x96xf32> to vector<40x8xf32>
    %cst_17 = arith.constant dense<0.000000e+00> : vector<40x40xf32>
    %40 = tpu.matmul %37, %38, %cst_17 {dimension_numbers = #tpu.dot_dimension_numbers<[1], [1], [0], [0], [0, 0, 1, 0], [], []>} : vector<40x8xf32>, vector<40x8xf32>, vector<40x40xf32> -> vector<40x40xf32>
    %cst_18 = arith.constant 0.353553385 : f32
    %41 = vector.broadcast %cst_18 : f32 to vector<40x40xf32>
    %42 = arith.mulf %40, %41 : vector<40x40xf32>
    %43 = arith.addf %42, %5 : vector<40x40xf32>
    %cst_19 = arith.constant dense<0xFF800000> : vector<40xf32>
    %44 = vector.multi_reduction <maximumf>, %43, %cst_19 [1] : vector<40x40xf32> to vector<40xf32>
    %45 = vector.shape_cast %44 : vector<40xf32> to vector<40x1xf32>
    %46 = vector.broadcast %45 : vector<40x1xf32> to vector<40x40xf32>
    %47 = arith.subf %43, %46 : vector<40x40xf32>
    %48 = math.exp %47 : vector<40x40xf32>
    %cst_20 = arith.constant dense<0.000000e+00> : vector<40xf32>
    %49 = vector.multi_reduction <add>, %48, %cst_20 [1] : vector<40x40xf32> to vector<40xf32>
    %50 = vector.shape_cast %49 : vector<40xf32> to vector<40x1xf32>
    %51 = tpu.reciprocal %50 {approx = true} : vector<40x1xf32> -> vector<40x1xf32>
    %52 = vector.broadcast %51 : vector<40x1xf32> to vector<40x40xf32>
    %53 = arith.mulf %48, %52 : vector<40x40xf32>
    %cst_21 = arith.constant dense<0.000000e+00> : vector<40x8xf32>
    %54 = tpu.matmul %53, %39, %cst_21 {dimension_numbers = #tpu.dot_dimension_numbers<[1], [0], [0], [1], [0, 0, 1, 1], [], []>} : vector<40x40xf32>, vector<40x8xf32>, vector<40x8xf32> -> vector<40x8xf32>
    %55 = vector.extract_strided_slice %36 {offsets = [0, 8], sizes = [40, 8], strides = [1, 1]} : vector<40x96xf32> to vector<40x8xf32>
    %56 = vector.extract_strided_slice %36 {offsets = [0, 40], sizes = [40, 8], strides = [1, 1]} : vector<40x96xf32> to vector<40x8xf32>
    %57 = vector.extract_strided_slice %36 {offsets = [0, 72], sizes = [40, 8], strides = [1, 1]} : vector<40x96xf32> to vector<40x8xf32>
    %cst_22 = arith.constant dense<0.000000e+00> : vector<40x40xf32>
    %58 = tpu.matmul %55, %56, %cst_22 {dimension_numbers = #tpu.dot_dimension_numbers<[1], [1], [0], [0], [0, 0, 1, 0], [], []>} : vector<40x8xf32>, vector<40x8xf32>, vector<40x40xf32> -> vector<40x40xf32>
    %cst_23 = arith.constant 0.353553385 : f32
    %59 = vector.broadcast %cst_23 : f32 to vector<40x40xf32>
    %60 = arith.mulf %58, %59 : vector<40x40xf32>
    %61 = arith.addf %60, %5 : vector<40x40xf32>
    %cst_24 = arith.constant dense<0xFF800000> : vector<40xf32>
    %62 = vector.multi_reduction <maximumf>, %61, %cst_24 [1] : vector<40x40xf32> to vector<40xf32>
    %63 = vector.shape_cast %62 : vector<40xf32> to vector<40x1xf32>
    %64 = vector.broadcast %63 : vector<40x1xf32> to vector<40x40xf32>
    %65 = arith.subf %61, %64 : vector<40x40xf32>
    %66 = math.exp %65 : vector<40x40xf32>
    %cst_25 = arith.constant dense<0.000000e+00> : vector<40xf32>
    %67 = vector.multi_reduction <add>, %66, %cst_25 [1] : vector<40x40xf32> to vector<40xf32>
    %68 = vector.shape_cast %67 : vector<40xf32> to vector<40x1xf32>
    %69 = tpu.reciprocal %68 {approx = true} : vector<40x1xf32> -> vector<40x1xf32>
    %70 = vector.broadcast %69 : vector<40x1xf32> to vector<40x40xf32>
    %71 = arith.mulf %66, %70 : vector<40x40xf32>
    %cst_26 = arith.constant dense<0.000000e+00> : vector<40x8xf32>
    %72 = tpu.matmul %71, %57, %cst_26 {dimension_numbers = #tpu.dot_dimension_numbers<[1], [0], [0], [1], [0, 0, 1, 1], [], []>} : vector<40x40xf32>, vector<40x8xf32>, vector<40x8xf32> -> vector<40x8xf32>
    %73 = vector.extract_strided_slice %36 {offsets = [0, 16], sizes = [40, 8], strides = [1, 1]} : vector<40x96xf32> to vector<40x8xf32>
    %74 = vector.extract_strided_slice %36 {offsets = [0, 48], sizes = [40, 8], strides = [1, 1]} : vector<40x96xf32> to vector<40x8xf32>
    %75 = vector.extract_strided_slice %36 {offsets = [0, 80], sizes = [40, 8], strides = [1, 1]} : vector<40x96xf32> to vector<40x8xf32>
    %cst_27 = arith.constant dense<0.000000e+00> : vector<40x40xf32>
    %76 = tpu.matmul %73, %74, %cst_27 {dimension_numbers = #tpu.dot_dimension_numbers<[1], [1], [0], [0], [0, 0, 1, 0], [], []>} : vector<40x8xf32>, vector<40x8xf32>, vector<40x40xf32> -> vector<40x40xf32>
    %cst_28 = arith.constant 0.353553385 : f32
    %77 = vector.broadcast %cst_28 : f32 to vector<40x40xf32>
    %78 = arith.mulf %76, %77 : vector<40x40xf32>
    %79 = arith.addf %78, %5 : vector<40x40xf32>
    %cst_29 = arith.constant dense<0xFF800000> : vector<40xf32>
    %80 = vector.multi_reduction <maximumf>, %79, %cst_29 [1] : vector<40x40xf32> to vector<40xf32>
    %81 = vector.shape_cast %80 : vector<40xf32> to vector<40x1xf32>
    %82 = vector.broadcast %81 : vector<40x1xf32> to vector<40x40xf32>
    %83 = arith.subf %79, %82 : vector<40x40xf32>
    %84 = math.exp %83 : vector<40x40xf32>
    %cst_30 = arith.constant dense<0.000000e+00> : vector<40xf32>
    %85 = vector.multi_reduction <add>, %84, %cst_30 [1] : vector<40x40xf32> to vector<40xf32>
    %86 = vector.shape_cast %85 : vector<40xf32> to vector<40x1xf32>
    %87 = tpu.reciprocal %86 {approx = true} : vector<40x1xf32> -> vector<40x1xf32>
    %88 = vector.broadcast %87 : vector<40x1xf32> to vector<40x40xf32>
    %89 = arith.mulf %84, %88 : vector<40x40xf32>
    %cst_31 = arith.constant dense<0.000000e+00> : vector<40x8xf32>
    %90 = tpu.matmul %89, %75, %cst_31 {dimension_numbers = #tpu.dot_dimension_numbers<[1], [0], [0], [1], [0, 0, 1, 1], [], []>} : vector<40x40xf32>, vector<40x8xf32>, vector<40x8xf32> -> vector<40x8xf32>
    %91 = vector.extract_strided_slice %36 {offsets = [0, 24], sizes = [40, 8], strides = [1, 1]} : vector<40x96xf32> to vector<40x8xf32>
    %92 = vector.extract_strided_slice %36 {offsets = [0, 56], sizes = [40, 8], strides = [1, 1]} : vector<40x96xf32> to vector<40x8xf32>
    %93 = vector.extract_strided_slice %36 {offsets = [0, 88], sizes = [40, 8], strides = [1, 1]} : vector<40x96xf32> to vector<40x8xf32>
    %cst_32 = arith.constant dense<0.000000e+00> : vector<40x40xf32>
    %94 = tpu.matmul %91, %92, %cst_32 {dimension_numbers = #tpu.dot_dimension_numbers<[1], [1], [0], [0], [0, 0, 1, 0], [], []>} : vector<40x8xf32>, vector<40x8xf32>, vector<40x40xf32> -> vector<40x40xf32>
    %cst_33 = arith.constant 0.353553385 : f32
    %95 = vector.broadcast %cst_33 : f32 to vector<40x40xf32>
    %96 = arith.mulf %94, %95 : vector<40x40xf32>
    %97 = arith.addf %96, %5 : vector<40x40xf32>
    %cst_34 = arith.constant dense<0xFF800000> : vector<40xf32>
    %98 = vector.multi_reduction <maximumf>, %97, %cst_34 [1] : vector<40x40xf32> to vector<40xf32>
    %99 = vector.shape_cast %98 : vector<40xf32> to vector<40x1xf32>
    %100 = vector.broadcast %99 : vector<40x1xf32> to vector<40x40xf32>
    %101 = arith.subf %97, %100 : vector<40x40xf32>
    %102 = math.exp %101 : vector<40x40xf32>
    %cst_35 = arith.constant dense<0.000000e+00> : vector<40xf32>
    %103 = vector.multi_reduction <add>, %102, %cst_35 [1] : vector<40x40xf32> to vector<40xf32>
    %104 = vector.shape_cast %103 : vector<40xf32> to vector<40x1xf32>
    %105 = tpu.reciprocal %104 {approx = true} : vector<40x1xf32> -> vector<40x1xf32>
    %106 = vector.broadcast %105 : vector<40x1xf32> to vector<40x40xf32>
    %107 = arith.mulf %102, %106 : vector<40x40xf32>
    %cst_36 = arith.constant dense<0.000000e+00> : vector<40x8xf32>
    %108 = tpu.matmul %107, %93, %cst_36 {dimension_numbers = #tpu.dot_dimension_numbers<[1], [0], [0], [1], [0, 0, 1, 1], [], []>} : vector<40x40xf32>, vector<40x8xf32>, vector<40x8xf32> -> vector<40x8xf32>
    %109 = tpu.concatenate %54, %72, %90, %108 in 1 : vector<40x8xf32>, vector<40x8xf32>, vector<40x8xf32>, vector<40x8xf32> -> vector<40x32xf32>
    %cst_37 = arith.constant dense<0.000000e+00> : vector<40x32xf32>
    %110 = tpu.matmul %109, %32, %cst_37 {dimension_numbers = #tpu.dot_dimension_numbers<[1], [0], [0], [1], [0, 0, 1, 1], [], []>} : vector<40x32xf32>, vector<32x32xf32>, vector<40x32xf32> -> vector<40x32xf32>
    %111 = vector.broadcast %33 : vector<1x32xf32> to vector<40x32xf32>
    %112 = arith.addf %110, %111 : vector<40x32xf32>
    %113 = arith.addf %4, %112 : vector<40x32xf32>
    %c368 = arith.constant 368 : index
    %c0_38 = arith.constant 0 : index
    %114 = vector.load %arg6[%c368, %c0_38] : memref<1488x128xf32, #tpu.memory_space<vmem>>, vector<1x32xf32>
    %c376 = arith.constant 376 : index
    %c0_39 = arith.constant 0 : index
    %115 = vector.load %arg6[%c376, %c0_39] : memref<1488x128xf32, #tpu.memory_space<vmem>>, vector<1x32xf32>
    %cst_40 = arith.constant dense<0.000000e+00> : vector<40xf32>
    %116 = vector.multi_reduction <add>, %113, %cst_40 [1] : vector<40x32xf32> to vector<40xf32>
    %117 = vector.shape_cast %116 : vector<40xf32> to vector<40x1xf32>
    %cst_41 = arith.constant 3.200000e+01 : f32
    %118 = vector.broadcast %cst_41 : f32 to vector<40x1xf32>
    %119 = arith.divf %117, %118 : vector<40x1xf32>
    %120 = vector.broadcast %119 : vector<40x1xf32> to vector<40x32xf32>
    %121 = arith.subf %113, %120 : vector<40x32xf32>
    %122 = arith.mulf %121, %121 : vector<40x32xf32>
    %cst_42 = arith.constant dense<0.000000e+00> : vector<40xf32>
    %123 = vector.multi_reduction <add>, %122, %cst_42 [1] : vector<40x32xf32> to vector<40xf32>
    %124 = vector.shape_cast %123 : vector<40xf32> to vector<40x1xf32>
    %cst_43 = arith.constant 3.200000e+01 : f32
    %125 = vector.broadcast %cst_43 : f32 to vector<40x1xf32>
    %126 = arith.divf %124, %125 : vector<40x1xf32>
    %127 = vector.broadcast %119 : vector<40x1xf32> to vector<40x32xf32>
    %128 = arith.subf %113, %127 : vector<40x32xf32>
    %cst_44 = arith.constant 9.99999997E-7 : f32
    %129 = vector.broadcast %cst_44 : f32 to vector<40x1xf32>
    %130 = arith.addf %126, %129 : vector<40x1xf32>
    %131 = math.rsqrt %130 : vector<40x1xf32>
    %132 = vector.broadcast %131 : vector<40x1xf32> to vector<40x32xf32>
    %133 = arith.mulf %128, %132 : vector<40x32xf32>
    %134 = vector.broadcast %114 : vector<1x32xf32> to vector<40x32xf32>
    %135 = arith.mulf %133, %134 : vector<40x32xf32>
    %136 = vector.broadcast %115 : vector<1x32xf32> to vector<40x32xf32>
    %137 = arith.addf %135, %136 : vector<40x32xf32>
    %c384 = arith.constant 384 : index
    %c0_45 = arith.constant 0 : index
    %138 = vector.load %arg6[%c384, %c0_45] : memref<1488x128xf32, #tpu.memory_space<vmem>>, vector<32x128xf32>
    %c416 = arith.constant 416 : index
    %c0_46 = arith.constant 0 : index
    %139 = vector.load %arg6[%c416, %c0_46] : memref<1488x128xf32, #tpu.memory_space<vmem>>, vector<1x128xf32>
    %c424 = arith.constant 424 : index
    %c0_47 = arith.constant 0 : index
    %140 = vector.load %arg6[%c424, %c0_47] : memref<1488x128xf32, #tpu.memory_space<vmem>>, vector<128x32xf32>
    %c552 = arith.constant 552 : index
    %c0_48 = arith.constant 0 : index
    %141 = vector.load %arg6[%c552, %c0_48] : memref<1488x128xf32, #tpu.memory_space<vmem>>, vector<1x32xf32>
    %cst_49 = arith.constant dense<0.000000e+00> : vector<40x128xf32>
    %142 = tpu.matmul %137, %138, %cst_49 {dimension_numbers = #tpu.dot_dimension_numbers<[1], [0], [0], [1], [0, 0, 1, 1], [], []>} : vector<40x32xf32>, vector<32x128xf32>, vector<40x128xf32> -> vector<40x128xf32>
    %143 = vector.broadcast %139 : vector<1x128xf32> to vector<40x128xf32>
    %144 = arith.addf %142, %143 : vector<40x128xf32>
    %cst_50 = arith.constant 5.000000e-01 : f32
    %145 = vector.broadcast %cst_50 : f32 to vector<40x128xf32>
    %146 = arith.mulf %145, %144 : vector<40x128xf32>
    %cst_51 = arith.constant 0.707106769 : f32
    %147 = vector.broadcast %cst_51 : f32 to vector<40x128xf32>
    %148 = arith.mulf %144, %147 : vector<40x128xf32>
    %cst_52 = arith.constant 0.000000e+00 : f32
    %149 = vector.broadcast %cst_52 : f32 to vector<40x128xf32>
    %150 = arith.cmpf oge, %148, %149 : vector<40x128xf32>
    %cst_53 = arith.constant 1.000000e+00 : f32
    %cst_54 = arith.constant -1.000000e+00 : f32
    %151 = vector.broadcast %cst_53 : f32 to vector<40x128xf32>
    %152 = vector.broadcast %cst_54 : f32 to vector<40x128xf32>
    %153 = arith.select %150, %151, %152 : vector<40x128xi1>, vector<40x128xf32>
    %154 = math.absf %148 : vector<40x128xf32>
    %cst_55 = arith.constant 0.327591091 : f32
    %155 = vector.broadcast %cst_55 : f32 to vector<40x128xf32>
    %156 = arith.mulf %155, %154 : vector<40x128xf32>
    %cst_56 = arith.constant 1.000000e+00 : f32
    %157 = vector.broadcast %cst_56 : f32 to vector<40x128xf32>
    %158 = arith.addf %157, %156 : vector<40x128xf32>
    %cst_57 = arith.constant 1.000000e+00 : f32
    %159 = vector.broadcast %cst_57 : f32 to vector<40x128xf32>
    %160 = arith.divf %159, %158 : vector<40x128xf32>
    %cst_58 = arith.constant 1.06140542 : f32
    %161 = vector.broadcast %cst_58 : f32 to vector<40x128xf32>
    %162 = arith.mulf %161, %160 : vector<40x128xf32>
    %cst_59 = arith.constant -1.45315206 : f32
    %163 = vector.broadcast %cst_59 : f32 to vector<40x128xf32>
    %164 = arith.addf %162, %163 : vector<40x128xf32>
    %165 = arith.mulf %164, %160 : vector<40x128xf32>
    %cst_60 = arith.constant 1.42141378 : f32
    %166 = vector.broadcast %cst_60 : f32 to vector<40x128xf32>
    %167 = arith.addf %165, %166 : vector<40x128xf32>
    %168 = arith.mulf %167, %160 : vector<40x128xf32>
    %cst_61 = arith.constant -0.284496725 : f32
    %169 = vector.broadcast %cst_61 : f32 to vector<40x128xf32>
    %170 = arith.addf %168, %169 : vector<40x128xf32>
    %171 = arith.mulf %170, %160 : vector<40x128xf32>
    %cst_62 = arith.constant 0.254829586 : f32
    %172 = vector.broadcast %cst_62 : f32 to vector<40x128xf32>
    %173 = arith.addf %171, %172 : vector<40x128xf32>
    %174 = arith.mulf %173, %160 : vector<40x128xf32>
    %cst_63 = arith.constant 0.000000e+00 : f32
    %175 = vector.broadcast %cst_63 : f32 to vector<40x128xf32>
    %176 = arith.subf %175, %154 : vector<40x128xf32>
    %177 = arith.mulf %176, %154 : vector<40x128xf32>
    %178 = math.exp %177 : vector<40x128xf32>
    %179 = arith.mulf %174, %178 : vector<40x128xf32>
    %cst_64 = arith.constant 1.000000e+00 : f32
    %180 = vector.broadcast %cst_64 : f32 to vector<40x128xf32>
    %181 = arith.subf %180, %179 : vector<40x128xf32>
    %182 = arith.mulf %153, %181 : vector<40x128xf32>
    %cst_65 = arith.constant 1.000000e+00 : f32
    %183 = vector.broadcast %cst_65 : f32 to vector<40x128xf32>
    %184 = arith.addf %183, %182 : vector<40x128xf32>
    %185 = arith.mulf %146, %184 : vector<40x128xf32>
    %cst_66 = arith.constant dense<0.000000e+00> : vector<40x32xf32>
    %186 = tpu.matmul %185, %140, %cst_66 {dimension_numbers = #tpu.dot_dimension_numbers<[1], [0], [0], [1], [0, 0, 1, 1], [], []>} : vector<40x128xf32>, vector<128x32xf32>, vector<40x32xf32> -> vector<40x32xf32>
    %187 = vector.broadcast %141 : vector<1x32xf32> to vector<40x32xf32>
    %188 = arith.addf %186, %187 : vector<40x32xf32>
    %189 = arith.addf %113, %188 : vector<40x32xf32>
    %c560 = arith.constant 560 : index
    %c0_67 = arith.constant 0 : index
    %190 = vector.load %arg6[%c560, %c0_67] : memref<1488x128xf32, #tpu.memory_space<vmem>>, vector<1x32xf32>
    %c568 = arith.constant 568 : index
    %c0_68 = arith.constant 0 : index
    %191 = vector.load %arg6[%c568, %c0_68] : memref<1488x128xf32, #tpu.memory_space<vmem>>, vector<1x32xf32>
    %cst_69 = arith.constant dense<0.000000e+00> : vector<40xf32>
    %192 = vector.multi_reduction <add>, %189, %cst_69 [1] : vector<40x32xf32> to vector<40xf32>
    %193 = vector.shape_cast %192 : vector<40xf32> to vector<40x1xf32>
    %cst_70 = arith.constant 3.200000e+01 : f32
    %194 = vector.broadcast %cst_70 : f32 to vector<40x1xf32>
    %195 = arith.divf %193, %194 : vector<40x1xf32>
    %196 = vector.broadcast %195 : vector<40x1xf32> to vector<40x32xf32>
    %197 = arith.subf %189, %196 : vector<40x32xf32>
    %198 = arith.mulf %197, %197 : vector<40x32xf32>
    %cst_71 = arith.constant dense<0.000000e+00> : vector<40xf32>
    %199 = vector.multi_reduction <add>, %198, %cst_71 [1] : vector<40x32xf32> to vector<40xf32>
    %200 = vector.shape_cast %199 : vector<40xf32> to vector<40x1xf32>
    %cst_72 = arith.constant 3.200000e+01 : f32
    %201 = vector.broadcast %cst_72 : f32 to vector<40x1xf32>
    %202 = arith.divf %200, %201 : vector<40x1xf32>
    %203 = vector.broadcast %195 : vector<40x1xf32> to vector<40x32xf32>
    %204 = arith.subf %189, %203 : vector<40x32xf32>
    %cst_73 = arith.constant 9.99999997E-7 : f32
    %205 = vector.broadcast %cst_73 : f32 to vector<40x1xf32>
    %206 = arith.addf %202, %205 : vector<40x1xf32>
    %207 = math.rsqrt %206 : vector<40x1xf32>
    %208 = vector.broadcast %207 : vector<40x1xf32> to vector<40x32xf32>
    %209 = arith.mulf %204, %208 : vector<40x32xf32>
    %210 = vector.broadcast %190 : vector<1x32xf32> to vector<40x32xf32>
    %211 = arith.mulf %209, %210 : vector<40x32xf32>
    %212 = vector.broadcast %191 : vector<1x32xf32> to vector<40x32xf32>
    %213 = arith.addf %211, %212 : vector<40x32xf32>
    %c576 = arith.constant 576 : index
    %c0_74 = arith.constant 0 : index
    %214 = vector.load %arg6[%c576, %c0_74] : memref<1488x128xf32, #tpu.memory_space<vmem>>, vector<32x96xf32>
    %c608 = arith.constant 608 : index
    %c0_75 = arith.constant 0 : index
    %215 = vector.load %arg6[%c608, %c0_75] : memref<1488x128xf32, #tpu.memory_space<vmem>>, vector<1x96xf32>
    %c616 = arith.constant 616 : index
    %c0_76 = arith.constant 0 : index
    %216 = vector.load %arg6[%c616, %c0_76] : memref<1488x128xf32, #tpu.memory_space<vmem>>, vector<32x32xf32>
    %c648 = arith.constant 648 : index
    %c0_77 = arith.constant 0 : index
    %217 = vector.load %arg6[%c648, %c0_77] : memref<1488x128xf32, #tpu.memory_space<vmem>>, vector<1x32xf32>
    %cst_78 = arith.constant dense<0.000000e+00> : vector<40x96xf32>
    %218 = tpu.matmul %213, %214, %cst_78 {dimension_numbers = #tpu.dot_dimension_numbers<[1], [0], [0], [1], [0, 0, 1, 1], [], []>} : vector<40x32xf32>, vector<32x96xf32>, vector<40x96xf32> -> vector<40x96xf32>
    %219 = vector.broadcast %215 : vector<1x96xf32> to vector<40x96xf32>
    %220 = arith.addf %218, %219 : vector<40x96xf32>
    %221 = vector.extract_strided_slice %220 {offsets = [0, 0], sizes = [40, 8], strides = [1, 1]} : vector<40x96xf32> to vector<40x8xf32>
    %222 = vector.extract_strided_slice %220 {offsets = [0, 32], sizes = [40, 8], strides = [1, 1]} : vector<40x96xf32> to vector<40x8xf32>
    %223 = vector.extract_strided_slice %220 {offsets = [0, 64], sizes = [40, 8], strides = [1, 1]} : vector<40x96xf32> to vector<40x8xf32>
    %cst_79 = arith.constant dense<0.000000e+00> : vector<40x40xf32>
    %224 = tpu.matmul %221, %222, %cst_79 {dimension_numbers = #tpu.dot_dimension_numbers<[1], [1], [0], [0], [0, 0, 1, 0], [], []>} : vector<40x8xf32>, vector<40x8xf32>, vector<40x40xf32> -> vector<40x40xf32>
    %cst_80 = arith.constant 0.353553385 : f32
    %225 = vector.broadcast %cst_80 : f32 to vector<40x40xf32>
    %226 = arith.mulf %224, %225 : vector<40x40xf32>
    %227 = arith.addf %226, %5 : vector<40x40xf32>
    %cst_81 = arith.constant dense<0xFF800000> : vector<40xf32>
    %228 = vector.multi_reduction <maximumf>, %227, %cst_81 [1] : vector<40x40xf32> to vector<40xf32>
    %229 = vector.shape_cast %228 : vector<40xf32> to vector<40x1xf32>
    %230 = vector.broadcast %229 : vector<40x1xf32> to vector<40x40xf32>
    %231 = arith.subf %227, %230 : vector<40x40xf32>
    %232 = math.exp %231 : vector<40x40xf32>
    %cst_82 = arith.constant dense<0.000000e+00> : vector<40xf32>
    %233 = vector.multi_reduction <add>, %232, %cst_82 [1] : vector<40x40xf32> to vector<40xf32>
    %234 = vector.shape_cast %233 : vector<40xf32> to vector<40x1xf32>
    %235 = tpu.reciprocal %234 {approx = true} : vector<40x1xf32> -> vector<40x1xf32>
    %236 = vector.broadcast %235 : vector<40x1xf32> to vector<40x40xf32>
    %237 = arith.mulf %232, %236 : vector<40x40xf32>
    %cst_83 = arith.constant dense<0.000000e+00> : vector<40x8xf32>
    %238 = tpu.matmul %237, %223, %cst_83 {dimension_numbers = #tpu.dot_dimension_numbers<[1], [0], [0], [1], [0, 0, 1, 1], [], []>} : vector<40x40xf32>, vector<40x8xf32>, vector<40x8xf32> -> vector<40x8xf32>
    %239 = vector.extract_strided_slice %220 {offsets = [0, 8], sizes = [40, 8], strides = [1, 1]} : vector<40x96xf32> to vector<40x8xf32>
    %240 = vector.extract_strided_slice %220 {offsets = [0, 40], sizes = [40, 8], strides = [1, 1]} : vector<40x96xf32> to vector<40x8xf32>
    %241 = vector.extract_strided_slice %220 {offsets = [0, 72], sizes = [40, 8], strides = [1, 1]} : vector<40x96xf32> to vector<40x8xf32>
    %cst_84 = arith.constant dense<0.000000e+00> : vector<40x40xf32>
    %242 = tpu.matmul %239, %240, %cst_84 {dimension_numbers = #tpu.dot_dimension_numbers<[1], [1], [0], [0], [0, 0, 1, 0], [], []>} : vector<40x8xf32>, vector<40x8xf32>, vector<40x40xf32> -> vector<40x40xf32>
    %cst_85 = arith.constant 0.353553385 : f32
    %243 = vector.broadcast %cst_85 : f32 to vector<40x40xf32>
    %244 = arith.mulf %242, %243 : vector<40x40xf32>
    %245 = arith.addf %244, %5 : vector<40x40xf32>
    %cst_86 = arith.constant dense<0xFF800000> : vector<40xf32>
    %246 = vector.multi_reduction <maximumf>, %245, %cst_86 [1] : vector<40x40xf32> to vector<40xf32>
    %247 = vector.shape_cast %246 : vector<40xf32> to vector<40x1xf32>
    %248 = vector.broadcast %247 : vector<40x1xf32> to vector<40x40xf32>
    %249 = arith.subf %245, %248 : vector<40x40xf32>
    %250 = math.exp %249 : vector<40x40xf32>
    %cst_87 = arith.constant dense<0.000000e+00> : vector<40xf32>
    %251 = vector.multi_reduction <add>, %250, %cst_87 [1] : vector<40x40xf32> to vector<40xf32>
    %252 = vector.shape_cast %251 : vector<40xf32> to vector<40x1xf32>
    %253 = tpu.reciprocal %252 {approx = true} : vector<40x1xf32> -> vector<40x1xf32>
    %254 = vector.broadcast %253 : vector<40x1xf32> to vector<40x40xf32>
    %255 = arith.mulf %250, %254 : vector<40x40xf32>
    %cst_88 = arith.constant dense<0.000000e+00> : vector<40x8xf32>
    %256 = tpu.matmul %255, %241, %cst_88 {dimension_numbers = #tpu.dot_dimension_numbers<[1], [0], [0], [1], [0, 0, 1, 1], [], []>} : vector<40x40xf32>, vector<40x8xf32>, vector<40x8xf32> -> vector<40x8xf32>
    %257 = vector.extract_strided_slice %220 {offsets = [0, 16], sizes = [40, 8], strides = [1, 1]} : vector<40x96xf32> to vector<40x8xf32>
    %258 = vector.extract_strided_slice %220 {offsets = [0, 48], sizes = [40, 8], strides = [1, 1]} : vector<40x96xf32> to vector<40x8xf32>
    %259 = vector.extract_strided_slice %220 {offsets = [0, 80], sizes = [40, 8], strides = [1, 1]} : vector<40x96xf32> to vector<40x8xf32>
    %cst_89 = arith.constant dense<0.000000e+00> : vector<40x40xf32>
    %260 = tpu.matmul %257, %258, %cst_89 {dimension_numbers = #tpu.dot_dimension_numbers<[1], [1], [0], [0], [0, 0, 1, 0], [], []>} : vector<40x8xf32>, vector<40x8xf32>, vector<40x40xf32> -> vector<40x40xf32>
    %cst_90 = arith.constant 0.353553385 : f32
    %261 = vector.broadcast %cst_90 : f32 to vector<40x40xf32>
    %262 = arith.mulf %260, %261 : vector<40x40xf32>
    %263 = arith.addf %262, %5 : vector<40x40xf32>
    %cst_91 = arith.constant dense<0xFF800000> : vector<40xf32>
    %264 = vector.multi_reduction <maximumf>, %263, %cst_91 [1] : vector<40x40xf32> to vector<40xf32>
    %265 = vector.shape_cast %264 : vector<40xf32> to vector<40x1xf32>
    %266 = vector.broadcast %265 : vector<40x1xf32> to vector<40x40xf32>
    %267 = arith.subf %263, %266 : vector<40x40xf32>
    %268 = math.exp %267 : vector<40x40xf32>
    %cst_92 = arith.constant dense<0.000000e+00> : vector<40xf32>
    %269 = vector.multi_reduction <add>, %268, %cst_92 [1] : vector<40x40xf32> to vector<40xf32>
    %270 = vector.shape_cast %269 : vector<40xf32> to vector<40x1xf32>
    %271 = tpu.reciprocal %270 {approx = true} : vector<40x1xf32> -> vector<40x1xf32>
    %272 = vector.broadcast %271 : vector<40x1xf32> to vector<40x40xf32>
    %273 = arith.mulf %268, %272 : vector<40x40xf32>
    %cst_93 = arith.constant dense<0.000000e+00> : vector<40x8xf32>
    %274 = tpu.matmul %273, %259, %cst_93 {dimension_numbers = #tpu.dot_dimension_numbers<[1], [0], [0], [1], [0, 0, 1, 1], [], []>} : vector<40x40xf32>, vector<40x8xf32>, vector<40x8xf32> -> vector<40x8xf32>
    %275 = vector.extract_strided_slice %220 {offsets = [0, 24], sizes = [40, 8], strides = [1, 1]} : vector<40x96xf32> to vector<40x8xf32>
    %276 = vector.extract_strided_slice %220 {offsets = [0, 56], sizes = [40, 8], strides = [1, 1]} : vector<40x96xf32> to vector<40x8xf32>
    %277 = vector.extract_strided_slice %220 {offsets = [0, 88], sizes = [40, 8], strides = [1, 1]} : vector<40x96xf32> to vector<40x8xf32>
    %cst_94 = arith.constant dense<0.000000e+00> : vector<40x40xf32>
    %278 = tpu.matmul %275, %276, %cst_94 {dimension_numbers = #tpu.dot_dimension_numbers<[1], [1], [0], [0], [0, 0, 1, 0], [], []>} : vector<40x8xf32>, vector<40x8xf32>, vector<40x40xf32> -> vector<40x40xf32>
    %cst_95 = arith.constant 0.353553385 : f32
    %279 = vector.broadcast %cst_95 : f32 to vector<40x40xf32>
    %280 = arith.mulf %278, %279 : vector<40x40xf32>
    %281 = arith.addf %280, %5 : vector<40x40xf32>
    %cst_96 = arith.constant dense<0xFF800000> : vector<40xf32>
    %282 = vector.multi_reduction <maximumf>, %281, %cst_96 [1] : vector<40x40xf32> to vector<40xf32>
    %283 = vector.shape_cast %282 : vector<40xf32> to vector<40x1xf32>
    %284 = vector.broadcast %283 : vector<40x1xf32> to vector<40x40xf32>
    %285 = arith.subf %281, %284 : vector<40x40xf32>
    %286 = math.exp %285 : vector<40x40xf32>
    %cst_97 = arith.constant dense<0.000000e+00> : vector<40xf32>
    %287 = vector.multi_reduction <add>, %286, %cst_97 [1] : vector<40x40xf32> to vector<40xf32>
    %288 = vector.shape_cast %287 : vector<40xf32> to vector<40x1xf32>
    %289 = tpu.reciprocal %288 {approx = true} : vector<40x1xf32> -> vector<40x1xf32>
    %290 = vector.broadcast %289 : vector<40x1xf32> to vector<40x40xf32>
    %291 = arith.mulf %286, %290 : vector<40x40xf32>
    %cst_98 = arith.constant dense<0.000000e+00> : vector<40x8xf32>
    %292 = tpu.matmul %291, %277, %cst_98 {dimension_numbers = #tpu.dot_dimension_numbers<[1], [0], [0], [1], [0, 0, 1, 1], [], []>} : vector<40x40xf32>, vector<40x8xf32>, vector<40x8xf32> -> vector<40x8xf32>
    %293 = tpu.concatenate %238, %256, %274, %292 in 1 : vector<40x8xf32>, vector<40x8xf32>, vector<40x8xf32>, vector<40x8xf32> -> vector<40x32xf32>
    %cst_99 = arith.constant dense<0.000000e+00> : vector<40x32xf32>
    %294 = tpu.matmul %293, %216, %cst_99 {dimension_numbers = #tpu.dot_dimension_numbers<[1], [0], [0], [1], [0, 0, 1, 1], [], []>} : vector<40x32xf32>, vector<32x32xf32>, vector<40x32xf32> -> vector<40x32xf32>
    %295 = vector.broadcast %217 : vector<1x32xf32> to vector<40x32xf32>
    %296 = arith.addf %294, %295 : vector<40x32xf32>
    %297 = arith.addf %189, %296 : vector<40x32xf32>
    %c656 = arith.constant 656 : index
    %c0_100 = arith.constant 0 : index
    %298 = vector.load %arg6[%c656, %c0_100] : memref<1488x128xf32, #tpu.memory_space<vmem>>, vector<1x32xf32>
    %c664 = arith.constant 664 : index
    %c0_101 = arith.constant 0 : index
    %299 = vector.load %arg6[%c664, %c0_101] : memref<1488x128xf32, #tpu.memory_space<vmem>>, vector<1x32xf32>
    %cst_102 = arith.constant dense<0.000000e+00> : vector<40xf32>
    %300 = vector.multi_reduction <add>, %297, %cst_102 [1] : vector<40x32xf32> to vector<40xf32>
    %301 = vector.shape_cast %300 : vector<40xf32> to vector<40x1xf32>
    %cst_103 = arith.constant 3.200000e+01 : f32
    %302 = vector.broadcast %cst_103 : f32 to vector<40x1xf32>
    %303 = arith.divf %301, %302 : vector<40x1xf32>
    %304 = vector.broadcast %303 : vector<40x1xf32> to vector<40x32xf32>
    %305 = arith.subf %297, %304 : vector<40x32xf32>
    %306 = arith.mulf %305, %305 : vector<40x32xf32>
    %cst_104 = arith.constant dense<0.000000e+00> : vector<40xf32>
    %307 = vector.multi_reduction <add>, %306, %cst_104 [1] : vector<40x32xf32> to vector<40xf32>
    %308 = vector.shape_cast %307 : vector<40xf32> to vector<40x1xf32>
    %cst_105 = arith.constant 3.200000e+01 : f32
    %309 = vector.broadcast %cst_105 : f32 to vector<40x1xf32>
    %310 = arith.divf %308, %309 : vector<40x1xf32>
    %311 = vector.broadcast %303 : vector<40x1xf32> to vector<40x32xf32>
    %312 = arith.subf %297, %311 : vector<40x32xf32>
    %cst_106 = arith.constant 9.99999997E-7 : f32
    %313 = vector.broadcast %cst_106 : f32 to vector<40x1xf32>
    %314 = arith.addf %310, %313 : vector<40x1xf32>
    %315 = math.rsqrt %314 : vector<40x1xf32>
    %316 = vector.broadcast %315 : vector<40x1xf32> to vector<40x32xf32>
    %317 = arith.mulf %312, %316 : vector<40x32xf32>
    %318 = vector.broadcast %298 : vector<1x32xf32> to vector<40x32xf32>
    %319 = arith.mulf %317, %318 : vector<40x32xf32>
    %320 = vector.broadcast %299 : vector<1x32xf32> to vector<40x32xf32>
    %321 = arith.addf %319, %320 : vector<40x32xf32>
    %c672 = arith.constant 672 : index
    %c0_107 = arith.constant 0 : index
    %322 = vector.load %arg6[%c672, %c0_107] : memref<1488x128xf32, #tpu.memory_space<vmem>>, vector<32x128xf32>
    %c704 = arith.constant 704 : index
    %c0_108 = arith.constant 0 : index
    %323 = vector.load %arg6[%c704, %c0_108] : memref<1488x128xf32, #tpu.memory_space<vmem>>, vector<1x128xf32>
    %c712 = arith.constant 712 : index
    %c0_109 = arith.constant 0 : index
    %324 = vector.load %arg6[%c712, %c0_109] : memref<1488x128xf32, #tpu.memory_space<vmem>>, vector<128x32xf32>
    %c840 = arith.constant 840 : index
    %c0_110 = arith.constant 0 : index
    %325 = vector.load %arg6[%c840, %c0_110] : memref<1488x128xf32, #tpu.memory_space<vmem>>, vector<1x32xf32>
    %cst_111 = arith.constant dense<0.000000e+00> : vector<40x128xf32>
    %326 = tpu.matmul %321, %322, %cst_111 {dimension_numbers = #tpu.dot_dimension_numbers<[1], [0], [0], [1], [0, 0, 1, 1], [], []>} : vector<40x32xf32>, vector<32x128xf32>, vector<40x128xf32> -> vector<40x128xf32>
    %327 = vector.broadcast %323 : vector<1x128xf32> to vector<40x128xf32>
    %328 = arith.addf %326, %327 : vector<40x128xf32>
    %cst_112 = arith.constant 5.000000e-01 : f32
    %329 = vector.broadcast %cst_112 : f32 to vector<40x128xf32>
    %330 = arith.mulf %329, %328 : vector<40x128xf32>
    %cst_113 = arith.constant 0.707106769 : f32
    %331 = vector.broadcast %cst_113 : f32 to vector<40x128xf32>
    %332 = arith.mulf %328, %331 : vector<40x128xf32>
    %cst_114 = arith.constant 0.000000e+00 : f32
    %333 = vector.broadcast %cst_114 : f32 to vector<40x128xf32>
    %334 = arith.cmpf oge, %332, %333 : vector<40x128xf32>
    %cst_115 = arith.constant 1.000000e+00 : f32
    %cst_116 = arith.constant -1.000000e+00 : f32
    %335 = vector.broadcast %cst_115 : f32 to vector<40x128xf32>
    %336 = vector.broadcast %cst_116 : f32 to vector<40x128xf32>
    %337 = arith.select %334, %335, %336 : vector<40x128xi1>, vector<40x128xf32>
    %338 = math.absf %332 : vector<40x128xf32>
    %cst_117 = arith.constant 0.327591091 : f32
    %339 = vector.broadcast %cst_117 : f32 to vector<40x128xf32>
    %340 = arith.mulf %339, %338 : vector<40x128xf32>
    %cst_118 = arith.constant 1.000000e+00 : f32
    %341 = vector.broadcast %cst_118 : f32 to vector<40x128xf32>
    %342 = arith.addf %341, %340 : vector<40x128xf32>
    %cst_119 = arith.constant 1.000000e+00 : f32
    %343 = vector.broadcast %cst_119 : f32 to vector<40x128xf32>
    %344 = arith.divf %343, %342 : vector<40x128xf32>
    %cst_120 = arith.constant 1.06140542 : f32
    %345 = vector.broadcast %cst_120 : f32 to vector<40x128xf32>
    %346 = arith.mulf %345, %344 : vector<40x128xf32>
    %cst_121 = arith.constant -1.45315206 : f32
    %347 = vector.broadcast %cst_121 : f32 to vector<40x128xf32>
    %348 = arith.addf %346, %347 : vector<40x128xf32>
    %349 = arith.mulf %348, %344 : vector<40x128xf32>
    %cst_122 = arith.constant 1.42141378 : f32
    %350 = vector.broadcast %cst_122 : f32 to vector<40x128xf32>
    %351 = arith.addf %349, %350 : vector<40x128xf32>
    %352 = arith.mulf %351, %344 : vector<40x128xf32>
    %cst_123 = arith.constant -0.284496725 : f32
    %353 = vector.broadcast %cst_123 : f32 to vector<40x128xf32>
    %354 = arith.addf %352, %353 : vector<40x128xf32>
    %355 = arith.mulf %354, %344 : vector<40x128xf32>
    %cst_124 = arith.constant 0.254829586 : f32
    %356 = vector.broadcast %cst_124 : f32 to vector<40x128xf32>
    %357 = arith.addf %355, %356 : vector<40x128xf32>
    %358 = arith.mulf %357, %344 : vector<40x128xf32>
    %cst_125 = arith.constant 0.000000e+00 : f32
    %359 = vector.broadcast %cst_125 : f32 to vector<40x128xf32>
    %360 = arith.subf %359, %338 : vector<40x128xf32>
    %361 = arith.mulf %360, %338 : vector<40x128xf32>
    %362 = math.exp %361 : vector<40x128xf32>
    %363 = arith.mulf %358, %362 : vector<40x128xf32>
    %cst_126 = arith.constant 1.000000e+00 : f32
    %364 = vector.broadcast %cst_126 : f32 to vector<40x128xf32>
    %365 = arith.subf %364, %363 : vector<40x128xf32>
    %366 = arith.mulf %337, %365 : vector<40x128xf32>
    %cst_127 = arith.constant 1.000000e+00 : f32
    %367 = vector.broadcast %cst_127 : f32 to vector<40x128xf32>
    %368 = arith.addf %367, %366 : vector<40x128xf32>
    %369 = arith.mulf %330, %368 : vector<40x128xf32>
    %cst_128 = arith.constant dense<0.000000e+00> : vector<40x32xf32>
    %370 = tpu.matmul %369, %324, %cst_128 {dimension_numbers = #tpu.dot_dimension_numbers<[1], [0], [0], [1], [0, 0, 1, 1], [], []>} : vector<40x128xf32>, vector<128x32xf32>, vector<40x32xf32> -> vector<40x32xf32>
    %371 = vector.broadcast %325 : vector<1x32xf32> to vector<40x32xf32>
    %372 = arith.addf %370, %371 : vector<40x32xf32>
    %373 = arith.addf %297, %372 : vector<40x32xf32>
    %c848 = arith.constant 848 : index
    %c0_129 = arith.constant 0 : index
    %374 = vector.load %arg6[%c848, %c0_129] : memref<1488x128xf32, #tpu.memory_space<vmem>>, vector<1x32xf32>
    %c856 = arith.constant 856 : index
    %c0_130 = arith.constant 0 : index
    %375 = vector.load %arg6[%c856, %c0_130] : memref<1488x128xf32, #tpu.memory_space<vmem>>, vector<1x32xf32>
    %cst_131 = arith.constant dense<0.000000e+00> : vector<40xf32>
    %376 = vector.multi_reduction <add>, %373, %cst_131 [1] : vector<40x32xf32> to vector<40xf32>
    %377 = vector.shape_cast %376 : vector<40xf32> to vector<40x1xf32>
    %cst_132 = arith.constant 3.200000e+01 : f32
    %378 = vector.broadcast %cst_132 : f32 to vector<40x1xf32>
    %379 = arith.divf %377, %378 : vector<40x1xf32>
    %380 = vector.broadcast %379 : vector<40x1xf32> to vector<40x32xf32>
    %381 = arith.subf %373, %380 : vector<40x32xf32>
    %382 = arith.mulf %381, %381 : vector<40x32xf32>
    %cst_133 = arith.constant dense<0.000000e+00> : vector<40xf32>
    %383 = vector.multi_reduction <add>, %382, %cst_133 [1] : vector<40x32xf32> to vector<40xf32>
    %384 = vector.shape_cast %383 : vector<40xf32> to vector<40x1xf32>
    %cst_134 = arith.constant 3.200000e+01 : f32
    %385 = vector.broadcast %cst_134 : f32 to vector<40x1xf32>
    %386 = arith.divf %384, %385 : vector<40x1xf32>
    %387 = vector.broadcast %379 : vector<40x1xf32> to vector<40x32xf32>
    %388 = arith.subf %373, %387 : vector<40x32xf32>
    %cst_135 = arith.constant 9.99999997E-7 : f32
    %389 = vector.broadcast %cst_135 : f32 to vector<40x1xf32>
    %390 = arith.addf %386, %389 : vector<40x1xf32>
    %391 = math.rsqrt %390 : vector<40x1xf32>
    %392 = vector.broadcast %391 : vector<40x1xf32> to vector<40x32xf32>
    %393 = arith.mulf %388, %392 : vector<40x32xf32>
    %394 = vector.broadcast %374 : vector<1x32xf32> to vector<40x32xf32>
    %395 = arith.mulf %393, %394 : vector<40x32xf32>
    %396 = vector.broadcast %375 : vector<1x32xf32> to vector<40x32xf32>
    %397 = arith.addf %395, %396 : vector<40x32xf32>
    %398 = vector.extract_strided_slice %397 {offsets = [0, 0], sizes = [8, 32], strides = [1, 1]} : vector<40x32xf32> to vector<8x32xf32>
    %c864 = arith.constant 864 : index
    %c0_136 = arith.constant 0 : index
    %399 = vector.load %arg6[%c864, %c0_136] : memref<1488x128xf32, #tpu.memory_space<vmem>>, vector<32x128xf32>
    %cst_137 = arith.constant dense<0.000000e+00> : vector<8x128xf32>
    %400 = tpu.matmul %398, %399, %cst_137 {dimension_numbers = #tpu.dot_dimension_numbers<[1], [0], [0], [1], [0, 0, 1, 1], [], []>} : vector<8x32xf32>, vector<32x128xf32>, vector<8x128xf32> -> vector<8x128xf32>
    %c896 = arith.constant 896 : index
    %c0_138 = arith.constant 0 : index
    %401 = vector.load %arg6[%c896, %c0_138] : memref<1488x128xf32, #tpu.memory_space<vmem>>, vector<1x128xf32>
    %402 = vector.broadcast %401 : vector<1x128xf32> to vector<8x128xf32>
    %403 = arith.addf %400, %402 : vector<8x128xf32>
    %404 = tpu.iota {dimensions = array<i32: 1>} : vector<12x30xi32>
    %c0_139 = arith.constant 0 : index
    %c0_140 = arith.constant 0 : index
    %405 = vector.load %arg2[%c0_139, %c0_140] : memref<12x1xi32, #tpu.memory_space<vmem>>, vector<12x1xi32>
    %406 = vector.broadcast %405 : vector<12x1xi32> to vector<12x30xi32>
    %407 = arith.cmpi eq, %404, %406 : vector<12x30xi32>
    %408 = arith.extui %407 : vector<12x30xi1> to vector<12x30xi32>
    %409 = arith.sitofp %408 : vector<12x30xi32> to vector<12x30xf32>
    %c904 = arith.constant 904 : index
    %c0_141 = arith.constant 0 : index
    %410 = vector.load %arg6[%c904, %c0_141] : memref<1488x128xf32, #tpu.memory_space<vmem>>, vector<30x32xf32>
    %cst_142 = arith.constant dense<0.000000e+00> : vector<12x32xf32>
    %411 = tpu.matmul %409, %410, %cst_142 {dimension_numbers = #tpu.dot_dimension_numbers<[1], [0], [0], [1], [0, 0, 1, 1], [], []>} : vector<12x30xf32>, vector<30x32xf32>, vector<12x32xf32> -> vector<12x32xf32>
    %c936 = arith.constant 936 : index
    %c0_143 = arith.constant 0 : index
    %412 = vector.load %arg6[%c936, %c0_143] : memref<1488x128xf32, #tpu.memory_space<vmem>>, vector<12x32xf32>
    %413 = arith.addf %411, %412 : vector<12x32xf32>
    %c952 = arith.constant 952 : index
    %c0_144 = arith.constant 0 : index
    %414 = vector.load %arg6[%c952, %c0_144] : memref<1488x128xf32, #tpu.memory_space<vmem>>, vector<1x32xf32>
    %c960 = arith.constant 960 : index
    %c0_145 = arith.constant 0 : index
    %415 = vector.load %arg6[%c960, %c0_145] : memref<1488x128xf32, #tpu.memory_space<vmem>>, vector<1x32xf32>
    %cst_146 = arith.constant dense<0.000000e+00> : vector<12xf32>
    %416 = vector.multi_reduction <add>, %413, %cst_146 [1] : vector<12x32xf32> to vector<12xf32>
    %417 = vector.shape_cast %416 : vector<12xf32> to vector<12x1xf32>
    %cst_147 = arith.constant 3.200000e+01 : f32
    %418 = vector.broadcast %cst_147 : f32 to vector<12x1xf32>
    %419 = arith.divf %417, %418 : vector<12x1xf32>
    %420 = vector.broadcast %419 : vector<12x1xf32> to vector<12x32xf32>
    %421 = arith.subf %413, %420 : vector<12x32xf32>
    %422 = arith.mulf %421, %421 : vector<12x32xf32>
    %cst_148 = arith.constant dense<0.000000e+00> : vector<12xf32>
    %423 = vector.multi_reduction <add>, %422, %cst_148 [1] : vector<12x32xf32> to vector<12xf32>
    %424 = vector.shape_cast %423 : vector<12xf32> to vector<12x1xf32>
    %cst_149 = arith.constant 3.200000e+01 : f32
    %425 = vector.broadcast %cst_149 : f32 to vector<12x1xf32>
    %426 = arith.divf %424, %425 : vector<12x1xf32>
    %427 = vector.broadcast %419 : vector<12x1xf32> to vector<12x32xf32>
    %428 = arith.subf %413, %427 : vector<12x32xf32>
    %cst_150 = arith.constant 9.99999996E-13 : f32
    %429 = vector.broadcast %cst_150 : f32 to vector<12x1xf32>
    %430 = arith.addf %426, %429 : vector<12x1xf32>
    %431 = math.rsqrt %430 : vector<12x1xf32>
    %432 = vector.broadcast %431 : vector<12x1xf32> to vector<12x32xf32>
    %433 = arith.mulf %428, %432 : vector<12x32xf32>
    %434 = vector.broadcast %414 : vector<1x32xf32> to vector<12x32xf32>
    %435 = arith.mulf %433, %434 : vector<12x32xf32>
    %436 = vector.broadcast %415 : vector<1x32xf32> to vector<12x32xf32>
    %437 = arith.addf %435, %436 : vector<12x32xf32>
    %c968 = arith.constant 968 : index
    %c0_151 = arith.constant 0 : index
    %438 = vector.load %arg6[%c968, %c0_151] : memref<1488x128xf32, #tpu.memory_space<vmem>>, vector<12x8xf32>
    %cst_152 = arith.constant dense<0.000000e+00> : vector<12x32xf32>
    %439 = tpu.matmul %438, %398, %cst_152 {dimension_numbers = #tpu.dot_dimension_numbers<[1], [0], [0], [1], [0, 0, 1, 1], [], []>} : vector<12x8xf32>, vector<8x32xf32>, vector<12x32xf32> -> vector<12x32xf32>
    %c0_153 = arith.constant 0 : index
    %440 = memref.load %arg5[%c0_153] : memref<2xf32, #tpu.memory_space<smem>>
    %441 = vector.broadcast %440 : f32 to vector<12x32xf32>
    %442 = arith.mulf %441, %437 : vector<12x32xf32>
    %cst_154 = arith.constant 1.000000e+00 : f32
    %443 = arith.subf %cst_154, %440 : f32
    %444 = vector.broadcast %443 : f32 to vector<12x32xf32>
    %445 = arith.mulf %444, %439 : vector<12x32xf32>
    %446 = arith.addf %442, %445 : vector<12x32xf32>
    %c0_155 = arith.constant 0 : index
    %c0_156 = arith.constant 0 : index
    %447 = vector.load %arg3[%c0_155, %c0_156] : memref<12x12xf32, #tpu.memory_space<vmem>>, vector<12x12xf32>
    %c992 = arith.constant 992 : index
    %c0_157 = arith.constant 0 : index
    %448 = vector.load %arg6[%c992, %c0_157] : memref<1488x128xf32, #tpu.memory_space<vmem>>, vector<32x96xf32>
    %c1024 = arith.constant 1024 : index
    %c0_158 = arith.constant 0 : index
    %449 = vector.load %arg6[%c1024, %c0_158] : memref<1488x128xf32, #tpu.memory_space<vmem>>, vector<1x96xf32>
    %c1032 = arith.constant 1032 : index
    %c0_159 = arith.constant 0 : index
    %450 = vector.load %arg6[%c1032, %c0_159] : memref<1488x128xf32, #tpu.memory_space<vmem>>, vector<32x32xf32>
    %c1064 = arith.constant 1064 : index
    %c0_160 = arith.constant 0 : index
    %451 = vector.load %arg6[%c1064, %c0_160] : memref<1488x128xf32, #tpu.memory_space<vmem>>, vector<1x32xf32>
    %cst_161 = arith.constant dense<0.000000e+00> : vector<12x96xf32>
    %452 = tpu.matmul %446, %448, %cst_161 {dimension_numbers = #tpu.dot_dimension_numbers<[1], [0], [0], [1], [0, 0, 1, 1], [], []>} : vector<12x32xf32>, vector<32x96xf32>, vector<12x96xf32> -> vector<12x96xf32>
    %453 = vector.broadcast %449 : vector<1x96xf32> to vector<12x96xf32>
    %454 = arith.addf %452, %453 : vector<12x96xf32>
    %455 = vector.extract_strided_slice %454 {offsets = [0, 0], sizes = [12, 8], strides = [1, 1]} : vector<12x96xf32> to vector<12x8xf32>
    %456 = vector.extract_strided_slice %454 {offsets = [0, 32], sizes = [12, 8], strides = [1, 1]} : vector<12x96xf32> to vector<12x8xf32>
    %457 = vector.extract_strided_slice %454 {offsets = [0, 64], sizes = [12, 8], strides = [1, 1]} : vector<12x96xf32> to vector<12x8xf32>
    %cst_162 = arith.constant dense<0.000000e+00> : vector<12x12xf32>
    %458 = tpu.matmul %455, %456, %cst_162 {dimension_numbers = #tpu.dot_dimension_numbers<[1], [1], [0], [0], [0, 0, 1, 0], [], []>} : vector<12x8xf32>, vector<12x8xf32>, vector<12x12xf32> -> vector<12x12xf32>
    %cst_163 = arith.constant 0.353553385 : f32
    %459 = vector.broadcast %cst_163 : f32 to vector<12x12xf32>
    %460 = arith.mulf %458, %459 : vector<12x12xf32>
    %461 = arith.addf %460, %447 : vector<12x12xf32>
    %cst_164 = arith.constant dense<0xFF800000> : vector<12xf32>
    %462 = vector.multi_reduction <maximumf>, %461, %cst_164 [1] : vector<12x12xf32> to vector<12xf32>
    %463 = vector.shape_cast %462 : vector<12xf32> to vector<12x1xf32>
    %464 = vector.broadcast %463 : vector<12x1xf32> to vector<12x12xf32>
    %465 = arith.subf %461, %464 : vector<12x12xf32>
    %466 = math.exp %465 : vector<12x12xf32>
    %cst_165 = arith.constant dense<0.000000e+00> : vector<12xf32>
    %467 = vector.multi_reduction <add>, %466, %cst_165 [1] : vector<12x12xf32> to vector<12xf32>
    %468 = vector.shape_cast %467 : vector<12xf32> to vector<12x1xf32>
    %469 = tpu.reciprocal %468 {approx = true} : vector<12x1xf32> -> vector<12x1xf32>
    %470 = vector.broadcast %469 : vector<12x1xf32> to vector<12x12xf32>
    %471 = arith.mulf %466, %470 : vector<12x12xf32>
    %cst_166 = arith.constant dense<0.000000e+00> : vector<12x8xf32>
    %472 = tpu.matmul %471, %457, %cst_166 {dimension_numbers = #tpu.dot_dimension_numbers<[1], [0], [0], [1], [0, 0, 1, 1], [], []>} : vector<12x12xf32>, vector<12x8xf32>, vector<12x8xf32> -> vector<12x8xf32>
    %473 = vector.extract_strided_slice %454 {offsets = [0, 8], sizes = [12, 8], strides = [1, 1]} : vector<12x96xf32> to vector<12x8xf32>
    %474 = vector.extract_strided_slice %454 {offsets = [0, 40], sizes = [12, 8], strides = [1, 1]} : vector<12x96xf32> to vector<12x8xf32>
    %475 = vector.extract_strided_slice %454 {offsets = [0, 72], sizes = [12, 8], strides = [1, 1]} : vector<12x96xf32> to vector<12x8xf32>
    %cst_167 = arith.constant dense<0.000000e+00> : vector<12x12xf32>
    %476 = tpu.matmul %473, %474, %cst_167 {dimension_numbers = #tpu.dot_dimension_numbers<[1], [1], [0], [0], [0, 0, 1, 0], [], []>} : vector<12x8xf32>, vector<12x8xf32>, vector<12x12xf32> -> vector<12x12xf32>
    %cst_168 = arith.constant 0.353553385 : f32
    %477 = vector.broadcast %cst_168 : f32 to vector<12x12xf32>
    %478 = arith.mulf %476, %477 : vector<12x12xf32>
    %479 = arith.addf %478, %447 : vector<12x12xf32>
    %cst_169 = arith.constant dense<0xFF800000> : vector<12xf32>
    %480 = vector.multi_reduction <maximumf>, %479, %cst_169 [1] : vector<12x12xf32> to vector<12xf32>
    %481 = vector.shape_cast %480 : vector<12xf32> to vector<12x1xf32>
    %482 = vector.broadcast %481 : vector<12x1xf32> to vector<12x12xf32>
    %483 = arith.subf %479, %482 : vector<12x12xf32>
    %484 = math.exp %483 : vector<12x12xf32>
    %cst_170 = arith.constant dense<0.000000e+00> : vector<12xf32>
    %485 = vector.multi_reduction <add>, %484, %cst_170 [1] : vector<12x12xf32> to vector<12xf32>
    %486 = vector.shape_cast %485 : vector<12xf32> to vector<12x1xf32>
    %487 = tpu.reciprocal %486 {approx = true} : vector<12x1xf32> -> vector<12x1xf32>
    %488 = vector.broadcast %487 : vector<12x1xf32> to vector<12x12xf32>
    %489 = arith.mulf %484, %488 : vector<12x12xf32>
    %cst_171 = arith.constant dense<0.000000e+00> : vector<12x8xf32>
    %490 = tpu.matmul %489, %475, %cst_171 {dimension_numbers = #tpu.dot_dimension_numbers<[1], [0], [0], [1], [0, 0, 1, 1], [], []>} : vector<12x12xf32>, vector<12x8xf32>, vector<12x8xf32> -> vector<12x8xf32>
    %491 = vector.extract_strided_slice %454 {offsets = [0, 16], sizes = [12, 8], strides = [1, 1]} : vector<12x96xf32> to vector<12x8xf32>
    %492 = vector.extract_strided_slice %454 {offsets = [0, 48], sizes = [12, 8], strides = [1, 1]} : vector<12x96xf32> to vector<12x8xf32>
    %493 = vector.extract_strided_slice %454 {offsets = [0, 80], sizes = [12, 8], strides = [1, 1]} : vector<12x96xf32> to vector<12x8xf32>
    %cst_172 = arith.constant dense<0.000000e+00> : vector<12x12xf32>
    %494 = tpu.matmul %491, %492, %cst_172 {dimension_numbers = #tpu.dot_dimension_numbers<[1], [1], [0], [0], [0, 0, 1, 0], [], []>} : vector<12x8xf32>, vector<12x8xf32>, vector<12x12xf32> -> vector<12x12xf32>
    %cst_173 = arith.constant 0.353553385 : f32
    %495 = vector.broadcast %cst_173 : f32 to vector<12x12xf32>
    %496 = arith.mulf %494, %495 : vector<12x12xf32>
    %497 = arith.addf %496, %447 : vector<12x12xf32>
    %cst_174 = arith.constant dense<0xFF800000> : vector<12xf32>
    %498 = vector.multi_reduction <maximumf>, %497, %cst_174 [1] : vector<12x12xf32> to vector<12xf32>
    %499 = vector.shape_cast %498 : vector<12xf32> to vector<12x1xf32>
    %500 = vector.broadcast %499 : vector<12x1xf32> to vector<12x12xf32>
    %501 = arith.subf %497, %500 : vector<12x12xf32>
    %502 = math.exp %501 : vector<12x12xf32>
    %cst_175 = arith.constant dense<0.000000e+00> : vector<12xf32>
    %503 = vector.multi_reduction <add>, %502, %cst_175 [1] : vector<12x12xf32> to vector<12xf32>
    %504 = vector.shape_cast %503 : vector<12xf32> to vector<12x1xf32>
    %505 = tpu.reciprocal %504 {approx = true} : vector<12x1xf32> -> vector<12x1xf32>
    %506 = vector.broadcast %505 : vector<12x1xf32> to vector<12x12xf32>
    %507 = arith.mulf %502, %506 : vector<12x12xf32>
    %cst_176 = arith.constant dense<0.000000e+00> : vector<12x8xf32>
    %508 = tpu.matmul %507, %493, %cst_176 {dimension_numbers = #tpu.dot_dimension_numbers<[1], [0], [0], [1], [0, 0, 1, 1], [], []>} : vector<12x12xf32>, vector<12x8xf32>, vector<12x8xf32> -> vector<12x8xf32>
    %509 = vector.extract_strided_slice %454 {offsets = [0, 24], sizes = [12, 8], strides = [1, 1]} : vector<12x96xf32> to vector<12x8xf32>
    %510 = vector.extract_strided_slice %454 {offsets = [0, 56], sizes = [12, 8], strides = [1, 1]} : vector<12x96xf32> to vector<12x8xf32>
    %511 = vector.extract_strided_slice %454 {offsets = [0, 88], sizes = [12, 8], strides = [1, 1]} : vector<12x96xf32> to vector<12x8xf32>
    %cst_177 = arith.constant dense<0.000000e+00> : vector<12x12xf32>
    %512 = tpu.matmul %509, %510, %cst_177 {dimension_numbers = #tpu.dot_dimension_numbers<[1], [1], [0], [0], [0, 0, 1, 0], [], []>} : vector<12x8xf32>, vector<12x8xf32>, vector<12x12xf32> -> vector<12x12xf32>
    %cst_178 = arith.constant 0.353553385 : f32
    %513 = vector.broadcast %cst_178 : f32 to vector<12x12xf32>
    %514 = arith.mulf %512, %513 : vector<12x12xf32>
    %515 = arith.addf %514, %447 : vector<12x12xf32>
    %cst_179 = arith.constant dense<0xFF800000> : vector<12xf32>
    %516 = vector.multi_reduction <maximumf>, %515, %cst_179 [1] : vector<12x12xf32> to vector<12xf32>
    %517 = vector.shape_cast %516 : vector<12xf32> to vector<12x1xf32>
    %518 = vector.broadcast %517 : vector<12x1xf32> to vector<12x12xf32>
    %519 = arith.subf %515, %518 : vector<12x12xf32>
    %520 = math.exp %519 : vector<12x12xf32>
    %cst_180 = arith.constant dense<0.000000e+00> : vector<12xf32>
    %521 = vector.multi_reduction <add>, %520, %cst_180 [1] : vector<12x12xf32> to vector<12xf32>
    %522 = vector.shape_cast %521 : vector<12xf32> to vector<12x1xf32>
    %523 = tpu.reciprocal %522 {approx = true} : vector<12x1xf32> -> vector<12x1xf32>
    %524 = vector.broadcast %523 : vector<12x1xf32> to vector<12x12xf32>
    %525 = arith.mulf %520, %524 : vector<12x12xf32>
    %cst_181 = arith.constant dense<0.000000e+00> : vector<12x8xf32>
    %526 = tpu.matmul %525, %511, %cst_181 {dimension_numbers = #tpu.dot_dimension_numbers<[1], [0], [0], [1], [0, 0, 1, 1], [], []>} : vector<12x12xf32>, vector<12x8xf32>, vector<12x8xf32> -> vector<12x8xf32>
    %527 = tpu.concatenate %472, %490, %508, %526 in 1 : vector<12x8xf32>, vector<12x8xf32>, vector<12x8xf32>, vector<12x8xf32> -> vector<12x32xf32>
    %cst_182 = arith.constant dense<0.000000e+00> : vector<12x32xf32>
    %528 = tpu.matmul %527, %450, %cst_182 {dimension_numbers = #tpu.dot_dimension_numbers<[1], [0], [0], [1], [0, 0, 1, 1], [], []>} : vector<12x32xf32>, vector<32x32xf32>, vector<12x32xf32> -> vector<12x32xf32>
    %529 = vector.broadcast %451 : vector<1x32xf32> to vector<12x32xf32>
    %530 = arith.addf %528, %529 : vector<12x32xf32>
    %531 = arith.addf %530, %446 : vector<12x32xf32>
    %c1072 = arith.constant 1072 : index
    %c0_183 = arith.constant 0 : index
    %532 = vector.load %arg6[%c1072, %c0_183] : memref<1488x128xf32, #tpu.memory_space<vmem>>, vector<1x32xf32>
    %c1080 = arith.constant 1080 : index
    %c0_184 = arith.constant 0 : index
    %533 = vector.load %arg6[%c1080, %c0_184] : memref<1488x128xf32, #tpu.memory_space<vmem>>, vector<1x32xf32>
    %cst_185 = arith.constant dense<0.000000e+00> : vector<12xf32>
    %534 = vector.multi_reduction <add>, %531, %cst_185 [1] : vector<12x32xf32> to vector<12xf32>
    %535 = vector.shape_cast %534 : vector<12xf32> to vector<12x1xf32>
    %cst_186 = arith.constant 3.200000e+01 : f32
    %536 = vector.broadcast %cst_186 : f32 to vector<12x1xf32>
    %537 = arith.divf %535, %536 : vector<12x1xf32>
    %538 = vector.broadcast %537 : vector<12x1xf32> to vector<12x32xf32>
    %539 = arith.subf %531, %538 : vector<12x32xf32>
    %540 = arith.mulf %539, %539 : vector<12x32xf32>
    %cst_187 = arith.constant dense<0.000000e+00> : vector<12xf32>
    %541 = vector.multi_reduction <add>, %540, %cst_187 [1] : vector<12x32xf32> to vector<12xf32>
    %542 = vector.shape_cast %541 : vector<12xf32> to vector<12x1xf32>
    %cst_188 = arith.constant 3.200000e+01 : f32
    %543 = vector.broadcast %cst_188 : f32 to vector<12x1xf32>
    %544 = arith.divf %542, %543 : vector<12x1xf32>
    %545 = vector.broadcast %537 : vector<12x1xf32> to vector<12x32xf32>
    %546 = arith.subf %531, %545 : vector<12x32xf32>
    %cst_189 = arith.constant 9.99999996E-13 : f32
    %547 = vector.broadcast %cst_189 : f32 to vector<12x1xf32>
    %548 = arith.addf %544, %547 : vector<12x1xf32>
    %549 = math.rsqrt %548 : vector<12x1xf32>
    %550 = vector.broadcast %549 : vector<12x1xf32> to vector<12x32xf32>
    %551 = arith.mulf %546, %550 : vector<12x32xf32>
    %552 = vector.broadcast %532 : vector<1x32xf32> to vector<12x32xf32>
    %553 = arith.mulf %551, %552 : vector<12x32xf32>
    %554 = vector.broadcast %533 : vector<1x32xf32> to vector<12x32xf32>
    %555 = arith.addf %553, %554 : vector<12x32xf32>
    %c1088 = arith.constant 1088 : index
    %c0_190 = arith.constant 0 : index
    %556 = vector.load %arg6[%c1088, %c0_190] : memref<1488x128xf32, #tpu.memory_space<vmem>>, vector<32x64xf32>
    %c1120 = arith.constant 1120 : index
    %c0_191 = arith.constant 0 : index
    %557 = vector.load %arg6[%c1120, %c0_191] : memref<1488x128xf32, #tpu.memory_space<vmem>>, vector<1x64xf32>
    %c1128 = arith.constant 1128 : index
    %c0_192 = arith.constant 0 : index
    %558 = vector.load %arg6[%c1128, %c0_192] : memref<1488x128xf32, #tpu.memory_space<vmem>>, vector<64x32xf32>
    %c1192 = arith.constant 1192 : index
    %c0_193 = arith.constant 0 : index
    %559 = vector.load %arg6[%c1192, %c0_193] : memref<1488x128xf32, #tpu.memory_space<vmem>>, vector<1x32xf32>
    %cst_194 = arith.constant dense<0.000000e+00> : vector<12x64xf32>
    %560 = tpu.matmul %555, %556, %cst_194 {dimension_numbers = #tpu.dot_dimension_numbers<[1], [0], [0], [1], [0, 0, 1, 1], [], []>} : vector<12x32xf32>, vector<32x64xf32>, vector<12x64xf32> -> vector<12x64xf32>
    %561 = vector.broadcast %557 : vector<1x64xf32> to vector<12x64xf32>
    %562 = arith.addf %560, %561 : vector<12x64xf32>
    %cst_195 = arith.constant 5.000000e-01 : f32
    %563 = vector.broadcast %cst_195 : f32 to vector<12x64xf32>
    %564 = arith.mulf %563, %562 : vector<12x64xf32>
    %cst_196 = arith.constant 0.707106769 : f32
    %565 = vector.broadcast %cst_196 : f32 to vector<12x64xf32>
    %566 = arith.mulf %562, %565 : vector<12x64xf32>
    %cst_197 = arith.constant 0.000000e+00 : f32
    %567 = vector.broadcast %cst_197 : f32 to vector<12x64xf32>
    %568 = arith.cmpf oge, %566, %567 : vector<12x64xf32>
    %cst_198 = arith.constant 1.000000e+00 : f32
    %cst_199 = arith.constant -1.000000e+00 : f32
    %569 = vector.broadcast %cst_198 : f32 to vector<12x64xf32>
    %570 = vector.broadcast %cst_199 : f32 to vector<12x64xf32>
    %571 = arith.select %568, %569, %570 : vector<12x64xi1>, vector<12x64xf32>
    %572 = math.absf %566 : vector<12x64xf32>
    %cst_200 = arith.constant 0.327591091 : f32
    %573 = vector.broadcast %cst_200 : f32 to vector<12x64xf32>
    %574 = arith.mulf %573, %572 : vector<12x64xf32>
    %cst_201 = arith.constant 1.000000e+00 : f32
    %575 = vector.broadcast %cst_201 : f32 to vector<12x64xf32>
    %576 = arith.addf %575, %574 : vector<12x64xf32>
    %cst_202 = arith.constant 1.000000e+00 : f32
    %577 = vector.broadcast %cst_202 : f32 to vector<12x64xf32>
    %578 = arith.divf %577, %576 : vector<12x64xf32>
    %cst_203 = arith.constant 1.06140542 : f32
    %579 = vector.broadcast %cst_203 : f32 to vector<12x64xf32>
    %580 = arith.mulf %579, %578 : vector<12x64xf32>
    %cst_204 = arith.constant -1.45315206 : f32
    %581 = vector.broadcast %cst_204 : f32 to vector<12x64xf32>
    %582 = arith.addf %580, %581 : vector<12x64xf32>
    %583 = arith.mulf %582, %578 : vector<12x64xf32>
    %cst_205 = arith.constant 1.42141378 : f32
    %584 = vector.broadcast %cst_205 : f32 to vector<12x64xf32>
    %585 = arith.addf %583, %584 : vector<12x64xf32>
    %586 = arith.mulf %585, %578 : vector<12x64xf32>
    %cst_206 = arith.constant -0.284496725 : f32
    %587 = vector.broadcast %cst_206 : f32 to vector<12x64xf32>
    %588 = arith.addf %586, %587 : vector<12x64xf32>
    %589 = arith.mulf %588, %578 : vector<12x64xf32>
    %cst_207 = arith.constant 0.254829586 : f32
    %590 = vector.broadcast %cst_207 : f32 to vector<12x64xf32>
    %591 = arith.addf %589, %590 : vector<12x64xf32>
    %592 = arith.mulf %591, %578 : vector<12x64xf32>
    %cst_208 = arith.constant 0.000000e+00 : f32
    %593 = vector.broadcast %cst_208 : f32 to vector<12x64xf32>
    %594 = arith.subf %593, %572 : vector<12x64xf32>
    %595 = arith.mulf %594, %572 : vector<12x64xf32>
    %596 = math.exp %595 : vector<12x64xf32>
    %597 = arith.mulf %592, %596 : vector<12x64xf32>
    %cst_209 = arith.constant 1.000000e+00 : f32
    %598 = vector.broadcast %cst_209 : f32 to vector<12x64xf32>
    %599 = arith.subf %598, %597 : vector<12x64xf32>
    %600 = arith.mulf %571, %599 : vector<12x64xf32>
    %cst_210 = arith.constant 1.000000e+00 : f32
    %601 = vector.broadcast %cst_210 : f32 to vector<12x64xf32>
    %602 = arith.addf %601, %600 : vector<12x64xf32>
    %603 = arith.mulf %564, %602 : vector<12x64xf32>
    %cst_211 = arith.constant dense<0.000000e+00> : vector<12x32xf32>
    %604 = tpu.matmul %603, %558, %cst_211 {dimension_numbers = #tpu.dot_dimension_numbers<[1], [0], [0], [1], [0, 0, 1, 1], [], []>} : vector<12x64xf32>, vector<64x32xf32>, vector<12x32xf32> -> vector<12x32xf32>
    %605 = vector.broadcast %559 : vector<1x32xf32> to vector<12x32xf32>
    %606 = arith.addf %604, %605 : vector<12x32xf32>
    %607 = arith.addf %606, %555 : vector<12x32xf32>
    %c1200 = arith.constant 1200 : index
    %c0_212 = arith.constant 0 : index
    %608 = vector.load %arg6[%c1200, %c0_212] : memref<1488x128xf32, #tpu.memory_space<vmem>>, vector<1x32xf32>
    %c1208 = arith.constant 1208 : index
    %c0_213 = arith.constant 0 : index
    %609 = vector.load %arg6[%c1208, %c0_213] : memref<1488x128xf32, #tpu.memory_space<vmem>>, vector<1x32xf32>
    %cst_214 = arith.constant dense<0.000000e+00> : vector<12xf32>
    %610 = vector.multi_reduction <add>, %607, %cst_214 [1] : vector<12x32xf32> to vector<12xf32>
    %611 = vector.shape_cast %610 : vector<12xf32> to vector<12x1xf32>
    %cst_215 = arith.constant 3.200000e+01 : f32
    %612 = vector.broadcast %cst_215 : f32 to vector<12x1xf32>
    %613 = arith.divf %611, %612 : vector<12x1xf32>
    %614 = vector.broadcast %613 : vector<12x1xf32> to vector<12x32xf32>
    %615 = arith.subf %607, %614 : vector<12x32xf32>
    %616 = arith.mulf %615, %615 : vector<12x32xf32>
    %cst_216 = arith.constant dense<0.000000e+00> : vector<12xf32>
    %617 = vector.multi_reduction <add>, %616, %cst_216 [1] : vector<12x32xf32> to vector<12xf32>
    %618 = vector.shape_cast %617 : vector<12xf32> to vector<12x1xf32>
    %cst_217 = arith.constant 3.200000e+01 : f32
    %619 = vector.broadcast %cst_217 : f32 to vector<12x1xf32>
    %620 = arith.divf %618, %619 : vector<12x1xf32>
    %621 = vector.broadcast %613 : vector<12x1xf32> to vector<12x32xf32>
    %622 = arith.subf %607, %621 : vector<12x32xf32>
    %cst_218 = arith.constant 9.99999996E-13 : f32
    %623 = vector.broadcast %cst_218 : f32 to vector<12x1xf32>
    %624 = arith.addf %620, %623 : vector<12x1xf32>
    %625 = math.rsqrt %624 : vector<12x1xf32>
    %626 = vector.broadcast %625 : vector<12x1xf32> to vector<12x32xf32>
    %627 = arith.mulf %622, %626 : vector<12x32xf32>
    %628 = vector.broadcast %608 : vector<1x32xf32> to vector<12x32xf32>
    %629 = arith.mulf %627, %628 : vector<12x32xf32>
    %630 = vector.broadcast %609 : vector<1x32xf32> to vector<12x32xf32>
    %631 = arith.addf %629, %630 : vector<12x32xf32>
    %c1216 = arith.constant 1216 : index
    %c0_219 = arith.constant 0 : index
    %632 = vector.load %arg6[%c1216, %c0_219] : memref<1488x128xf32, #tpu.memory_space<vmem>>, vector<32x96xf32>
    %c1248 = arith.constant 1248 : index
    %c0_220 = arith.constant 0 : index
    %633 = vector.load %arg6[%c1248, %c0_220] : memref<1488x128xf32, #tpu.memory_space<vmem>>, vector<1x96xf32>
    %c1256 = arith.constant 1256 : index
    %c0_221 = arith.constant 0 : index
    %634 = vector.load %arg6[%c1256, %c0_221] : memref<1488x128xf32, #tpu.memory_space<vmem>>, vector<32x32xf32>
    %c1288 = arith.constant 1288 : index
    %c0_222 = arith.constant 0 : index
    %635 = vector.load %arg6[%c1288, %c0_222] : memref<1488x128xf32, #tpu.memory_space<vmem>>, vector<1x32xf32>
    %cst_223 = arith.constant dense<0.000000e+00> : vector<12x96xf32>
    %636 = tpu.matmul %631, %632, %cst_223 {dimension_numbers = #tpu.dot_dimension_numbers<[1], [0], [0], [1], [0, 0, 1, 1], [], []>} : vector<12x32xf32>, vector<32x96xf32>, vector<12x96xf32> -> vector<12x96xf32>
    %637 = vector.broadcast %633 : vector<1x96xf32> to vector<12x96xf32>
    %638 = arith.addf %636, %637 : vector<12x96xf32>
    %639 = vector.extract_strided_slice %638 {offsets = [0, 0], sizes = [12, 8], strides = [1, 1]} : vector<12x96xf32> to vector<12x8xf32>
    %640 = vector.extract_strided_slice %638 {offsets = [0, 32], sizes = [12, 8], strides = [1, 1]} : vector<12x96xf32> to vector<12x8xf32>
    %641 = vector.extract_strided_slice %638 {offsets = [0, 64], sizes = [12, 8], strides = [1, 1]} : vector<12x96xf32> to vector<12x8xf32>
    %cst_224 = arith.constant dense<0.000000e+00> : vector<12x12xf32>
    %642 = tpu.matmul %639, %640, %cst_224 {dimension_numbers = #tpu.dot_dimension_numbers<[1], [1], [0], [0], [0, 0, 1, 0], [], []>} : vector<12x8xf32>, vector<12x8xf32>, vector<12x12xf32> -> vector<12x12xf32>
    %cst_225 = arith.constant 0.353553385 : f32
    %643 = vector.broadcast %cst_225 : f32 to vector<12x12xf32>
    %644 = arith.mulf %642, %643 : vector<12x12xf32>
    %645 = arith.addf %644, %447 : vector<12x12xf32>
    %cst_226 = arith.constant dense<0xFF800000> : vector<12xf32>
    %646 = vector.multi_reduction <maximumf>, %645, %cst_226 [1] : vector<12x12xf32> to vector<12xf32>
    %647 = vector.shape_cast %646 : vector<12xf32> to vector<12x1xf32>
    %648 = vector.broadcast %647 : vector<12x1xf32> to vector<12x12xf32>
    %649 = arith.subf %645, %648 : vector<12x12xf32>
    %650 = math.exp %649 : vector<12x12xf32>
    %cst_227 = arith.constant dense<0.000000e+00> : vector<12xf32>
    %651 = vector.multi_reduction <add>, %650, %cst_227 [1] : vector<12x12xf32> to vector<12xf32>
    %652 = vector.shape_cast %651 : vector<12xf32> to vector<12x1xf32>
    %653 = tpu.reciprocal %652 {approx = true} : vector<12x1xf32> -> vector<12x1xf32>
    %654 = vector.broadcast %653 : vector<12x1xf32> to vector<12x12xf32>
    %655 = arith.mulf %650, %654 : vector<12x12xf32>
    %cst_228 = arith.constant dense<0.000000e+00> : vector<12x8xf32>
    %656 = tpu.matmul %655, %641, %cst_228 {dimension_numbers = #tpu.dot_dimension_numbers<[1], [0], [0], [1], [0, 0, 1, 1], [], []>} : vector<12x12xf32>, vector<12x8xf32>, vector<12x8xf32> -> vector<12x8xf32>
    %657 = vector.extract_strided_slice %638 {offsets = [0, 8], sizes = [12, 8], strides = [1, 1]} : vector<12x96xf32> to vector<12x8xf32>
    %658 = vector.extract_strided_slice %638 {offsets = [0, 40], sizes = [12, 8], strides = [1, 1]} : vector<12x96xf32> to vector<12x8xf32>
    %659 = vector.extract_strided_slice %638 {offsets = [0, 72], sizes = [12, 8], strides = [1, 1]} : vector<12x96xf32> to vector<12x8xf32>
    %cst_229 = arith.constant dense<0.000000e+00> : vector<12x12xf32>
    %660 = tpu.matmul %657, %658, %cst_229 {dimension_numbers = #tpu.dot_dimension_numbers<[1], [1], [0], [0], [0, 0, 1, 0], [], []>} : vector<12x8xf32>, vector<12x8xf32>, vector<12x12xf32> -> vector<12x12xf32>
    %cst_230 = arith.constant 0.353553385 : f32
    %661 = vector.broadcast %cst_230 : f32 to vector<12x12xf32>
    %662 = arith.mulf %660, %661 : vector<12x12xf32>
    %663 = arith.addf %662, %447 : vector<12x12xf32>
    %cst_231 = arith.constant dense<0xFF800000> : vector<12xf32>
    %664 = vector.multi_reduction <maximumf>, %663, %cst_231 [1] : vector<12x12xf32> to vector<12xf32>
    %665 = vector.shape_cast %664 : vector<12xf32> to vector<12x1xf32>
    %666 = vector.broadcast %665 : vector<12x1xf32> to vector<12x12xf32>
    %667 = arith.subf %663, %666 : vector<12x12xf32>
    %668 = math.exp %667 : vector<12x12xf32>
    %cst_232 = arith.constant dense<0.000000e+00> : vector<12xf32>
    %669 = vector.multi_reduction <add>, %668, %cst_232 [1] : vector<12x12xf32> to vector<12xf32>
    %670 = vector.shape_cast %669 : vector<12xf32> to vector<12x1xf32>
    %671 = tpu.reciprocal %670 {approx = true} : vector<12x1xf32> -> vector<12x1xf32>
    %672 = vector.broadcast %671 : vector<12x1xf32> to vector<12x12xf32>
    %673 = arith.mulf %668, %672 : vector<12x12xf32>
    %cst_233 = arith.constant dense<0.000000e+00> : vector<12x8xf32>
    %674 = tpu.matmul %673, %659, %cst_233 {dimension_numbers = #tpu.dot_dimension_numbers<[1], [0], [0], [1], [0, 0, 1, 1], [], []>} : vector<12x12xf32>, vector<12x8xf32>, vector<12x8xf32> -> vector<12x8xf32>
    %675 = vector.extract_strided_slice %638 {offsets = [0, 16], sizes = [12, 8], strides = [1, 1]} : vector<12x96xf32> to vector<12x8xf32>
    %676 = vector.extract_strided_slice %638 {offsets = [0, 48], sizes = [12, 8], strides = [1, 1]} : vector<12x96xf32> to vector<12x8xf32>
    %677 = vector.extract_strided_slice %638 {offsets = [0, 80], sizes = [12, 8], strides = [1, 1]} : vector<12x96xf32> to vector<12x8xf32>
    %cst_234 = arith.constant dense<0.000000e+00> : vector<12x12xf32>
    %678 = tpu.matmul %675, %676, %cst_234 {dimension_numbers = #tpu.dot_dimension_numbers<[1], [1], [0], [0], [0, 0, 1, 0], [], []>} : vector<12x8xf32>, vector<12x8xf32>, vector<12x12xf32> -> vector<12x12xf32>
    %cst_235 = arith.constant 0.353553385 : f32
    %679 = vector.broadcast %cst_235 : f32 to vector<12x12xf32>
    %680 = arith.mulf %678, %679 : vector<12x12xf32>
    %681 = arith.addf %680, %447 : vector<12x12xf32>
    %cst_236 = arith.constant dense<0xFF800000> : vector<12xf32>
    %682 = vector.multi_reduction <maximumf>, %681, %cst_236 [1] : vector<12x12xf32> to vector<12xf32>
    %683 = vector.shape_cast %682 : vector<12xf32> to vector<12x1xf32>
    %684 = vector.broadcast %683 : vector<12x1xf32> to vector<12x12xf32>
    %685 = arith.subf %681, %684 : vector<12x12xf32>
    %686 = math.exp %685 : vector<12x12xf32>
    %cst_237 = arith.constant dense<0.000000e+00> : vector<12xf32>
    %687 = vector.multi_reduction <add>, %686, %cst_237 [1] : vector<12x12xf32> to vector<12xf32>
    %688 = vector.shape_cast %687 : vector<12xf32> to vector<12x1xf32>
    %689 = tpu.reciprocal %688 {approx = true} : vector<12x1xf32> -> vector<12x1xf32>
    %690 = vector.broadcast %689 : vector<12x1xf32> to vector<12x12xf32>
    %691 = arith.mulf %686, %690 : vector<12x12xf32>
    %cst_238 = arith.constant dense<0.000000e+00> : vector<12x8xf32>
    %692 = tpu.matmul %691, %677, %cst_238 {dimension_numbers = #tpu.dot_dimension_numbers<[1], [0], [0], [1], [0, 0, 1, 1], [], []>} : vector<12x12xf32>, vector<12x8xf32>, vector<12x8xf32> -> vector<12x8xf32>
    %693 = vector.extract_strided_slice %638 {offsets = [0, 24], sizes = [12, 8], strides = [1, 1]} : vector<12x96xf32> to vector<12x8xf32>
    %694 = vector.extract_strided_slice %638 {offsets = [0, 56], sizes = [12, 8], strides = [1, 1]} : vector<12x96xf32> to vector<12x8xf32>
    %695 = vector.extract_strided_slice %638 {offsets = [0, 88], sizes = [12, 8], strides = [1, 1]} : vector<12x96xf32> to vector<12x8xf32>
    %cst_239 = arith.constant dense<0.000000e+00> : vector<12x12xf32>
    %696 = tpu.matmul %693, %694, %cst_239 {dimension_numbers = #tpu.dot_dimension_numbers<[1], [1], [0], [0], [0, 0, 1, 0], [], []>} : vector<12x8xf32>, vector<12x8xf32>, vector<12x12xf32> -> vector<12x12xf32>
    %cst_240 = arith.constant 0.353553385 : f32
    %697 = vector.broadcast %cst_240 : f32 to vector<12x12xf32>
    %698 = arith.mulf %696, %697 : vector<12x12xf32>
    %699 = arith.addf %698, %447 : vector<12x12xf32>
    %cst_241 = arith.constant dense<0xFF800000> : vector<12xf32>
    %700 = vector.multi_reduction <maximumf>, %699, %cst_241 [1] : vector<12x12xf32> to vector<12xf32>
    %701 = vector.shape_cast %700 : vector<12xf32> to vector<12x1xf32>
    %702 = vector.broadcast %701 : vector<12x1xf32> to vector<12x12xf32>
    %703 = arith.subf %699, %702 : vector<12x12xf32>
    %704 = math.exp %703 : vector<12x12xf32>
    %cst_242 = arith.constant dense<0.000000e+00> : vector<12xf32>
    %705 = vector.multi_reduction <add>, %704, %cst_242 [1] : vector<12x12xf32> to vector<12xf32>
    %706 = vector.shape_cast %705 : vector<12xf32> to vector<12x1xf32>
    %707 = tpu.reciprocal %706 {approx = true} : vector<12x1xf32> -> vector<12x1xf32>
    %708 = vector.broadcast %707 : vector<12x1xf32> to vector<12x12xf32>
    %709 = arith.mulf %704, %708 : vector<12x12xf32>
    %cst_243 = arith.constant dense<0.000000e+00> : vector<12x8xf32>
    %710 = tpu.matmul %709, %695, %cst_243 {dimension_numbers = #tpu.dot_dimension_numbers<[1], [0], [0], [1], [0, 0, 1, 1], [], []>} : vector<12x12xf32>, vector<12x8xf32>, vector<12x8xf32> -> vector<12x8xf32>
    %711 = tpu.concatenate %656, %674, %692, %710 in 1 : vector<12x8xf32>, vector<12x8xf32>, vector<12x8xf32>, vector<12x8xf32> -> vector<12x32xf32>
    %cst_244 = arith.constant dense<0.000000e+00> : vector<12x32xf32>
    %712 = tpu.matmul %711, %634, %cst_244 {dimension_numbers = #tpu.dot_dimension_numbers<[1], [0], [0], [1], [0, 0, 1, 1], [], []>} : vector<12x32xf32>, vector<32x32xf32>, vector<12x32xf32> -> vector<12x32xf32>
    %713 = vector.broadcast %635 : vector<1x32xf32> to vector<12x32xf32>
    %714 = arith.addf %712, %713 : vector<12x32xf32>
    %715 = arith.addf %714, %631 : vector<12x32xf32>
    %c1296 = arith.constant 1296 : index
    %c0_245 = arith.constant 0 : index
    %716 = vector.load %arg6[%c1296, %c0_245] : memref<1488x128xf32, #tpu.memory_space<vmem>>, vector<1x32xf32>
    %c1304 = arith.constant 1304 : index
    %c0_246 = arith.constant 0 : index
    %717 = vector.load %arg6[%c1304, %c0_246] : memref<1488x128xf32, #tpu.memory_space<vmem>>, vector<1x32xf32>
    %cst_247 = arith.constant dense<0.000000e+00> : vector<12xf32>
    %718 = vector.multi_reduction <add>, %715, %cst_247 [1] : vector<12x32xf32> to vector<12xf32>
    %719 = vector.shape_cast %718 : vector<12xf32> to vector<12x1xf32>
    %cst_248 = arith.constant 3.200000e+01 : f32
    %720 = vector.broadcast %cst_248 : f32 to vector<12x1xf32>
    %721 = arith.divf %719, %720 : vector<12x1xf32>
    %722 = vector.broadcast %721 : vector<12x1xf32> to vector<12x32xf32>
    %723 = arith.subf %715, %722 : vector<12x32xf32>
    %724 = arith.mulf %723, %723 : vector<12x32xf32>
    %cst_249 = arith.constant dense<0.000000e+00> : vector<12xf32>
    %725 = vector.multi_reduction <add>, %724, %cst_249 [1] : vector<12x32xf32> to vector<12xf32>
    %726 = vector.shape_cast %725 : vector<12xf32> to vector<12x1xf32>
    %cst_250 = arith.constant 3.200000e+01 : f32
    %727 = vector.broadcast %cst_250 : f32 to vector<12x1xf32>
    %728 = arith.divf %726, %727 : vector<12x1xf32>
    %729 = vector.broadcast %721 : vector<12x1xf32> to vector<12x32xf32>
    %730 = arith.subf %715, %729 : vector<12x32xf32>
    %cst_251 = arith.constant 9.99999996E-13 : f32
    %731 = vector.broadcast %cst_251 : f32 to vector<12x1xf32>
    %732 = arith.addf %728, %731 : vector<12x1xf32>
    %733 = math.rsqrt %732 : vector<12x1xf32>
    %734 = vector.broadcast %733 : vector<12x1xf32> to vector<12x32xf32>
    %735 = arith.mulf %730, %734 : vector<12x32xf32>
    %736 = vector.broadcast %716 : vector<1x32xf32> to vector<12x32xf32>
    %737 = arith.mulf %735, %736 : vector<12x32xf32>
    %738 = vector.broadcast %717 : vector<1x32xf32> to vector<12x32xf32>
    %739 = arith.addf %737, %738 : vector<12x32xf32>
    %c1312 = arith.constant 1312 : index
    %c0_252 = arith.constant 0 : index
    %740 = vector.load %arg6[%c1312, %c0_252] : memref<1488x128xf32, #tpu.memory_space<vmem>>, vector<32x64xf32>
    %c1344 = arith.constant 1344 : index
    %c0_253 = arith.constant 0 : index
    %741 = vector.load %arg6[%c1344, %c0_253] : memref<1488x128xf32, #tpu.memory_space<vmem>>, vector<1x64xf32>
    %c1352 = arith.constant 1352 : index
    %c0_254 = arith.constant 0 : index
    %742 = vector.load %arg6[%c1352, %c0_254] : memref<1488x128xf32, #tpu.memory_space<vmem>>, vector<64x32xf32>
    %c1416 = arith.constant 1416 : index
    %c0_255 = arith.constant 0 : index
    %743 = vector.load %arg6[%c1416, %c0_255] : memref<1488x128xf32, #tpu.memory_space<vmem>>, vector<1x32xf32>
    %cst_256 = arith.constant dense<0.000000e+00> : vector<12x64xf32>
    %744 = tpu.matmul %739, %740, %cst_256 {dimension_numbers = #tpu.dot_dimension_numbers<[1], [0], [0], [1], [0, 0, 1, 1], [], []>} : vector<12x32xf32>, vector<32x64xf32>, vector<12x64xf32> -> vector<12x64xf32>
    %745 = vector.broadcast %741 : vector<1x64xf32> to vector<12x64xf32>
    %746 = arith.addf %744, %745 : vector<12x64xf32>
    %cst_257 = arith.constant 5.000000e-01 : f32
    %747 = vector.broadcast %cst_257 : f32 to vector<12x64xf32>
    %748 = arith.mulf %747, %746 : vector<12x64xf32>
    %cst_258 = arith.constant 0.707106769 : f32
    %749 = vector.broadcast %cst_258 : f32 to vector<12x64xf32>
    %750 = arith.mulf %746, %749 : vector<12x64xf32>
    %cst_259 = arith.constant 0.000000e+00 : f32
    %751 = vector.broadcast %cst_259 : f32 to vector<12x64xf32>
    %752 = arith.cmpf oge, %750, %751 : vector<12x64xf32>
    %cst_260 = arith.constant 1.000000e+00 : f32
    %cst_261 = arith.constant -1.000000e+00 : f32
    %753 = vector.broadcast %cst_260 : f32 to vector<12x64xf32>
    %754 = vector.broadcast %cst_261 : f32 to vector<12x64xf32>
    %755 = arith.select %752, %753, %754 : vector<12x64xi1>, vector<12x64xf32>
    %756 = math.absf %750 : vector<12x64xf32>
    %cst_262 = arith.constant 0.327591091 : f32
    %757 = vector.broadcast %cst_262 : f32 to vector<12x64xf32>
    %758 = arith.mulf %757, %756 : vector<12x64xf32>
    %cst_263 = arith.constant 1.000000e+00 : f32
    %759 = vector.broadcast %cst_263 : f32 to vector<12x64xf32>
    %760 = arith.addf %759, %758 : vector<12x64xf32>
    %cst_264 = arith.constant 1.000000e+00 : f32
    %761 = vector.broadcast %cst_264 : f32 to vector<12x64xf32>
    %762 = arith.divf %761, %760 : vector<12x64xf32>
    %cst_265 = arith.constant 1.06140542 : f32
    %763 = vector.broadcast %cst_265 : f32 to vector<12x64xf32>
    %764 = arith.mulf %763, %762 : vector<12x64xf32>
    %cst_266 = arith.constant -1.45315206 : f32
    %765 = vector.broadcast %cst_266 : f32 to vector<12x64xf32>
    %766 = arith.addf %764, %765 : vector<12x64xf32>
    %767 = arith.mulf %766, %762 : vector<12x64xf32>
    %cst_267 = arith.constant 1.42141378 : f32
    %768 = vector.broadcast %cst_267 : f32 to vector<12x64xf32>
    %769 = arith.addf %767, %768 : vector<12x64xf32>
    %770 = arith.mulf %769, %762 : vector<12x64xf32>
    %cst_268 = arith.constant -0.284496725 : f32
    %771 = vector.broadcast %cst_268 : f32 to vector<12x64xf32>
    %772 = arith.addf %770, %771 : vector<12x64xf32>
    %773 = arith.mulf %772, %762 : vector<12x64xf32>
    %cst_269 = arith.constant 0.254829586 : f32
    %774 = vector.broadcast %cst_269 : f32 to vector<12x64xf32>
    %775 = arith.addf %773, %774 : vector<12x64xf32>
    %776 = arith.mulf %775, %762 : vector<12x64xf32>
    %cst_270 = arith.constant 0.000000e+00 : f32
    %777 = vector.broadcast %cst_270 : f32 to vector<12x64xf32>
    %778 = arith.subf %777, %756 : vector<12x64xf32>
    %779 = arith.mulf %778, %756 : vector<12x64xf32>
    %780 = math.exp %779 : vector<12x64xf32>
    %781 = arith.mulf %776, %780 : vector<12x64xf32>
    %cst_271 = arith.constant 1.000000e+00 : f32
    %782 = vector.broadcast %cst_271 : f32 to vector<12x64xf32>
    %783 = arith.subf %782, %781 : vector<12x64xf32>
    %784 = arith.mulf %755, %783 : vector<12x64xf32>
    %cst_272 = arith.constant 1.000000e+00 : f32
    %785 = vector.broadcast %cst_272 : f32 to vector<12x64xf32>
    %786 = arith.addf %785, %784 : vector<12x64xf32>
    %787 = arith.mulf %748, %786 : vector<12x64xf32>
    %cst_273 = arith.constant dense<0.000000e+00> : vector<12x32xf32>
    %788 = tpu.matmul %787, %742, %cst_273 {dimension_numbers = #tpu.dot_dimension_numbers<[1], [0], [0], [1], [0, 0, 1, 1], [], []>} : vector<12x64xf32>, vector<64x32xf32>, vector<12x32xf32> -> vector<12x32xf32>
    %789 = vector.broadcast %743 : vector<1x32xf32> to vector<12x32xf32>
    %790 = arith.addf %788, %789 : vector<12x32xf32>
    %791 = arith.addf %790, %739 : vector<12x32xf32>
    %c1424 = arith.constant 1424 : index
    %c0_274 = arith.constant 0 : index
    %792 = vector.load %arg6[%c1424, %c0_274] : memref<1488x128xf32, #tpu.memory_space<vmem>>, vector<1x32xf32>
    %c1432 = arith.constant 1432 : index
    %c0_275 = arith.constant 0 : index
    %793 = vector.load %arg6[%c1432, %c0_275] : memref<1488x128xf32, #tpu.memory_space<vmem>>, vector<1x32xf32>
    %cst_276 = arith.constant dense<0.000000e+00> : vector<12xf32>
    %794 = vector.multi_reduction <add>, %791, %cst_276 [1] : vector<12x32xf32> to vector<12xf32>
    %795 = vector.shape_cast %794 : vector<12xf32> to vector<12x1xf32>
    %cst_277 = arith.constant 3.200000e+01 : f32
    %796 = vector.broadcast %cst_277 : f32 to vector<12x1xf32>
    %797 = arith.divf %795, %796 : vector<12x1xf32>
    %798 = vector.broadcast %797 : vector<12x1xf32> to vector<12x32xf32>
    %799 = arith.subf %791, %798 : vector<12x32xf32>
    %800 = arith.mulf %799, %799 : vector<12x32xf32>
    %cst_278 = arith.constant dense<0.000000e+00> : vector<12xf32>
    %801 = vector.multi_reduction <add>, %800, %cst_278 [1] : vector<12x32xf32> to vector<12xf32>
    %802 = vector.shape_cast %801 : vector<12xf32> to vector<12x1xf32>
    %cst_279 = arith.constant 3.200000e+01 : f32
    %803 = vector.broadcast %cst_279 : f32 to vector<12x1xf32>
    %804 = arith.divf %802, %803 : vector<12x1xf32>
    %805 = vector.broadcast %797 : vector<12x1xf32> to vector<12x32xf32>
    %806 = arith.subf %791, %805 : vector<12x32xf32>
    %cst_280 = arith.constant 9.99999996E-13 : f32
    %807 = vector.broadcast %cst_280 : f32 to vector<12x1xf32>
    %808 = arith.addf %804, %807 : vector<12x1xf32>
    %809 = math.rsqrt %808 : vector<12x1xf32>
    %810 = vector.broadcast %809 : vector<12x1xf32> to vector<12x32xf32>
    %811 = arith.mulf %806, %810 : vector<12x32xf32>
    %812 = vector.broadcast %792 : vector<1x32xf32> to vector<12x32xf32>
    %813 = arith.mulf %811, %812 : vector<12x32xf32>
    %814 = vector.broadcast %793 : vector<1x32xf32> to vector<12x32xf32>
    %815 = arith.addf %813, %814 : vector<12x32xf32>
    %c1440 = arith.constant 1440 : index
    %c0_281 = arith.constant 0 : index
    %816 = vector.load %arg6[%c1440, %c0_281] : memref<1488x128xf32, #tpu.memory_space<vmem>>, vector<32x128xf32>
    %cst_282 = arith.constant dense<0.000000e+00> : vector<12x128xf32>
    %817 = tpu.matmul %815, %816, %cst_282 {dimension_numbers = #tpu.dot_dimension_numbers<[1], [0], [0], [1], [0, 0, 1, 1], [], []>} : vector<12x32xf32>, vector<32x128xf32>, vector<12x128xf32> -> vector<12x128xf32>
    %c1472 = arith.constant 1472 : index
    %c0_283 = arith.constant 0 : index
    %818 = vector.load %arg6[%c1472, %c0_283] : memref<1488x128xf32, #tpu.memory_space<vmem>>, vector<1x128xf32>
    %819 = vector.broadcast %818 : vector<1x128xf32> to vector<12x128xf32>
    %820 = arith.addf %817, %819 : vector<12x128xf32>
    %c984 = arith.constant 984 : index
    %c0_284 = arith.constant 0 : index
    %821 = vector.load %arg6[%c984, %c0_284] : memref<1488x128xf32, #tpu.memory_space<vmem>>, vector<8x12xf32>
    %cst_285 = arith.constant dense<0.000000e+00> : vector<8x128xf32>
    %822 = tpu.matmul %821, %820, %cst_285 {dimension_numbers = #tpu.dot_dimension_numbers<[1], [0], [0], [1], [0, 0, 1, 1], [], []>} : vector<8x12xf32>, vector<12x128xf32>, vector<8x128xf32> -> vector<8x128xf32>
    %c1 = arith.constant 1 : index
    %823 = memref.load %arg5[%c1] : memref<2xf32, #tpu.memory_space<smem>>
    %824 = vector.broadcast %823 : f32 to vector<8x128xf32>
    %825 = arith.mulf %824, %403 : vector<8x128xf32>
    %cst_286 = arith.constant 1.000000e+00 : f32
    %826 = arith.subf %cst_286, %823 : f32
    %827 = vector.broadcast %826 : f32 to vector<8x128xf32>
    %828 = arith.mulf %827, %822 : vector<8x128xf32>
    %829 = arith.addf %825, %828 : vector<8x128xf32>
    %c0_287 = arith.constant 0 : index
    %c0_288 = arith.constant 0 : index
    %830 = vector.load %arg4[%c0_287, %c0_288] : memref<8x1xi32, #tpu.memory_space<vmem>>, vector<8x1xi32>
    %c-100_i32 = arith.constant -100 : i32
    %831 = vector.broadcast %c-100_i32 : i32 to vector<8x1xi32>
    %832 = arith.cmpi ne, %830, %831 : vector<8x1xi32>
    %833 = arith.extui %832 : vector<8x1xi1> to vector<8x1xi32>
    %834 = arith.sitofp %833 : vector<8x1xi32> to vector<8x1xf32>
    %cst_289 = arith.constant dense<0.000000e+00> : vector<1xf32>
    %835 = vector.multi_reduction <add>, %834, %cst_289 [0] : vector<8x1xf32> to vector<1xf32>
    %836 = vector.shape_cast %835 : vector<1xf32> to vector<1x1xf32>
    %cst_290 = arith.constant 1.000000e+00 : f32
    %837 = vector.broadcast %cst_290 : f32 to vector<1x1xf32>
    %838 = arith.maximumf %836, %837 : vector<1x1xf32>
    %839 = tpu.iota {dimensions = array<i32: 1>} : vector<8x128xi32>
    %840 = vector.broadcast %830 : vector<8x1xi32> to vector<8x128xi32>
    %841 = arith.cmpi eq, %839, %840 : vector<8x128xi32>
    %842 = arith.extui %841 : vector<8x128xi1> to vector<8x128xi32>
    %843 = arith.sitofp %842 : vector<8x128xi32> to vector<8x128xf32>
    %c1480 = arith.constant 1480 : index
    %c0_291 = arith.constant 0 : index
    %844 = vector.load %arg6[%c1480, %c0_291] : memref<1488x128xf32, #tpu.memory_space<vmem>>, vector<1x128xf32>
    %845 = vector.broadcast %844 : vector<1x128xf32> to vector<8x128xf32>
    %846 = arith.addf %829, %845 : vector<8x128xf32>
    %cst_292 = arith.constant dense<0xFF800000> : vector<8xf32>
    %847 = vector.multi_reduction <maximumf>, %846, %cst_292 [1] : vector<8x128xf32> to vector<8xf32>
    %848 = vector.shape_cast %847 : vector<8xf32> to vector<8x1xf32>
    %849 = vector.broadcast %848 : vector<8x1xf32> to vector<8x128xf32>
    %850 = arith.subf %846, %849 : vector<8x128xf32>
    %851 = math.exp %850 : vector<8x128xf32>
    %cst_293 = arith.constant dense<0.000000e+00> : vector<8xf32>
    %852 = vector.multi_reduction <add>, %851, %cst_293 [1] : vector<8x128xf32> to vector<8xf32>
    %853 = vector.shape_cast %852 : vector<8xf32> to vector<8x1xf32>
    %854 = math.log %853 : vector<8x1xf32>
    %855 = arith.addf %854, %848 : vector<8x1xf32>
    %856 = arith.mulf %829, %843 : vector<8x128xf32>
    %cst_294 = arith.constant dense<0.000000e+00> : vector<8xf32>
    %857 = vector.multi_reduction <add>, %856, %cst_294 [1] : vector<8x128xf32> to vector<8xf32>
    %858 = vector.shape_cast %857 : vector<8xf32> to vector<8x1xf32>
    %859 = arith.subf %855, %858 : vector<8x1xf32>
    %860 = arith.mulf %859, %834 : vector<8x1xf32>
    %cst_295 = arith.constant dense<0.000000e+00> : vector<1xf32>
    %861 = vector.multi_reduction <add>, %860, %cst_295 [0] : vector<8x1xf32> to vector<1xf32>
    %862 = vector.shape_cast %861 : vector<1xf32> to vector<1x1xf32>
    %863 = arith.divf %862, %838 : vector<1x1xf32>
    %864 = vector.broadcast %844 : vector<1x128xf32> to vector<8x128xf32>
    %865 = arith.addf %403, %864 : vector<8x128xf32>
    %cst_296 = arith.constant dense<0xFF800000> : vector<8xf32>
    %866 = vector.multi_reduction <maximumf>, %865, %cst_296 [1] : vector<8x128xf32> to vector<8xf32>
    %867 = vector.shape_cast %866 : vector<8xf32> to vector<8x1xf32>
    %868 = vector.broadcast %867 : vector<8x1xf32> to vector<8x128xf32>
    %869 = arith.subf %865, %868 : vector<8x128xf32>
    %870 = math.exp %869 : vector<8x128xf32>
    %cst_297 = arith.constant dense<0.000000e+00> : vector<8xf32>
    %871 = vector.multi_reduction <add>, %870, %cst_297 [1] : vector<8x128xf32> to vector<8xf32>
    %872 = vector.shape_cast %871 : vector<8xf32> to vector<8x1xf32>
    %873 = math.log %872 : vector<8x1xf32>
    %874 = arith.addf %873, %867 : vector<8x1xf32>
    %875 = arith.mulf %403, %843 : vector<8x128xf32>
    %cst_298 = arith.constant dense<0.000000e+00> : vector<8xf32>
    %876 = vector.multi_reduction <add>, %875, %cst_298 [1] : vector<8x128xf32> to vector<8xf32>
    %877 = vector.shape_cast %876 : vector<8xf32> to vector<8x1xf32>
    %878 = arith.subf %874, %877 : vector<8x1xf32>
    %879 = arith.mulf %878, %834 : vector<8x1xf32>
    %cst_299 = arith.constant dense<0.000000e+00> : vector<1xf32>
    %880 = vector.multi_reduction <add>, %879, %cst_299 [0] : vector<8x1xf32> to vector<1xf32>
    %881 = vector.shape_cast %880 : vector<1xf32> to vector<1x1xf32>
    %882 = arith.divf %881, %838 : vector<1x1xf32>
    %883 = vector.broadcast %844 : vector<1x128xf32> to vector<8x128xf32>
    %884 = arith.addf %822, %883 : vector<8x128xf32>
    %cst_300 = arith.constant dense<0xFF800000> : vector<8xf32>
    %885 = vector.multi_reduction <maximumf>, %884, %cst_300 [1] : vector<8x128xf32> to vector<8xf32>
    %886 = vector.shape_cast %885 : vector<8xf32> to vector<8x1xf32>
    %887 = vector.broadcast %886 : vector<8x1xf32> to vector<8x128xf32>
    %888 = arith.subf %884, %887 : vector<8x128xf32>
    %889 = math.exp %888 : vector<8x128xf32>
    %cst_301 = arith.constant dense<0.000000e+00> : vector<8xf32>
    %890 = vector.multi_reduction <add>, %889, %cst_301 [1] : vector<8x128xf32> to vector<8xf32>
    %891 = vector.shape_cast %890 : vector<8xf32> to vector<8x1xf32>
    %892 = math.log %891 : vector<8x1xf32>
    %893 = arith.addf %892, %886 : vector<8x1xf32>
    %894 = arith.mulf %822, %843 : vector<8x128xf32>
    %cst_302 = arith.constant dense<0.000000e+00> : vector<8xf32>
    %895 = vector.multi_reduction <add>, %894, %cst_302 [1] : vector<8x128xf32> to vector<8xf32>
    %896 = vector.shape_cast %895 : vector<8xf32> to vector<8x1xf32>
    %897 = arith.subf %893, %896 : vector<8x1xf32>
    %898 = arith.mulf %897, %834 : vector<8x1xf32>
    %cst_303 = arith.constant dense<0.000000e+00> : vector<1xf32>
    %899 = vector.multi_reduction <add>, %898, %cst_303 [0] : vector<8x1xf32> to vector<1xf32>
    %900 = vector.shape_cast %899 : vector<1xf32> to vector<1x1xf32>
    %901 = arith.divf %900, %838 : vector<1x1xf32>
    %c0_304 = arith.constant 0 : index
    %c0_305 = arith.constant 0 : index
    %902 = vector.load %arg7[%c0_304, %c0_305] : memref<16x128xf32, #tpu.memory_space<vmem>>, vector<8x128xf32>
    tpu.vector_store %arg7[%c0_304, %c0_305], %829 {strides = array<i32>} : memref<16x128xf32, #tpu.memory_space<vmem>>, vector<8x128xf32>,
    %903 = tpu.iota {dimensions = array<i32: 0>} : vector<8x128xi32>
    %904 = tpu.iota {dimensions = array<i32: 1>} : vector<8x128xi32>
    %c0_i32 = arith.constant 0 : i32
    %905 = vector.broadcast %c0_i32 : i32 to vector<8x128xi32>
    %906 = arith.cmpi eq, %903, %905 : vector<8x128xi32>
    %c0_i32_306 = arith.constant 0 : i32
    %907 = vector.broadcast %c0_i32_306 : i32 to vector<8x128xi32>
    %908 = arith.cmpi eq, %904, %907 : vector<8x128xi32>
    %909 = arith.andi %906, %908 : vector<8x128xi1>
    %cst_307 = arith.constant 0.000000e+00 : f32
    %910 = vector.shape_cast %863 : vector<1x1xf32> to vector<1x1xf32>
    %911 = vector.broadcast %910 : vector<1x1xf32> to vector<8x128xf32>
    %912 = vector.broadcast %cst_307 : f32 to vector<8x128xf32>
    %913 = arith.select %909, %911, %912 : vector<8x128xi1>, vector<8x128xf32>
    %c0_i32_308 = arith.constant 0 : i32
    %914 = vector.broadcast %c0_i32_308 : i32 to vector<8x128xi32>
    %915 = arith.cmpi eq, %903, %914 : vector<8x128xi32>
    %c1_i32 = arith.constant 1 : i32
    %916 = vector.broadcast %c1_i32 : i32 to vector<8x128xi32>
    %917 = arith.cmpi eq, %904, %916 : vector<8x128xi32>
    %918 = arith.andi %915, %917 : vector<8x128xi1>
    %cst_309 = arith.constant 0.000000e+00 : f32
    %919 = vector.shape_cast %882 : vector<1x1xf32> to vector<1x1xf32>
    %920 = vector.broadcast %919 : vector<1x1xf32> to vector<8x128xf32>
    %921 = vector.broadcast %cst_309 : f32 to vector<8x128xf32>
    %922 = arith.select %918, %920, %921 : vector<8x128xi1>, vector<8x128xf32>
    %923 = arith.addf %913, %922 : vector<8x128xf32>
    %c0_i32_310 = arith.constant 0 : i32
    %924 = vector.broadcast %c0_i32_310 : i32 to vector<8x128xi32>
    %925 = arith.cmpi eq, %903, %924 : vector<8x128xi32>
    %c2_i32 = arith.constant 2 : i32
    %926 = vector.broadcast %c2_i32 : i32 to vector<8x128xi32>
    %927 = arith.cmpi eq, %904, %926 : vector<8x128xi32>
    %928 = arith.andi %925, %927 : vector<8x128xi1>
    %cst_311 = arith.constant 0.000000e+00 : f32
    %929 = vector.shape_cast %901 : vector<1x1xf32> to vector<1x1xf32>
    %930 = vector.broadcast %929 : vector<1x1xf32> to vector<8x128xf32>
    %931 = vector.broadcast %cst_311 : f32 to vector<8x128xf32>
    %932 = arith.select %928, %930, %931 : vector<8x128xi1>, vector<8x128xf32>
    %933 = arith.addf %923, %932 : vector<8x128xf32>
    %c8 = arith.constant 8 : index
    %c0_312 = arith.constant 0 : index
    %934 = vector.load %arg7[%c8, %c0_312] : memref<16x128xf32, #tpu.memory_space<vmem>>, vector<8x128xf32>
    tpu.vector_store %arg7[%c8, %c0_312], %933 {strides = array<i32>} : memref<16x128xf32, #tpu.memory_space<vmem>>, vector<8x128xf32>,
    return
  }
  func.func @transform_0(%arg0: i32) -> (i32, i32) {
    %c0_i32 = arith.constant 0 : i32
    %c0_i32_0 = arith.constant 0 : i32
    %c0_i32_1 = arith.constant 0 : i32
    return %c0_i32, %c0_i32_0 : i32, i32
  }
  func.func @transform_1(%arg0: i32) -> (i32, i32) {
    %c0_i32 = arith.constant 0 : i32
    %c0_i32_0 = arith.constant 0 : i32
    %c0_i32_1 = arith.constant 0 : i32
    return %c0_i32, %c0_i32_0 : i32, i32
  }
  func.func @transform_2(%arg0: i32) -> (i32, i32) {
    %c0_i32 = arith.constant 0 : i32
    %c0_i32_0 = arith.constant 0 : i32
    %c0_i32_1 = arith.constant 0 : i32
    return %c0_i32, %c0_i32_0 : i32, i32
  }
  func.func @transform_3(%arg0: i32) -> (i32, i32) {
    %c0_i32 = arith.constant 0 : i32
    %c0_i32_0 = arith.constant 0 : i32
    %c0_i32_1 = arith.constant 0 : i32
    return %c0_i32, %c0_i32_0 : i32, i32
  }
  func.func @transform_4(%arg0: i32) -> i32 {
    %c0_i32 = arith.constant 0 : i32
    %c0_i32_0 = arith.constant 0 : i32
    return %c0_i32 : i32
  }
  func.func @transform_5(%arg0: i32) -> (i32, i32) {
    %c0_i32 = arith.constant 0 : i32
    %c0_i32_0 = arith.constant 0 : i32
    %c0_i32_1 = arith.constant 0 : i32
    return %c0_i32, %c0_i32_0 : i32, i32
  }
  func.func @transform_6(%arg0: i32) -> (i32, i32) {
    %c0_i32 = arith.constant 0 : i32
    %c0_i32_0 = arith.constant 0 : i32
    %c0_i32_1 = arith.constant 0 : i32
    return %c0_i32, %c0_i32_0 : i32, i32
  }
}

</mosaic_0001>

<llo_original>
// kernel: vit_bert_forward.1
$region0: #{vit_bert_forward.1}
  #allocation0 [shape = 'u32[]', space=smem, size = 0x4, offset = 0x4, fixed_abs, tag = 'smem constant byte address 0x4 - core index']
  #allocation1 [shape = 'u32[144,128]{1,0:T(1,128)}', space=vmem, size = 0x12000, scoped, tag = 'internal scratch']
  %s0 = inlined_call_operand.vmem [shape: f32[40,192], index: 0, kind: input, shape index: {}]
  %s1 = inlined_call_operand.vmem [shape: s32[12,1], index: 1, kind: input, shape index: {}]
  %s2 = inlined_call_operand.vmem [shape: f32[12,12], index: 2, kind: input, shape index: {}]
  %s3 = inlined_call_operand.vmem [shape: s32[8,1], index: 3, kind: input, shape index: {}]
  %s4 = inlined_call_operand.vmem [shape: f32[2], index: 4, kind: input, shape index: {}]
  %s5 = inlined_call_operand.vmem [shape: f32[1488,128], index: 5, kind: input, shape index: {}]
  %s6 = inlined_call_operand.vmem [shape: f32[16,128], index: 6, kind: output, shape index: {}]
  %s7 = sld [smem:[#allocation0]]
  $region38: #{vit_bert_forward.1} parent=0
    _
  %s9 = ssub.s32 1, %s7
  %s10 = scalar_select 0, %s9, %s7
  $region1: #{vit_bert_forward.1} parent=0
    #allocation2 [shape = 'u8[512]{0}', space=smem, size = 0x200, scoped, tag = 'input window, operand 4, single buffered']
    #allocation3 [shape = 's32[1]{0}', space=sflag, size = 0x4, scoped, tag = 'scoped memory for vit_bert_forward.1']
    %11 = vsyncpa [#allocation3], 0
    // Predicated region
    $region2: #{vit_bert_forward.1} parent=1 // pred_check
      _
    $region3: #{vit_bert_forward.1} parent=1 // pred_check_branch
      %13 = sbr.rel (0) target = $region5
    $region4: #{vit_bert_forward.1} parent=1 // pred_region
      _
    $region5: #{vit_bert_forward.1} parent=1 // pred_fallthru
      _
    // Predicated region
    $region6: #{vit_bert_forward.1} parent=1 // pred_check
      _
    $region7: #{vit_bert_forward.1} parent=1 // pred_check_branch
      %15 = sbr.rel (0) target = $region9
    $region8: #{vit_bert_forward.1} parent=1 // pred_region
      _
    $region9: #{vit_bert_forward.1} parent=1 // pred_fallthru
      _
    // Predicated region
    $region10: #{vit_bert_forward.1} parent=1 // pred_check
      _
    $region11: #{vit_bert_forward.1} parent=1 // pred_check_branch
      %17 = sbr.rel (0) target = $region13
    $region12: #{vit_bert_forward.1} parent=1 // pred_region
      _
    $region13: #{vit_bert_forward.1} parent=1 // pred_fallthru
      _
    // Predicated region
    $region14: #{vit_bert_forward.1} parent=1 // pred_check
      _
    $region15: #{vit_bert_forward.1} parent=1 // pred_check_branch
      %19 = sbr.rel (0) target = $region17
    $region16: #{vit_bert_forward.1} parent=1 // pred_region
      _
    $region17: #{vit_bert_forward.1} parent=1 // pred_fallthru
      _
    // Predicated region
    $region18: #{vit_bert_forward.1} parent=1 // pred_check
      _
    $region19: #{vit_bert_forward.1} parent=1 // pred_check_branch
      %21 = sbr.rel (0) target = $region21
    $region20: #{vit_bert_forward.1} parent=1 // pred_region
      %s23 = ssub.s32 16, 16
      %24 = vsyncadd [#allocation3], %s23
      %s26 = sshll.u32 %s4, 4
      %s27 = int_to_ptr.vmem [resolvable:$true] %s26
      %29 = dma.vmem_to_smem %s27, 16, [#allocation2], [#allocation3]
    $region21: #{vit_bert_forward.1} parent=1 // pred_fallthru
      _
    // Predicated region
    $region22: #{vit_bert_forward.1} parent=1 // pred_check
      _
    $region23: #{vit_bert_forward.1} parent=1 // pred_check_branch
      %31 = sbr.rel (0) target = $region25
    $region24: #{vit_bert_forward.1} parent=1 // pred_region
      _
    $region25: #{vit_bert_forward.1} parent=1 // pred_fallthru
      _
    // Predicated region
    $region26: #{vit_bert_forward.1} parent=1 // pred_check
      _
    $region27: #{vit_bert_forward.1} parent=1 // pred_check_branch
      %33 = sbr.rel (0) target = $region29
    $region28: #{vit_bert_forward.1} parent=1 // pred_region
      %34 = dma.done [#allocation3], 16
    $region29: #{vit_bert_forward.1} parent=1 // pred_fallthru
      _
    %35 = sfence
    %v36 = vld [vmem:[%s0] sm:$0xff]
    %v37 = vld [vmem:[%s0 + $0x8] sm:$0xff]
    %v38 = vld [vmem:[%s0 + $0x10] sm:$0xff]
    %v39 = vld [vmem:[%s0 + $0x18] sm:$0xff]
    %v40 = vld [vmem:[%s0 + $0x20] sm:$0xff]
    %v41 = vld [vmem:[%s0 + $0x28] sm:$0xff]
    %v42 = vld [vmem:[%s0 + $0x30] sm:$0xff]
    %v43 = vld [vmem:[%s0 + $0x38] sm:$0xff]
    %v44 = vld [vmem:[%s0 + $0x40] sm:$0xff]
    %v45 = vld [vmem:[%s0 + $0x48] sm:$0xff]
    %v46 = vld [vmem:[%s5] sm:$0xff]
    %v47 = vld [vmem:[%s5 + $0x8] sm:$0xff]
    %v48 = vld [vmem:[%s5 + $0x10] sm:$0xff]
    %v49 = vld [vmem:[%s5 + $0x18] sm:$0xff]
    %v50 = vld [vmem:[%s5 + $0x20] sm:$0xff]
    %v51 = vld [vmem:[%s5 + $0x28] sm:$0xff]
    %v52 = vld [vmem:[%s5 + $0x30] sm:$0xff]
    %v53 = vld [vmem:[%s5 + $0x38] sm:$0xff]
    %v54 = vld [vmem:[%s5 + $0x40] sm:$0xff]
    %v55 = vld [vmem:[%s5 + $0x48] sm:$0xff]
    %v56 = vld [vmem:[%s5 + $0x50] sm:$0xff]
    %v57 = vld [vmem:[%s5 + $0x58] sm:$0xff]
    %v58 = vld [vmem:[%s5 + $0x60] sm:$0xff]
    %v59 = vld [vmem:[%s5 + $0x68] sm:$0xff]
    %v60 = vld [vmem:[%s5 + $0x70] sm:$0xff]
    %v61 = vld [vmem:[%s5 + $0x78] sm:$0xff]
    %v62 = vld [vmem:[%s5 + $0x80] sm:$0xff]
    %v63 = vld [vmem:[%s5 + $0x88] sm:$0xff]
    %v64 = vld [vmem:[%s5 + $0x90] sm:$0xff]
    %v65 = vld [vmem:[%s5 + $0x98] sm:$0xff]
    %v66 = vld [vmem:[%s5 + $0xa0] sm:$0xff]
    %v67 = vld [vmem:[%s5 + $0xa8] sm:$0xff]
    %v68 = vld [vmem:[%s5 + $0xb0] sm:$0xff]
    %v69 = vld [vmem:[%s5 + $0xb8] sm:$0xff]
    %v70 = vld [vmem:[%s5 + $0xc0] sm:$0xff]
    %v71 = vld [vmem:[%s5 + $0xc8] sm:$0xff]
    %v72 = vld [vmem:[%s5 + $0xd0] sm:$0xff]
    %v73 = vld [vmem:[%s5 + $0xd8] sm:$0xff]
    %v74 = vld [vmem:[%s5 + $0xe0] sm:$0xff]
    %vm75 = vcmask 523264
    %v77 = vsel %vm75, %v37, 0
    %v80 = vsel %vm75, %v39, 0
    %v83 = vsel %vm75, %v41, 0
    %v86 = vsel %vm75, %v43, 0
    %v89 = vsel %vm75, %v45, 0
    %91 = vmatprep.subr.mxu0 0.0
    %92 = vmatpush1.msra.mxu0 %v61
    %93 = vmatprep.subr.mxu0 0.0
    %94 = vmatpush1.msra.mxu0 %v60
    %95 = vmatprep.subr.mxu0 0.0
    %96 = vmatpush1.msra.mxu0 %v59
    %97 = vmatprep.subr.mxu0 0.0
    %98 = vmatpush1.msra.mxu0 %v58
    %99 = vmatprep.subr.mxu0 0.0
    %100 = vmatpush1.msra.mxu0 %v57
    %101 = vmatprep.subr.mxu0 0.0
    %102 = vmatpush1.msra.mxu0 %v56
    %103 = vmatprep.subr.mxu0 0.0
    %104 = vmatpush1.msra.mxu0 %v55
    %105 = vmatprep.subr.mxu0 0.0
    %106 = vmatpush1.msra.mxu0 %v54
    %107 = vmatprep.subr.mxu0 0.0
    %108 = vmatpush1.msra.mxu0 %v53
    %109 = vmatprep.subr.mxu0 0.0
    %110 = vmatpush1.msra.mxu0 %v52
    %111 = vmatprep.subr.mxu0 0.0
    %112 = vmatpush1.msra.mxu0 %v51
    %113 = vmatprep.subr.mxu0 0.0
    %114 = vmatpush1.msra.mxu0 %v50
    %115 = vmatprep.subr.mxu0 0.0
    %116 = vmatpush1.msra.mxu0 %v49
    %117 = vmatprep.subr.mxu0 0.0
    %118 = vmatpush1.msra.mxu0 %v48
    %119 = vmatprep.subr.mxu0 0.0
    %120 = vmatpush1.msra.mxu0 %v47
    %121 = vmatprep.subr.mxu0 0.0
    %122 = vmatpush1.msra.mxu0 %v46
    %123 = vmatprep.subr.mxu0 0.0
    %124 = vmatpush2.msra.mxu0 0.0
    %125 = vmatprep.subr.mxu0 0.0
    %126 = vmatpush2.msra.mxu0 0.0
    %127 = vmatprep.subr.mxu0 0.0
    %128 = vmatpush2.msra.mxu0 0.0
    %129 = vmatprep.subr.mxu0 0.0
    %130 = vmatpush2.msra.mxu0 0.0
    %131 = vmatprep.subr.mxu0 0.0
    %132 = vmatpush2.msra.mxu0 0.0
    %133 = vmatprep.subr.mxu0 0.0
    %134 = vmatpush2.msra.mxu0 0.0
    %135 = vmatprep.subr.mxu0 0.0
    %136 = vmatpush2.msra.mxu0 0.0
    %137 = vmatprep.subr.mxu0 0.0
    %138 = vmatpush2.msra.mxu0 0.0
    %139 = vmatprep.subr.mxu0 0.0
    %140 = vmatpush2.msra.mxu0 %v69
    %141 = vmatprep.subr.mxu0 0.0
    %142 = vmatpush2.msra.mxu0 %v68
    %143 = vmatprep.subr.mxu0 0.0
    %144 = vmatpush2.msra.mxu0 %v67
    %145 = vmatprep.subr.mxu0 0.0
    %146 = vmatpush2.msra.mxu0 %v66
    %147 = vmatprep.subr.mxu0 0.0
    %148 = vmatpush2.msra.mxu0 %v65
    %149 = vmatprep.subr.mxu0 0.0
    %150 = vmatpush2.msra.mxu0 %v64
    %151 = vmatprep.subr.mxu0 0.0
    %152 = vmatpush2.msra.mxu0 %v63
    %153 = vmatprep.subr.mxu0 0.0
    %154 = vmatpush2.msra.mxu0 %v62
    %155 = vmatprep.mubr.f32.mxu0 %v77
    %156 = vmatmul.mubr.f32.gmra.mxu0 %v36
    %v157 = vpop.f32.mrf.mxu0
    %v158 = vadd.f32 %v70, %v157
    %v159 = vpop.f32.mrf.mxu0
    %160 = vmatprep.mubr.f32.mxu0 %v80
    %161 = vmatmul.mubr.f32.gmra.mxu0 %v38
    %v162 = vpop.f32.mrf.mxu0
    %v163 = vadd.f32 %v71, %v162
    %v164 = vpop.f32.mrf.mxu0
    %165 = vmatprep.mubr.f32.mxu0 %v83
    %166 = vmatmul.mubr.f32.gmra.mxu0 %v40
    %v167 = vpop.f32.mrf.mxu0
    %v168 = vadd.f32 %v72, %v167
    %v169 = vpop.f32.mrf.mxu0
    %170 = vmatprep.mubr.f32.mxu0 %v86
    %171 = vmatmul.mubr.f32.gmra.mxu0 %v42
    %v172 = vpop.f32.mrf.mxu0
    %v173 = vadd.f32 %v73, %v172
    %v174 = vpop.f32.mrf.mxu0
    %175 = vmatprep.mubr.f32.mxu0 %v89
    %176 = vmatmul.mubr.f32.gmra.mxu0 %v44
    %v177 = vpop.f32.mrf.mxu0
    %v178 = vadd.f32 %v74, %v177
    %v179 = vpop.f32.mrf.mxu0
    %180 = vdwg.mxu0
    %v181 = vld [vmem:[%s5 + $0xe8] sm:$0xff]
    %v182 = vld [vmem:[%s5 + $0xf0] sm:$0xff]
    %v183 = vld [vmem:[%s5 + $0xf8] sm:$0xff]
    %v184 = vld [vmem:[%s5 + $0x100] sm:$0xff]
    %v185 = vld [vmem:[%s5 + $0x108] sm:$0xff]
    %v186 = vld [vmem:[%s5 + $0x110] sm:$0x1]
    %v187 = vld [vmem:[%s5 + $0x118] sm:$0x1]
    %vm188 = vcmask 261120
    %v189 = vsel %vm188, %v158, 0.0
    %190 = vadd.xlane.f32.xlu0 %v189
    %v191 = vpop.xlane.xlu0 %190
    %v192 = vsel %vm188, %v163, 0.0
    %193 = vadd.xlane.f32.xlu0 %v192
    %v194 = vpop.xlane.xlu0 %193
    %v195 = vsel %vm188, %v168, 0.0
    %196 = vadd.xlane.f32.xlu0 %v195
    %v197 = vpop.xlane.xlu0 %196
    %v198 = vsel %vm188, %v173, 0.0
    %199 = vadd.xlane.f32.xlu0 %v198
    %v200 = vpop.xlane.xlu0 %199
    %v201 = vsel %vm188, %v178, 0.0
    %202 = vadd.xlane.f32.xlu0 %v201
    %v203 = vpop.xlane.xlu0 %202
    %v204 = vrcp.pop 32.0
    %v205 = vmul.f32 %v191, %v204
    %v206 = vmul.f32 %v194, %v204
    %v207 = vmul.f32 %v197, %v204
    %v208 = vmul.f32 %v200, %v204
    %v209 = vmul.f32 %v203, %v204
    %v210 = vsub.f32 %v158, %v205
    %v211 = vsub.f32 %v163, %v206
    %v212 = vsub.f32 %v168, %v207
    %v213 = vsub.f32 %v173, %v208
    %v214 = vsub.f32 %v178, %v209
    %v215 = vmul.f32 %v210, %v210
    %v216 = vmul.f32 %v211, %v211
    %v217 = vmul.f32 %v212, %v212
    %v218 = vmul.f32 %v213, %v213
    %v219 = vmul.f32 %v214, %v214
    %v220 = vsel %vm188, %v215, 0.0
    %221 = vadd.xlane.f32.xlu0 %v220
    %v222 = vpop.xlane.xlu0 %221
    %v223 = vsel %vm188, %v216, 0.0
    %224 = vadd.xlane.f32.xlu0 %v223
    %v225 = vpop.xlane.xlu0 %224
    %v226 = vsel %vm188, %v217, 0.0
    %227 = vadd.xlane.f32.xlu0 %v226
    %v228 = vpop.xlane.xlu0 %227
    %v229 = vsel %vm188, %v218, 0.0
    %230 = vadd.xlane.f32.xlu0 %v229
    %v231 = vpop.xlane.xlu0 %230
    %v232 = vsel %vm188, %v219, 0.0
    %233 = vadd.xlane.f32.xlu0 %v232
    %v234 = vpop.xlane.xlu0 %233
    %v235 = vmul.f32 %v222, %v204
    %v236 = vmul.f32 %v225, %v204
    %v237 = vmul.f32 %v228, %v204
    %v238 = vmul.f32 %v231, %v204
    %v239 = vmul.f32 %v234, %v204
    %v240 = vadd.f32 %v235, 1e-06
    %v241 = vadd.f32 %v236, 1e-06
    %v242 = vadd.f32 %v237, 1e-06
    %v243 = vadd.f32 %v238, 1e-06
    %v244 = vadd.f32 %v239, 1e-06
    %v245 = vrsqrt.pop %v240
    %v246 = vrsqrt.pop %v241
    %v247 = vrsqrt.pop %v242
    %v248 = vrsqrt.pop %v243
    %v249 = vrsqrt.pop %v244
    %v250 = vmul.f32 %v210, %v245
    %v251 = vmul.f32 %v211, %v246
    %v252 = vmul.f32 %v212, %v247
    %v253 = vmul.f32 %v213, %v248
    %v254 = vmul.f32 %v214, %v249
    %v255 = vlaneseq
    %v256 = vshrl.u32 %v255, 7
    %v257 = vsub.s32 0, %v256
    %v258 = vrot.slane %v186, %v257
    %v259 = vmul.f32 %v250, %v258
    %v260 = vmul.f32 %v251, %v258
    %v261 = vmul.f32 %v252, %v258
    %v262 = vmul.f32 %v253, %v258
    %v263 = vmul.f32 %v254, %v258
    %v264 = vlaneseq
    %v265 = vshrl.u32 %v264, 7
    %v266 = vsub.s32 0, %v265
    %v267 = vrot.slane %v187, %v266
    %v268 = vadd.f32 %v259, %v267
    %v269 = vadd.f32 %v260, %v267
    %v270 = vadd.f32 %v261, %v267
    %v271 = vadd.f32 %v262, %v267
    %v272 = vadd.f32 %v263, %v267
    %v273 = vld [vmem:[%s5 + $0x120] sm:$0xff]
    %v274 = vld [vmem:[%s5 + $0x128] sm:$0xff]
    %v275 = vld [vmem:[%s5 + $0x130] sm:$0xff]
    %v276 = vld [vmem:[%s5 + $0x138] sm:$0xff]
    %v277 = vld [vmem:[%s5 + $0x140] sm:$0x1]
    %v278 = vld [vmem:[%s5 + $0x148] sm:$0xff]
    %v279 = vld [vmem:[%s5 + $0x150] sm:$0xff]
    %v280 = vld [vmem:[%s5 + $0x158] sm:$0xff]
    %v281 = vld [vmem:[%s5 + $0x160] sm:$0xff]
    %v282 = vld [vmem:[%s5 + $0x168] sm:$0x1]
    %v283 = vlaneseq
    %v284 = vshrl.u32 %v283, 7
    %v285 = vsub.s32 0, %v284
    %v286 = vrot.slane %v277, %v285
    %v288 = vsel %vm188, %v268, 0
    %v291 = vsel %vm188, %v269, 0
    %v294 = vsel %vm188, %v270, 0
    %v297 = vsel %vm188, %v271, 0
    %v300 = vsel %vm188, %v272, 0
    %302 = vmatprep.subr.mxu0 0.0
    %303 = vmatpush1.msra.mxu0 0.0
    %304 = vmatprep.subr.mxu0 0.0
    %305 = vmatpush1.msra.mxu0 0.0
    %306 = vmatprep.subr.mxu0 0.0
    %307 = vmatpush1.msra.mxu0 0.0
    %308 = vmatprep.subr.mxu0 0.0
    %309 = vmatpush1.msra.mxu0 0.0
    %310 = vmatprep.subr.mxu0 0.0
    %311 = vmatpush1.msra.mxu0 0.0
    %312 = vmatprep.subr.mxu0 0.0
    %313 = vmatpush1.msra.mxu0 0.0
    %314 = vmatprep.subr.mxu0 0.0
    %315 = vmatpush1.msra.mxu0 0.0
    %316 = vmatprep.subr.mxu0 0.0
    %317 = vmatpush1.msra.mxu0 0.0
    %318 = vmatprep.subr.mxu0 0.0
    %319 = vmatpush1.msra.mxu0 0.0
    %320 = vmatprep.subr.mxu0 0.0
    %321 = vmatpush1.msra.mxu0 0.0
    %322 = vmatprep.subr.mxu0 0.0
    %323 = vmatpush1.msra.mxu0 0.0
    %324 = vmatprep.subr.mxu0 0.0
    %325 = vmatpush1.msra.mxu0 0.0
    %326 = vmatprep.subr.mxu0 0.0
    %327 = vmatpush1.msra.mxu0 %v276
    %328 = vmatprep.subr.mxu0 0.0
    %329 = vmatpush1.msra.mxu0 %v275
    %330 = vmatprep.subr.mxu0 0.0
    %331 = vmatpush1.msra.mxu0 %v274
    %332 = vmatprep.subr.mxu0 0.0
    %333 = vmatpush1.msra.mxu0 %v273
    %334 = vmatprep.subr.mxu0 0.0
    %335 = vmatpush2.msra.mxu0 0.0
    %336 = vmatprep.subr.mxu0 0.0
    %337 = vmatpush2.msra.mxu0 0.0
    %338 = vmatprep.subr.mxu0 0.0
    %339 = vmatpush2.msra.mxu0 0.0
    %340 = vmatprep.subr.mxu0 0.0
    %341 = vmatpush2.msra.mxu0 0.0
    %342 = vmatprep.subr.mxu0 0.0
    %343 = vmatpush2.msra.mxu0 0.0
    %344 = vmatprep.subr.mxu0 0.0
    %345 = vmatpush2.msra.mxu0 0.0
    %346 = vmatprep.subr.mxu0 0.0
    %347 = vmatpush2.msra.mxu0 0.0
    %348 = vmatprep.subr.mxu0 0.0
    %349 = vmatpush2.msra.mxu0 0.0
    %350 = vmatprep.subr.mxu0 0.0
    %351 = vmatpush2.msra.mxu0 0.0
    %352 = vmatprep.subr.mxu0 0.0
    %353 = vmatpush2.msra.mxu0 0.0
    %354 = vmatprep.subr.mxu0 0.0
    %355 = vmatpush2.msra.mxu0 0.0
    %356 = vmatprep.subr.mxu0 0.0
    %357 = vmatpush2.msra.mxu0 0.0
    %358 = vmatprep.subr.mxu0 0.0
    %359 = vmatpush2.msra.mxu0 0.0
    %360 = vmatprep.subr.mxu0 0.0
    %361 = vmatpush2.msra.mxu0 0.0
    %362 = vmatprep.subr.mxu0 0.0
    %363 = vmatpush2.msra.mxu0 0.0
    %364 = vmatprep.subr.mxu0 0.0
    %365 = vmatpush2.msra.mxu0 0.0
    %366 = vmatprep.mubr.f32.mxu0 0.0
    %367 = vmatmul.mubr.f32.gmra.mxu0 %v288
    %v368 = vpop.f32.mrf.mxu0
    %v369 = vadd.f32 %v286, %v368
    %v370 = vpop.f32.mrf.mxu0
    %371 = vmatprep.mubr.f32.mxu0 0.0
    %372 = vmatmul.mubr.f32.gmra.mxu0 %v291
    %v373 = vpop.f32.mrf.mxu0
    %v374 = vadd.f32 %v286, %v373
    %v375 = vpop.f32.mrf.mxu0
    %376 = vmatprep.mubr.f32.mxu0 0.0
    %377 = vmatmul.mubr.f32.gmra.mxu0 %v294
    %v378 = vpop.f32.mrf.mxu0
    %v379 = vadd.f32 %v286, %v378
    %v380 = vpop.f32.mrf.mxu0
    %381 = vmatprep.mubr.f32.mxu0 0.0
    %382 = vmatmul.mubr.f32.gmra.mxu0 %v297
    %v383 = vpop.f32.mrf.mxu0
    %v384 = vadd.f32 %v286, %v383
    %v385 = vpop.f32.mrf.mxu0
    %386 = vmatprep.mubr.f32.mxu0 0.0
    %387 = vmatmul.mubr.f32.gmra.mxu0 %v300
    %v388 = vpop.f32.mrf.mxu0
    %v389 = vadd.f32 %v286, %v388
    %v390 = vpop.f32.mrf.mxu0
    %391 = vdwg.mxu0
    %397 = vrot.lane.b32.xlu0 %v369, 96
    %v398 = vpop.permute.xlu0 %397
    %399 = vrot.lane.b32.xlu0 %v374, 96
    %v400 = vpop.permute.xlu0 %399
    %401 = vrot.lane.b32.xlu0 %v379, 96
    %v402 = vpop.permute.xlu0 %401
    %403 = vrot.lane.b32.xlu0 %v384, 96
    %v404 = vpop.permute.xlu0 %403
    %405 = vrot.lane.b32.xlu0 %v389, 96
    %v406 = vpop.permute.xlu0 %405
    %vm407 = vcmask 64512
    %v408 = vsel %vm407, %v369, 0
    %v410 = vsel %vm407, %v374, 0
    %v412 = vsel %vm407, %v379, 0
    %v414 = vsel %vm407, %v384, 0
    %v416 = vsel %vm407, %v389, 0
    %v418 = vsel %vm407, %v398, 0
    %v420 = vsel %vm407, %v400, 0
    %v422 = vsel %vm407, %v402, 0
    %v424 = vsel %vm407, %v404, 0
    %v426 = vsel %vm407, %v406, 0
    %428 = vmatprep.subr.mxu0 0.0
    %429 = vmatpush1.xpose.msra.mxu0 0.0
    %430 = vmatprep.subr.mxu0 0.0
    %431 = vmatpush1.xpose.msra.mxu0 0.0
    %432 = vmatprep.subr.mxu0 0.0
    %433 = vmatpush1.xpose.msra.mxu0 0.0
    %434 = vmatprep.subr.mxu0 0.0
    %435 = vmatpush1.xpose.msra.mxu0 0.0
    %436 = vmatprep.subr.mxu0 0.0
    %437 = vmatpush1.xpose.msra.mxu0 0.0
    %438 = vmatprep.subr.mxu0 0.0
    %439 = vmatpush1.xpose.msra.mxu0 0.0
    %440 = vmatprep.subr.mxu0 0.0
    %441 = vmatpush1.xpose.msra.mxu0 0.0
    %442 = vmatprep.subr.mxu0 0.0
    %443 = vmatpush1.xpose.msra.mxu0 0.0
    %444 = vmatprep.subr.mxu0 0.0
    %445 = vmatpush1.xpose.msra.mxu0 0.0
    %446 = vmatprep.subr.mxu0 0.0
    %447 = vmatpush1.xpose.msra.mxu0 0.0
    %448 = vmatprep.subr.mxu0 0.0
    %449 = vmatpush1.xpose.msra.mxu0 0.0
    %450 = vmatprep.subr.mxu0 0.0
    %451 = vmatpush1.xpose.msra.mxu0 %v426
    %452 = vmatprep.subr.mxu0 0.0
    %453 = vmatpush1.xpose.msra.mxu0 %v424
    %454 = vmatprep.subr.mxu0 0.0
    %455 = vmatpush1.xpose.msra.mxu0 %v422
    %456 = vmatprep.subr.mxu0 0.0
    %457 = vmatpush1.xpose.msra.mxu0 %v420
    %458 = vmatprep.subr.mxu0 0.0
    %459 = vmatpush1.xpose.msra.mxu0 %v418
    %460 = vmatprep.subr.mxu0 0.0
    %461 = vmatpush2.xpose.msra.mxu0 0.0
    %462 = vmatprep.subr.mxu0 0.0
    %463 = vmatpush2.xpose.msra.mxu0 0.0
    %464 = vmatprep.subr.mxu0 0.0
    %465 = vmatpush2.xpose.msra.mxu0 0.0
    %466 = vmatprep.subr.mxu0 0.0
    %467 = vmatpush2.xpose.msra.mxu0 0.0
    %468 = vmatprep.subr.mxu0 0.0
    %469 = vmatpush2.xpose.msra.mxu0 0.0
    %470 = vmatprep.subr.mxu0 0.0
    %471 = vmatpush2.xpose.msra.mxu0 0.0
    %472 = vmatprep.subr.mxu0 0.0
    %473 = vmatpush2.xpose.msra.mxu0 0.0
    %474 = vmatprep.subr.mxu0 0.0
    %475 = vmatpush2.xpose.msra.mxu0 0.0
    %476 = vmatprep.subr.mxu0 0.0
    %477 = vmatpush2.xpose.msra.mxu0 0.0
    %478 = vmatprep.subr.mxu0 0.0
    %479 = vmatpush2.xpose.msra.mxu0 0.0
    %480 = vmatprep.subr.mxu0 0.0
    %481 = vmatpush2.xpose.msra.mxu0 0.0
    %482 = vmatprep.subr.mxu0 0.0
    %483 = vmatpush2.xpose.msra.mxu0 0.0
    %484 = vmatprep.subr.mxu0 0.0
    %485 = vmatpush2.xpose.msra.mxu0 0.0
    %486 = vmatprep.subr.mxu0 0.0
    %487 = vmatpush2.xpose.msra.mxu0 0.0
    %488 = vmatprep.subr.mxu0 0.0
    %489 = vmatpush2.xpose.msra.mxu0 0.0
    %490 = vmatprep.subr.mxu0 0.0
    %491 = vmatpush2.xpose.msra.mxu0 0.0
    %492 = vmatprep.mubr.f32.mxu0 0.0
    %493 = vmatmul.mubr.f32.gmra.mxu0 %v408
    %v494 = vpop.f32.mrf.mxu0
    %v495 = vadd.f32 0.0, %v494
    %v496 = vpop.f32.mrf.mxu0
    %497 = vmatprep.mubr.f32.mxu0 0.0
    %498 = vmatmul.mubr.f32.gmra.mxu0 %v410
    %v499 = vpop.f32.mrf.mxu0
    %v500 = vadd.f32 0.0, %v499
    %v501 = vpop.f32.mrf.mxu0
    %502 = vmatprep.mubr.f32.mxu0 0.0
    %503 = vmatmul.mubr.f32.gmra.mxu0 %v412
    %v504 = vpop.f32.mrf.mxu0
    %v505 = vadd.f32 0.0, %v504
    %v506 = vpop.f32.mrf.mxu0
    %507 = vmatprep.mubr.f32.mxu0 0.0
    %508 = vmatmul.mubr.f32.gmra.mxu0 %v414
    %v509 = vpop.f32.mrf.mxu0
    %v510 = vadd.f32 0.0, %v509
    %v511 = vpop.f32.mrf.mxu0
    %512 = vmatprep.mubr.f32.mxu0 0.0
    %513 = vmatmul.mubr.f32.gmra.mxu0 %v416
    %v514 = vpop.f32.mrf.mxu0
    %v515 = vadd.f32 0.0, %v514
    %v516 = vpop.f32.mrf.mxu0
    %517 = vdwg.mxu0
    %v518 = vmul.f32 %v495, 0.35355338
    %v519 = vmul.f32 %v500, 0.35355338
    %v520 = vmul.f32 %v505, 0.35355338
    %v521 = vmul.f32 %v510, 0.35355338
    %v522 = vmul.f32 %v515, 0.35355338
    %v523 = vadd.f32 %v518, %v181
    %v524 = vadd.f32 %v519, %v182
    %v525 = vadd.f32 %v520, %v183
    %v526 = vadd.f32 %v521, %v184
    %v527 = vadd.f32 %v522, %v185
    %vm528 = vcmask 326656
    %v529 = vsel %vm528, %v523, -inf
    %530 = vmax.xlane.f32.xlu0 %v529
    %v531 = vpop.xlane.xlu0 %530
    %v532 = vsel %vm528, %v524, -inf
    %533 = vmax.xlane.f32.xlu0 %v532
    %v534 = vpop.xlane.xlu0 %533
    %v535 = vsel %vm528, %v525, -inf
    %536 = vmax.xlane.f32.xlu0 %v535
    %v537 = vpop.xlane.xlu0 %536
    %v538 = vsel %vm528, %v526, -inf
    %539 = vmax.xlane.f32.xlu0 %v538
    %v540 = vpop.xlane.xlu0 %539
    %v541 = vsel %vm528, %v527, -inf
    %542 = vmax.xlane.f32.xlu0 %v541
    %v543 = vpop.xlane.xlu0 %542
    %v544 = vsub.f32 %v523, %v531
    %v545 = vsub.f32 %v524, %v534
    %v546 = vsub.f32 %v525, %v537
    %v547 = vsub.f32 %v526, %v540
    %v548 = vsub.f32 %v527, %v543
    %v549 = vmul.f32 %v544, 1.442695
    %v550 = vpow.pop %v549
    %v551 = vmul.f32 %v545, 1.442695
    %v552 = vpow.pop %v551
    %v553 = vmul.f32 %v546, 1.442695
    %v554 = vpow.pop %v553
    %v555 = vmul.f32 %v547, 1.442695
    %v556 = vpow.pop %v555
    %v557 = vmul.f32 %v548, 1.442695
    %v558 = vpow.pop %v557
    %v559 = vsel %vm528, %v550, 0.0
    %560 = vadd.xlane.f32.xlu0 %v559
    %v561 = vpop.xlane.xlu0 %560
    %v562 = vsel %vm528, %v552, 0.0
    %563 = vadd.xlane.f32.xlu0 %v562
    %v564 = vpop.xlane.xlu0 %563
    %v565 = vsel %vm528, %v554, 0.0
    %566 = vadd.xlane.f32.xlu0 %v565
    %v567 = vpop.xlane.xlu0 %566
    %v568 = vsel %vm528, %v556, 0.0
    %569 = vadd.xlane.f32.xlu0 %v568
    %v570 = vpop.xlane.xlu0 %569
    %v571 = vsel %vm528, %v558, 0.0
    %572 = vadd.xlane.f32.xlu0 %v571
    %v573 = vpop.xlane.xlu0 %572
    %v574 = vrcp.pop %v561
    %v575 = vrcp.pop %v564
    %v576 = vrcp.pop %v567
    %v577 = vrcp.pop %v570
    %v578 = vrcp.pop %v573
    %v579 = vmul.f32 %v550, %v574
    %v580 = vmul.f32 %v552, %v575
    %v581 = vmul.f32 %v554, %v576
    %v582 = vmul.f32 %v556, %v577
    %v583 = vmul.f32 %v558, %v578
    %584 = vrot.lane.b32.xlu0 %v369, 64
    %v585 = vpop.permute.xlu0 %584
    %586 = vrot.lane.b32.xlu0 %v374, 64
    %v587 = vpop.permute.xlu0 %586
    %588 = vrot.lane.b32.xlu0 %v379, 64
    %v589 = vpop.permute.xlu0 %588
    %590 = vrot.lane.b32.xlu0 %v384, 64
    %v591 = vpop.permute.xlu0 %590
    %592 = vrot.lane.b32.xlu0 %v389, 64
    %v593 = vpop.permute.xlu0 %592
    %v600 = vsel %vm528, %v579, 0
    %v603 = vsel %vm528, %v580, 0
    %v606 = vsel %vm528, %v581, 0
    %v609 = vsel %vm528, %v582, 0
    %v612 = vsel %vm528, %v583, 0
    %614 = vmatprep.subr.mxu0 0.0
    %615 = vmatpush1.msra.mxu0 0.0
    %616 = vmatprep.subr.mxu0 0.0
    %617 = vmatpush1.msra.mxu0 0.0
    %618 = vmatprep.subr.mxu0 0.0
    %619 = vmatpush1.msra.mxu0 0.0
    %620 = vmatprep.subr.mxu0 0.0
    %621 = vmatpush1.msra.mxu0 0.0
    %622 = vmatprep.subr.mxu0 0.0
    %623 = vmatpush1.msra.mxu0 0.0
    %624 = vmatprep.subr.mxu0 0.0
    %625 = vmatpush1.msra.mxu0 0.0
    %626 = vmatprep.subr.mxu0 0.0
    %627 = vmatpush1.msra.mxu0 0.0
    %628 = vmatprep.subr.mxu0 0.0
    %629 = vmatpush1.msra.mxu0 0.0
    %630 = vmatprep.subr.mxu0 0.0
    %631 = vmatpush1.msra.mxu0 0.0
    %632 = vmatprep.subr.mxu0 0.0
    %633 = vmatpush1.msra.mxu0 0.0
    %634 = vmatprep.subr.mxu0 0.0
    %635 = vmatpush1.msra.mxu0 0.0
    %636 = vmatprep.subr.mxu0 0.0
    %637 = vmatpush1.msra.mxu0 %v593
    %638 = vmatprep.subr.mxu0 0.0
    %639 = vmatpush1.msra.mxu0 %v591
    %640 = vmatprep.subr.mxu0 0.0
    %641 = vmatpush1.msra.mxu0 %v589
    %642 = vmatprep.subr.mxu0 0.0
    %643 = vmatpush1.msra.mxu0 %v587
    %644 = vmatprep.subr.mxu0 0.0
    %645 = vmatpush1.msra.mxu0 %v585
    %646 = vmatprep.subr.mxu0 0.0
    %647 = vmatpush2.msra.mxu0 0.0
    %648 = vmatprep.subr.mxu0 0.0
    %649 = vmatpush2.msra.mxu0 0.0
    %650 = vmatprep.subr.mxu0 0.0
    %651 = vmatpush2.msra.mxu0 0.0
    %652 = vmatprep.subr.mxu0 0.0
    %653 = vmatpush2.msra.mxu0 0.0
    %654 = vmatprep.subr.mxu0 0.0
    %655 = vmatpush2.msra.mxu0 0.0
    %656 = vmatprep.subr.mxu0 0.0
    %657 = vmatpush2.msra.mxu0 0.0
    %658 = vmatprep.subr.mxu0 0.0
    %659 = vmatpush2.msra.mxu0 0.0
    %660 = vmatprep.subr.mxu0 0.0
    %661 = vmatpush2.msra.mxu0 0.0
    %662 = vmatprep.subr.mxu0 0.0
    %663 = vmatpush2.msra.mxu0 0.0
    %664 = vmatprep.subr.mxu0 0.0
    %665 = vmatpush2.msra.mxu0 0.0
    %666 = vmatprep.subr.mxu0 0.0
    %667 = vmatpush2.msra.mxu0 0.0
    %668 = vmatprep.subr.mxu0 0.0
    %669 = vmatpush2.msra.mxu0 0.0
    %670 = vmatprep.subr.mxu0 0.0
    %671 = vmatpush2.msra.mxu0 0.0
    %672 = vmatprep.subr.mxu0 0.0
    %673 = vmatpush2.msra.mxu0 0.0
    %674 = vmatprep.subr.mxu0 0.0
    %675 = vmatpush2.msra.mxu0 0.0
    %676 = vmatprep.subr.mxu0 0.0
    %677 = vmatpush2.msra.mxu0 0.0
    %678 = vmatprep.mubr.f32.mxu0 0.0
    %679 = vmatmul.mubr.f32.gmra.mxu0 %v600
    %v680 = vpop.f32.mrf.mxu0
    %v681 = vadd.f32 0.0, %v680
    %v682 = vpop.f32.mrf.mxu0
    %683 = vmatprep.mubr.f32.mxu0 0.0
    %684 = vmatmul.mubr.f32.gmra.mxu0 %v603
    %v685 = vpop.f32.mrf.mxu0
    %v686 = vadd.f32 0.0, %v685
    %v687 = vpop.f32.mrf.mxu0
    %688 = vmatprep.mubr.f32.mxu0 0.0
    %689 = vmatmul.mubr.f32.gmra.mxu0 %v606
    %v690 = vpop.f32.mrf.mxu0
    %v691 = vadd.f32 0.0, %v690
    %v692 = vpop.f32.mrf.mxu0
    %693 = vmatprep.mubr.f32.mxu0 0.0
    %694 = vmatmul.mubr.f32.gmra.mxu0 %v609
    %v695 = vpop.f32.mrf.mxu0
    %v696 = vadd.f32 0.0, %v695
    %v697 = vpop.f32.mrf.mxu0
    %698 = vmatprep.mubr.f32.mxu0 0.0
    %699 = vmatmul.mubr.f32.gmra.mxu0 %v612
    %v700 = vpop.f32.mrf.mxu0
    %v701 = vadd.f32 0.0, %v700
    %v702 = vpop.f32.mrf.mxu0
    %703 = vdwg.mxu0
    %704 = vrot.lane.b32.xlu0 %v369, 120
    %v705 = vpop.permute.xlu0 %704
    %706 = vrot.lane.b32.xlu0 %v374, 120
    %v707 = vpop.permute.xlu0 %706
    %708 = vrot.lane.b32.xlu0 %v379, 120
    %v709 = vpop.permute.xlu0 %708
    %710 = vrot.lane.b32.xlu0 %v384, 120
    %v711 = vpop.permute.xlu0 %710
    %712 = vrot.lane.b32.xlu0 %v389, 120
    %v713 = vpop.permute.xlu0 %712
    %714 = vrot.lane.b32.xlu0 %v369, 88
    %v715 = vpop.permute.xlu0 %714
    %716 = vrot.lane.b32.xlu0 %v374, 88
    %v717 = vpop.permute.xlu0 %716
    %718 = vrot.lane.b32.xlu0 %v379, 88
    %v719 = vpop.permute.xlu0 %718
    %720 = vrot.lane.b32.xlu0 %v384, 88
    %v721 = vpop.permute.xlu0 %720
    %722 = vrot.lane.b32.xlu0 %v389, 88
    %v723 = vpop.permute.xlu0 %722
    %v724 = vsel %vm407, %v705, 0
    %v726 = vsel %vm407, %v707, 0
    %v728 = vsel %vm407, %v709, 0
    %v730 = vsel %vm407, %v711, 0
    %v732 = vsel %vm407, %v713, 0
    %v734 = vsel %vm407, %v715, 0
    %v736 = vsel %vm407, %v717, 0
    %v738 = vsel %vm407, %v719, 0
    %v740 = vsel %vm407, %v721, 0
    %v742 = vsel %vm407, %v723, 0
    %744 = vmatprep.subr.mxu0 0.0
    %745 = vmatpush1.xpose.msra.mxu0 0.0
    %746 = vmatprep.subr.mxu0 0.0
    %747 = vmatpush1.xpose.msra.mxu0 0.0
    %748 = vmatprep.subr.mxu0 0.0
    %749 = vmatpush1.xpose.msra.mxu0 0.0
    %750 = vmatprep.subr.mxu0 0.0
    %751 = vmatpush1.xpose.msra.mxu0 0.0
    %752 = vmatprep.subr.mxu0 0.0
    %753 = vmatpush1.xpose.msra.mxu0 0.0
    %754 = vmatprep.subr.mxu0 0.0
    %755 = vmatpush1.xpose.msra.mxu0 0.0
    %756 = vmatprep.subr.mxu0 0.0
    %757 = vmatpush1.xpose.msra.mxu0 0.0
    %758 = vmatprep.subr.mxu0 0.0
    %759 = vmatpush1.xpose.msra.mxu0 0.0
    %760 = vmatprep.subr.mxu0 0.0
    %761 = vmatpush1.xpose.msra.mxu0 0.0
    %762 = vmatprep.subr.mxu0 0.0
    %763 = vmatpush1.xpose.msra.mxu0 0.0
    %764 = vmatprep.subr.mxu0 0.0
    %765 = vmatpush1.xpose.msra.mxu0 0.0
    %766 = vmatprep.subr.mxu0 0.0
    %767 = vmatpush1.xpose.msra.mxu0 %v742
    %768 = vmatprep.subr.mxu0 0.0
    %769 = vmatpush1.xpose.msra.mxu0 %v740
    %770 = vmatprep.subr.mxu0 0.0
    %771 = vmatpush1.xpose.msra.mxu0 %v738
    %772 = vmatprep.subr.mxu0 0.0
    %773 = vmatpush1.xpose.msra.mxu0 %v736
    %774 = vmatprep.subr.mxu0 0.0
    %775 = vmatpush1.xpose.msra.mxu0 %v734
    %776 = vmatprep.subr.mxu0 0.0
    %777 = vmatpush2.xpose.msra.mxu0 0.0
    %778 = vmatprep.subr.mxu0 0.0
    %779 = vmatpush2.xpose.msra.mxu0 0.0
    %780 = vmatprep.subr.mxu0 0.0
    %781 = vmatpush2.xpose.msra.mxu0 0.0
    %782 = vmatprep.subr.mxu0 0.0
    %783 = vmatpush2.xpose.msra.mxu0 0.0
    %784 = vmatprep.subr.mxu0 0.0
    %785 = vmatpush2.xpose.msra.mxu0 0.0
    %786 = vmatprep.subr.mxu0 0.0
    %787 = vmatpush2.xpose.msra.mxu0 0.0
    %788 = vmatprep.subr.mxu0 0.0
    %789 = vmatpush2.xpose.msra.mxu0 0.0
    %790 = vmatprep.subr.mxu0 0.0
    %791 = vmatpush2.xpose.msra.mxu0 0.0
    %792 = vmatprep.subr.mxu0 0.0
    %793 = vmatpush2.xpose.msra.mxu0 0.0
    %794 = vmatprep.subr.mxu0 0.0
    %795 = vmatpush2.xpose.msra.mxu0 0.0
    %796 = vmatprep.subr.mxu0 0.0
    %797 = vmatpush2.xpose.msra.mxu0 0.0
    %798 = vmatprep.subr.mxu0 0.0
    %799 = vmatpush2.xpose.msra.mxu0 0.0
    %800 = vmatprep.subr.mxu0 0.0
    %801 = vmatpush2.xpose.msra.mxu0 0.0
    %802 = vmatprep.subr.mxu0 0.0
    %803 = vmatpush2.xpose.msra.mxu0 0.0
    %804 = vmatprep.subr.mxu0 0.0
    %805 = vmatpush2.xpose.msra.mxu0 0.0
    %806 = vmatprep.subr.mxu0 0.0
    %807 = vmatpush2.xpose.msra.mxu0 0.0
    %808 = vmatprep.mubr.f32.mxu0 0.0
    %809 = vmatmul.mubr.f32.gmra.mxu0 %v724
    %v810 = vpop.f32.mrf.mxu0
    %v811 = vadd.f32 0.0, %v810
    %v812 = vpop.f32.mrf.mxu0
    %813 = vmatprep.mubr.f32.mxu0 0.0
    %814 = vmatmul.mubr.f32.gmra.mxu0 %v726
    %v815 = vpop.f32.mrf.mxu0
    %v816 = vadd.f32 0.0, %v815
    %v817 = vpop.f32.mrf.mxu0
    %818 = vmatprep.mubr.f32.mxu0 0.0
    %819 = vmatmul.mubr.f32.gmra.mxu0 %v728
    %v820 = vpop.f32.mrf.mxu0
    %v821 = vadd.f32 0.0, %v820
    %v822 = vpop.f32.mrf.mxu0
    %823 = vmatprep.mubr.f32.mxu0 0.0
    %824 = vmatmul.mubr.f32.gmra.mxu0 %v730
    %v825 = vpop.f32.mrf.mxu0
    %v826 = vadd.f32 0.0, %v825
    %v827 = vpop.f32.mrf.mxu0
    %828 = vmatprep.mubr.f32.mxu0 0.0
    %829 = vmatmul.mubr.f32.gmra.mxu0 %v732
    %v830 = vpop.f32.mrf.mxu0
    %v831 = vadd.f32 0.0, %v830
    %v832 = vpop.f32.mrf.mxu0
    %833 = vdwg.mxu0
    %v834 = vmul.f32 %v811, 0.35355338
    %v835 = vmul.f32 %v816, 0.35355338
    %v836 = vmul.f32 %v821, 0.35355338
    %v837 = vmul.f32 %v826, 0.35355338
    %v838 = vmul.f32 %v831, 0.35355338
    %v839 = vadd.f32 %v834, %v181
    %v840 = vadd.f32 %v835, %v182
    %v841 = vadd.f32 %v836, %v183
    %v842 = vadd.f32 %v837, %v184
    %v843 = vadd.f32 %v838, %v185
    %v844 = vsel %vm528, %v839, -inf
    %845 = vmax.xlane.f32.xlu0 %v844
    %v846 = vpop.xlane.xlu0 %845
    %v847 = vsel %vm528, %v840, -inf
    %848 = vmax.xlane.f32.xlu0 %v847
    %v849 = vpop.xlane.xlu0 %848
    %v850 = vsel %vm528, %v841, -inf
    %851 = vmax.xlane.f32.xlu0 %v850
    %v852 = vpop.xlane.xlu0 %851
    %v853 = vsel %vm528, %v842, -inf
    %854 = vmax.xlane.f32.xlu0 %v853
    %v855 = vpop.xlane.xlu0 %854
    %v856 = vsel %vm528, %v843, -inf
    %857 = vmax.xlane.f32.xlu0 %v856
    %v858 = vpop.xlane.xlu0 %857
    %v859 = vsub.f32 %v839, %v846
    %v860 = vsub.f32 %v840, %v849
    %v861 = vsub.f32 %v841, %v852
    %v862 = vsub.f32 %v842, %v855
    %v863 = vsub.f32 %v843, %v858
    %v864 = vmul.f32 %v859, 1.442695
    %v865 = vpow.pop %v864
    %v866 = vmul.f32 %v860, 1.442695
    %v867 = vpow.pop %v866
    %v868 = vmul.f32 %v861, 1.442695
    %v869 = vpow.pop %v868
    %v870 = vmul.f32 %v862, 1.442695
    %v871 = vpow.pop %v870
    %v872 = vmul.f32 %v863, 1.442695
    %v873 = vpow.pop %v872
    %v874 = vsel %vm528, %v865, 0.0
    %875 = vadd.xlane.f32.xlu0 %v874
    %v876 = vpop.xlane.xlu0 %875
    %v877 = vsel %vm528, %v867, 0.0
    %878 = vadd.xlane.f32.xlu0 %v877
    %v879 = vpop.xlane.xlu0 %878
    %v880 = vsel %vm528, %v869, 0.0
    %881 = vadd.xlane.f32.xlu0 %v880
    %v882 = vpop.xlane.xlu0 %881
    %v883 = vsel %vm528, %v871, 0.0
    %884 = vadd.xlane.f32.xlu0 %v883
    %v885 = vpop.xlane.xlu0 %884
    %v886 = vsel %vm528, %v873, 0.0
    %887 = vadd.xlane.f32.xlu0 %v886
    %v888 = vpop.xlane.xlu0 %887
    %v889 = vrcp.pop %v876
    %v890 = vrcp.pop %v879
    %v891 = vrcp.pop %v882
    %v892 = vrcp.pop %v885
    %v893 = vrcp.pop %v888
    %v894 = vmul.f32 %v865, %v889
    %v895 = vmul.f32 %v867, %v890
    %v896 = vmul.f32 %v869, %v891
    %v897 = vmul.f32 %v871, %v892
    %v898 = vmul.f32 %v873, %v893
    %899 = vrot.lane.b32.xlu0 %v369, 56
    %v900 = vpop.permute.xlu0 %899
    %901 = vrot.lane.b32.xlu0 %v374, 56
    %v902 = vpop.permute.xlu0 %901
    %903 = vrot.lane.b32.xlu0 %v379, 56
    %v904 = vpop.permute.xlu0 %903
    %905 = vrot.lane.b32.xlu0 %v384, 56
    %v906 = vpop.permute.xlu0 %905
    %907 = vrot.lane.b32.xlu0 %v389, 56
    %v908 = vpop.permute.xlu0 %907
    %v915 = vsel %vm528, %v894, 0
    %v918 = vsel %vm528, %v895, 0
    %v921 = vsel %vm528, %v896, 0
    %v924 = vsel %vm528, %v897, 0
    %v927 = vsel %vm528, %v898, 0
    %929 = vmatprep.subr.mxu0 0.0
    %930 = vmatpush1.msra.mxu0 0.0
    %931 = vmatprep.subr.mxu0 0.0
    %932 = vmatpush1.msra.mxu0 0.0
    %933 = vmatprep.subr.mxu0 0.0
    %934 = vmatpush1.msra.mxu0 0.0
    %935 = vmatprep.subr.mxu0 0.0
    %936 = vmatpush1.msra.mxu0 0.0
    %937 = vmatprep.subr.mxu0 0.0
    %938 = vmatpush1.msra.mxu0 0.0
    %939 = vmatprep.subr.mxu0 0.0
    %940 = vmatpush1.msra.mxu0 0.0
    %941 = vmatprep.subr.mxu0 0.0
    %942 = vmatpush1.msra.mxu0 0.0
    %943 = vmatprep.subr.mxu0 0.0
    %944 = vmatpush1.msra.mxu0 0.0
    %945 = vmatprep.subr.mxu0 0.0
    %946 = vmatpush1.msra.mxu0 0.0
    %947 = vmatprep.subr.mxu0 0.0
    %948 = vmatpush1.msra.mxu0 0.0
    %949 = vmatprep.subr.mxu0 0.0
    %950 = vmatpush1.msra.mxu0 0.0
    %951 = vmatprep.subr.mxu0 0.0
    %952 = vmatpush1.msra.mxu0 %v908
    %953 = vmatprep.subr.mxu0 0.0
    %954 = vmatpush1.msra.mxu0 %v906
    %955 = vmatprep.subr.mxu0 0.0
    %956 = vmatpush1.msra.mxu0 %v904
    %957 = vmatprep.subr.mxu0 0.0
    %958 = vmatpush1.msra.mxu0 %v902
    %959 = vmatprep.subr.mxu0 0.0
    %960 = vmatpush1.msra.mxu0 %v900
    %961 = vmatprep.subr.mxu0 0.0
    %962 = vmatpush2.msra.mxu0 0.0
    %963 = vmatprep.subr.mxu0 0.0
    %964 = vmatpush2.msra.mxu0 0.0
    %965 = vmatprep.subr.mxu0 0.0
    %966 = vmatpush2.msra.mxu0 0.0
    %967 = vmatprep.subr.mxu0 0.0
    %968 = vmatpush2.msra.mxu0 0.0
    %969 = vmatprep.subr.mxu0 0.0
    %970 = vmatpush2.msra.mxu0 0.0
    %971 = vmatprep.subr.mxu0 0.0
    %972 = vmatpush2.msra.mxu0 0.0
    %973 = vmatprep.subr.mxu0 0.0
    %974 = vmatpush2.msra.mxu0 0.0
    %975 = vmatprep.subr.mxu0 0.0
    %976 = vmatpush2.msra.mxu0 0.0
    %977 = vmatprep.subr.mxu0 0.0
    %978 = vmatpush2.msra.mxu0 0.0
    %979 = vmatprep.subr.mxu0 0.0
    %980 = vmatpush2.msra.mxu0 0.0
    %981 = vmatprep.subr.mxu0 0.0
    %982 = vmatpush2.msra.mxu0 0.0
    %983 = vmatprep.subr.mxu0 0.0
    %984 = vmatpush2.msra.mxu0 0.0
    %985 = vmatprep.subr.mxu0 0.0
    %986 = vmatpush2.msra.mxu0 0.0
    %987 = vmatprep.subr.mxu0 0.0
    %988 = vmatpush2.msra.mxu0 0.0
    %989 = vmatprep.subr.mxu0 0.0
    %990 = vmatpush2.msra.mxu0 0.0
    %991 = vmatprep.subr.mxu0 0.0
    %992 = vmatpush2.msra.mxu0 0.0
    %993 = vmatprep.mubr.f32.mxu0 0.0
    %994 = vmatmul.mubr.f32.gmra.mxu0 %v915
    %v995 = vpop.f32.mrf.mxu0
    %v996 = vadd.f32 0.0, %v995
    %v997 = vpop.f32.mrf.mxu0
    %998 = vmatprep.mubr.f32.mxu0 0.0
    %999 = vmatmul.mubr.f32.gmra.mxu0 %v918
    %v1000 = vpop.f32.mrf.mxu0
    %v1001 = vadd.f32 0.0, %v1000
    %v1002 = vpop.f32.mrf.mxu0
    %1003 = vmatprep.mubr.f32.mxu0 0.0
    %1004 = vmatmul.mubr.f32.gmra.mxu0 %v921
    %v1005 = vpop.f32.mrf.mxu0
    %v1006 = vadd.f32 0.0, %v1005
    %v1007 = vpop.f32.mrf.mxu0
    %1008 = vmatprep.mubr.f32.mxu0 0.0
    %1009 = vmatmul.mubr.f32.gmra.mxu0 %v924
    %v1010 = vpop.f32.mrf.mxu0
    %v1011 = vadd.f32 0.0, %v1010
    %v1012 = vpop.f32.mrf.mxu0
    %1013 = vmatprep.mubr.f32.mxu0 0.0
    %1014 = vmatmul.mubr.f32.gmra.mxu0 %v927
    %v1015 = vpop.f32.mrf.mxu0
    %v1016 = vadd.f32 0.0, %v1015
    %v1017 = vpop.f32.mrf.mxu0
    %1018 = vdwg.mxu0
    %1019 = vrot.lane.b32.xlu0 %v369, 112
    %v1020 = vpop.permute.xlu0 %1019
    %1021 = vrot.lane.b32.xlu0 %v374, 112
    %v1022 = vpop.permute.xlu0 %1021
    %1023 = vrot.lane.b32.xlu0 %v379, 112
    %v1024 = vpop.permute.xlu0 %1023
    %1025 = vrot.lane.b32.xlu0 %v384, 112
    %v1026 = vpop.permute.xlu0 %1025
    %1027 = vrot.lane.b32.xlu0 %v389, 112
    %v1028 = vpop.permute.xlu0 %1027
    %1029 = vrot.lane.b32.xlu0 %v369, 80
    %v1030 = vpop.permute.xlu0 %1029
    %1031 = vrot.lane.b32.xlu0 %v374, 80
    %v1032 = vpop.permute.xlu0 %1031
    %1033 = vrot.lane.b32.xlu0 %v379, 80
    %v1034 = vpop.permute.xlu0 %1033
    %1035 = vrot.lane.b32.xlu0 %v384, 80
    %v1036 = vpop.permute.xlu0 %1035
    %1037 = vrot.lane.b32.xlu0 %v389, 80
    %v1038 = vpop.permute.xlu0 %1037
    %v1039 = vsel %vm407, %v1020, 0
    %v1041 = vsel %vm407, %v1022, 0
    %v1043 = vsel %vm407, %v1024, 0
    %v1045 = vsel %vm407, %v1026, 0
    %v1047 = vsel %vm407, %v1028, 0
    %v1049 = vsel %vm407, %v1030, 0
    %v1051 = vsel %vm407, %v1032, 0
    %v1053 = vsel %vm407, %v1034, 0
    %v1055 = vsel %vm407, %v1036, 0
    %v1057 = vsel %vm407, %v1038, 0
    %1059 = vmatprep.subr.mxu0 0.0
    %1060 = vmatpush1.xpose.msra.mxu0 0.0
    %1061 = vmatprep.subr.mxu0 0.0
    %1062 = vmatpush1.xpose.msra.mxu0 0.0
    %1063 = vmatprep.subr.mxu0 0.0
    %1064 = vmatpush1.xpose.msra.mxu0 0.0
    %1065 = vmatprep.subr.mxu0 0.0
    %1066 = vmatpush1.xpose.msra.mxu0 0.0
    %1067 = vmatprep.subr.mxu0 0.0
    %1068 = vmatpush1.xpose.msra.mxu0 0.0
    %1069 = vmatprep.subr.mxu0 0.0
    %1070 = vmatpush1.xpose.msra.mxu0 0.0
    %1071 = vmatprep.subr.mxu0 0.0
    %1072 = vmatpush1.xpose.msra.mxu0 0.0
    %1073 = vmatprep.subr.mxu0 0.0
    %1074 = vmatpush1.xpose.msra.mxu0 0.0
    %1075 = vmatprep.subr.mxu0 0.0
    %1076 = vmatpush1.xpose.msra.mxu0 0.0
    %1077 = vmatprep.subr.mxu0 0.0
    %1078 = vmatpush1.xpose.msra.mxu0 0.0
    %1079 = vmatprep.subr.mxu0 0.0
    %1080 = vmatpush1.xpose.msra.mxu0 0.0
    %1081 = vmatprep.subr.mxu0 0.0
    %1082 = vmatpush1.xpose.msra.mxu0 %v1057
    %1083 = vmatprep.subr.mxu0 0.0
    %1084 = vmatpush1.xpose.msra.mxu0 %v1055
    %1085 = vmatprep.subr.mxu0 0.0
    %1086 = vmatpush1.xpose.msra.mxu0 %v1053
    %1087 = vmatprep.subr.mxu0 0.0
    %1088 = vmatpush1.xpose.msra.mxu0 %v1051
    %1089 = vmatprep.subr.mxu0 0.0
    %1090 = vmatpush1.xpose.msra.mxu0 %v1049
    %1091 = vmatprep.subr.mxu0 0.0
    %1092 = vmatpush2.xpose.msra.mxu0 0.0
    %1093 = vmatprep.subr.mxu0 0.0
    %1094 = vmatpush2.xpose.msra.mxu0 0.0
    %1095 = vmatprep.subr.mxu0 0.0
    %1096 = vmatpush2.xpose.msra.mxu0 0.0
    %1097 = vmatprep.subr.mxu0 0.0
    %1098 = vmatpush2.xpose.msra.mxu0 0.0
    %1099 = vmatprep.subr.mxu0 0.0
    %1100 = vmatpush2.xpose.msra.mxu0 0.0
    %1101 = vmatprep.subr.mxu0 0.0
    %1102 = vmatpush2.xpose.msra.mxu0 0.0
    %1103 = vmatprep.subr.mxu0 0.0
    %1104 = vmatpush2.xpose.msra.mxu0 0.0
    %1105 = vmatprep.subr.mxu0 0.0
    %1106 = vmatpush2.xpose.msra.mxu0 0.0
    %1107 = vmatprep.subr.mxu0 0.0
    %1108 = vmatpush2.xpose.msra.mxu0 0.0
    %1109 = vmatprep.subr.mxu0 0.0
    %1110 = vmatpush2.xpose.msra.mxu0 0.0
    %1111 = vmatprep.subr.mxu0 0.0
    %1112 = vmatpush2.xpose.msra.mxu0 0.0
    %1113 = vmatprep.subr.mxu0 0.0
    %1114 = vmatpush2.xpose.msra.mxu0 0.0
    %1115 = vmatprep.subr.mxu0 0.0
    %1116 = vmatpush2.xpose.msra.mxu0 0.0
    %1117 = vmatprep.subr.mxu0 0.0
    %1118 = vmatpush2.xpose.msra.mxu0 0.0
    %1119 = vmatprep.subr.mxu0 0.0
    %1120 = vmatpush2.xpose.msra.mxu0 0.0
    %1121 = vmatprep.subr.mxu0 0.0
    %1122 = vmatpush2.xpose.msra.mxu0 0.0
    %1123 = vmatprep.mubr.f32.mxu0 0.0
    %1124 = vmatmul.mubr.f32.gmra.mxu0 %v1039
    %v1125 = vpop.f32.mrf.mxu0
    %v1126 = vadd.f32 0.0, %v1125
    %v1127 = vpop.f32.mrf.mxu0
    %1128 = vmatprep.mubr.f32.mxu0 0.0
    %1129 = vmatmul.mubr.f32.gmra.mxu0 %v1041
    %v1130 = vpop.f32.mrf.mxu0
    %v1131 = vadd.f32 0.0, %v1130
    %v1132 = vpop.f32.mrf.mxu0
    %1133 = vmatprep.mubr.f32.mxu0 0.0
    %1134 = vmatmul.mubr.f32.gmra.mxu0 %v1043
    %v1135 = vpop.f32.mrf.mxu0
    %v1136 = vadd.f32 0.0, %v1135
    %v1137 = vpop.f32.mrf.mxu0
    %1138 = vmatprep.mubr.f32.mxu0 0.0
    %1139 = vmatmul.mubr.f32.gmra.mxu0 %v1045
    %v1140 = vpop.f32.mrf.mxu0
    %v1141 = vadd.f32 0.0, %v1140
    %v1142 = vpop.f32.mrf.mxu0
    %1143 = vmatprep.mubr.f32.mxu0 0.0
    %1144 = vmatmul.mubr.f32.gmra.mxu0 %v1047
    %v1145 = vpop.f32.mrf.mxu0
    %v1146 = vadd.f32 0.0, %v1145
    %v1147 = vpop.f32.mrf.mxu0
    %1148 = vdwg.mxu0
    %v1149 = vmul.f32 %v1126, 0.35355338
    %v1150 = vmul.f32 %v1131, 0.35355338
    %v1151 = vmul.f32 %v1136, 0.35355338
    %v1152 = vmul.f32 %v1141, 0.35355338
    %v1153 = vmul.f32 %v1146, 0.35355338
    %v1154 = vadd.f32 %v1149, %v181
    %v1155 = vadd.f32 %v1150, %v182
    %v1156 = vadd.f32 %v1151, %v183
    %v1157 = vadd.f32 %v1152, %v184
    %v1158 = vadd.f32 %v1153, %v185
    %v1159 = vsel %vm528, %v1154, -inf
    %1160 = vmax.xlane.f32.xlu0 %v1159
    %v1161 = vpop.xlane.xlu0 %1160
    %v1162 = vsel %vm528, %v1155, -inf
    %1163 = vmax.xlane.f32.xlu0 %v1162
    %v1164 = vpop.xlane.xlu0 %1163
    %v1165 = vsel %vm528, %v1156, -inf
    %1166 = vmax.xlane.f32.xlu0 %v1165
    %v1167 = vpop.xlane.xlu0 %1166
    %v1168 = vsel %vm528, %v1157, -inf
    %1169 = vmax.xlane.f32.xlu0 %v1168
    %v1170 = vpop.xlane.xlu0 %1169
    %v1171 = vsel %vm528, %v1158, -inf
    %1172 = vmax.xlane.f32.xlu0 %v1171
    %v1173 = vpop.xlane.xlu0 %1172
    %v1174 = vsub.f32 %v1154, %v1161
    %v1175 = vsub.f32 %v1155, %v1164
    %v1176 = vsub.f32 %v1156, %v1167
    %v1177 = vsub.f32 %v1157, %v1170
    %v1178 = vsub.f32 %v1158, %v1173
    %v1179 = vmul.f32 %v1174, 1.442695
    %v1180 = vpow.pop %v1179
    %v1181 = vmul.f32 %v1175, 1.442695
    %v1182 = vpow.pop %v1181
    %v1183 = vmul.f32 %v1176, 1.442695
    %v1184 = vpow.pop %v1183
    %v1185 = vmul.f32 %v1177, 1.442695
    %v1186 = vpow.pop %v1185
    %v1187 = vmul.f32 %v1178, 1.442695
    %v1188 = vpow.pop %v1187
    %v1189 = vsel %vm528, %v1180, 0.0
    %1190 = vadd.xlane.f32.xlu0 %v1189
    %v1191 = vpop.xlane.xlu0 %1190
    %v1192 = vsel %vm528, %v1182, 0.0
    %1193 = vadd.xlane.f32.xlu0 %v1192
    %v1194 = vpop.xlane.xlu0 %1193
    %v1195 = vsel %vm528, %v1184, 0.0
    %1196 = vadd.xlane.f32.xlu0 %v1195
    %v1197 = vpop.xlane.xlu0 %1196
    %v1198 = vsel %vm528, %v1186, 0.0
    %1199 = vadd.xlane.f32.xlu0 %v1198
    %v1200 = vpop.xlane.xlu0 %1199
    %v1201 = vsel %vm528, %v1188, 0.0
    %1202 = vadd.xlane.f32.xlu0 %v1201
    %v1203 = vpop.xlane.xlu0 %1202
    %v1204 = vrcp.pop %v1191
    %v1205 = vrcp.pop %v1194
    %v1206 = vrcp.pop %v1197
    %v1207 = vrcp.pop %v1200
    %v1208 = vrcp.pop %v1203
    %v1209 = vmul.f32 %v1180, %v1204
    %v1210 = vmul.f32 %v1182, %v1205
    %v1211 = vmul.f32 %v1184, %v1206
    %v1212 = vmul.f32 %v1186, %v1207
    %v1213 = vmul.f32 %v1188, %v1208
    %1214 = vrot.lane.b32.xlu0 %v369, 48
    %v1215 = vpop.permute.xlu0 %1214
    %1216 = vrot.lane.b32.xlu0 %v374, 48
    %v1217 = vpop.permute.xlu0 %1216
    %1218 = vrot.lane.b32.xlu0 %v379, 48
    %v1219 = vpop.permute.xlu0 %1218
    %1220 = vrot.lane.b32.xlu0 %v384, 48
    %v1221 = vpop.permute.xlu0 %1220
    %1222 = vrot.lane.b32.xlu0 %v389, 48
    %v1223 = vpop.permute.xlu0 %1222
    %v1230 = vsel %vm528, %v1209, 0
    %v1233 = vsel %vm528, %v1210, 0
    %v1236 = vsel %vm528, %v1211, 0
    %v1239 = vsel %vm528, %v1212, 0
    %v1242 = vsel %vm528, %v1213, 0
    %1244 = vmatprep.subr.mxu0 0.0
    %1245 = vmatpush1.msra.mxu0 0.0
    %1246 = vmatprep.subr.mxu0 0.0
    %1247 = vmatpush1.msra.mxu0 0.0
    %1248 = vmatprep.subr.mxu0 0.0
    %1249 = vmatpush1.msra.mxu0 0.0
    %1250 = vmatprep.subr.mxu0 0.0
    %1251 = vmatpush1.msra.mxu0 0.0
    %1252 = vmatprep.subr.mxu0 0.0
    %1253 = vmatpush1.msra.mxu0 0.0
    %1254 = vmatprep.subr.mxu0 0.0
    %1255 = vmatpush1.msra.mxu0 0.0
    %1256 = vmatprep.subr.mxu0 0.0
    %1257 = vmatpush1.msra.mxu0 0.0
    %1258 = vmatprep.subr.mxu0 0.0
    %1259 = vmatpush1.msra.mxu0 0.0
    %1260 = vmatprep.subr.mxu0 0.0
    %1261 = vmatpush1.msra.mxu0 0.0
    %1262 = vmatprep.subr.mxu0 0.0
    %1263 = vmatpush1.msra.mxu0 0.0
    %1264 = vmatprep.subr.mxu0 0.0
    %1265 = vmatpush1.msra.mxu0 0.0
    %1266 = vmatprep.subr.mxu0 0.0
    %1267 = vmatpush1.msra.mxu0 %v1223
    %1268 = vmatprep.subr.mxu0 0.0
    %1269 = vmatpush1.msra.mxu0 %v1221
    %1270 = vmatprep.subr.mxu0 0.0
    %1271 = vmatpush1.msra.mxu0 %v1219
    %1272 = vmatprep.subr.mxu0 0.0
    %1273 = vmatpush1.msra.mxu0 %v1217
    %1274 = vmatprep.subr.mxu0 0.0
    %1275 = vmatpush1.msra.mxu0 %v1215
    %1276 = vmatprep.subr.mxu0 0.0
    %1277 = vmatpush2.msra.mxu0 0.0
    %1278 = vmatprep.subr.mxu0 0.0
    %1279 = vmatpush2.msra.mxu0 0.0
    %1280 = vmatprep.subr.mxu0 0.0
    %1281 = vmatpush2.msra.mxu0 0.0
    %1282 = vmatprep.subr.mxu0 0.0
    %1283 = vmatpush2.msra.mxu0 0.0
    %1284 = vmatprep.subr.mxu0 0.0
    %1285 = vmatpush2.msra.mxu0 0.0
    %1286 = vmatprep.subr.mxu0 0.0
    %1287 = vmatpush2.msra.mxu0 0.0
    %1288 = vmatprep.subr.mxu0 0.0
    %1289 = vmatpush2.msra.mxu0 0.0
    %1290 = vmatprep.subr.mxu0 0.0
    %1291 = vmatpush2.msra.mxu0 0.0
    %1292 = vmatprep.subr.mxu0 0.0
    %1293 = vmatpush2.msra.mxu0 0.0
    %1294 = vmatprep.subr.mxu0 0.0
    %1295 = vmatpush2.msra.mxu0 0.0
    %1296 = vmatprep.subr.mxu0 0.0
    %1297 = vmatpush2.msra.mxu0 0.0
    %1298 = vmatprep.subr.mxu0 0.0
    %1299 = vmatpush2.msra.mxu0 0.0
    %1300 = vmatprep.subr.mxu0 0.0
    %1301 = vmatpush2.msra.mxu0 0.0
    %1302 = vmatprep.subr.mxu0 0.0
    %1303 = vmatpush2.msra.mxu0 0.0
    %1304 = vmatprep.subr.mxu0 0.0
    %1305 = vmatpush2.msra.mxu0 0.0
    %1306 = vmatprep.subr.mxu0 0.0
    %1307 = vmatpush2.msra.mxu0 0.0
    %1308 = vmatprep.mubr.f32.mxu0 0.0
    %1309 = vmatmul.mubr.f32.gmra.mxu0 %v1230
    %v1310 = vpop.f32.mrf.mxu0
    %v1311 = vadd.f32 0.0, %v1310
    %v1312 = vpop.f32.mrf.mxu0
    %1313 = vmatprep.mubr.f32.mxu0 0.0
    %1314 = vmatmul.mubr.f32.gmra.mxu0 %v1233
    %v1315 = vpop.f32.mrf.mxu0
    %v1316 = vadd.f32 0.0, %v1315
    %v1317 = vpop.f32.mrf.mxu0
    %1318 = vmatprep.mubr.f32.mxu0 0.0
    %1319 = vmatmul.mubr.f32.gmra.mxu0 %v1236
    %v1320 = vpop.f32.mrf.mxu0
    %v1321 = vadd.f32 0.0, %v1320
    %v1322 = vpop.f32.mrf.mxu0
    %1323 = vmatprep.mubr.f32.mxu0 0.0
    %1324 = vmatmul.mubr.f32.gmra.mxu0 %v1239
    %v1325 = vpop.f32.mrf.mxu0
    %v1326 = vadd.f32 0.0, %v1325
    %v1327 = vpop.f32.mrf.mxu0
    %1328 = vmatprep.mubr.f32.mxu0 0.0
    %1329 = vmatmul.mubr.f32.gmra.mxu0 %v1242
    %v1330 = vpop.f32.mrf.mxu0
    %v1331 = vadd.f32 0.0, %v1330
    %v1332 = vpop.f32.mrf.mxu0
    %1333 = vdwg.mxu0
    %1334 = vrot.lane.b32.xlu0 %v369, 104
    %v1335 = vpop.permute.xlu0 %1334
    %1336 = vrot.lane.b32.xlu0 %v374, 104
    %v1337 = vpop.permute.xlu0 %1336
    %1338 = vrot.lane.b32.xlu0 %v379, 104
    %v1339 = vpop.permute.xlu0 %1338
    %1340 = vrot.lane.b32.xlu0 %v384, 104
    %v1341 = vpop.permute.xlu0 %1340
    %1342 = vrot.lane.b32.xlu0 %v389, 104
    %v1343 = vpop.permute.xlu0 %1342
    %1344 = vrot.lane.b32.xlu0 %v369, 72
    %v1345 = vpop.permute.xlu0 %1344
    %1346 = vrot.lane.b32.xlu0 %v374, 72
    %v1347 = vpop.permute.xlu0 %1346
    %1348 = vrot.lane.b32.xlu0 %v379, 72
    %v1349 = vpop.permute.xlu0 %1348
    %1350 = vrot.lane.b32.xlu0 %v384, 72
    %v1351 = vpop.permute.xlu0 %1350
    %1352 = vrot.lane.b32.xlu0 %v389, 72
    %v1353 = vpop.permute.xlu0 %1352
    %v1354 = vsel %vm407, %v1335, 0
    %v1356 = vsel %vm407, %v1337, 0
    %v1358 = vsel %vm407, %v1339, 0
    %v1360 = vsel %vm407, %v1341, 0
    %v1362 = vsel %vm407, %v1343, 0
    %v1364 = vsel %vm407, %v1345, 0
    %v1366 = vsel %vm407, %v1347, 0
    %v1368 = vsel %vm407, %v1349, 0
    %v1370 = vsel %vm407, %v1351, 0
    %v1372 = vsel %vm407, %v1353, 0
    %1374 = vmatprep.subr.mxu0 0.0
    %1375 = vmatpush1.xpose.msra.mxu0 0.0
    %1376 = vmatprep.subr.mxu0 0.0
    %1377 = vmatpush1.xpose.msra.mxu0 0.0
    %1378 = vmatprep.subr.mxu0 0.0
    %1379 = vmatpush1.xpose.msra.mxu0 0.0
    %1380 = vmatprep.subr.mxu0 0.0
    %1381 = vmatpush1.xpose.msra.mxu0 0.0
    %1382 = vmatprep.subr.mxu0 0.0
    %1383 = vmatpush1.xpose.msra.mxu0 0.0
    %1384 = vmatprep.subr.mxu0 0.0
    %1385 = vmatpush1.xpose.msra.mxu0 0.0
    %1386 = vmatprep.subr.mxu0 0.0
    %1387 = vmatpush1.xpose.msra.mxu0 0.0
    %1388 = vmatprep.subr.mxu0 0.0
    %1389 = vmatpush1.xpose.msra.mxu0 0.0
    %1390 = vmatprep.subr.mxu0 0.0
    %1391 = vmatpush1.xpose.msra.mxu0 0.0
    %1392 = vmatprep.subr.mxu0 0.0
    %1393 = vmatpush1.xpose.msra.mxu0 0.0
    %1394 = vmatprep.subr.mxu0 0.0
    %1395 = vmatpush1.xpose.msra.mxu0 0.0
    %1396 = vmatprep.subr.mxu0 0.0
    %1397 = vmatpush1.xpose.msra.mxu0 %v1372
    %1398 = vmatprep.subr.mxu0 0.0
    %1399 = vmatpush1.xpose.msra.mxu0 %v1370
    %1400 = vmatprep.subr.mxu0 0.0
    %1401 = vmatpush1.xpose.msra.mxu0 %v1368
    %1402 = vmatprep.subr.mxu0 0.0
    %1403 = vmatpush1.xpose.msra.mxu0 %v1366
    %1404 = vmatprep.subr.mxu0 0.0
    %1405 = vmatpush1.xpose.msra.mxu0 %v1364
    %1406 = vmatprep.subr.mxu0 0.0
    %1407 = vmatpush2.xpose.msra.mxu0 0.0
    %1408 = vmatprep.subr.mxu0 0.0
    %1409 = vmatpush2.xpose.msra.mxu0 0.0
    %1410 = vmatprep.subr.mxu0 0.0
    %1411 = vmatpush2.xpose.msra.mxu0 0.0
    %1412 = vmatprep.subr.mxu0 0.0
    %1413 = vmatpush2.xpose.msra.mxu0 0.0
    %1414 = vmatprep.subr.mxu0 0.0
    %1415 = vmatpush2.xpose.msra.mxu0 0.0
    %1416 = vmatprep.subr.mxu0 0.0
    %1417 = vmatpush2.xpose.msra.mxu0 0.0
    %1418 = vmatprep.subr.mxu0 0.0
    %1419 = vmatpush2.xpose.msra.mxu0 0.0
    %1420 = vmatprep.subr.mxu0 0.0
    %1421 = vmatpush2.xpose.msra.mxu0 0.0
    %1422 = vmatprep.subr.mxu0 0.0
    %1423 = vmatpush2.xpose.msra.mxu0 0.0
    %1424 = vmatprep.subr.mxu0 0.0
    %1425 = vmatpush2.xpose.msra.mxu0 0.0
    %1426 = vmatprep.subr.mxu0 0.0
    %1427 = vmatpush2.xpose.msra.mxu0 0.0
    %1428 = vmatprep.subr.mxu0 0.0
    %1429 = vmatpush2.xpose.msra.mxu0 0.0
    %1430 = vmatprep.subr.mxu0 0.0
    %1431 = vmatpush2.xpose.msra.mxu0 0.0
    %1432 = vmatprep.subr.mxu0 0.0
    %1433 = vmatpush2.xpose.msra.mxu0 0.0
    %1434 = vmatprep.subr.mxu0 0.0
    %1435 = vmatpush2.xpose.msra.mxu0 0.0
    %1436 = vmatprep.subr.mxu0 0.0
    %1437 = vmatpush2.xpose.msra.mxu0 0.0
    %1438 = vmatprep.mubr.f32.mxu0 0.0
    %1439 = vmatmul.mubr.f32.gmra.mxu0 %v1354
    %v1440 = vpop.f32.mrf.mxu0
    %v1441 = vadd.f32 0.0, %v1440
    %v1442 = vpop.f32.mrf.mxu0
    %1443 = vmatprep.mubr.f32.mxu0 0.0
    %1444 = vmatmul.mubr.f32.gmra.mxu0 %v1356
    %v1445 = vpop.f32.mrf.mxu0
    %v1446 = vadd.f32 0.0, %v1445
    %v1447 = vpop.f32.mrf.mxu0
    %1448 = vmatprep.mubr.f32.mxu0 0.0
    %1449 = vmatmul.mubr.f32.gmra.mxu0 %v1358
    %v1450 = vpop.f32.mrf.mxu0
    %v1451 = vadd.f32 0.0, %v1450
    %v1452 = vpop.f32.mrf.mxu0
    %1453 = vmatprep.mubr.f32.mxu0 0.0
    %1454 = vmatmul.mubr.f32.gmra.mxu0 %v1360
    %v1455 = vpop.f32.mrf.mxu0
    %v1456 = vadd.f32 0.0, %v1455
    %v1457 = vpop.f32.mrf.mxu0
    %1458 = vmatprep.mubr.f32.mxu0 0.0
    %1459 = vmatmul.mubr.f32.gmra.mxu0 %v1362
    %v1460 = vpop.f32.mrf.mxu0
    %v1461 = vadd.f32 0.0, %v1460
    %v1462 = vpop.f32.mrf.mxu0
    %1463 = vdwg.mxu0
    %v1464 = vmul.f32 %v1441, 0.35355338
    %v1465 = vmul.f32 %v1446, 0.35355338
    %v1466 = vmul.f32 %v1451, 0.35355338
    %v1467 = vmul.f32 %v1456, 0.35355338
    %v1468 = vmul.f32 %v1461, 0.35355338
    %v1469 = vadd.f32 %v1464, %v181
    %v1470 = vadd.f32 %v1465, %v182
    %v1471 = vadd.f32 %v1466, %v183
    %v1472 = vadd.f32 %v1467, %v184
    %v1473 = vadd.f32 %v1468, %v185
    %v1474 = vsel %vm528, %v1469, -inf
    %1475 = vmax.xlane.f32.xlu0 %v1474
    %v1476 = vpop.xlane.xlu0 %1475
    %v1477 = vsel %vm528, %v1470, -inf
    %1478 = vmax.xlane.f32.xlu0 %v1477
    %v1479 = vpop.xlane.xlu0 %1478
    %v1480 = vsel %vm528, %v1471, -inf
    %1481 = vmax.xlane.f32.xlu0 %v1480
    %v1482 = vpop.xlane.xlu0 %1481
    %v1483 = vsel %vm528, %v1472, -inf
    %1484 = vmax.xlane.f32.xlu0 %v1483
    %v1485 = vpop.xlane.xlu0 %1484
    %v1486 = vsel %vm528, %v1473, -inf
    %1487 = vmax.xlane.f32.xlu0 %v1486
    %v1488 = vpop.xlane.xlu0 %1487
    %v1489 = vsub.f32 %v1469, %v1476
    %v1490 = vsub.f32 %v1470, %v1479
    %v1491 = vsub.f32 %v1471, %v1482
    %v1492 = vsub.f32 %v1472, %v1485
    %v1493 = vsub.f32 %v1473, %v1488
    %v1494 = vmul.f32 %v1489, 1.442695
    %v1495 = vpow.pop %v1494
    %v1496 = vmul.f32 %v1490, 1.442695
    %v1497 = vpow.pop %v1496
    %v1498 = vmul.f32 %v1491, 1.442695
    %v1499 = vpow.pop %v1498
    %v1500 = vmul.f32 %v1492, 1.442695
    %v1501 = vpow.pop %v1500
    %v1502 = vmul.f32 %v1493, 1.442695
    %v1503 = vpow.pop %v1502
    %v1504 = vsel %vm528, %v1495, 0.0
    %1505 = vadd.xlane.f32.xlu0 %v1504
    %v1506 = vpop.xlane.xlu0 %1505
    %v1507 = vsel %vm528, %v1497, 0.0
    %1508 = vadd.xlane.f32.xlu0 %v1507
    %v1509 = vpop.xlane.xlu0 %1508
    %v1510 = vsel %vm528, %v1499, 0.0
    %1511 = vadd.xlane.f32.xlu0 %v1510
    %v1512 = vpop.xlane.xlu0 %1511
    %v1513 = vsel %vm528, %v1501, 0.0
    %1514 = vadd.xlane.f32.xlu0 %v1513
    %v1515 = vpop.xlane.xlu0 %1514
    %v1516 = vsel %vm528, %v1503, 0.0
    %1517 = vadd.xlane.f32.xlu0 %v1516
    %v1518 = vpop.xlane.xlu0 %1517
    %v1519 = vrcp.pop %v1506
    %v1520 = vrcp.pop %v1509
    %v1521 = vrcp.pop %v1512
    %v1522 = vrcp.pop %v1515
    %v1523 = vrcp.pop %v1518
    %v1524 = vmul.f32 %v1495, %v1519
    %v1525 = vmul.f32 %v1497, %v1520
    %v1526 = vmul.f32 %v1499, %v1521
    %v1527 = vmul.f32 %v1501, %v1522
    %v1528 = vmul.f32 %v1503, %v1523
    %1529 = vrot.lane.b32.xlu0 %v369, 40
    %v1530 = vpop.permute.xlu0 %1529
    %1531 = vrot.lane.b32.xlu0 %v374, 40
    %v1532 = vpop.permute.xlu0 %1531
    %1533 = vrot.lane.b32.xlu0 %v379, 40
    %v1534 = vpop.permute.xlu0 %1533
    %1535 = vrot.lane.b32.xlu0 %v384, 40
    %v1536 = vpop.permute.xlu0 %1535
    %1537 = vrot.lane.b32.xlu0 %v389, 40
    %v1538 = vpop.permute.xlu0 %1537
    %v1545 = vsel %vm528, %v1524, 0
    %v1548 = vsel %vm528, %v1525, 0
    %v1551 = vsel %vm528, %v1526, 0
    %v1554 = vsel %vm528, %v1527, 0
    %v1557 = vsel %vm528, %v1528, 0
    %1559 = vmatprep.subr.mxu0 0.0
    %1560 = vmatpush1.msra.mxu0 0.0
    %1561 = vmatprep.subr.mxu0 0.0
    %1562 = vmatpush1.msra.mxu0 0.0
    %1563 = vmatprep.subr.mxu0 0.0
    %1564 = vmatpush1.msra.mxu0 0.0
    %1565 = vmatprep.subr.mxu0 0.0
    %1566 = vmatpush1.msra.mxu0 0.0
    %1567 = vmatprep.subr.mxu0 0.0
    %1568 = vmatpush1.msra.mxu0 0.0
    %1569 = vmatprep.subr.mxu0 0.0
    %1570 = vmatpush1.msra.mxu0 0.0
    %1571 = vmatprep.subr.mxu0 0.0
    %1572 = vmatpush1.msra.mxu0 0.0
    %1573 = vmatprep.subr.mxu0 0.0
    %1574 = vmatpush1.msra.mxu0 0.0
    %1575 = vmatprep.subr.mxu0 0.0
    %1576 = vmatpush1.msra.mxu0 0.0
    %1577 = vmatprep.subr.mxu0 0.0
    %1578 = vmatpush1.msra.mxu0 0.0
    %1579 = vmatprep.subr.mxu0 0.0
    %1580 = vmatpush1.msra.mxu0 0.0
    %1581 = vmatprep.subr.mxu0 0.0
    %1582 = vmatpush1.msra.mxu0 %v1538
    %1583 = vmatprep.subr.mxu0 0.0
    %1584 = vmatpush1.msra.mxu0 %v1536
    %1585 = vmatprep.subr.mxu0 0.0
    %1586 = vmatpush1.msra.mxu0 %v1534
    %1587 = vmatprep.subr.mxu0 0.0
    %1588 = vmatpush1.msra.mxu0 %v1532
    %1589 = vmatprep.subr.mxu0 0.0
    %1590 = vmatpush1.msra.mxu0 %v1530
    %1591 = vmatprep.subr.mxu0 0.0
    %1592 = vmatpush2.msra.mxu0 0.0
    %1593 = vmatprep.subr.mxu0 0.0
    %1594 = vmatpush2.msra.mxu0 0.0
    %1595 = vmatprep.subr.mxu0 0.0
    %1596 = vmatpush2.msra.mxu0 0.0
    %1597 = vmatprep.subr.mxu0 0.0
    %1598 = vmatpush2.msra.mxu0 0.0
    %1599 = vmatprep.subr.mxu0 0.0
    %1600 = vmatpush2.msra.mxu0 0.0
    %1601 = vmatprep.subr.mxu0 0.0
    %1602 = vmatpush2.msra.mxu0 0.0
    %1603 = vmatprep.subr.mxu0 0.0
    %1604 = vmatpush2.msra.mxu0 0.0
    %1605 = vmatprep.subr.mxu0 0.0
    %1606 = vmatpush2.msra.mxu0 0.0
    %1607 = vmatprep.subr.mxu0 0.0
    %1608 = vmatpush2.msra.mxu0 0.0
    %1609 = vmatprep.subr.mxu0 0.0
    %1610 = vmatpush2.msra.mxu0 0.0
    %1611 = vmatprep.subr.mxu0 0.0
    %1612 = vmatpush2.msra.mxu0 0.0
    %1613 = vmatprep.subr.mxu0 0.0
    %1614 = vmatpush2.msra.mxu0 0.0
    %1615 = vmatprep.subr.mxu0 0.0
    %1616 = vmatpush2.msra.mxu0 0.0
    %1617 = vmatprep.subr.mxu0 0.0
    %1618 = vmatpush2.msra.mxu0 0.0
    %1619 = vmatprep.subr.mxu0 0.0
    %1620 = vmatpush2.msra.mxu0 0.0
    %1621 = vmatprep.subr.mxu0 0.0
    %1622 = vmatpush2.msra.mxu0 0.0
    %1623 = vmatprep.mubr.f32.mxu0 0.0
    %1624 = vmatmul.mubr.f32.gmra.mxu0 %v1545
    %v1625 = vpop.f32.mrf.mxu0
    %v1626 = vadd.f32 0.0, %v1625
    %v1627 = vpop.f32.mrf.mxu0
    %1628 = vmatprep.mubr.f32.mxu0 0.0
    %1629 = vmatmul.mubr.f32.gmra.mxu0 %v1548
    %v1630 = vpop.f32.mrf.mxu0
    %v1631 = vadd.f32 0.0, %v1630
    %v1632 = vpop.f32.mrf.mxu0
    %1633 = vmatprep.mubr.f32.mxu0 0.0
    %1634 = vmatmul.mubr.f32.gmra.mxu0 %v1551
    %v1635 = vpop.f32.mrf.mxu0
    %v1636 = vadd.f32 0.0, %v1635
    %v1637 = vpop.f32.mrf.mxu0
    %1638 = vmatprep.mubr.f32.mxu0 0.0
    %1639 = vmatmul.mubr.f32.gmra.mxu0 %v1554
    %v1640 = vpop.f32.mrf.mxu0
    %v1641 = vadd.f32 0.0, %v1640
    %v1642 = vpop.f32.mrf.mxu0
    %1643 = vmatprep.mubr.f32.mxu0 0.0
    %1644 = vmatmul.mubr.f32.gmra.mxu0 %v1557
    %v1645 = vpop.f32.mrf.mxu0
    %v1646 = vadd.f32 0.0, %v1645
    %v1647 = vpop.f32.mrf.mxu0
    %1648 = vdwg.mxu0
    %1654 = vrot.lane.b32.xlu0 %v996, 8
    %v1655 = vpop.permute.xlu0 %1654
    %1656 = vrot.lane.b32.xlu0 %v1001, 8
    %v1657 = vpop.permute.xlu0 %1656
    %1658 = vrot.lane.b32.xlu0 %v1006, 8
    %v1659 = vpop.permute.xlu0 %1658
    %1660 = vrot.lane.b32.xlu0 %v1011, 8
    %v1661 = vpop.permute.xlu0 %1660
    %1662 = vrot.lane.b32.xlu0 %v1016, 8
    %v1663 = vpop.permute.xlu0 %1662
    %1674 = vrot.lane.b32.xlu0 %v1311, 16
    %v1675 = vpop.permute.xlu0 %1674
    %1676 = vrot.lane.b32.xlu0 %v1316, 16
    %v1677 = vpop.permute.xlu0 %1676
    %1678 = vrot.lane.b32.xlu0 %v1321, 16
    %v1679 = vpop.permute.xlu0 %1678
    %1680 = vrot.lane.b32.xlu0 %v1326, 16
    %v1681 = vpop.permute.xlu0 %1680
    %1682 = vrot.lane.b32.xlu0 %v1331, 16
    %v1683 = vpop.permute.xlu0 %1682
    %1694 = vrot.lane.b32.xlu0 %v1626, 24
    %v1695 = vpop.permute.xlu0 %1694
    %1696 = vrot.lane.b32.xlu0 %v1631, 24
    %v1697 = vpop.permute.xlu0 %1696
    %1698 = vrot.lane.b32.xlu0 %v1636, 24
    %v1699 = vpop.permute.xlu0 %1698
    %1700 = vrot.lane.b32.xlu0 %v1641, 24
    %v1701 = vpop.permute.xlu0 %1700
    %1702 = vrot.lane.b32.xlu0 %v1646, 24
    %v1703 = vpop.permute.xlu0 %1702
    %v1709 = vsel %vm407, %v681, %v1655
    %v1710 = vsel %vm407, %v686, %v1657
    %v1711 = vsel %vm407, %v691, %v1659
    %v1712 = vsel %vm407, %v696, %v1661
    %v1713 = vsel %vm407, %v701, %v1663
    %vm1714 = vcmask 130048
    %v1715 = vsel %vm1714, %v1709, %v1675
    %v1716 = vsel %vm1714, %v1710, %v1677
    %v1717 = vsel %vm1714, %v1711, %v1679
    %v1718 = vsel %vm1714, %v1712, %v1681
    %v1719 = vsel %vm1714, %v1713, %v1683
    %vm1720 = vcmask 195584
    %v1721 = vsel %vm1720, %v1715, %v1695
    %v1722 = vsel %vm1720, %v1716, %v1697
    %v1723 = vsel %vm1720, %v1717, %v1699
    %v1724 = vsel %vm1720, %v1718, %v1701
    %v1725 = vsel %vm1720, %v1719, %v1703
    %v1726 = vlaneseq
    %v1727 = vshrl.u32 %v1726, 7
    %v1728 = vsub.s32 0, %v1727
    %v1729 = vrot.slane %v282, %v1728
    %v1731 = vsel %vm188, %v1721, 0
    %v1734 = vsel %vm188, %v1722, 0
    %v1737 = vsel %vm188, %v1723, 0
    %v1740 = vsel %vm188, %v1724, 0
    %v1743 = vsel %vm188, %v1725, 0
    %1745 = vmatprep.subr.mxu0 0.0
    %1746 = vmatpush1.msra.mxu0 0.0
    %1747 = vmatprep.subr.mxu0 0.0
    %1748 = vmatpush1.msra.mxu0 0.0
    %1749 = vmatprep.subr.mxu0 0.0
    %1750 = vmatpush1.msra.mxu0 0.0
    %1751 = vmatprep.subr.mxu0 0.0
    %1752 = vmatpush1.msra.mxu0 0.0
    %1753 = vmatprep.subr.mxu0 0.0
    %1754 = vmatpush1.msra.mxu0 0.0
    %1755 = vmatprep.subr.mxu0 0.0
    %1756 = vmatpush1.msra.mxu0 0.0
    %1757 = vmatprep.subr.mxu0 0.0
    %1758 = vmatpush1.msra.mxu0 0.0
    %1759 = vmatprep.subr.mxu0 0.0
    %1760 = vmatpush1.msra.mxu0 0.0
    %1761 = vmatprep.subr.mxu0 0.0
    %1762 = vmatpush1.msra.mxu0 0.0
    %1763 = vmatprep.subr.mxu0 0.0
    %1764 = vmatpush1.msra.mxu0 0.0
    %1765 = vmatprep.subr.mxu0 0.0
    %1766 = vmatpush1.msra.mxu0 0.0
    %1767 = vmatprep.subr.mxu0 0.0
    %1768 = vmatpush1.msra.mxu0 0.0
    %1769 = vmatprep.subr.mxu0 0.0
    %1770 = vmatpush1.msra.mxu0 %v281
    %1771 = vmatprep.subr.mxu0 0.0
    %1772 = vmatpush1.msra.mxu0 %v280
    %1773 = vmatprep.subr.mxu0 0.0
    %1774 = vmatpush1.msra.mxu0 %v279
    %1775 = vmatprep.subr.mxu0 0.0
    %1776 = vmatpush1.msra.mxu0 %v278
    %1777 = vmatprep.subr.mxu0 0.0
    %1778 = vmatpush2.msra.mxu0 0.0
    %1779 = vmatprep.subr.mxu0 0.0
    %1780 = vmatpush2.msra.mxu0 0.0
    %1781 = vmatprep.subr.mxu0 0.0
    %1782 = vmatpush2.msra.mxu0 0.0
    %1783 = vmatprep.subr.mxu0 0.0
    %1784 = vmatpush2.msra.mxu0 0.0
    %1785 = vmatprep.subr.mxu0 0.0
    %1786 = vmatpush2.msra.mxu0 0.0
    %1787 = vmatprep.subr.mxu0 0.0
    %1788 = vmatpush2.msra.mxu0 0.0
    %1789 = vmatprep.subr.mxu0 0.0
    %1790 = vmatpush2.msra.mxu0 0.0
    %1791 = vmatprep.subr.mxu0 0.0
    %1792 = vmatpush2.msra.mxu0 0.0
    %1793 = vmatprep.subr.mxu0 0.0
    %1794 = vmatpush2.msra.mxu0 0.0
    %1795 = vmatprep.subr.mxu0 0.0
    %1796 = vmatpush2.msra.mxu0 0.0
    %1797 = vmatprep.subr.mxu0 0.0
    %1798 = vmatpush2.msra.mxu0 0.0
    %1799 = vmatprep.subr.mxu0 0.0
    %1800 = vmatpush2.msra.mxu0 0.0
    %1801 = vmatprep.subr.mxu0 0.0
    %1802 = vmatpush2.msra.mxu0 0.0
    %1803 = vmatprep.subr.mxu0 0.0
    %1804 = vmatpush2.msra.mxu0 0.0
    %1805 = vmatprep.subr.mxu0 0.0
    %1806 = vmatpush2.msra.mxu0 0.0
    %1807 = vmatprep.subr.mxu0 0.0
    %1808 = vmatpush2.msra.mxu0 0.0
    %1809 = vmatprep.mubr.f32.mxu0 0.0
    %1810 = vmatmul.mubr.f32.gmra.mxu0 %v1731
    %v1811 = vpop.f32.mrf.mxu0
    %v1812 = vadd.f32 %v1729, %v1811
    %v1813 = vpop.f32.mrf.mxu0
    %1814 = vmatprep.mubr.f32.mxu0 0.0
    %1815 = vmatmul.mubr.f32.gmra.mxu0 %v1734
    %v1816 = vpop.f32.mrf.mxu0
    %v1817 = vadd.f32 %v1729, %v1816
    %v1818 = vpop.f32.mrf.mxu0
    %1819 = vmatprep.mubr.f32.mxu0 0.0
    %1820 = vmatmul.mubr.f32.gmra.mxu0 %v1737
    %v1821 = vpop.f32.mrf.mxu0
    %v1822 = vadd.f32 %v1729, %v1821
    %v1823 = vpop.f32.mrf.mxu0
    %1824 = vmatprep.mubr.f32.mxu0 0.0
    %1825 = vmatmul.mubr.f32.gmra.mxu0 %v1740
    %v1826 = vpop.f32.mrf.mxu0
    %v1827 = vadd.f32 %v1729, %v1826
    %v1828 = vpop.f32.mrf.mxu0
    %1829 = vmatprep.mubr.f32.mxu0 0.0
    %1830 = vmatmul.mubr.f32.gmra.mxu0 %v1743
    %v1831 = vpop.f32.mrf.mxu0
    %v1832 = vadd.f32 %v1729, %v1831
    %v1833 = vpop.f32.mrf.mxu0
    %1834 = vdwg.mxu0
    %v1835 = vadd.f32 %v158, %v1812
    %v1836 = vadd.f32 %v163, %v1817
    %v1837 = vadd.f32 %v168, %v1822
    %v1838 = vadd.f32 %v173, %v1827
    %v1839 = vadd.f32 %v178, %v1832
    %v1840 = vld [vmem:[%s5 + $0x170] sm:$0x1]
    %v1841 = vld [vmem:[%s5 + $0x178] sm:$0x1]
    %v1842 = vsel %vm188, %v1835, 0.0
    %1843 = vadd.xlane.f32.xlu0 %v1842
    %v1844 = vpop.xlane.xlu0 %1843
    %v1845 = vsel %vm188, %v1836, 0.0
    %1846 = vadd.xlane.f32.xlu0 %v1845
    %v1847 = vpop.xlane.xlu0 %1846
    %v1848 = vsel %vm188, %v1837, 0.0
    %1849 = vadd.xlane.f32.xlu0 %v1848
    %v1850 = vpop.xlane.xlu0 %1849
    %v1851 = vsel %vm188, %v1838, 0.0
    %1852 = vadd.xlane.f32.xlu0 %v1851
    %v1853 = vpop.xlane.xlu0 %1852
    %v1854 = vsel %vm188, %v1839, 0.0
    %1855 = vadd.xlane.f32.xlu0 %v1854
    %v1856 = vpop.xlane.xlu0 %1855
    %v1857 = vmul.f32 %v1844, %v204
    %v1858 = vmul.f32 %v1847, %v204
    %v1859 = vmul.f32 %v1850, %v204
    %v1860 = vmul.f32 %v1853, %v204
    %v1861 = vmul.f32 %v1856, %v204
    %v1862 = vsub.f32 %v1835, %v1857
    %v1863 = vsub.f32 %v1836, %v1858
    %v1864 = vsub.f32 %v1837, %v1859
    %v1865 = vsub.f32 %v1838, %v1860
    %v1866 = vsub.f32 %v1839, %v1861
    %v1867 = vmul.f32 %v1862, %v1862
    %v1868 = vmul.f32 %v1863, %v1863
    %v1869 = vmul.f32 %v1864, %v1864
    %v1870 = vmul.f32 %v1865, %v1865
    %v1871 = vmul.f32 %v1866, %v1866
    %v1872 = vsel %vm188, %v1867, 0.0
    %1873 = vadd.xlane.f32.xlu0 %v1872
    %v1874 = vpop.xlane.xlu0 %1873
    %v1875 = vsel %vm188, %v1868, 0.0
    %1876 = vadd.xlane.f32.xlu0 %v1875
    %v1877 = vpop.xlane.xlu0 %1876
    %v1878 = vsel %vm188, %v1869, 0.0
    %1879 = vadd.xlane.f32.xlu0 %v1878
    %v1880 = vpop.xlane.xlu0 %1879
    %v1881 = vsel %vm188, %v1870, 0.0
    %1882 = vadd.xlane.f32.xlu0 %v1881
    %v1883 = vpop.xlane.xlu0 %1882
    %v1884 = vsel %vm188, %v1871, 0.0
    %1885 = vadd.xlane.f32.xlu0 %v1884
    %v1886 = vpop.xlane.xlu0 %1885
    %v1887 = vmul.f32 %v1874, %v204
    %v1888 = vmul.f32 %v1877, %v204
    %v1889 = vmul.f32 %v1880, %v204
    %v1890 = vmul.f32 %v1883, %v204
    %v1891 = vmul.f32 %v1886, %v204
    %v1892 = vadd.f32 %v1887, 1e-06
    %v1893 = vadd.f32 %v1888, 1e-06
    %v1894 = vadd.f32 %v1889, 1e-06
    %v1895 = vadd.f32 %v1890, 1e-06
    %v1896 = vadd.f32 %v1891, 1e-06
    %v1897 = vrsqrt.pop %v1892
    %v1898 = vrsqrt.pop %v1893
    %v1899 = vrsqrt.pop %v1894
    %v1900 = vrsqrt.pop %v1895
    %v1901 = vrsqrt.pop %v1896
    %v1902 = vmul.f32 %v1862, %v1897
    %v1903 = vmul.f32 %v1863, %v1898
    %v1904 = vmul.f32 %v1864, %v1899
    %v1905 = vmul.f32 %v1865, %v1900
    %v1906 = vmul.f32 %v1866, %v1901
    %v1907 = vlaneseq
    %v1908 = vshrl.u32 %v1907, 7
    %v1909 = vsub.s32 0, %v1908
    %v1910 = vrot.slane %v1840, %v1909
    %v1911 = vmul.f32 %v1902, %v1910
    %v1912 = vmul.f32 %v1903, %v1910
    %v1913 = vmul.f32 %v1904, %v1910
    %v1914 = vmul.f32 %v1905, %v1910
    %v1915 = vmul.f32 %v1906, %v1910
    %v1916 = vlaneseq
    %v1917 = vshrl.u32 %v1916, 7
    %v1918 = vsub.s32 0, %v1917
    %v1919 = vrot.slane %v1841, %v1918
    %v1920 = vadd.f32 %v1911, %v1919
    %v1921 = vadd.f32 %v1912, %v1919
    %v1922 = vadd.f32 %v1913, %v1919
    %v1923 = vadd.f32 %v1914, %v1919
    %v1924 = vadd.f32 %v1915, %v1919
    %v1925 = vld [vmem:[%s5 + $0x180] sm:$0xff]
    %v1926 = vld [vmem:[%s5 + $0x188] sm:$0xff]
    %v1927 = vld [vmem:[%s5 + $0x190] sm:$0xff]
    %v1928 = vld [vmem:[%s5 + $0x198] sm:$0xff]
    %v1929 = vld [vmem:[%s5 + $0x1a0] sm:$0x1]
    %v1930 = vld [vmem:[%s5 + $0x1a8] sm:$0xff]
    %v1931 = vld [vmem:[%s5 + $0x1b0] sm:$0xff]
    %v1932 = vld [vmem:[%s5 + $0x1b8] sm:$0xff]
    %v1933 = vld [vmem:[%s5 + $0x1c0] sm:$0xff]
    %v1934 = vld [vmem:[%s5 + $0x1c8] sm:$0xff]
    %v1935 = vld [vmem:[%s5 + $0x1d0] sm:$0xff]
    %v1936 = vld [vmem:[%s5 + $0x1d8] sm:$0xff]
    %v1937 = vld [vmem:[%s5 + $0x1e0] sm:$0xff]
    %v1938 = vld [vmem:[%s5 + $0x1e8] sm:$0xff]
    %v1939 = vld [vmem:[%s5 + $0x1f0] sm:$0xff]
    %v1940 = vld [vmem:[%s5 + $0x1f8] sm:$0xff]
    %v1941 = vld [vmem:[%s5 + $0x200] sm:$0xff]
    %v1942 = vld [vmem:[%s5 + $0x208] sm:$0xff]
    %v1943 = vld [vmem:[%s5 + $0x210] sm:$0xff]
    %v1944 = vld [vmem:[%s5 + $0x218] sm:$0xff]
    %v1945 = vld [vmem:[%s5 + $0x220] sm:$0xff]
    %v1946 = vld [vmem:[%s5 + $0x228] sm:$0x1]
    %v1947 = vlaneseq
    %v1948 = vshrl.u32 %v1947, 7
    %v1949 = vsub.s32 0, %v1948
    %v1950 = vrot.slane %v1929, %v1949
    %v1952 = vsel %vm188, %v1920, 0
    %v1955 = vsel %vm188, %v1921, 0
    %v1958 = vsel %vm188, %v1922, 0
    %v1961 = vsel %vm188, %v1923, 0
    %v1964 = vsel %vm188, %v1924, 0
    %1966 = vmatprep.subr.mxu0 0.0
    %1967 = vmatpush1.msra.mxu0 0.0
    %1968 = vmatprep.subr.mxu0 0.0
    %1969 = vmatpush1.msra.mxu0 0.0
    %1970 = vmatprep.subr.mxu0 0.0
    %1971 = vmatpush1.msra.mxu0 0.0
    %1972 = vmatprep.subr.mxu0 0.0
    %1973 = vmatpush1.msra.mxu0 0.0
    %1974 = vmatprep.subr.mxu0 0.0
    %1975 = vmatpush1.msra.mxu0 0.0
    %1976 = vmatprep.subr.mxu0 0.0
    %1977 = vmatpush1.msra.mxu0 0.0
    %1978 = vmatprep.subr.mxu0 0.0
    %1979 = vmatpush1.msra.mxu0 0.0
    %1980 = vmatprep.subr.mxu0 0.0
    %1981 = vmatpush1.msra.mxu0 0.0
    %1982 = vmatprep.subr.mxu0 0.0
    %1983 = vmatpush1.msra.mxu0 0.0
    %1984 = vmatprep.subr.mxu0 0.0
    %1985 = vmatpush1.msra.mxu0 0.0
    %1986 = vmatprep.subr.mxu0 0.0
    %1987 = vmatpush1.msra.mxu0 0.0
    %1988 = vmatprep.subr.mxu0 0.0
    %1989 = vmatpush1.msra.mxu0 0.0
    %1990 = vmatprep.subr.mxu0 0.0
    %1991 = vmatpush1.msra.mxu0 %v1928
    %1992 = vmatprep.subr.mxu0 0.0
    %1993 = vmatpush1.msra.mxu0 %v1927
    %1994 = vmatprep.subr.mxu0 0.0
    %1995 = vmatpush1.msra.mxu0 %v1926
    %1996 = vmatprep.subr.mxu0 0.0
    %1997 = vmatpush1.msra.mxu0 %v1925
    %1998 = vmatprep.subr.mxu0 0.0
    %1999 = vmatpush2.msra.mxu0 0.0
    %2000 = vmatprep.subr.mxu0 0.0
    %2001 = vmatpush2.msra.mxu0 0.0
    %2002 = vmatprep.subr.mxu0 0.0
    %2003 = vmatpush2.msra.mxu0 0.0
    %2004 = vmatprep.subr.mxu0 0.0
    %2005 = vmatpush2.msra.mxu0 0.0
    %2006 = vmatprep.subr.mxu0 0.0
    %2007 = vmatpush2.msra.mxu0 0.0
    %2008 = vmatprep.subr.mxu0 0.0
    %2009 = vmatpush2.msra.mxu0 0.0
    %2010 = vmatprep.subr.mxu0 0.0
    %2011 = vmatpush2.msra.mxu0 0.0
    %2012 = vmatprep.subr.mxu0 0.0
    %2013 = vmatpush2.msra.mxu0 0.0
    %2014 = vmatprep.subr.mxu0 0.0
    %2015 = vmatpush2.msra.mxu0 0.0
    %2016 = vmatprep.subr.mxu0 0.0
    %2017 = vmatpush2.msra.mxu0 0.0
    %2018 = vmatprep.subr.mxu0 0.0
    %2019 = vmatpush2.msra.mxu0 0.0
    %2020 = vmatprep.subr.mxu0 0.0
    %2021 = vmatpush2.msra.mxu0 0.0
    %2022 = vmatprep.subr.mxu0 0.0
    %2023 = vmatpush2.msra.mxu0 0.0
    %2024 = vmatprep.subr.mxu0 0.0
    %2025 = vmatpush2.msra.mxu0 0.0
    %2026 = vmatprep.subr.mxu0 0.0
    %2027 = vmatpush2.msra.mxu0 0.0
    %2028 = vmatprep.subr.mxu0 0.0
    %2029 = vmatpush2.msra.mxu0 0.0
    %2030 = vmatprep.mubr.f32.mxu0 0.0
    %2031 = vmatmul.mubr.f32.gmra.mxu0 %v1952
    %v2032 = vpop.f32.mrf.mxu0
    %v2033 = vadd.f32 %v1950, %v2032
    %v2034 = vpop.f32.mrf.mxu0
    %2035 = vmatprep.mubr.f32.mxu0 0.0
    %2036 = vmatmul.mubr.f32.gmra.mxu0 %v1955
    %v2037 = vpop.f32.mrf.mxu0
    %v2038 = vadd.f32 %v1950, %v2037
    %v2039 = vpop.f32.mrf.mxu0
    %2040 = vmatprep.mubr.f32.mxu0 0.0
    %2041 = vmatmul.mubr.f32.gmra.mxu0 %v1958
    %v2042 = vpop.f32.mrf.mxu0
    %v2043 = vadd.f32 %v1950, %v2042
    %v2044 = vpop.f32.mrf.mxu0
    %2045 = vmatprep.mubr.f32.mxu0 0.0
    %2046 = vmatmul.mubr.f32.gmra.mxu0 %v1961
    %v2047 = vpop.f32.mrf.mxu0
    %v2048 = vadd.f32 %v1950, %v2047
    %v2049 = vpop.f32.mrf.mxu0
    %2050 = vmatprep.mubr.f32.mxu0 0.0
    %2051 = vmatmul.mubr.f32.gmra.mxu0 %v1964
    %v2052 = vpop.f32.mrf.mxu0
    %v2053 = vadd.f32 %v1950, %v2052
    %v2054 = vpop.f32.mrf.mxu0
    %2055 = vdwg.mxu0
    %v2056 = vmul.f32 %v2033, 0.5
    %v2057 = vmul.f32 %v2038, 0.5
    %v2058 = vmul.f32 %v2043, 0.5
    %v2059 = vmul.f32 %v2048, 0.5
    %v2060 = vmul.f32 %v2053, 0.5
    %v2061 = vmul.f32 %v2033, 0.70710677
    %v2062 = vmul.f32 %v2038, 0.70710677
    %v2063 = vmul.f32 %v2043, 0.70710677
    %v2064 = vmul.f32 %v2048, 0.70710677
    %v2065 = vmul.f32 %v2053, 0.70710677
    %vm2066 = vcmp.ge.f32.partialorder %v2061, 0.0
    %vm2067 = vcmp.ge.f32.partialorder %v2062, 0.0
    %vm2068 = vcmp.ge.f32.partialorder %v2063, 0.0
    %vm2069 = vcmp.ge.f32.partialorder %v2064, 0.0
    %vm2070 = vcmp.ge.f32.partialorder %v2065, 0.0
    %v2071 = vsel %vm2066, 1.0, -1.0
    %v2072 = vsel %vm2067, 1.0, -1.0
    %v2073 = vsel %vm2068, 1.0, -1.0
    %v2074 = vsel %vm2069, 1.0, -1.0
    %v2075 = vsel %vm2070, 1.0, -1.0
    %v2076 = vand.u32 2147483647, %v2061
    %v2077 = vand.u32 2147483647, %v2062
    %v2078 = vand.u32 2147483647, %v2063
    %v2079 = vand.u32 2147483647, %v2064
    %v2080 = vand.u32 2147483647, %v2065
    %v2081 = vmul.f32 %v2076, 0.3275911
    %v2082 = vmul.f32 %v2077, 0.3275911
    %v2083 = vmul.f32 %v2078, 0.3275911
    %v2084 = vmul.f32 %v2079, 0.3275911
    %v2085 = vmul.f32 %v2080, 0.3275911
    %v2086 = vadd.f32 %v2081, 1.0
    %v2087 = vadd.f32 %v2082, 1.0
    %v2088 = vadd.f32 %v2083, 1.0
    %v2089 = vadd.f32 %v2084, 1.0
    %v2090 = vadd.f32 %v2085, 1.0
    %v2091 = vrcp.pop %v2086
    %v2092 = vmul.f32 1.0, %v2091
    %v2093 = vrcp.pop %v2087
    %v2094 = vmul.f32 1.0, %v2093
    %v2095 = vrcp.pop %v2088
    %v2096 = vmul.f32 1.0, %v2095
    %v2097 = vrcp.pop %v2089
    %v2098 = vmul.f32 1.0, %v2097
    %v2099 = vrcp.pop %v2090
    %v2100 = vmul.f32 1.0, %v2099
    %v2101 = vmul.f32 %v2092, 1.0614054
    %v2102 = vmul.f32 %v2094, 1.0614054
    %v2103 = vmul.f32 %v2096, 1.0614054
    %v2104 = vmul.f32 %v2098, 1.0614054
    %v2105 = vmul.f32 %v2100, 1.0614054
    %v2106 = vadd.f32 %v2101, -1.4531521
    %v2107 = vadd.f32 %v2102, -1.4531521
    %v2108 = vadd.f32 %v2103, -1.4531521
    %v2109 = vadd.f32 %v2104, -1.4531521
    %v2110 = vadd.f32 %v2105, -1.4531521
    %v2111 = vmul.f32 %v2106, %v2092
    %v2112 = vmul.f32 %v2107, %v2094
    %v2113 = vmul.f32 %v2108, %v2096
    %v2114 = vmul.f32 %v2109, %v2098
    %v2115 = vmul.f32 %v2110, %v2100
    %v2116 = vadd.f32 %v2111, 1.4214138
    %v2117 = vadd.f32 %v2112, 1.4214138
    %v2118 = vadd.f32 %v2113, 1.4214138
    %v2119 = vadd.f32 %v2114, 1.4214138
    %v2120 = vadd.f32 %v2115, 1.4214138
    %v2121 = vmul.f32 %v2116, %v2092
    %v2122 = vmul.f32 %v2117, %v2094
    %v2123 = vmul.f32 %v2118, %v2096
    %v2124 = vmul.f32 %v2119, %v2098
    %v2125 = vmul.f32 %v2120, %v2100
    %v2126 = vadd.f32 %v2121, -0.28449672
    %v2127 = vadd.f32 %v2122, -0.28449672
    %v2128 = vadd.f32 %v2123, -0.28449672
    %v2129 = vadd.f32 %v2124, -0.28449672
    %v2130 = vadd.f32 %v2125, -0.28449672
    %v2131 = vmul.f32 %v2126, %v2092
    %v2132 = vmul.f32 %v2127, %v2094
    %v2133 = vmul.f32 %v2128, %v2096
    %v2134 = vmul.f32 %v2129, %v2098
    %v2135 = vmul.f32 %v2130, %v2100
    %v2136 = vadd.f32 %v2131, 0.2548296
    %v2137 = vadd.f32 %v2132, 0.2548296
    %v2138 = vadd.f32 %v2133, 0.2548296
    %v2139 = vadd.f32 %v2134, 0.2548296
    %v2140 = vadd.f32 %v2135, 0.2548296
    %v2141 = vmul.f32 %v2136, %v2092
    %v2142 = vmul.f32 %v2137, %v2094
    %v2143 = vmul.f32 %v2138, %v2096
    %v2144 = vmul.f32 %v2139, %v2098
    %v2145 = vmul.f32 %v2140, %v2100
    %v2146 = vsub.f32 0.0, %v2076
    %v2147 = vsub.f32 0.0, %v2077
    %v2148 = vsub.f32 0.0, %v2078
    %v2149 = vsub.f32 0.0, %v2079
    %v2150 = vsub.f32 0.0, %v2080
    %v2151 = vmul.f32 %v2146, %v2076
    %v2152 = vmul.f32 %v2147, %v2077
    %v2153 = vmul.f32 %v2148, %v2078
    %v2154 = vmul.f32 %v2149, %v2079
    %v2155 = vmul.f32 %v2150, %v2080
    %v2156 = vmul.f32 %v2151, 1.442695
    %v2157 = vpow.pop %v2156
    %v2158 = vmul.f32 %v2152, 1.442695
    %v2159 = vpow.pop %v2158
    %v2160 = vmul.f32 %v2153, 1.442695
    %v2161 = vpow.pop %v2160
    %v2162 = vmul.f32 %v2154, 1.442695
    %v2163 = vpow.pop %v2162
    %v2164 = vmul.f32 %v2155, 1.442695
    %v2165 = vpow.pop %v2164
    %v2166 = vmul.f32 %v2141, %v2157
    %v2167 = vmul.f32 %v2142, %v2159
    %v2168 = vmul.f32 %v2143, %v2161
    %v2169 = vmul.f32 %v2144, %v2163
    %v2170 = vmul.f32 %v2145, %v2165
    %v2171 = vsub.f32 1.0, %v2166
    %v2172 = vsub.f32 1.0, %v2167
    %v2173 = vsub.f32 1.0, %v2168
    %v2174 = vsub.f32 1.0, %v2169
    %v2175 = vsub.f32 1.0, %v2170
    %v2176 = vmul.f32 %v2071, %v2171
    %v2177 = vmul.f32 %v2072, %v2172
    %v2178 = vmul.f32 %v2073, %v2173
    %v2179 = vmul.f32 %v2074, %v2174
    %v2180 = vmul.f32 %v2075, %v2175
    %v2181 = vadd.f32 %v2176, 1.0
    %v2182 = vadd.f32 %v2177, 1.0
    %v2183 = vadd.f32 %v2178, 1.0
    %v2184 = vadd.f32 %v2179, 1.0
    %v2185 = vadd.f32 %v2180, 1.0
    %v2186 = vmul.f32 %v2056, %v2181
    %v2187 = vmul.f32 %v2057, %v2182
    %v2188 = vmul.f32 %v2058, %v2183
    %v2189 = vmul.f32 %v2059, %v2184
    %v2190 = vmul.f32 %v2060, %v2185
    %v2191 = vlaneseq
    %v2192 = vshrl.u32 %v2191, 7
    %v2193 = vsub.s32 0, %v2192
    %v2194 = vrot.slane %v1946, %v2193
    %2195 = vmatprep.subr.mxu0 0.0
    %2196 = vmatpush1.msra.mxu0 %v1945
    %2197 = vmatprep.subr.mxu0 0.0
    %2198 = vmatpush1.msra.mxu0 %v1944
    %2199 = vmatprep.subr.mxu0 0.0
    %2200 = vmatpush1.msra.mxu0 %v1943
    %2201 = vmatprep.subr.mxu0 0.0
    %2202 = vmatpush1.msra.mxu0 %v1942
    %2203 = vmatprep.subr.mxu0 0.0
    %2204 = vmatpush1.msra.mxu0 %v1941
    %2205 = vmatprep.subr.mxu0 0.0
    %2206 = vmatpush1.msra.mxu0 %v1940
    %2207 = vmatprep.subr.mxu0 0.0
    %2208 = vmatpush1.msra.mxu0 %v1939
    %2209 = vmatprep.subr.mxu0 0.0
    %2210 = vmatpush1.msra.mxu0 %v1938
    %2211 = vmatprep.subr.mxu0 0.0
    %2212 = vmatpush1.msra.mxu0 %v1937
    %2213 = vmatprep.subr.mxu0 0.0
    %2214 = vmatpush1.msra.mxu0 %v1936
    %2215 = vmatprep.subr.mxu0 0.0
    %2216 = vmatpush1.msra.mxu0 %v1935
    %2217 = vmatprep.subr.mxu0 0.0
    %2218 = vmatpush1.msra.mxu0 %v1934
    %2219 = vmatprep.subr.mxu0 0.0
    %2220 = vmatpush1.msra.mxu0 %v1933
    %2221 = vmatprep.subr.mxu0 0.0
    %2222 = vmatpush1.msra.mxu0 %v1932
    %2223 = vmatprep.subr.mxu0 0.0
    %2224 = vmatpush1.msra.mxu0 %v1931
    %2225 = vmatprep.subr.mxu0 0.0
    %2226 = vmatpush1.msra.mxu0 %v1930
    %2227 = vmatprep.subr.mxu0 0.0
    %2228 = vmatpush2.msra.mxu0 0.0
    %2229 = vmatprep.subr.mxu0 0.0
    %2230 = vmatpush2.msra.mxu0 0.0
    %2231 = vmatprep.subr.mxu0 0.0
    %2232 = vmatpush2.msra.mxu0 0.0
    %2233 = vmatprep.subr.mxu0 0.0
    %2234 = vmatpush2.msra.mxu0 0.0
    %2235 = vmatprep.subr.mxu0 0.0
    %2236 = vmatpush2.msra.mxu0 0.0
    %2237 = vmatprep.subr.mxu0 0.0
    %2238 = vmatpush2.msra.mxu0 0.0
    %2239 = vmatprep.subr.mxu0 0.0
    %2240 = vmatpush2.msra.mxu0 0.0
    %2241 = vmatprep.subr.mxu0 0.0
    %2242 = vmatpush2.msra.mxu0 0.0
    %2243 = vmatprep.subr.mxu0 0.0
    %2244 = vmatpush2.msra.mxu0 0.0
    %2245 = vmatprep.subr.mxu0 0.0
    %2246 = vmatpush2.msra.mxu0 0.0
    %2247 = vmatprep.subr.mxu0 0.0
    %2248 = vmatpush2.msra.mxu0 0.0
    %2249 = vmatprep.subr.mxu0 0.0
    %2250 = vmatpush2.msra.mxu0 0.0
    %2251 = vmatprep.subr.mxu0 0.0
    %2252 = vmatpush2.msra.mxu0 0.0
    %2253 = vmatprep.subr.mxu0 0.0
    %2254 = vmatpush2.msra.mxu0 0.0
    %2255 = vmatprep.subr.mxu0 0.0
    %2256 = vmatpush2.msra.mxu0 0.0
    %2257 = vmatprep.subr.mxu0 0.0
    %2258 = vmatpush2.msra.mxu0 0.0
    %2259 = vmatprep.mubr.f32.mxu0 0.0
    %2260 = vmatmul.mubr.f32.gmra.mxu0 %v2186
    %v2261 = vpop.f32.mrf.mxu0
    %v2262 = vadd.f32 %v2194, %v2261
    %v2263 = vpop.f32.mrf.mxu0
    %2264 = vmatprep.mubr.f32.mxu0 0.0
    %2265 = vmatmul.mubr.f32.gmra.mxu0 %v2187
    %v2266 = vpop.f32.mrf.mxu0
    %v2267 = vadd.f32 %v2194, %v2266
    %v2268 = vpop.f32.mrf.mxu0
    %2269 = vmatprep.mubr.f32.mxu0 0.0
    %2270 = vmatmul.mubr.f32.gmra.mxu0 %v2188
    %v2271 = vpop.f32.mrf.mxu0
    %v2272 = vadd.f32 %v2194, %v2271
    %v2273 = vpop.f32.mrf.mxu0
    %2274 = vmatprep.mubr.f32.mxu0 0.0
    %2275 = vmatmul.mubr.f32.gmra.mxu0 %v2189
    %v2276 = vpop.f32.mrf.mxu0
    %v2277 = vadd.f32 %v2194, %v2276
    %v2278 = vpop.f32.mrf.mxu0
    %2279 = vmatprep.mubr.f32.mxu0 0.0
    %2280 = vmatmul.mubr.f32.gmra.mxu0 %v2190
    %v2281 = vpop.f32.mrf.mxu0
    %v2282 = vadd.f32 %v2194, %v2281
    %v2283 = vpop.f32.mrf.mxu0
    %2284 = vdwg.mxu0
    %v2285 = vadd.f32 %v1835, %v2262
    %v2286 = vadd.f32 %v1836, %v2267
    %v2287 = vadd.f32 %v1837, %v2272
    %v2288 = vadd.f32 %v1838, %v2277
    %v2289 = vadd.f32 %v1839, %v2282
    %v2290 = vld [vmem:[%s5 + $0x230] sm:$0x1]
    %v2291 = vld [vmem:[%s5 + $0x238] sm:$0x1]
    %v2292 = vsel %vm188, %v2285, 0.0
    %2293 = vadd.xlane.f32.xlu0 %v2292
    %v2294 = vpop.xlane.xlu0 %2293
    %v2295 = vsel %vm188, %v2286, 0.0
    %2296 = vadd.xlane.f32.xlu0 %v2295
    %v2297 = vpop.xlane.xlu0 %2296
    %v2298 = vsel %vm188, %v2287, 0.0
    %2299 = vadd.xlane.f32.xlu0 %v2298
    %v2300 = vpop.xlane.xlu0 %2299
    %v2301 = vsel %vm188, %v2288, 0.0
    %2302 = vadd.xlane.f32.xlu0 %v2301
    %v2303 = vpop.xlane.xlu0 %2302
    %v2304 = vsel %vm188, %v2289, 0.0
    %2305 = vadd.xlane.f32.xlu0 %v2304
    %v2306 = vpop.xlane.xlu0 %2305
    %v2307 = vmul.f32 %v2294, %v204
    %v2308 = vmul.f32 %v2297, %v204
    %v2309 = vmul.f32 %v2300, %v204
    %v2310 = vmul.f32 %v2303, %v204
    %v2311 = vmul.f32 %v2306, %v204
    %v2312 = vsub.f32 %v2285, %v2307
    %v2313 = vsub.f32 %v2286, %v2308
    %v2314 = vsub.f32 %v2287, %v2309
    %v2315 = vsub.f32 %v2288, %v2310
    %v2316 = vsub.f32 %v2289, %v2311
    %v2317 = vmul.f32 %v2312, %v2312
    %v2318 = vmul.f32 %v2313, %v2313
    %v2319 = vmul.f32 %v2314, %v2314
    %v2320 = vmul.f32 %v2315, %v2315
    %v2321 = vmul.f32 %v2316, %v2316
    %v2322 = vsel %vm188, %v2317, 0.0
    %2323 = vadd.xlane.f32.xlu0 %v2322
    %v2324 = vpop.xlane.xlu0 %2323
    %v2325 = vsel %vm188, %v2318, 0.0
    %2326 = vadd.xlane.f32.xlu0 %v2325
    %v2327 = vpop.xlane.xlu0 %2326
    %v2328 = vsel %vm188, %v2319, 0.0
    %2329 = vadd.xlane.f32.xlu0 %v2328
    %v2330 = vpop.xlane.xlu0 %2329
    %v2331 = vsel %vm188, %v2320, 0.0
    %2332 = vadd.xlane.f32.xlu0 %v2331
    %v2333 = vpop.xlane.xlu0 %2332
    %v2334 = vsel %vm188, %v2321, 0.0
    %2335 = vadd.xlane.f32.xlu0 %v2334
    %v2336 = vpop.xlane.xlu0 %2335
    %v2337 = vmul.f32 %v2324, %v204
    %v2338 = vmul.f32 %v2327, %v204
    %v2339 = vmul.f32 %v2330, %v204
    %v2340 = vmul.f32 %v2333, %v204
    %v2341 = vmul.f32 %v2336, %v204
    %v2342 = vadd.f32 %v2337, 1e-06
    %v2343 = vadd.f32 %v2338, 1e-06
    %v2344 = vadd.f32 %v2339, 1e-06
    %v2345 = vadd.f32 %v2340, 1e-06
    %v2346 = vadd.f32 %v2341, 1e-06
    %v2347 = vrsqrt.pop %v2342
    %v2348 = vrsqrt.pop %v2343
    %v2349 = vrsqrt.pop %v2344
    %v2350 = vrsqrt.pop %v2345
    %v2351 = vrsqrt.pop %v2346
    %v2352 = vmul.f32 %v2312, %v2347
    %v2353 = vmul.f32 %v2313, %v2348
    %v2354 = vmul.f32 %v2314, %v2349
    %v2355 = vmul.f32 %v2315, %v2350
    %v2356 = vmul.f32 %v2316, %v2351
    %v2357 = vlaneseq
    %v2358 = vshrl.u32 %v2357, 7
    %v2359 = vsub.s32 0, %v2358
    %v2360 = vrot.slane %v2290, %v2359
    %v2361 = vmul.f32 %v2352, %v2360
    %v2362 = vmul.f32 %v2353, %v2360
    %v2363 = vmul.f32 %v2354, %v2360
    %v2364 = vmul.f32 %v2355, %v2360
    %v2365 = vmul.f32 %v2356, %v2360
    %v2366 = vlaneseq
    %v2367 = vshrl.u32 %v2366, 7
    %v2368 = vsub.s32 0, %v2367
    %v2369 = vrot.slane %v2291, %v2368
    %v2370 = vadd.f32 %v2361, %v2369
    %v2371 = vadd.f32 %v2362, %v2369
    %v2372 = vadd.f32 %v2363, %v2369
    %v2373 = vadd.f32 %v2364, %v2369
    %v2374 = vadd.f32 %v2365, %v2369
    %v2375 = vld [vmem:[%s5 + $0x240] sm:$0xff]
    %v2376 = vld [vmem:[%s5 + $0x248] sm:$0xff]
    %v2377 = vld [vmem:[%s5 + $0x250] sm:$0xff]
    %v2378 = vld [vmem:[%s5 + $0x258] sm:$0xff]
    %v2379 = vld [vmem:[%s5 + $0x260] sm:$0x1]
    %v2380 = vld [vmem:[%s5 + $0x268] sm:$0xff]
    %v2381 = vld [vmem:[%s5 + $0x270] sm:$0xff]
    %v2382 = vld [vmem:[%s5 + $0x278] sm:$0xff]
    %v2383 = vld [vmem:[%s5 + $0x280] sm:$0xff]
    %v2384 = vld [vmem:[%s5 + $0x288] sm:$0x1]
    %v2385 = vlaneseq
    %v2386 = vshrl.u32 %v2385, 7
    %v2387 = vsub.s32 0, %v2386
    %v2388 = vrot.slane %v2379, %v2387
    %v2390 = vsel %vm188, %v2370, 0
    %v2393 = vsel %vm188, %v2371, 0
    %v2396 = vsel %vm188, %v2372, 0
    %v2399 = vsel %vm188, %v2373, 0
    %v2402 = vsel %vm188, %v2374, 0
    %2404 = vmatprep.subr.mxu0 0.0
    %2405 = vmatpush1.msra.mxu0 0.0
    %2406 = vmatprep.subr.mxu0 0.0
    %2407 = vmatpush1.msra.mxu0 0.0
    %2408 = vmatprep.subr.mxu0 0.0
    %2409 = vmatpush1.msra.mxu0 0.0
    %2410 = vmatprep.subr.mxu0 0.0
    %2411 = vmatpush1.msra.mxu0 0.0
    %2412 = vmatprep.subr.mxu0 0.0
    %2413 = vmatpush1.msra.mxu0 0.0
    %2414 = vmatprep.subr.mxu0 0.0
    %2415 = vmatpush1.msra.mxu0 0.0
    %2416 = vmatprep.subr.mxu0 0.0
    %2417 = vmatpush1.msra.mxu0 0.0
    %2418 = vmatprep.subr.mxu0 0.0
    %2419 = vmatpush1.msra.mxu0 0.0
    %2420 = vmatprep.subr.mxu0 0.0
    %2421 = vmatpush1.msra.mxu0 0.0
    %2422 = vmatprep.subr.mxu0 0.0
    %2423 = vmatpush1.msra.mxu0 0.0
    %2424 = vmatprep.subr.mxu0 0.0
    %2425 = vmatpush1.msra.mxu0 0.0
    %2426 = vmatprep.subr.mxu0 0.0
    %2427 = vmatpush1.msra.mxu0 0.0
    %2428 = vmatprep.subr.mxu0 0.0
    %2429 = vmatpush1.msra.mxu0 %v2378
    %2430 = vmatprep.subr.mxu0 0.0
    %2431 = vmatpush1.msra.mxu0 %v2377
    %2432 = vmatprep.subr.mxu0 0.0
    %2433 = vmatpush1.msra.mxu0 %v2376
    %2434 = vmatprep.subr.mxu0 0.0
    %2435 = vmatpush1.msra.mxu0 %v2375
    %2436 = vmatprep.subr.mxu0 0.0
    %2437 = vmatpush2.msra.mxu0 0.0
    %2438 = vmatprep.subr.mxu0 0.0
    %2439 = vmatpush2.msra.mxu0 0.0
    %2440 = vmatprep.subr.mxu0 0.0
    %2441 = vmatpush2.msra.mxu0 0.0
    %2442 = vmatprep.subr.mxu0 0.0
    %2443 = vmatpush2.msra.mxu0 0.0
    %2444 = vmatprep.subr.mxu0 0.0
    %2445 = vmatpush2.msra.mxu0 0.0
    %2446 = vmatprep.subr.mxu0 0.0
    %2447 = vmatpush2.msra.mxu0 0.0
    %2448 = vmatprep.subr.mxu0 0.0
    %2449 = vmatpush2.msra.mxu0 0.0
    %2450 = vmatprep.subr.mxu0 0.0
    %2451 = vmatpush2.msra.mxu0 0.0
    %2452 = vmatprep.subr.mxu0 0.0
    %2453 = vmatpush2.msra.mxu0 0.0
    %2454 = vmatprep.subr.mxu0 0.0
    %2455 = vmatpush2.msra.mxu0 0.0
    %2456 = vmatprep.subr.mxu0 0.0
    %2457 = vmatpush2.msra.mxu0 0.0
    %2458 = vmatprep.subr.mxu0 0.0
    %2459 = vmatpush2.msra.mxu0 0.0
    %2460 = vmatprep.subr.mxu0 0.0
    %2461 = vmatpush2.msra.mxu0 0.0
    %2462 = vmatprep.subr.mxu0 0.0
    %2463 = vmatpush2.msra.mxu0 0.0
    %2464 = vmatprep.subr.mxu0 0.0
    %2465 = vmatpush2.msra.mxu0 0.0
    %2466 = vmatprep.subr.mxu0 0.0
    %2467 = vmatpush2.msra.mxu0 0.0
    %2468 = vmatprep.mubr.f32.mxu0 0.0
    %2469 = vmatmul.mubr.f32.gmra.mxu0 %v2390
    %v2470 = vpop.f32.mrf.mxu0
    %v2471 = vadd.f32 %v2388, %v2470
    %v2472 = vpop.f32.mrf.mxu0
    %2473 = vmatprep.mubr.f32.mxu0 0.0
    %2474 = vmatmul.mubr.f32.gmra.mxu0 %v2393
    %v2475 = vpop.f32.mrf.mxu0
    %v2476 = vadd.f32 %v2388, %v2475
    %v2477 = vpop.f32.mrf.mxu0
    %2478 = vmatprep.mubr.f32.mxu0 0.0
    %2479 = vmatmul.mubr.f32.gmra.mxu0 %v2396
    %v2480 = vpop.f32.mrf.mxu0
    %v2481 = vadd.f32 %v2388, %v2480
    %v2482 = vpop.f32.mrf.mxu0
    %2483 = vmatprep.mubr.f32.mxu0 0.0
    %2484 = vmatmul.mubr.f32.gmra.mxu0 %v2399
    %v2485 = vpop.f32.mrf.mxu0
    %v2486 = vadd.f32 %v2388, %v2485
    %v2487 = vpop.f32.mrf.mxu0
    %2488 = vmatprep.mubr.f32.mxu0 0.0
    %2489 = vmatmul.mubr.f32.gmra.mxu0 %v2402
    %v2490 = vpop.f32.mrf.mxu0
    %v2491 = vadd.f32 %v2388, %v2490
    %v2492 = vpop.f32.mrf.mxu0
    %2493 = vdwg.mxu0
    %2499 = vrot.lane.b32.xlu0 %v2471, 96
    %v2500 = vpop.permute.xlu0 %2499
    %2501 = vrot.lane.b32.xlu0 %v2476, 96
    %v2502 = vpop.permute.xlu0 %2501
    %2503 = vrot.lane.b32.xlu0 %v2481, 96
    %v2504 = vpop.permute.xlu0 %2503
    %2505 = vrot.lane.b32.xlu0 %v2486, 96
    %v2506 = vpop.permute.xlu0 %2505
    %2507 = vrot.lane.b32.xlu0 %v2491, 96
    %v2508 = vpop.permute.xlu0 %2507
    %v2509 = vsel %vm407, %v2471, 0
    %v2511 = vsel %vm407, %v2476, 0
    %v2513 = vsel %vm407, %v2481, 0
    %v2515 = vsel %vm407, %v2486, 0
    %v2517 = vsel %vm407, %v2491, 0
    %v2519 = vsel %vm407, %v2500, 0
    %v2521 = vsel %vm407, %v2502, 0
    %v2523 = vsel %vm407, %v2504, 0
    %v2525 = vsel %vm407, %v2506, 0
    %v2527 = vsel %vm407, %v2508, 0
    %2529 = vmatprep.subr.mxu0 0.0
    %2530 = vmatpush1.xpose.msra.mxu0 0.0
    %2531 = vmatprep.subr.mxu0 0.0
    %2532 = vmatpush1.xpose.msra.mxu0 0.0
    %2533 = vmatprep.subr.mxu0 0.0
    %2534 = vmatpush1.xpose.msra.mxu0 0.0
    %2535 = vmatprep.subr.mxu0 0.0
    %2536 = vmatpush1.xpose.msra.mxu0 0.0
    %2537 = vmatprep.subr.mxu0 0.0
    %2538 = vmatpush1.xpose.msra.mxu0 0.0
    %2539 = vmatprep.subr.mxu0 0.0
    %2540 = vmatpush1.xpose.msra.mxu0 0.0
    %2541 = vmatprep.subr.mxu0 0.0
    %2542 = vmatpush1.xpose.msra.mxu0 0.0
    %2543 = vmatprep.subr.mxu0 0.0
    %2544 = vmatpush1.xpose.msra.mxu0 0.0
    %2545 = vmatprep.subr.mxu0 0.0
    %2546 = vmatpush1.xpose.msra.mxu0 0.0
    %2547 = vmatprep.subr.mxu0 0.0
    %2548 = vmatpush1.xpose.msra.mxu0 0.0
    %2549 = vmatprep.subr.mxu0 0.0
    %2550 = vmatpush1.xpose.msra.mxu0 0.0
    %2551 = vmatprep.subr.mxu0 0.0
    %2552 = vmatpush1.xpose.msra.mxu0 %v2527
    %2553 = vmatprep.subr.mxu0 0.0
    %2554 = vmatpush1.xpose.msra.mxu0 %v2525
    %2555 = vmatprep.subr.mxu0 0.0
    %2556 = vmatpush1.xpose.msra.mxu0 %v2523
    %2557 = vmatprep.subr.mxu0 0.0
    %2558 = vmatpush1.xpose.msra.mxu0 %v2521
    %2559 = vmatprep.subr.mxu0 0.0
    %2560 = vmatpush1.xpose.msra.mxu0 %v2519
    %2561 = vmatprep.subr.mxu0 0.0
    %2562 = vmatpush2.xpose.msra.mxu0 0.0
    %2563 = vmatprep.subr.mxu0 0.0
    %2564 = vmatpush2.xpose.msra.mxu0 0.0
    %2565 = vmatprep.subr.mxu0 0.0
    %2566 = vmatpush2.xpose.msra.mxu0 0.0
    %2567 = vmatprep.subr.mxu0 0.0
    %2568 = vmatpush2.xpose.msra.mxu0 0.0
    %2569 = vmatprep.subr.mxu0 0.0
    %2570 = vmatpush2.xpose.msra.mxu0 0.0
    %2571 = vmatprep.subr.mxu0 0.0
    %2572 = vmatpush2.xpose.msra.mxu0 0.0
    %2573 = vmatprep.subr.mxu0 0.0
    %2574 = vmatpush2.xpose.msra.mxu0 0.0
    %2575 = vmatprep.subr.mxu0 0.0
    %2576 = vmatpush2.xpose.msra.mxu0 0.0
    %2577 = vmatprep.subr.mxu0 0.0
    %2578 = vmatpush2.xpose.msra.mxu0 0.0
    %2579 = vmatprep.subr.mxu0 0.0
    %2580 = vmatpush2.xpose.msra.mxu0 0.0
    %2581 = vmatprep.subr.mxu0 0.0
    %2582 = vmatpush2.xpose.msra.mxu0 0.0
    %2583 = vmatprep.subr.mxu0 0.0
    %2584 = vmatpush2.xpose.msra.mxu0 0.0
    %2585 = vmatprep.subr.mxu0 0.0
    %2586 = vmatpush2.xpose.msra.mxu0 0.0
    %2587 = vmatprep.subr.mxu0 0.0
    %2588 = vmatpush2.xpose.msra.mxu0 0.0
    %2589 = vmatprep.subr.mxu0 0.0
    %2590 = vmatpush2.xpose.msra.mxu0 0.0
    %2591 = vmatprep.subr.mxu0 0.0
    %2592 = vmatpush2.xpose.msra.mxu0 0.0
    %2593 = vmatprep.mubr.f32.mxu0 0.0
    %2594 = vmatmul.mubr.f32.gmra.mxu0 %v2509
    %v2595 = vpop.f32.mrf.mxu0
    %v2596 = vadd.f32 0.0, %v2595
    %v2597 = vpop.f32.mrf.mxu0
    %2598 = vmatprep.mubr.f32.mxu0 0.0
    %2599 = vmatmul.mubr.f32.gmra.mxu0 %v2511
    %v2600 = vpop.f32.mrf.mxu0
    %v2601 = vadd.f32 0.0, %v2600
    %v2602 = vpop.f32.mrf.mxu0
    %2603 = vmatprep.mubr.f32.mxu0 0.0
    %2604 = vmatmul.mubr.f32.gmra.mxu0 %v2513
    %v2605 = vpop.f32.mrf.mxu0
    %v2606 = vadd.f32 0.0, %v2605
    %v2607 = vpop.f32.mrf.mxu0
    %2608 = vmatprep.mubr.f32.mxu0 0.0
    %2609 = vmatmul.mubr.f32.gmra.mxu0 %v2515
    %v2610 = vpop.f32.mrf.mxu0
    %v2611 = vadd.f32 0.0, %v2610
    %v2612 = vpop.f32.mrf.mxu0
    %2613 = vmatprep.mubr.f32.mxu0 0.0
    %2614 = vmatmul.mubr.f32.gmra.mxu0 %v2517
    %v2615 = vpop.f32.mrf.mxu0
    %v2616 = vadd.f32 0.0, %v2615
    %v2617 = vpop.f32.mrf.mxu0
    %2618 = vdwg.mxu0
    %v2619 = vmul.f32 %v2596, 0.35355338
    %v2620 = vmul.f32 %v2601, 0.35355338
    %v2621 = vmul.f32 %v2606, 0.35355338
    %v2622 = vmul.f32 %v2611, 0.35355338
    %v2623 = vmul.f32 %v2616, 0.35355338
    %v2624 = vadd.f32 %v2619, %v181
    %v2625 = vadd.f32 %v2620, %v182
    %v2626 = vadd.f32 %v2621, %v183
    %v2627 = vadd.f32 %v2622, %v184
    %v2628 = vadd.f32 %v2623, %v185
    %v2629 = vsel %vm528, %v2624, -inf
    %2630 = vmax.xlane.f32.xlu0 %v2629
    %v2631 = vpop.xlane.xlu0 %2630
    %v2632 = vsel %vm528, %v2625, -inf
    %2633 = vmax.xlane.f32.xlu0 %v2632
    %v2634 = vpop.xlane.xlu0 %2633
    %v2635 = vsel %vm528, %v2626, -inf
    %2636 = vmax.xlane.f32.xlu0 %v2635
    %v2637 = vpop.xlane.xlu0 %2636
    %v2638 = vsel %vm528, %v2627, -inf
    %2639 = vmax.xlane.f32.xlu0 %v2638
    %v2640 = vpop.xlane.xlu0 %2639
    %v2641 = vsel %vm528, %v2628, -inf
    %2642 = vmax.xlane.f32.xlu0 %v2641
    %v2643 = vpop.xlane.xlu0 %2642
    %v2644 = vsub.f32 %v2624, %v2631
    %v2645 = vsub.f32 %v2625, %v2634
    %v2646 = vsub.f32 %v2626, %v2637
    %v2647 = vsub.f32 %v2627, %v2640
    %v2648 = vsub.f32 %v2628, %v2643
    %v2649 = vmul.f32 %v2644, 1.442695
    %v2650 = vpow.pop %v2649
    %v2651 = vmul.f32 %v2645, 1.442695
    %v2652 = vpow.pop %v2651
    %v2653 = vmul.f32 %v2646, 1.442695
    %v2654 = vpow.pop %v2653
    %v2655 = vmul.f32 %v2647, 1.442695
    %v2656 = vpow.pop %v2655
    %v2657 = vmul.f32 %v2648, 1.442695
    %v2658 = vpow.pop %v2657
    %v2659 = vsel %vm528, %v2650, 0.0
    %2660 = vadd.xlane.f32.xlu0 %v2659
    %v2661 = vpop.xlane.xlu0 %2660
    %v2662 = vsel %vm528, %v2652, 0.0
    %2663 = vadd.xlane.f32.xlu0 %v2662
    %v2664 = vpop.xlane.xlu0 %2663
    %v2665 = vsel %vm528, %v2654, 0.0
    %2666 = vadd.xlane.f32.xlu0 %v2665
    %v2667 = vpop.xlane.xlu0 %2666
    %v2668 = vsel %vm528, %v2656, 0.0
    %2669 = vadd.xlane.f32.xlu0 %v2668
    %v2670 = vpop.xlane.xlu0 %2669
    %v2671 = vsel %vm528, %v2658, 0.0
    %2672 = vadd.xlane.f32.xlu0 %v2671
    %v2673 = vpop.xlane.xlu0 %2672
    %v2674 = vrcp.pop %v2661
    %v2675 = vrcp.pop %v2664
    %v2676 = vrcp.pop %v2667
    %v2677 = vrcp.pop %v2670
    %v2678 = vrcp.pop %v2673
    %v2679 = vmul.f32 %v2650, %v2674
    %v2680 = vmul.f32 %v2652, %v2675
    %v2681 = vmul.f32 %v2654, %v2676
    %v2682 = vmul.f32 %v2656, %v2677
    %v2683 = vmul.f32 %v2658, %v2678
    %2684 = vrot.lane.b32.xlu0 %v2471, 64
    %v2685 = vpop.permute.xlu0 %2684
    %2686 = vrot.lane.b32.xlu0 %v2476, 64
    %v2687 = vpop.permute.xlu0 %2686
    %2688 = vrot.lane.b32.xlu0 %v2481, 64
    %v2689 = vpop.permute.xlu0 %2688
    %2690 = vrot.lane.b32.xlu0 %v2486, 64
    %v2691 = vpop.permute.xlu0 %2690
    %2692 = vrot.lane.b32.xlu0 %v2491, 64
    %v2693 = vpop.permute.xlu0 %2692
    %v2700 = vsel %vm528, %v2679, 0
    %v2703 = vsel %vm528, %v2680, 0
    %v2706 = vsel %vm528, %v2681, 0
    %v2709 = vsel %vm528, %v2682, 0
    %v2712 = vsel %vm528, %v2683, 0
    %2714 = vmatprep.subr.mxu0 0.0
    %2715 = vmatpush1.msra.mxu0 0.0
    %2716 = vmatprep.subr.mxu0 0.0
    %2717 = vmatpush1.msra.mxu0 0.0
    %2718 = vmatprep.subr.mxu0 0.0
    %2719 = vmatpush1.msra.mxu0 0.0
    %2720 = vmatprep.subr.mxu0 0.0
    %2721 = vmatpush1.msra.mxu0 0.0
    %2722 = vmatprep.subr.mxu0 0.0
    %2723 = vmatpush1.msra.mxu0 0.0
    %2724 = vmatprep.subr.mxu0 0.0
    %2725 = vmatpush1.msra.mxu0 0.0
    %2726 = vmatprep.subr.mxu0 0.0
    %2727 = vmatpush1.msra.mxu0 0.0
    %2728 = vmatprep.subr.mxu0 0.0
    %2729 = vmatpush1.msra.mxu0 0.0
    %2730 = vmatprep.subr.mxu0 0.0
    %2731 = vmatpush1.msra.mxu0 0.0
    %2732 = vmatprep.subr.mxu0 0.0
    %2733 = vmatpush1.msra.mxu0 0.0
    %2734 = vmatprep.subr.mxu0 0.0
    %2735 = vmatpush1.msra.mxu0 0.0
    %2736 = vmatprep.subr.mxu0 0.0
    %2737 = vmatpush1.msra.mxu0 %v2693
    %2738 = vmatprep.subr.mxu0 0.0
    %2739 = vmatpush1.msra.mxu0 %v2691
    %2740 = vmatprep.subr.mxu0 0.0
    %2741 = vmatpush1.msra.mxu0 %v2689
    %2742 = vmatprep.subr.mxu0 0.0
    %2743 = vmatpush1.msra.mxu0 %v2687
    %2744 = vmatprep.subr.mxu0 0.0
    %2745 = vmatpush1.msra.mxu0 %v2685
    %2746 = vmatprep.subr.mxu0 0.0
    %2747 = vmatpush2.msra.mxu0 0.0
    %2748 = vmatprep.subr.mxu0 0.0
    %2749 = vmatpush2.msra.mxu0 0.0
    %2750 = vmatprep.subr.mxu0 0.0
    %2751 = vmatpush2.msra.mxu0 0.0
    %2752 = vmatprep.subr.mxu0 0.0
    %2753 = vmatpush2.msra.mxu0 0.0
    %2754 = vmatprep.subr.mxu0 0.0
    %2755 = vmatpush2.msra.mxu0 0.0
    %2756 = vmatprep.subr.mxu0 0.0
    %2757 = vmatpush2.msra.mxu0 0.0
    %2758 = vmatprep.subr.mxu0 0.0
    %2759 = vmatpush2.msra.mxu0 0.0
    %2760 = vmatprep.subr.mxu0 0.0
    %2761 = vmatpush2.msra.mxu0 0.0
    %2762 = vmatprep.subr.mxu0 0.0
    %2763 = vmatpush2.msra.mxu0 0.0
    %2764 = vmatprep.subr.mxu0 0.0
    %2765 = vmatpush2.msra.mxu0 0.0
    %2766 = vmatprep.subr.mxu0 0.0
    %2767 = vmatpush2.msra.mxu0 0.0
    %2768 = vmatprep.subr.mxu0 0.0
    %2769 = vmatpush2.msra.mxu0 0.0
    %2770 = vmatprep.subr.mxu0 0.0
    %2771 = vmatpush2.msra.mxu0 0.0
    %2772 = vmatprep.subr.mxu0 0.0
    %2773 = vmatpush2.msra.mxu0 0.0
    %2774 = vmatprep.subr.mxu0 0.0
    %2775 = vmatpush2.msra.mxu0 0.0
    %2776 = vmatprep.subr.mxu0 0.0
    %2777 = vmatpush2.msra.mxu0 0.0
    %2778 = vmatprep.mubr.f32.mxu0 0.0
    %2779 = vmatmul.mubr.f32.gmra.mxu0 %v2700
    %v2780 = vpop.f32.mrf.mxu0
    %v2781 = vadd.f32 0.0, %v2780
    %v2782 = vpop.f32.mrf.mxu0
    %2783 = vmatprep.mubr.f32.mxu0 0.0
    %2784 = vmatmul.mubr.f32.gmra.mxu0 %v2703
    %v2785 = vpop.f32.mrf.mxu0
    %v2786 = vadd.f32 0.0, %v2785
    %v2787 = vpop.f32.mrf.mxu0
    %2788 = vmatprep.mubr.f32.mxu0 0.0
    %2789 = vmatmul.mubr.f32.gmra.mxu0 %v2706
    %v2790 = vpop.f32.mrf.mxu0
    %v2791 = vadd.f32 0.0, %v2790
    %v2792 = vpop.f32.mrf.mxu0
    %2793 = vmatprep.mubr.f32.mxu0 0.0
    %2794 = vmatmul.mubr.f32.gmra.mxu0 %v2709
    %v2795 = vpop.f32.mrf.mxu0
    %v2796 = vadd.f32 0.0, %v2795
    %v2797 = vpop.f32.mrf.mxu0
    %2798 = vmatprep.mubr.f32.mxu0 0.0
    %2799 = vmatmul.mubr.f32.gmra.mxu0 %v2712
    %v2800 = vpop.f32.mrf.mxu0
    %v2801 = vadd.f32 0.0, %v2800
    %v2802 = vpop.f32.mrf.mxu0
    %2803 = vdwg.mxu0
    %2804 = vrot.lane.b32.xlu0 %v2471, 120
    %v2805 = vpop.permute.xlu0 %2804
    %2806 = vrot.lane.b32.xlu0 %v2476, 120
    %v2807 = vpop.permute.xlu0 %2806
    %2808 = vrot.lane.b32.xlu0 %v2481, 120
    %v2809 = vpop.permute.xlu0 %2808
    %2810 = vrot.lane.b32.xlu0 %v2486, 120
    %v2811 = vpop.permute.xlu0 %2810
    %2812 = vrot.lane.b32.xlu0 %v2491, 120
    %v2813 = vpop.permute.xlu0 %2812
    %2814 = vrot.lane.b32.xlu0 %v2471, 88
    %v2815 = vpop.permute.xlu0 %2814
    %2816 = vrot.lane.b32.xlu0 %v2476, 88
    %v2817 = vpop.permute.xlu0 %2816
    %2818 = vrot.lane.b32.xlu0 %v2481, 88
    %v2819 = vpop.permute.xlu0 %2818
    %2820 = vrot.lane.b32.xlu0 %v2486, 88
    %v2821 = vpop.permute.xlu0 %2820
    %2822 = vrot.lane.b32.xlu0 %v2491, 88
    %v2823 = vpop.permute.xlu0 %2822
    %v2824 = vsel %vm407, %v2805, 0
    %v2826 = vsel %vm407, %v2807, 0
    %v2828 = vsel %vm407, %v2809, 0
    %v2830 = vsel %vm407, %v2811, 0
    %v2832 = vsel %vm407, %v2813, 0
    %v2834 = vsel %vm407, %v2815, 0
    %v2836 = vsel %vm407, %v2817, 0
    %v2838 = vsel %vm407, %v2819, 0
    %v2840 = vsel %vm407, %v2821, 0
    %v2842 = vsel %vm407, %v2823, 0
    %2844 = vmatprep.subr.mxu0 0.0
    %2845 = vmatpush1.xpose.msra.mxu0 0.0
    %2846 = vmatprep.subr.mxu0 0.0
    %2847 = vmatpush1.xpose.msra.mxu0 0.0
    %2848 = vmatprep.subr.mxu0 0.0
    %2849 = vmatpush1.xpose.msra.mxu0 0.0
    %2850 = vmatprep.subr.mxu0 0.0
    %2851 = vmatpush1.xpose.msra.mxu0 0.0
    %2852 = vmatprep.subr.mxu0 0.0
    %2853 = vmatpush1.xpose.msra.mxu0 0.0
    %2854 = vmatprep.subr.mxu0 0.0
    %2855 = vmatpush1.xpose.msra.mxu0 0.0
    %2856 = vmatprep.subr.mxu0 0.0
    %2857 = vmatpush1.xpose.msra.mxu0 0.0
    %2858 = vmatprep.subr.mxu0 0.0
    %2859 = vmatpush1.xpose.msra.mxu0 0.0
    %2860 = vmatprep.subr.mxu0 0.0
    %2861 = vmatpush1.xpose.msra.mxu0 0.0
    %2862 = vmatprep.subr.mxu0 0.0
    %2863 = vmatpush1.xpose.msra.mxu0 0.0
    %2864 = vmatprep.subr.mxu0 0.0
    %2865 = vmatpush1.xpose.msra.mxu0 0.0
    %2866 = vmatprep.subr.mxu0 0.0
    %2867 = vmatpush1.xpose.msra.mxu0 %v2842
    %2868 = vmatprep.subr.mxu0 0.0
    %2869 = vmatpush1.xpose.msra.mxu0 %v2840
    %2870 = vmatprep.subr.mxu0 0.0
    %2871 = vmatpush1.xpose.msra.mxu0 %v2838
    %2872 = vmatprep.subr.mxu0 0.0
    %2873 = vmatpush1.xpose.msra.mxu0 %v2836
    %2874 = vmatprep.subr.mxu0 0.0
    %2875 = vmatpush1.xpose.msra.mxu0 %v2834
    %2876 = vmatprep.subr.mxu0 0.0
    %2877 = vmatpush2.xpose.msra.mxu0 0.0
    %2878 = vmatprep.subr.mxu0 0.0
    %2879 = vmatpush2.xpose.msra.mxu0 0.0
    %2880 = vmatprep.subr.mxu0 0.0
    %2881 = vmatpush2.xpose.msra.mxu0 0.0
    %2882 = vmatprep.subr.mxu0 0.0
    %2883 = vmatpush2.xpose.msra.mxu0 0.0
    %2884 = vmatprep.subr.mxu0 0.0
    %2885 = vmatpush2.xpose.msra.mxu0 0.0
    %2886 = vmatprep.subr.mxu0 0.0
    %2887 = vmatpush2.xpose.msra.mxu0 0.0
    %2888 = vmatprep.subr.mxu0 0.0
    %2889 = vmatpush2.xpose.msra.mxu0 0.0
    %2890 = vmatprep.subr.mxu0 0.0
    %2891 = vmatpush2.xpose.msra.mxu0 0.0
    %2892 = vmatprep.subr.mxu0 0.0
    %2893 = vmatpush2.xpose.msra.mxu0 0.0
    %2894 = vmatprep.subr.mxu0 0.0
    %2895 = vmatpush2.xpose.msra.mxu0 0.0
    %2896 = vmatprep.subr.mxu0 0.0
    %2897 = vmatpush2.xpose.msra.mxu0 0.0
    %2898 = vmatprep.subr.mxu0 0.0
    %2899 = vmatpush2.xpose.msra.mxu0 0.0
    %2900 = vmatprep.subr.mxu0 0.0
    %2901 = vmatpush2.xpose.msra.mxu0 0.0
    %2902 = vmatprep.subr.mxu0 0.0
    %2903 = vmatpush2.xpose.msra.mxu0 0.0
    %2904 = vmatprep.subr.mxu0 0.0
    %2905 = vmatpush2.xpose.msra.mxu0 0.0
    %2906 = vmatprep.subr.mxu0 0.0
    %2907 = vmatpush2.xpose.msra.mxu0 0.0
    %2908 = vmatprep.mubr.f32.mxu0 0.0
    %2909 = vmatmul.mubr.f32.gmra.mxu0 %v2824
    %v2910 = vpop.f32.mrf.mxu0
    %v2911 = vadd.f32 0.0, %v2910
    %v2912 = vpop.f32.mrf.mxu0
    %2913 = vmatprep.mubr.f32.mxu0 0.0
    %2914 = vmatmul.mubr.f32.gmra.mxu0 %v2826
    %v2915 = vpop.f32.mrf.mxu0
    %v2916 = vadd.f32 0.0, %v2915
    %v2917 = vpop.f32.mrf.mxu0
    %2918 = vmatprep.mubr.f32.mxu0 0.0
    %2919 = vmatmul.mubr.f32.gmra.mxu0 %v2828
    %v2920 = vpop.f32.mrf.mxu0
    %v2921 = vadd.f32 0.0, %v2920
    %v2922 = vpop.f32.mrf.mxu0
    %2923 = vmatprep.mubr.f32.mxu0 0.0
    %2924 = vmatmul.mubr.f32.gmra.mxu0 %v2830
    %v2925 = vpop.f32.mrf.mxu0
    %v2926 = vadd.f32 0.0, %v2925
    %v2927 = vpop.f32.mrf.mxu0
    %2928 = vmatprep.mubr.f32.mxu0 0.0
    %2929 = vmatmul.mubr.f32.gmra.mxu0 %v2832
    %v2930 = vpop.f32.mrf.mxu0
    %v2931 = vadd.f32 0.0, %v2930
    %v2932 = vpop.f32.mrf.mxu0
    %2933 = vdwg.mxu0
    %v2934 = vmul.f32 %v2911, 0.35355338
    %v2935 = vmul.f32 %v2916, 0.35355338
    %v2936 = vmul.f32 %v2921, 0.35355338
    %v2937 = vmul.f32 %v2926, 0.35355338
    %v2938 = vmul.f32 %v2931, 0.35355338
    %v2939 = vadd.f32 %v2934, %v181
    %v2940 = vadd.f32 %v2935, %v182
    %v2941 = vadd.f32 %v2936, %v183
    %v2942 = vadd.f32 %v2937, %v184
    %v2943 = vadd.f32 %v2938, %v185
    %v2944 = vsel %vm528, %v2939, -inf
    %2945 = vmax.xlane.f32.xlu0 %v2944
    %v2946 = vpop.xlane.xlu0 %2945
    %v2947 = vsel %vm528, %v2940, -inf
    %2948 = vmax.xlane.f32.xlu0 %v2947
    %v2949 = vpop.xlane.xlu0 %2948
    %v2950 = vsel %vm528, %v2941, -inf
    %2951 = vmax.xlane.f32.xlu0 %v2950
    %v2952 = vpop.xlane.xlu0 %2951
    %v2953 = vsel %vm528, %v2942, -inf
    %2954 = vmax.xlane.f32.xlu0 %v2953
    %v2955 = vpop.xlane.xlu0 %2954
    %v2956 = vsel %vm528, %v2943, -inf
    %2957 = vmax.xlane.f32.xlu0 %v2956
    %v2958 = vpop.xlane.xlu0 %2957
    %v2959 = vsub.f32 %v2939, %v2946
    %v2960 = vsub.f32 %v2940, %v2949
    %v2961 = vsub.f32 %v2941, %v2952
    %v2962 = vsub.f32 %v2942, %v2955
    %v2963 = vsub.f32 %v2943, %v2958
    %v2964 = vmul.f32 %v2959, 1.442695
    %v2965 = vpow.pop %v2964
    %v2966 = vmul.f32 %v2960, 1.442695
    %v2967 = vpow.pop %v2966
    %v2968 = vmul.f32 %v2961, 1.442695
    %v2969 = vpow.pop %v2968
    %v2970 = vmul.f32 %v2962, 1.442695
    %v2971 = vpow.pop %v2970
    %v2972 = vmul.f32 %v2963, 1.442695
    %v2973 = vpow.pop %v2972
    %v2974 = vsel %vm528, %v2965, 0.0
    %2975 = vadd.xlane.f32.xlu0 %v2974
    %v2976 = vpop.xlane.xlu0 %2975
    %v2977 = vsel %vm528, %v2967, 0.0
    %2978 = vadd.xlane.f32.xlu0 %v2977
    %v2979 = vpop.xlane.xlu0 %2978
    %v2980 = vsel %vm528, %v2969, 0.0
    %2981 = vadd.xlane.f32.xlu0 %v2980
    %v2982 = vpop.xlane.xlu0 %2981
    %v2983 = vsel %vm528, %v2971, 0.0
    %2984 = vadd.xlane.f32.xlu0 %v2983
    %v2985 = vpop.xlane.xlu0 %2984
    %v2986 = vsel %vm528, %v2973, 0.0
    %2987 = vadd.xlane.f32.xlu0 %v2986
    %v2988 = vpop.xlane.xlu0 %2987
    %v2989 = vrcp.pop %v2976
    %v2990 = vrcp.pop %v2979
    %v2991 = vrcp.pop %v2982
    %v2992 = vrcp.pop %v2985
    %v2993 = vrcp.pop %v2988
    %v2994 = vmul.f32 %v2965, %v2989
    %v2995 = vmul.f32 %v2967, %v2990
    %v2996 = vmul.f32 %v2969, %v2991
    %v2997 = vmul.f32 %v2971, %v2992
    %v2998 = vmul.f32 %v2973, %v2993
    %2999 = vrot.lane.b32.xlu0 %v2471, 56
    %v3000 = vpop.permute.xlu0 %2999
    %3001 = vrot.lane.b32.xlu0 %v2476, 56
    %v3002 = vpop.permute.xlu0 %3001
    %3003 = vrot.lane.b32.xlu0 %v2481, 56
    %v3004 = vpop.permute.xlu0 %3003
    %3005 = vrot.lane.b32.xlu0 %v2486, 56
    %v3006 = vpop.permute.xlu0 %3005
    %3007 = vrot.lane.b32.xlu0 %v2491, 56
    %v3008 = vpop.permute.xlu0 %3007
    %v3015 = vsel %vm528, %v2994, 0
    %v3018 = vsel %vm528, %v2995, 0
    %v3021 = vsel %vm528, %v2996, 0
    %v3024 = vsel %vm528, %v2997, 0
    %v3027 = vsel %vm528, %v2998, 0
    %3029 = vmatprep.subr.mxu0 0.0
    %3030 = vmatpush1.msra.mxu0 0.0
    %3031 = vmatprep.subr.mxu0 0.0
    %3032 = vmatpush1.msra.mxu0 0.0
    %3033 = vmatprep.subr.mxu0 0.0
    %3034 = vmatpush1.msra.mxu0 0.0
    %3035 = vmatprep.subr.mxu0 0.0
    %3036 = vmatpush1.msra.mxu0 0.0
    %3037 = vmatprep.subr.mxu0 0.0
    %3038 = vmatpush1.msra.mxu0 0.0
    %3039 = vmatprep.subr.mxu0 0.0
    %3040 = vmatpush1.msra.mxu0 0.0
    %3041 = vmatprep.subr.mxu0 0.0
    %3042 = vmatpush1.msra.mxu0 0.0
    %3043 = vmatprep.subr.mxu0 0.0
    %3044 = vmatpush1.msra.mxu0 0.0
    %3045 = vmatprep.subr.mxu0 0.0
    %3046 = vmatpush1.msra.mxu0 0.0
    %3047 = vmatprep.subr.mxu0 0.0
    %3048 = vmatpush1.msra.mxu0 0.0
    %3049 = vmatprep.subr.mxu0 0.0
    %3050 = vmatpush1.msra.mxu0 0.0
    %3051 = vmatprep.subr.mxu0 0.0
    %3052 = vmatpush1.msra.mxu0 %v3008
    %3053 = vmatprep.subr.mxu0 0.0
    %3054 = vmatpush1.msra.mxu0 %v3006
    %3055 = vmatprep.subr.mxu0 0.0
    %3056 = vmatpush1.msra.mxu0 %v3004
    %3057 = vmatprep.subr.mxu0 0.0
    %3058 = vmatpush1.msra.mxu0 %v3002
    %3059 = vmatprep.subr.mxu0 0.0
    %3060 = vmatpush1.msra.mxu0 %v3000
    %3061 = vmatprep.subr.mxu0 0.0
    %3062 = vmatpush2.msra.mxu0 0.0
    %3063 = vmatprep.subr.mxu0 0.0
    %3064 = vmatpush2.msra.mxu0 0.0
    %3065 = vmatprep.subr.mxu0 0.0
    %3066 = vmatpush2.msra.mxu0 0.0
    %3067 = vmatprep.subr.mxu0 0.0
    %3068 = vmatpush2.msra.mxu0 0.0
    %3069 = vmatprep.subr.mxu0 0.0
    %3070 = vmatpush2.msra.mxu0 0.0
    %3071 = vmatprep.subr.mxu0 0.0
    %3072 = vmatpush2.msra.mxu0 0.0
    %3073 = vmatprep.subr.mxu0 0.0
    %3074 = vmatpush2.msra.mxu0 0.0
    %3075 = vmatprep.subr.mxu0 0.0
    %3076 = vmatpush2.msra.mxu0 0.0
    %3077 = vmatprep.subr.mxu0 0.0
    %3078 = vmatpush2.msra.mxu0 0.0
    %3079 = vmatprep.subr.mxu0 0.0
    %3080 = vmatpush2.msra.mxu0 0.0
    %3081 = vmatprep.subr.mxu0 0.0
    %3082 = vmatpush2.msra.mxu0 0.0
    %3083 = vmatprep.subr.mxu0 0.0
    %3084 = vmatpush2.msra.mxu0 0.0
    %3085 = vmatprep.subr.mxu0 0.0
    %3086 = vmatpush2.msra.mxu0 0.0
    %3087 = vmatprep.subr.mxu0 0.0
    %3088 = vmatpush2.msra.mxu0 0.0
    %3089 = vmatprep.subr.mxu0 0.0
    %3090 = vmatpush2.msra.mxu0 0.0
    %3091 = vmatprep.subr.mxu0 0.0
    %3092 = vmatpush2.msra.mxu0 0.0
    %3093 = vmatprep.mubr.f32.mxu0 0.0
    %3094 = vmatmul.mubr.f32.gmra.mxu0 %v3015
    %v3095 = vpop.f32.mrf.mxu0
    %v3096 = vadd.f32 0.0, %v3095
    %v3097 = vpop.f32.mrf.mxu0
    %3098 = vmatprep.mubr.f32.mxu0 0.0
    %3099 = vmatmul.mubr.f32.gmra.mxu0 %v3018
    %v3100 = vpop.f32.mrf.mxu0
    %v3101 = vadd.f32 0.0, %v3100
    %v3102 = vpop.f32.mrf.mxu0
    %3103 = vmatprep.mubr.f32.mxu0 0.0
    %3104 = vmatmul.mubr.f32.gmra.mxu0 %v3021
    %v3105 = vpop.f32.mrf.mxu0
    %v3106 = vadd.f32 0.0, %v3105
    %v3107 = vpop.f32.mrf.mxu0
    %3108 = vmatprep.mubr.f32.mxu0 0.0
    %3109 = vmatmul.mubr.f32.gmra.mxu0 %v3024
    %v3110 = vpop.f32.mrf.mxu0
    %v3111 = vadd.f32 0.0, %v3110
    %v3112 = vpop.f32.mrf.mxu0
    %3113 = vmatprep.mubr.f32.mxu0 0.0
    %3114 = vmatmul.mubr.f32.gmra.mxu0 %v3027
    %v3115 = vpop.f32.mrf.mxu0
    %v3116 = vadd.f32 0.0, %v3115
    %v3117 = vpop.f32.mrf.mxu0
    %3118 = vdwg.mxu0
    %3119 = vrot.lane.b32.xlu0 %v2471, 112
    %v3120 = vpop.permute.xlu0 %3119
    %3121 = vrot.lane.b32.xlu0 %v2476, 112
    %v3122 = vpop.permute.xlu0 %3121
    %3123 = vrot.lane.b32.xlu0 %v2481, 112
    %v3124 = vpop.permute.xlu0 %3123
    %3125 = vrot.lane.b32.xlu0 %v2486, 112
    %v3126 = vpop.permute.xlu0 %3125
    %3127 = vrot.lane.b32.xlu0 %v2491, 112
    %v3128 = vpop.permute.xlu0 %3127
    %3129 = vrot.lane.b32.xlu0 %v2471, 80
    %v3130 = vpop.permute.xlu0 %3129
    %3131 = vrot.lane.b32.xlu0 %v2476, 80
    %v3132 = vpop.permute.xlu0 %3131
    %3133 = vrot.lane.b32.xlu0 %v2481, 80
    %v3134 = vpop.permute.xlu0 %3133
    %3135 = vrot.lane.b32.xlu0 %v2486, 80
    %v3136 = vpop.permute.xlu0 %3135
    %3137 = vrot.lane.b32.xlu0 %v2491, 80
    %v3138 = vpop.permute.xlu0 %3137
    %v3139 = vsel %vm407, %v3120, 0
    %v3141 = vsel %vm407, %v3122, 0
    %v3143 = vsel %vm407, %v3124, 0
    %v3145 = vsel %vm407, %v3126, 0
    %v3147 = vsel %vm407, %v3128, 0
    %v3149 = vsel %vm407, %v3130, 0
    %v3151 = vsel %vm407, %v3132, 0
    %v3153 = vsel %vm407, %v3134, 0
    %v3155 = vsel %vm407, %v3136, 0
    %v3157 = vsel %vm407, %v3138, 0
    %3159 = vmatprep.subr.mxu0 0.0
    %3160 = vmatpush1.xpose.msra.mxu0 0.0
    %3161 = vmatprep.subr.mxu0 0.0
    %3162 = vmatpush1.xpose.msra.mxu0 0.0
    %3163 = vmatprep.subr.mxu0 0.0
    %3164 = vmatpush1.xpose.msra.mxu0 0.0
    %3165 = vmatprep.subr.mxu0 0.0
    %3166 = vmatpush1.xpose.msra.mxu0 0.0
    %3167 = vmatprep.subr.mxu0 0.0
    %3168 = vmatpush1.xpose.msra.mxu0 0.0
    %3169 = vmatprep.subr.mxu0 0.0
    %3170 = vmatpush1.xpose.msra.mxu0 0.0
    %3171 = vmatprep.subr.mxu0 0.0
    %3172 = vmatpush1.xpose.msra.mxu0 0.0
    %3173 = vmatprep.subr.mxu0 0.0
    %3174 = vmatpush1.xpose.msra.mxu0 0.0
    %3175 = vmatprep.subr.mxu0 0.0
    %3176 = vmatpush1.xpose.msra.mxu0 0.0
    %3177 = vmatprep.subr.mxu0 0.0
    %3178 = vmatpush1.xpose.msra.mxu0 0.0
    %3179 = vmatprep.subr.mxu0 0.0
    %3180 = vmatpush1.xpose.msra.mxu0 0.0
    %3181 = vmatprep.subr.mxu0 0.0
    %3182 = vmatpush1.xpose.msra.mxu0 %v3157
    %3183 = vmatprep.subr.mxu0 0.0
    %3184 = vmatpush1.xpose.msra.mxu0 %v3155
    %3185 = vmatprep.subr.mxu0 0.0
    %3186 = vmatpush1.xpose.msra.mxu0 %v3153
    %3187 = vmatprep.subr.mxu0 0.0
    %3188 = vmatpush1.xpose.msra.mxu0 %v3151
    %3189 = vmatprep.subr.mxu0 0.0
    %3190 = vmatpush1.xpose.msra.mxu0 %v3149
    %3191 = vmatprep.subr.mxu0 0.0
    %3192 = vmatpush2.xpose.msra.mxu0 0.0
    %3193 = vmatprep.subr.mxu0 0.0
    %3194 = vmatpush2.xpose.msra.mxu0 0.0
    %3195 = vmatprep.subr.mxu0 0.0
    %3196 = vmatpush2.xpose.msra.mxu0 0.0
    %3197 = vmatprep.subr.mxu0 0.0
    %3198 = vmatpush2.xpose.msra.mxu0 0.0
    %3199 = vmatprep.subr.mxu0 0.0
    %3200 = vmatpush2.xpose.msra.mxu0 0.0
    %3201 = vmatprep.subr.mxu0 0.0
    %3202 = vmatpush2.xpose.msra.mxu0 0.0
    %3203 = vmatprep.subr.mxu0 0.0
    %3204 = vmatpush2.xpose.msra.mxu0 0.0
    %3205 = vmatprep.subr.mxu0 0.0
    %3206 = vmatpush2.xpose.msra.mxu0 0.0
    %3207 = vmatprep.subr.mxu0 0.0
    %3208 = vmatpush2.xpose.msra.mxu0 0.0
    %3209 = vmatprep.subr.mxu0 0.0
    %3210 = vmatpush2.xpose.msra.mxu0 0.0
    %3211 = vmatprep.subr.mxu0 0.0
    %3212 = vmatpush2.xpose.msra.mxu0 0.0
    %3213 = vmatprep.subr.mxu0 0.0
    %3214 = vmatpush2.xpose.msra.mxu0 0.0
    %3215 = vmatprep.subr.mxu0 0.0
    %3216 = vmatpush2.xpose.msra.mxu0 0.0
    %3217 = vmatprep.subr.mxu0 0.0
    %3218 = vmatpush2.xpose.msra.mxu0 0.0
    %3219 = vmatprep.subr.mxu0 0.0
    %3220 = vmatpush2.xpose.msra.mxu0 0.0
    %3221 = vmatprep.subr.mxu0 0.0
    %3222 = vmatpush2.xpose.msra.mxu0 0.0
    %3223 = vmatprep.mubr.f32.mxu0 0.0
    %3224 = vmatmul.mubr.f32.gmra.mxu0 %v3139
    %v3225 = vpop.f32.mrf.mxu0
    %v3226 = vadd.f32 0.0, %v3225
    %v3227 = vpop.f32.mrf.mxu0
    %3228 = vmatprep.mubr.f32.mxu0 0.0
    %3229 = vmatmul.mubr.f32.gmra.mxu0 %v3141
    %v3230 = vpop.f32.mrf.mxu0
    %v3231 = vadd.f32 0.0, %v3230
    %v3232 = vpop.f32.mrf.mxu0
    %3233 = vmatprep.mubr.f32.mxu0 0.0
    %3234 = vmatmul.mubr.f32.gmra.mxu0 %v3143
    %v3235 = vpop.f32.mrf.mxu0
    %v3236 = vadd.f32 0.0, %v3235
    %v3237 = vpop.f32.mrf.mxu0
    %3238 = vmatprep.mubr.f32.mxu0 0.0
    %3239 = vmatmul.mubr.f32.gmra.mxu0 %v3145
    %v3240 = vpop.f32.mrf.mxu0
    %v3241 = vadd.f32 0.0, %v3240
    %v3242 = vpop.f32.mrf.mxu0
    %3243 = vmatprep.mubr.f32.mxu0 0.0
    %3244 = vmatmul.mubr.f32.gmra.mxu0 %v3147
    %v3245 = vpop.f32.mrf.mxu0
    %v3246 = vadd.f32 0.0, %v3245
    %v3247 = vpop.f32.mrf.mxu0
    %3248 = vdwg.mxu0
    %v3249 = vmul.f32 %v3226, 0.35355338
    %v3250 = vmul.f32 %v3231, 0.35355338
    %v3251 = vmul.f32 %v3236, 0.35355338
    %v3252 = vmul.f32 %v3241, 0.35355338
    %v3253 = vmul.f32 %v3246, 0.35355338
    %v3254 = vadd.f32 %v3249, %v181
    %v3255 = vadd.f32 %v3250, %v182
    %v3256 = vadd.f32 %v3251, %v183
    %v3257 = vadd.f32 %v3252, %v184
    %v3258 = vadd.f32 %v3253, %v185
    %v3259 = vsel %vm528, %v3254, -inf
    %3260 = vmax.xlane.f32.xlu0 %v3259
    %v3261 = vpop.xlane.xlu0 %3260
    %v3262 = vsel %vm528, %v3255, -inf
    %3263 = vmax.xlane.f32.xlu0 %v3262
    %v3264 = vpop.xlane.xlu0 %3263
    %v3265 = vsel %vm528, %v3256, -inf
    %3266 = vmax.xlane.f32.xlu0 %v3265
    %v3267 = vpop.xlane.xlu0 %3266
    %v3268 = vsel %vm528, %v3257, -inf
    %3269 = vmax.xlane.f32.xlu0 %v3268
    %v3270 = vpop.xlane.xlu0 %3269
    %v3271 = vsel %vm528, %v3258, -inf
    %3272 = vmax.xlane.f32.xlu0 %v3271
    %v3273 = vpop.xlane.xlu0 %3272
    %v3274 = vsub.f32 %v3254, %v3261
    %v3275 = vsub.f32 %v3255, %v3264
    %v3276 = vsub.f32 %v3256, %v3267
    %v3277 = vsub.f32 %v3257, %v3270
    %v3278 = vsub.f32 %v3258, %v3273
    %v3279 = vmul.f32 %v3274, 1.442695
    %v3280 = vpow.pop %v3279
    %v3281 = vmul.f32 %v3275, 1.442695
    %v3282 = vpow.pop %v3281
    %v3283 = vmul.f32 %v3276, 1.442695
    %v3284 = vpow.pop %v3283
    %v3285 = vmul.f32 %v3277, 1.442695
    %v3286 = vpow.pop %v3285
    %v3287 = vmul.f32 %v3278, 1.442695
    %v3288 = vpow.pop %v3287
    %v3289 = vsel %vm528, %v3280, 0.0
    %3290 = vadd.xlane.f32.xlu0 %v3289
    %v3291 = vpop.xlane.xlu0 %3290
    %v3292 = vsel %vm528, %v3282, 0.0
    %3293 = vadd.xlane.f32.xlu0 %v3292
    %v3294 = vpop.xlane.xlu0 %3293
    %v3295 = vsel %vm528, %v3284, 0.0
    %3296 = vadd.xlane.f32.xlu0 %v3295
    %v3297 = vpop.xlane.xlu0 %3296
    %v3298 = vsel %vm528, %v3286, 0.0
    %3299 = vadd.xlane.f32.xlu0 %v3298
    %v3300 = vpop.xlane.xlu0 %3299
    %v3301 = vsel %vm528, %v3288, 0.0
    %3302 = vadd.xlane.f32.xlu0 %v3301
    %v3303 = vpop.xlane.xlu0 %3302
    %v3304 = vrcp.pop %v3291
    %v3305 = vrcp.pop %v3294
    %v3306 = vrcp.pop %v3297
    %v3307 = vrcp.pop %v3300
    %v3308 = vrcp.pop %v3303
    %v3309 = vmul.f32 %v3280, %v3304
    %v3310 = vmul.f32 %v3282, %v3305
    %v3311 = vmul.f32 %v3284, %v3306
    %v3312 = vmul.f32 %v3286, %v3307
    %v3313 = vmul.f32 %v3288, %v3308
    %3314 = vrot.lane.b32.xlu0 %v2471, 48
    %v3315 = vpop.permute.xlu0 %3314
    %3316 = vrot.lane.b32.xlu0 %v2476, 48
    %v3317 = vpop.permute.xlu0 %3316
    %3318 = vrot.lane.b32.xlu0 %v2481, 48
    %v3319 = vpop.permute.xlu0 %3318
    %3320 = vrot.lane.b32.xlu0 %v2486, 48
    %v3321 = vpop.permute.xlu0 %3320
    %3322 = vrot.lane.b32.xlu0 %v2491, 48
    %v3323 = vpop.permute.xlu0 %3322
    %v3330 = vsel %vm528, %v3309, 0
    %v3333 = vsel %vm528, %v3310, 0
    %v3336 = vsel %vm528, %v3311, 0
    %v3339 = vsel %vm528, %v3312, 0
    %v3342 = vsel %vm528, %v3313, 0
    %3344 = vmatprep.subr.mxu0 0.0
    %3345 = vmatpush1.msra.mxu0 0.0
    %3346 = vmatprep.subr.mxu0 0.0
    %3347 = vmatpush1.msra.mxu0 0.0
    %3348 = vmatprep.subr.mxu0 0.0
    %3349 = vmatpush1.msra.mxu0 0.0
    %3350 = vmatprep.subr.mxu0 0.0
    %3351 = vmatpush1.msra.mxu0 0.0
    %3352 = vmatprep.subr.mxu0 0.0
    %3353 = vmatpush1.msra.mxu0 0.0
    %3354 = vmatprep.subr.mxu0 0.0
    %3355 = vmatpush1.msra.mxu0 0.0
    %3356 = vmatprep.subr.mxu0 0.0
    %3357 = vmatpush1.msra.mxu0 0.0
    %3358 = vmatprep.subr.mxu0 0.0
    %3359 = vmatpush1.msra.mxu0 0.0
    %3360 = vmatprep.subr.mxu0 0.0
    %3361 = vmatpush1.msra.mxu0 0.0
    %3362 = vmatprep.subr.mxu0 0.0
    %3363 = vmatpush1.msra.mxu0 0.0
    %3364 = vmatprep.subr.mxu0 0.0
    %3365 = vmatpush1.msra.mxu0 0.0
    %3366 = vmatprep.subr.mxu0 0.0
    %3367 = vmatpush1.msra.mxu0 %v3323
    %3368 = vmatprep.subr.mxu0 0.0
    %3369 = vmatpush1.msra.mxu0 %v3321
    %3370 = vmatprep.subr.mxu0 0.0
    %3371 = vmatpush1.msra.mxu0 %v3319
    %3372 = vmatprep.subr.mxu0 0.0
    %3373 = vmatpush1.msra.mxu0 %v3317
    %3374 = vmatprep.subr.mxu0 0.0
    %3375 = vmatpush1.msra.mxu0 %v3315
    %3376 = vmatprep.subr.mxu0 0.0
    %3377 = vmatpush2.msra.mxu0 0.0
    %3378 = vmatprep.subr.mxu0 0.0
    %3379 = vmatpush2.msra.mxu0 0.0
    %3380 = vmatprep.subr.mxu0 0.0
    %3381 = vmatpush2.msra.mxu0 0.0
    %3382 = vmatprep.subr.mxu0 0.0
    %3383 = vmatpush2.msra.mxu0 0.0
    %3384 = vmatprep.subr.mxu0 0.0
    %3385 = vmatpush2.msra.mxu0 0.0
    %3386 = vmatprep.subr.mxu0 0.0
    %3387 = vmatpush2.msra.mxu0 0.0
    %3388 = vmatprep.subr.mxu0 0.0
    %3389 = vmatpush2.msra.mxu0 0.0
    %3390 = vmatprep.subr.mxu0 0.0
    %3391 = vmatpush2.msra.mxu0 0.0
    %3392 = vmatprep.subr.mxu0 0.0
    %3393 = vmatpush2.msra.mxu0 0.0
    %3394 = vmatprep.subr.mxu0 0.0
    %3395 = vmatpush2.msra.mxu0 0.0
    %3396 = vmatprep.subr.mxu0 0.0
    %3397 = vmatpush2.msra.mxu0 0.0
    %3398 = vmatprep.subr.mxu0 0.0
    %3399 = vmatpush2.msra.mxu0 0.0
    %3400 = vmatprep.subr.mxu0 0.0
    %3401 = vmatpush2.msra.mxu0 0.0
    %3402 = vmatprep.subr.mxu0 0.0
    %3403 = vmatpush2.msra.mxu0 0.0
    %3404 = vmatprep.subr.mxu0 0.0
    %3405 = vmatpush2.msra.mxu0 0.0
    %3406 = vmatprep.subr.mxu0 0.0
    %3407 = vmatpush2.msra.mxu0 0.0
    %3408 = vmatprep.mubr.f32.mxu0 0.0
    %3409 = vmatmul.mubr.f32.gmra.mxu0 %v3330
    %v3410 = vpop.f32.mrf.mxu0
    %v3411 = vadd.f32 0.0, %v3410
    %v3412 = vpop.f32.mrf.mxu0
    %3413 = vmatprep.mubr.f32.mxu0 0.0
    %3414 = vmatmul.mubr.f32.gmra.mxu0 %v3333
    %v3415 = vpop.f32.mrf.mxu0
    %v3416 = vadd.f32 0.0, %v3415
    %v3417 = vpop.f32.mrf.mxu0
    %3418 = vmatprep.mubr.f32.mxu0 0.0
    %3419 = vmatmul.mubr.f32.gmra.mxu0 %v3336
    %v3420 = vpop.f32.mrf.mxu0
    %v3421 = vadd.f32 0.0, %v3420
    %v3422 = vpop.f32.mrf.mxu0
    %3423 = vmatprep.mubr.f32.mxu0 0.0
    %3424 = vmatmul.mubr.f32.gmra.mxu0 %v3339
    %v3425 = vpop.f32.mrf.mxu0
    %v3426 = vadd.f32 0.0, %v3425
    %v3427 = vpop.f32.mrf.mxu0
    %3428 = vmatprep.mubr.f32.mxu0 0.0
    %3429 = vmatmul.mubr.f32.gmra.mxu0 %v3342
    %v3430 = vpop.f32.mrf.mxu0
    %v3431 = vadd.f32 0.0, %v3430
    %v3432 = vpop.f32.mrf.mxu0
    %3433 = vdwg.mxu0
    %3434 = vrot.lane.b32.xlu0 %v2471, 104
    %v3435 = vpop.permute.xlu0 %3434
    %3436 = vrot.lane.b32.xlu0 %v2476, 104
    %v3437 = vpop.permute.xlu0 %3436
    %3438 = vrot.lane.b32.xlu0 %v2481, 104
    %v3439 = vpop.permute.xlu0 %3438
    %3440 = vrot.lane.b32.xlu0 %v2486, 104
    %v3441 = vpop.permute.xlu0 %3440
    %3442 = vrot.lane.b32.xlu0 %v2491, 104
    %v3443 = vpop.permute.xlu0 %3442
    %3444 = vrot.lane.b32.xlu0 %v2471, 72
    %v3445 = vpop.permute.xlu0 %3444
    %3446 = vrot.lane.b32.xlu0 %v2476, 72
    %v3447 = vpop.permute.xlu0 %3446
    %3448 = vrot.lane.b32.xlu0 %v2481, 72
    %v3449 = vpop.permute.xlu0 %3448
    %3450 = vrot.lane.b32.xlu0 %v2486, 72
    %v3451 = vpop.permute.xlu0 %3450
    %3452 = vrot.lane.b32.xlu0 %v2491, 72
    %v3453 = vpop.permute.xlu0 %3452
    %v3454 = vsel %vm407, %v3435, 0
    %v3456 = vsel %vm407, %v3437, 0
    %v3458 = vsel %vm407, %v3439, 0
    %v3460 = vsel %vm407, %v3441, 0
    %v3462 = vsel %vm407, %v3443, 0
    %v3464 = vsel %vm407, %v3445, 0
    %v3466 = vsel %vm407, %v3447, 0
    %v3468 = vsel %vm407, %v3449, 0
    %v3470 = vsel %vm407, %v3451, 0
    %v3472 = vsel %vm407, %v3453, 0
    %3474 = vmatprep.subr.mxu0 0.0
    %3475 = vmatpush1.xpose.msra.mxu0 0.0
    %3476 = vmatprep.subr.mxu0 0.0
    %3477 = vmatpush1.xpose.msra.mxu0 0.0
    %3478 = vmatprep.subr.mxu0 0.0
    %3479 = vmatpush1.xpose.msra.mxu0 0.0
    %3480 = vmatprep.subr.mxu0 0.0
    %3481 = vmatpush1.xpose.msra.mxu0 0.0
    %3482 = vmatprep.subr.mxu0 0.0
    %3483 = vmatpush1.xpose.msra.mxu0 0.0
    %3484 = vmatprep.subr.mxu0 0.0
    %3485 = vmatpush1.xpose.msra.mxu0 0.0
    %3486 = vmatprep.subr.mxu0 0.0
    %3487 = vmatpush1.xpose.msra.mxu0 0.0
    %3488 = vmatprep.subr.mxu0 0.0
    %3489 = vmatpush1.xpose.msra.mxu0 0.0
    %3490 = vmatprep.subr.mxu0 0.0
    %3491 = vmatpush1.xpose.msra.mxu0 0.0
    %3492 = vmatprep.subr.mxu0 0.0
    %3493 = vmatpush1.xpose.msra.mxu0 0.0
    %3494 = vmatprep.subr.mxu0 0.0
    %3495 = vmatpush1.xpose.msra.mxu0 0.0
    %3496 = vmatprep.subr.mxu0 0.0
    %3497 = vmatpush1.xpose.msra.mxu0 %v3472
    %3498 = vmatprep.subr.mxu0 0.0
    %3499 = vmatpush1.xpose.msra.mxu0 %v3470
    %3500 = vmatprep.subr.mxu0 0.0
    %3501 = vmatpush1.xpose.msra.mxu0 %v3468
    %3502 = vmatprep.subr.mxu0 0.0
    %3503 = vmatpush1.xpose.msra.mxu0 %v3466
    %3504 = vmatprep.subr.mxu0 0.0
    %3505 = vmatpush1.xpose.msra.mxu0 %v3464
    %3506 = vmatprep.subr.mxu0 0.0
    %3507 = vmatpush2.xpose.msra.mxu0 0.0
    %3508 = vmatprep.subr.mxu0 0.0
    %3509 = vmatpush2.xpose.msra.mxu0 0.0
    %3510 = vmatprep.subr.mxu0 0.0
    %3511 = vmatpush2.xpose.msra.mxu0 0.0
    %3512 = vmatprep.subr.mxu0 0.0
    %3513 = vmatpush2.xpose.msra.mxu0 0.0
    %3514 = vmatprep.subr.mxu0 0.0
    %3515 = vmatpush2.xpose.msra.mxu0 0.0
    %3516 = vmatprep.subr.mxu0 0.0
    %3517 = vmatpush2.xpose.msra.mxu0 0.0
    %3518 = vmatprep.subr.mxu0 0.0
    %3519 = vmatpush2.xpose.msra.mxu0 0.0
    %3520 = vmatprep.subr.mxu0 0.0
    %3521 = vmatpush2.xpose.msra.mxu0 0.0
    %3522 = vmatprep.subr.mxu0 0.0
    %3523 = vmatpush2.xpose.msra.mxu0 0.0
    %3524 = vmatprep.subr.mxu0 0.0
    %3525 = vmatpush2.xpose.msra.mxu0 0.0
    %3526 = vmatprep.subr.mxu0 0.0
    %3527 = vmatpush2.xpose.msra.mxu0 0.0
    %3528 = vmatprep.subr.mxu0 0.0
    %3529 = vmatpush2.xpose.msra.mxu0 0.0
    %3530 = vmatprep.subr.mxu0 0.0
    %3531 = vmatpush2.xpose.msra.mxu0 0.0
    %3532 = vmatprep.subr.mxu0 0.0
    %3533 = vmatpush2.xpose.msra.mxu0 0.0
    %3534 = vmatprep.subr.mxu0 0.0
    %3535 = vmatpush2.xpose.msra.mxu0 0.0
    %3536 = vmatprep.subr.mxu0 0.0
    %3537 = vmatpush2.xpose.msra.mxu0 0.0
    %3538 = vmatprep.mubr.f32.mxu0 0.0
    %3539 = vmatmul.mubr.f32.gmra.mxu0 %v3454
    %v3540 = vpop.f32.mrf.mxu0
    %v3541 = vadd.f32 0.0, %v3540
    %v3542 = vpop.f32.mrf.mxu0
    %3543 = vmatprep.mubr.f32.mxu0 0.0
    %3544 = vmatmul.mubr.f32.gmra.mxu0 %v3456
    %v3545 = vpop.f32.mrf.mxu0
    %v3546 = vadd.f32 0.0, %v3545
    %v3547 = vpop.f32.mrf.mxu0
    %3548 = vmatprep.mubr.f32.mxu0 0.0
    %3549 = vmatmul.mubr.f32.gmra.mxu0 %v3458
    %v3550 = vpop.f32.mrf.mxu0
    %v3551 = vadd.f32 0.0, %v3550
    %v3552 = vpop.f32.mrf.mxu0
    %3553 = vmatprep.mubr.f32.mxu0 0.0
    %3554 = vmatmul.mubr.f32.gmra.mxu0 %v3460
    %v3555 = vpop.f32.mrf.mxu0
    %v3556 = vadd.f32 0.0, %v3555
    %v3557 = vpop.f32.mrf.mxu0
    %3558 = vmatprep.mubr.f32.mxu0 0.0
    %3559 = vmatmul.mubr.f32.gmra.mxu0 %v3462
    %v3560 = vpop.f32.mrf.mxu0
    %v3561 = vadd.f32 0.0, %v3560
    %v3562 = vpop.f32.mrf.mxu0
    %3563 = vdwg.mxu0
    %v3564 = vmul.f32 %v3541, 0.35355338
    %v3565 = vmul.f32 %v3546, 0.35355338
    %v3566 = vmul.f32 %v3551, 0.35355338
    %v3567 = vmul.f32 %v3556, 0.35355338
    %v3568 = vmul.f32 %v3561, 0.35355338
    %v3569 = vadd.f32 %v3564, %v181
    %v3570 = vadd.f32 %v3565, %v182
    %v3571 = vadd.f32 %v3566, %v183
    %v3572 = vadd.f32 %v3567, %v184
    %v3573 = vadd.f32 %v3568, %v185
    %v3574 = vsel %vm528, %v3569, -inf
    %3575 = vmax.xlane.f32.xlu0 %v3574
    %v3576 = vpop.xlane.xlu0 %3575
    %v3577 = vsel %vm528, %v3570, -inf
    %3578 = vmax.xlane.f32.xlu0 %v3577
    %v3579 = vpop.xlane.xlu0 %3578
    %v3580 = vsel %vm528, %v3571, -inf
    %3581 = vmax.xlane.f32.xlu0 %v3580
    %v3582 = vpop.xlane.xlu0 %3581
    %v3583 = vsel %vm528, %v3572, -inf
    %3584 = vmax.xlane.f32.xlu0 %v3583
    %v3585 = vpop.xlane.xlu0 %3584
    %v3586 = vsel %vm528, %v3573, -inf
    %3587 = vmax.xlane.f32.xlu0 %v3586
    %v3588 = vpop.xlane.xlu0 %3587
    %v3589 = vsub.f32 %v3569, %v3576
    %v3590 = vsub.f32 %v3570, %v3579
    %v3591 = vsub.f32 %v3571, %v3582
    %v3592 = vsub.f32 %v3572, %v3585
    %v3593 = vsub.f32 %v3573, %v3588
    %v3594 = vmul.f32 %v3589, 1.442695
    %v3595 = vpow.pop %v3594
    %v3596 = vmul.f32 %v3590, 1.442695
    %v3597 = vpow.pop %v3596
    %v3598 = vmul.f32 %v3591, 1.442695
    %v3599 = vpow.pop %v3598
    %v3600 = vmul.f32 %v3592, 1.442695
    %v3601 = vpow.pop %v3600
    %v3602 = vmul.f32 %v3593, 1.442695
    %v3603 = vpow.pop %v3602
    %v3604 = vsel %vm528, %v3595, 0.0
    %3605 = vadd.xlane.f32.xlu0 %v3604
    %v3606 = vpop.xlane.xlu0 %3605
    %v3607 = vsel %vm528, %v3597, 0.0
    %3608 = vadd.xlane.f32.xlu0 %v3607
    %v3609 = vpop.xlane.xlu0 %3608
    %v3610 = vsel %vm528, %v3599, 0.0
    %3611 = vadd.xlane.f32.xlu0 %v3610
    %v3612 = vpop.xlane.xlu0 %3611
    %v3613 = vsel %vm528, %v3601, 0.0
    %3614 = vadd.xlane.f32.xlu0 %v3613
    %v3615 = vpop.xlane.xlu0 %3614
    %v3616 = vsel %vm528, %v3603, 0.0
    %3617 = vadd.xlane.f32.xlu0 %v3616
    %v3618 = vpop.xlane.xlu0 %3617
    %v3619 = vrcp.pop %v3606
    %v3620 = vrcp.pop %v3609
    %v3621 = vrcp.pop %v3612
    %v3622 = vrcp.pop %v3615
    %v3623 = vrcp.pop %v3618
    %v3624 = vmul.f32 %v3595, %v3619
    %v3625 = vmul.f32 %v3597, %v3620
    %v3626 = vmul.f32 %v3599, %v3621
    %v3627 = vmul.f32 %v3601, %v3622
    %v3628 = vmul.f32 %v3603, %v3623
    %3629 = vrot.lane.b32.xlu0 %v2471, 40
    %v3630 = vpop.permute.xlu0 %3629
    %3631 = vrot.lane.b32.xlu0 %v2476, 40
    %v3632 = vpop.permute.xlu0 %3631
    %3633 = vrot.lane.b32.xlu0 %v2481, 40
    %v3634 = vpop.permute.xlu0 %3633
    %3635 = vrot.lane.b32.xlu0 %v2486, 40
    %v3636 = vpop.permute.xlu0 %3635
    %3637 = vrot.lane.b32.xlu0 %v2491, 40
    %v3638 = vpop.permute.xlu0 %3637
    %v3645 = vsel %vm528, %v3624, 0
    %v3648 = vsel %vm528, %v3625, 0
    %v3651 = vsel %vm528, %v3626, 0
    %v3654 = vsel %vm528, %v3627, 0
    %v3657 = vsel %vm528, %v3628, 0
    %3659 = vmatprep.subr.mxu0 0.0
    %3660 = vmatpush1.msra.mxu0 0.0
    %3661 = vmatprep.subr.mxu0 0.0
    %3662 = vmatpush1.msra.mxu0 0.0
    %3663 = vmatprep.subr.mxu0 0.0
    %3664 = vmatpush1.msra.mxu0 0.0
    %3665 = vmatprep.subr.mxu0 0.0
    %3666 = vmatpush1.msra.mxu0 0.0
    %3667 = vmatprep.subr.mxu0 0.0
    %3668 = vmatpush1.msra.mxu0 0.0
    %3669 = vmatprep.subr.mxu0 0.0
    %3670 = vmatpush1.msra.mxu0 0.0
    %3671 = vmatprep.subr.mxu0 0.0
    %3672 = vmatpush1.msra.mxu0 0.0
    %3673 = vmatprep.subr.mxu0 0.0
    %3674 = vmatpush1.msra.mxu0 0.0
    %3675 = vmatprep.subr.mxu0 0.0
    %3676 = vmatpush1.msra.mxu0 0.0
    %3677 = vmatprep.subr.mxu0 0.0
    %3678 = vmatpush1.msra.mxu0 0.0
    %3679 = vmatprep.subr.mxu0 0.0
    %3680 = vmatpush1.msra.mxu0 0.0
    %3681 = vmatprep.subr.mxu0 0.0
    %3682 = vmatpush1.msra.mxu0 %v3638
    %3683 = vmatprep.subr.mxu0 0.0
    %3684 = vmatpush1.msra.mxu0 %v3636
    %3685 = vmatprep.subr.mxu0 0.0
    %3686 = vmatpush1.msra.mxu0 %v3634
    %3687 = vmatprep.subr.mxu0 0.0
    %3688 = vmatpush1.msra.mxu0 %v3632
    %3689 = vmatprep.subr.mxu0 0.0
    %3690 = vmatpush1.msra.mxu0 %v3630
    %3691 = vmatprep.subr.mxu0 0.0
    %3692 = vmatpush2.msra.mxu0 0.0
    %3693 = vmatprep.subr.mxu0 0.0
    %3694 = vmatpush2.msra.mxu0 0.0
    %3695 = vmatprep.subr.mxu0 0.0
    %3696 = vmatpush2.msra.mxu0 0.0
    %3697 = vmatprep.subr.mxu0 0.0
    %3698 = vmatpush2.msra.mxu0 0.0
    %3699 = vmatprep.subr.mxu0 0.0
    %3700 = vmatpush2.msra.mxu0 0.0
    %3701 = vmatprep.subr.mxu0 0.0
    %3702 = vmatpush2.msra.mxu0 0.0
    %3703 = vmatprep.subr.mxu0 0.0
    %3704 = vmatpush2.msra.mxu0 0.0
    %3705 = vmatprep.subr.mxu0 0.0
    %3706 = vmatpush2.msra.mxu0 0.0
    %3707 = vmatprep.subr.mxu0 0.0
    %3708 = vmatpush2.msra.mxu0 0.0
    %3709 = vmatprep.subr.mxu0 0.0
    %3710 = vmatpush2.msra.mxu0 0.0
    %3711 = vmatprep.subr.mxu0 0.0
    %3712 = vmatpush2.msra.mxu0 0.0
    %3713 = vmatprep.subr.mxu0 0.0
    %3714 = vmatpush2.msra.mxu0 0.0
    %3715 = vmatprep.subr.mxu0 0.0
    %3716 = vmatpush2.msra.mxu0 0.0
    %3717 = vmatprep.subr.mxu0 0.0
    %3718 = vmatpush2.msra.mxu0 0.0
    %3719 = vmatprep.subr.mxu0 0.0
    %3720 = vmatpush2.msra.mxu0 0.0
    %3721 = vmatprep.subr.mxu0 0.0
    %3722 = vmatpush2.msra.mxu0 0.0
    %3723 = vmatprep.mubr.f32.mxu0 0.0
    %3724 = vmatmul.mubr.f32.gmra.mxu0 %v3645
    %v3725 = vpop.f32.mrf.mxu0
    %v3726 = vadd.f32 0.0, %v3725
    %v3727 = vpop.f32.mrf.mxu0
    %3728 = vmatprep.mubr.f32.mxu0 0.0
    %3729 = vmatmul.mubr.f32.gmra.mxu0 %v3648
    %v3730 = vpop.f32.mrf.mxu0
    %v3731 = vadd.f32 0.0, %v3730
    %v3732 = vpop.f32.mrf.mxu0
    %3733 = vmatprep.mubr.f32.mxu0 0.0
    %3734 = vmatmul.mubr.f32.gmra.mxu0 %v3651
    %v3735 = vpop.f32.mrf.mxu0
    %v3736 = vadd.f32 0.0, %v3735
    %v3737 = vpop.f32.mrf.mxu0
    %3738 = vmatprep.mubr.f32.mxu0 0.0
    %3739 = vmatmul.mubr.f32.gmra.mxu0 %v3654
    %v3740 = vpop.f32.mrf.mxu0
    %v3741 = vadd.f32 0.0, %v3740
    %v3742 = vpop.f32.mrf.mxu0
    %3743 = vmatprep.mubr.f32.mxu0 0.0
    %3744 = vmatmul.mubr.f32.gmra.mxu0 %v3657
    %v3745 = vpop.f32.mrf.mxu0
    %v3746 = vadd.f32 0.0, %v3745
    %v3747 = vpop.f32.mrf.mxu0
    %3748 = vdwg.mxu0
    %3754 = vrot.lane.b32.xlu0 %v3096, 8
    %v3755 = vpop.permute.xlu0 %3754
    %3756 = vrot.lane.b32.xlu0 %v3101, 8
    %v3757 = vpop.permute.xlu0 %3756
    %3758 = vrot.lane.b32.xlu0 %v3106, 8
    %v3759 = vpop.permute.xlu0 %3758
    %3760 = vrot.lane.b32.xlu0 %v3111, 8
    %v3761 = vpop.permute.xlu0 %3760
    %3762 = vrot.lane.b32.xlu0 %v3116, 8
    %v3763 = vpop.permute.xlu0 %3762
    %3774 = vrot.lane.b32.xlu0 %v3411, 16
    %v3775 = vpop.permute.xlu0 %3774
    %3776 = vrot.lane.b32.xlu0 %v3416, 16
    %v3777 = vpop.permute.xlu0 %3776
    %3778 = vrot.lane.b32.xlu0 %v3421, 16
    %v3779 = vpop.permute.xlu0 %3778
    %3780 = vrot.lane.b32.xlu0 %v3426, 16
    %v3781 = vpop.permute.xlu0 %3780
    %3782 = vrot.lane.b32.xlu0 %v3431, 16
    %v3783 = vpop.permute.xlu0 %3782
    %3794 = vrot.lane.b32.xlu0 %v3726, 24
    %v3795 = vpop.permute.xlu0 %3794
    %3796 = vrot.lane.b32.xlu0 %v3731, 24
    %v3797 = vpop.permute.xlu0 %3796
    %3798 = vrot.lane.b32.xlu0 %v3736, 24
    %v3799 = vpop.permute.xlu0 %3798
    %3800 = vrot.lane.b32.xlu0 %v3741, 24
    %v3801 = vpop.permute.xlu0 %3800
    %3802 = vrot.lane.b32.xlu0 %v3746, 24
    %v3803 = vpop.permute.xlu0 %3802
    %v3809 = vsel %vm407, %v2781, %v3755
    %v3810 = vsel %vm407, %v2786, %v3757
    %v3811 = vsel %vm407, %v2791, %v3759
    %v3812 = vsel %vm407, %v2796, %v3761
    %v3813 = vsel %vm407, %v2801, %v3763
    %v3814 = vsel %vm1714, %v3809, %v3775
    %v3815 = vsel %vm1714, %v3810, %v3777
    %v3816 = vsel %vm1714, %v3811, %v3779
    %v3817 = vsel %vm1714, %v3812, %v3781
    %v3818 = vsel %vm1714, %v3813, %v3783
    %v3819 = vsel %vm1720, %v3814, %v3795
    %v3820 = vsel %vm1720, %v3815, %v3797
    %v3821 = vsel %vm1720, %v3816, %v3799
    %v3822 = vsel %vm1720, %v3817, %v3801
    %v3823 = vsel %vm1720, %v3818, %v3803
    %v3824 = vlaneseq
    %v3825 = vshrl.u32 %v3824, 7
    %v3826 = vsub.s32 0, %v3825
    %v3827 = vrot.slane %v2384, %v3826
    %v3829 = vsel %vm188, %v3819, 0
    %v3832 = vsel %vm188, %v3820, 0
    %v3835 = vsel %vm188, %v3821, 0
    %v3838 = vsel %vm188, %v3822, 0
    %v3841 = vsel %vm188, %v3823, 0
    %3843 = vmatprep.subr.mxu0 0.0
    %3844 = vmatpush1.msra.mxu0 0.0
    %3845 = vmatprep.subr.mxu0 0.0
    %3846 = vmatpush1.msra.mxu0 0.0
    %3847 = vmatprep.subr.mxu0 0.0
    %3848 = vmatpush1.msra.mxu0 0.0
    %3849 = vmatprep.subr.mxu0 0.0
    %3850 = vmatpush1.msra.mxu0 0.0
    %3851 = vmatprep.subr.mxu0 0.0
    %3852 = vmatpush1.msra.mxu0 0.0
    %3853 = vmatprep.subr.mxu0 0.0
    %3854 = vmatpush1.msra.mxu0 0.0
    %3855 = vmatprep.subr.mxu0 0.0
    %3856 = vmatpush1.msra.mxu0 0.0
    %3857 = vmatprep.subr.mxu0 0.0
    %3858 = vmatpush1.msra.mxu0 0.0
    %3859 = vmatprep.subr.mxu0 0.0
    %3860 = vmatpush1.msra.mxu0 0.0
    %3861 = vmatprep.subr.mxu0 0.0
    %3862 = vmatpush1.msra.mxu0 0.0
    %3863 = vmatprep.subr.mxu0 0.0
    %3864 = vmatpush1.msra.mxu0 0.0
    %3865 = vmatprep.subr.mxu0 0.0
    %3866 = vmatpush1.msra.mxu0 0.0
    %3867 = vmatprep.subr.mxu0 0.0
    %3868 = vmatpush1.msra.mxu0 %v2383
    %3869 = vmatprep.subr.mxu0 0.0
    %3870 = vmatpush1.msra.mxu0 %v2382
    %3871 = vmatprep.subr.mxu0 0.0
    %3872 = vmatpush1.msra.mxu0 %v2381
    %3873 = vmatprep.subr.mxu0 0.0
    %3874 = vmatpush1.msra.mxu0 %v2380
    %3875 = vmatprep.subr.mxu0 0.0
    %3876 = vmatpush2.msra.mxu0 0.0
    %3877 = vmatprep.subr.mxu0 0.0
    %3878 = vmatpush2.msra.mxu0 0.0
    %3879 = vmatprep.subr.mxu0 0.0
    %3880 = vmatpush2.msra.mxu0 0.0
    %3881 = vmatprep.subr.mxu0 0.0
    %3882 = vmatpush2.msra.mxu0 0.0
    %3883 = vmatprep.subr.mxu0 0.0
    %3884 = vmatpush2.msra.mxu0 0.0
    %3885 = vmatprep.subr.mxu0 0.0
    %3886 = vmatpush2.msra.mxu0 0.0
    %3887 = vmatprep.subr.mxu0 0.0
    %3888 = vmatpush2.msra.mxu0 0.0
    %3889 = vmatprep.subr.mxu0 0.0
    %3890 = vmatpush2.msra.mxu0 0.0
    %3891 = vmatprep.subr.mxu0 0.0
    %3892 = vmatpush2.msra.mxu0 0.0
    %3893 = vmatprep.subr.mxu0 0.0
    %3894 = vmatpush2.msra.mxu0 0.0
    %3895 = vmatprep.subr.mxu0 0.0
    %3896 = vmatpush2.msra.mxu0 0.0
    %3897 = vmatprep.subr.mxu0 0.0
    %3898 = vmatpush2.msra.mxu0 0.0
    %3899 = vmatprep.subr.mxu0 0.0
    %3900 = vmatpush2.msra.mxu0 0.0
    %3901 = vmatprep.subr.mxu0 0.0
    %3902 = vmatpush2.msra.mxu0 0.0
    %3903 = vmatprep.subr.mxu0 0.0
    %3904 = vmatpush2.msra.mxu0 0.0
    %3905 = vmatprep.subr.mxu0 0.0
    %3906 = vmatpush2.msra.mxu0 0.0
    %3907 = vmatprep.mubr.f32.mxu0 0.0
    %3908 = vmatmul.mubr.f32.gmra.mxu0 %v3829
    %v3909 = vpop.f32.mrf.mxu0
    %v3910 = vadd.f32 %v3827, %v3909
    %v3911 = vpop.f32.mrf.mxu0
    %3912 = vmatprep.mubr.f32.mxu0 0.0
    %3913 = vmatmul.mubr.f32.gmra.mxu0 %v3832
    %v3914 = vpop.f32.mrf.mxu0
    %v3915 = vadd.f32 %v3827, %v3914
    %v3916 = vpop.f32.mrf.mxu0
    %3917 = vmatprep.mubr.f32.mxu0 0.0
    %3918 = vmatmul.mubr.f32.gmra.mxu0 %v3835
    %v3919 = vpop.f32.mrf.mxu0
    %v3920 = vadd.f32 %v3827, %v3919
    %v3921 = vpop.f32.mrf.mxu0
    %3922 = vmatprep.mubr.f32.mxu0 0.0
    %3923 = vmatmul.mubr.f32.gmra.mxu0 %v3838
    %v3924 = vpop.f32.mrf.mxu0
    %v3925 = vadd.f32 %v3827, %v3924
    %v3926 = vpop.f32.mrf.mxu0
    %3927 = vmatprep.mubr.f32.mxu0 0.0
    %3928 = vmatmul.mubr.f32.gmra.mxu0 %v3841
    %v3929 = vpop.f32.mrf.mxu0
    %v3930 = vadd.f32 %v3827, %v3929
    %v3931 = vpop.f32.mrf.mxu0
    %3932 = vdwg.mxu0
    %v3933 = vadd.f32 %v2285, %v3910
    %v3934 = vadd.f32 %v2286, %v3915
    %v3935 = vadd.f32 %v2287, %v3920
    %v3936 = vadd.f32 %v2288, %v3925
    %v3937 = vadd.f32 %v2289, %v3930
    %v3938 = vld [vmem:[%s5 + $0x290] sm:$0x1]
    %v3939 = vld [vmem:[%s5 + $0x298] sm:$0x1]
    %v3940 = vsel %vm188, %v3933, 0.0
    %3941 = vadd.xlane.f32.xlu0 %v3940
    %v3942 = vpop.xlane.xlu0 %3941
    %v3943 = vsel %vm188, %v3934, 0.0
    %3944 = vadd.xlane.f32.xlu0 %v3943
    %v3945 = vpop.xlane.xlu0 %3944
    %v3946 = vsel %vm188, %v3935, 0.0
    %3947 = vadd.xlane.f32.xlu0 %v3946
    %v3948 = vpop.xlane.xlu0 %3947
    %v3949 = vsel %vm188, %v3936, 0.0
    %3950 = vadd.xlane.f32.xlu0 %v3949
    %v3951 = vpop.xlane.xlu0 %3950
    %v3952 = vsel %vm188, %v3937, 0.0
    %3953 = vadd.xlane.f32.xlu0 %v3952
    %v3954 = vpop.xlane.xlu0 %3953
    %v3955 = vmul.f32 %v3942, %v204
    %v3956 = vmul.f32 %v3945, %v204
    %v3957 = vmul.f32 %v3948, %v204
    %v3958 = vmul.f32 %v3951, %v204
    %v3959 = vmul.f32 %v3954, %v204
    %v3960 = vsub.f32 %v3933, %v3955
    %v3961 = vsub.f32 %v3934, %v3956
    %v3962 = vsub.f32 %v3935, %v3957
    %v3963 = vsub.f32 %v3936, %v3958
    %v3964 = vsub.f32 %v3937, %v3959
    %v3965 = vmul.f32 %v3960, %v3960
    %v3966 = vmul.f32 %v3961, %v3961
    %v3967 = vmul.f32 %v3962, %v3962
    %v3968 = vmul.f32 %v3963, %v3963
    %v3969 = vmul.f32 %v3964, %v3964
    %v3970 = vsel %vm188, %v3965, 0.0
    %3971 = vadd.xlane.f32.xlu0 %v3970
    %v3972 = vpop.xlane.xlu0 %3971
    %v3973 = vsel %vm188, %v3966, 0.0
    %3974 = vadd.xlane.f32.xlu0 %v3973
    %v3975 = vpop.xlane.xlu0 %3974
    %v3976 = vsel %vm188, %v3967, 0.0
    %3977 = vadd.xlane.f32.xlu0 %v3976
    %v3978 = vpop.xlane.xlu0 %3977
    %v3979 = vsel %vm188, %v3968, 0.0
    %3980 = vadd.xlane.f32.xlu0 %v3979
    %v3981 = vpop.xlane.xlu0 %3980
    %v3982 = vsel %vm188, %v3969, 0.0
    %3983 = vadd.xlane.f32.xlu0 %v3982
    %v3984 = vpop.xlane.xlu0 %3983
    %v3985 = vmul.f32 %v3972, %v204
    %v3986 = vmul.f32 %v3975, %v204
    %v3987 = vmul.f32 %v3978, %v204
    %v3988 = vmul.f32 %v3981, %v204
    %v3989 = vmul.f32 %v3984, %v204
    %v3990 = vadd.f32 %v3985, 1e-06
    %v3991 = vadd.f32 %v3986, 1e-06
    %v3992 = vadd.f32 %v3987, 1e-06
    %v3993 = vadd.f32 %v3988, 1e-06
    %v3994 = vadd.f32 %v3989, 1e-06
    %v3995 = vrsqrt.pop %v3990
    %v3996 = vrsqrt.pop %v3991
    %v3997 = vrsqrt.pop %v3992
    %v3998 = vrsqrt.pop %v3993
    %v3999 = vrsqrt.pop %v3994
    %v4000 = vmul.f32 %v3960, %v3995
    %v4001 = vmul.f32 %v3961, %v3996
    %v4002 = vmul.f32 %v3962, %v3997
    %v4003 = vmul.f32 %v3963, %v3998
    %v4004 = vmul.f32 %v3964, %v3999
    %v4005 = vlaneseq
    %v4006 = vshrl.u32 %v4005, 7
    %v4007 = vsub.s32 0, %v4006
    %v4008 = vrot.slane %v3938, %v4007
    %v4009 = vmul.f32 %v4000, %v4008
    %v4010 = vmul.f32 %v4001, %v4008
    %v4011 = vmul.f32 %v4002, %v4008
    %v4012 = vmul.f32 %v4003, %v4008
    %v4013 = vmul.f32 %v4004, %v4008
    %v4014 = vlaneseq
    %v4015 = vshrl.u32 %v4014, 7
    %v4016 = vsub.s32 0, %v4015
    %v4017 = vrot.slane %v3939, %v4016
    %v4018 = vadd.f32 %v4009, %v4017
    %v4019 = vadd.f32 %v4010, %v4017
    %v4020 = vadd.f32 %v4011, %v4017
    %v4021 = vadd.f32 %v4012, %v4017
    %v4022 = vadd.f32 %v4013, %v4017
    %v4023 = vld [vmem:[%s5 + $0x2a0] sm:$0xff]
    %v4024 = vld [vmem:[%s5 + $0x2a8] sm:$0xff]
    %v4025 = vld [vmem:[%s5 + $0x2b0] sm:$0xff]
    %v4026 = vld [vmem:[%s5 + $0x2b8] sm:$0xff]
    %v4027 = vld [vmem:[%s5 + $0x2c0] sm:$0x1]
    %v4028 = vld [vmem:[%s5 + $0x2c8] sm:$0xff]
    %v4029 = vld [vmem:[%s5 + $0x2d0] sm:$0xff]
    %v4030 = vld [vmem:[%s5 + $0x2d8] sm:$0xff]
    %v4031 = vld [vmem:[%s5 + $0x2e0] sm:$0xff]
    %v4032 = vld [vmem:[%s5 + $0x2e8] sm:$0xff]
    %v4033 = vld [vmem:[%s5 + $0x2f0] sm:$0xff]
    %v4034 = vld [vmem:[%s5 + $0x2f8] sm:$0xff]
    %v4035 = vld [vmem:[%s5 + $0x300] sm:$0xff]
    %v4036 = vld [vmem:[%s5 + $0x308] sm:$0xff]
    %v4037 = vld [vmem:[%s5 + $0x310] sm:$0xff]
    %v4038 = vld [vmem:[%s5 + $0x318] sm:$0xff]
    %v4039 = vld [vmem:[%s5 + $0x320] sm:$0xff]
    %v4040 = vld [vmem:[%s5 + $0x328] sm:$0xff]
    %v4041 = vld [vmem:[%s5 + $0x330] sm:$0xff]
    %v4042 = vld [vmem:[%s5 + $0x338] sm:$0xff]
    %v4043 = vld [vmem:[%s5 + $0x340] sm:$0xff]
    %v4044 = vld [vmem:[%s5 + $0x348] sm:$0x1]
    %v4045 = vlaneseq
    %v4046 = vshrl.u32 %v4045, 7
    %v4047 = vsub.s32 0, %v4046
    %v4048 = vrot.slane %v4027, %v4047
    %v4050 = vsel %vm188, %v4018, 0
    %v4053 = vsel %vm188, %v4019, 0
    %v4056 = vsel %vm188, %v4020, 0
    %v4059 = vsel %vm188, %v4021, 0
    %v4062 = vsel %vm188, %v4022, 0
    %4064 = vmatprep.subr.mxu0 0.0
    %4065 = vmatpush1.msra.mxu0 0.0
    %4066 = vmatprep.subr.mxu0 0.0
    %4067 = vmatpush1.msra.mxu0 0.0
    %4068 = vmatprep.subr.mxu0 0.0
    %4069 = vmatpush1.msra.mxu0 0.0
    %4070 = vmatprep.subr.mxu0 0.0
    %4071 = vmatpush1.msra.mxu0 0.0
    %4072 = vmatprep.subr.mxu0 0.0
    %4073 = vmatpush1.msra.mxu0 0.0
    %4074 = vmatprep.subr.mxu0 0.0
    %4075 = vmatpush1.msra.mxu0 0.0
    %4076 = vmatprep.subr.mxu0 0.0
    %4077 = vmatpush1.msra.mxu0 0.0
    %4078 = vmatprep.subr.mxu0 0.0
    %4079 = vmatpush1.msra.mxu0 0.0
    %4080 = vmatprep.subr.mxu0 0.0
    %4081 = vmatpush1.msra.mxu0 0.0
    %4082 = vmatprep.subr.mxu0 0.0
    %4083 = vmatpush1.msra.mxu0 0.0
    %4084 = vmatprep.subr.mxu0 0.0
    %4085 = vmatpush1.msra.mxu0 0.0
    %4086 = vmatprep.subr.mxu0 0.0
    %4087 = vmatpush1.msra.mxu0 0.0
    %4088 = vmatprep.subr.mxu0 0.0
    %4089 = vmatpush1.msra.mxu0 %v4026
    %4090 = vmatprep.subr.mxu0 0.0
    %4091 = vmatpush1.msra.mxu0 %v4025
    %4092 = vmatprep.subr.mxu0 0.0
    %4093 = vmatpush1.msra.mxu0 %v4024
    %4094 = vmatprep.subr.mxu0 0.0
    %4095 = vmatpush1.msra.mxu0 %v4023
    %4096 = vmatprep.subr.mxu0 0.0
    %4097 = vmatpush2.msra.mxu0 0.0
    %4098 = vmatprep.subr.mxu0 0.0
    %4099 = vmatpush2.msra.mxu0 0.0
    %4100 = vmatprep.subr.mxu0 0.0
    %4101 = vmatpush2.msra.mxu0 0.0
    %4102 = vmatprep.subr.mxu0 0.0
    %4103 = vmatpush2.msra.mxu0 0.0
    %4104 = vmatprep.subr.mxu0 0.0
    %4105 = vmatpush2.msra.mxu0 0.0
    %4106 = vmatprep.subr.mxu0 0.0
    %4107 = vmatpush2.msra.mxu0 0.0
    %4108 = vmatprep.subr.mxu0 0.0
    %4109 = vmatpush2.msra.mxu0 0.0
    %4110 = vmatprep.subr.mxu0 0.0
    %4111 = vmatpush2.msra.mxu0 0.0
    %4112 = vmatprep.subr.mxu0 0.0
    %4113 = vmatpush2.msra.mxu0 0.0
    %4114 = vmatprep.subr.mxu0 0.0
    %4115 = vmatpush2.msra.mxu0 0.0
    %4116 = vmatprep.subr.mxu0 0.0
    %4117 = vmatpush2.msra.mxu0 0.0
    %4118 = vmatprep.subr.mxu0 0.0
    %4119 = vmatpush2.msra.mxu0 0.0
    %4120 = vmatprep.subr.mxu0 0.0
    %4121 = vmatpush2.msra.mxu0 0.0
    %4122 = vmatprep.subr.mxu0 0.0
    %4123 = vmatpush2.msra.mxu0 0.0
    %4124 = vmatprep.subr.mxu0 0.0
    %4125 = vmatpush2.msra.mxu0 0.0
    %4126 = vmatprep.subr.mxu0 0.0
    %4127 = vmatpush2.msra.mxu0 0.0
    %4128 = vmatprep.mubr.f32.mxu0 0.0
    %4129 = vmatmul.mubr.f32.gmra.mxu0 %v4050
    %v4130 = vpop.f32.mrf.mxu0
    %v4131 = vadd.f32 %v4048, %v4130
    %v4132 = vpop.f32.mrf.mxu0
    %4133 = vmatprep.mubr.f32.mxu0 0.0
    %4134 = vmatmul.mubr.f32.gmra.mxu0 %v4053
    %v4135 = vpop.f32.mrf.mxu0
    %v4136 = vadd.f32 %v4048, %v4135
    %v4137 = vpop.f32.mrf.mxu0
    %4138 = vmatprep.mubr.f32.mxu0 0.0
    %4139 = vmatmul.mubr.f32.gmra.mxu0 %v4056
    %v4140 = vpop.f32.mrf.mxu0
    %v4141 = vadd.f32 %v4048, %v4140
    %v4142 = vpop.f32.mrf.mxu0
    %4143 = vmatprep.mubr.f32.mxu0 0.0
    %4144 = vmatmul.mubr.f32.gmra.mxu0 %v4059
    %v4145 = vpop.f32.mrf.mxu0
    %v4146 = vadd.f32 %v4048, %v4145
    %v4147 = vpop.f32.mrf.mxu0
    %4148 = vmatprep.mubr.f32.mxu0 0.0
    %4149 = vmatmul.mubr.f32.gmra.mxu0 %v4062
    %v4150 = vpop.f32.mrf.mxu0
    %v4151 = vadd.f32 %v4048, %v4150
    %v4152 = vpop.f32.mrf.mxu0
    %4153 = vdwg.mxu0
    %v4154 = vmul.f32 %v4131, 0.5
    %v4155 = vmul.f32 %v4136, 0.5
    %v4156 = vmul.f32 %v4141, 0.5
    %v4157 = vmul.f32 %v4146, 0.5
    %v4158 = vmul.f32 %v4151, 0.5
    %v4159 = vmul.f32 %v4131, 0.70710677
    %v4160 = vmul.f32 %v4136, 0.70710677
    %v4161 = vmul.f32 %v4141, 0.70710677
    %v4162 = vmul.f32 %v4146, 0.70710677
    %v4163 = vmul.f32 %v4151, 0.70710677
    %vm4164 = vcmp.ge.f32.partialorder %v4159, 0.0
    %vm4165 = vcmp.ge.f32.partialorder %v4160, 0.0
    %vm4166 = vcmp.ge.f32.partialorder %v4161, 0.0
    %vm4167 = vcmp.ge.f32.partialorder %v4162, 0.0
    %vm4168 = vcmp.ge.f32.partialorder %v4163, 0.0
    %v4169 = vsel %vm4164, 1.0, -1.0
    %v4170 = vsel %vm4165, 1.0, -1.0
    %v4171 = vsel %vm4166, 1.0, -1.0
    %v4172 = vsel %vm4167, 1.0, -1.0
    %v4173 = vsel %vm4168, 1.0, -1.0
    %v4174 = vand.u32 2147483647, %v4159
    %v4175 = vand.u32 2147483647, %v4160
    %v4176 = vand.u32 2147483647, %v4161
    %v4177 = vand.u32 2147483647, %v4162
    %v4178 = vand.u32 2147483647, %v4163
    %v4179 = vmul.f32 %v4174, 0.3275911
    %v4180 = vmul.f32 %v4175, 0.3275911
    %v4181 = vmul.f32 %v4176, 0.3275911
    %v4182 = vmul.f32 %v4177, 0.3275911
    %v4183 = vmul.f32 %v4178, 0.3275911
    %v4184 = vadd.f32 %v4179, 1.0
    %v4185 = vadd.f32 %v4180, 1.0
    %v4186 = vadd.f32 %v4181, 1.0
    %v4187 = vadd.f32 %v4182, 1.0
    %v4188 = vadd.f32 %v4183, 1.0
    %v4189 = vrcp.pop %v4184
    %v4190 = vmul.f32 1.0, %v4189
    %v4191 = vrcp.pop %v4185
    %v4192 = vmul.f32 1.0, %v4191
    %v4193 = vrcp.pop %v4186
    %v4194 = vmul.f32 1.0, %v4193
    %v4195 = vrcp.pop %v4187
    %v4196 = vmul.f32 1.0, %v4195
    %v4197 = vrcp.pop %v4188
    %v4198 = vmul.f32 1.0, %v4197
    %v4199 = vmul.f32 %v4190, 1.0614054
    %v4200 = vmul.f32 %v4192, 1.0614054
    %v4201 = vmul.f32 %v4194, 1.0614054
    %v4202 = vmul.f32 %v4196, 1.0614054
    %v4203 = vmul.f32 %v4198, 1.0614054
    %v4204 = vadd.f32 %v4199, -1.4531521
    %v4205 = vadd.f32 %v4200, -1.4531521
    %v4206 = vadd.f32 %v4201, -1.4531521
    %v4207 = vadd.f32 %v4202, -1.4531521
    %v4208 = vadd.f32 %v4203, -1.4531521
    %v4209 = vmul.f32 %v4204, %v4190
    %v4210 = vmul.f32 %v4205, %v4192
    %v4211 = vmul.f32 %v4206, %v4194
    %v4212 = vmul.f32 %v4207, %v4196
    %v4213 = vmul.f32 %v4208, %v4198
    %v4214 = vadd.f32 %v4209, 1.4214138
    %v4215 = vadd.f32 %v4210, 1.4214138
    %v4216 = vadd.f32 %v4211, 1.4214138
    %v4217 = vadd.f32 %v4212, 1.4214138
    %v4218 = vadd.f32 %v4213, 1.4214138
    %v4219 = vmul.f32 %v4214, %v4190
    %v4220 = vmul.f32 %v4215, %v4192
    %v4221 = vmul.f32 %v4216, %v4194
    %v4222 = vmul.f32 %v4217, %v4196
    %v4223 = vmul.f32 %v4218, %v4198
    %v4224 = vadd.f32 %v4219, -0.28449672
    %v4225 = vadd.f32 %v4220, -0.28449672
    %v4226 = vadd.f32 %v4221, -0.28449672
    %v4227 = vadd.f32 %v4222, -0.28449672
    %v4228 = vadd.f32 %v4223, -0.28449672
    %v4229 = vmul.f32 %v4224, %v4190
    %v4230 = vmul.f32 %v4225, %v4192
    %v4231 = vmul.f32 %v4226, %v4194
    %v4232 = vmul.f32 %v4227, %v4196
    %v4233 = vmul.f32 %v4228, %v4198
    %v4234 = vadd.f32 %v4229, 0.2548296
    %v4235 = vadd.f32 %v4230, 0.2548296
    %v4236 = vadd.f32 %v4231, 0.2548296
    %v4237 = vadd.f32 %v4232, 0.2548296
    %v4238 = vadd.f32 %v4233, 0.2548296
    %v4239 = vmul.f32 %v4234, %v4190
    %v4240 = vmul.f32 %v4235, %v4192
    %v4241 = vmul.f32 %v4236, %v4194
    %v4242 = vmul.f32 %v4237, %v4196
    %v4243 = vmul.f32 %v4238, %v4198
    %v4244 = vsub.f32 0.0, %v4174
    %v4245 = vsub.f32 0.0, %v4175
    %v4246 = vsub.f32 0.0, %v4176
    %v4247 = vsub.f32 0.0, %v4177
    %v4248 = vsub.f32 0.0, %v4178
    %v4249 = vmul.f32 %v4244, %v4174
    %v4250 = vmul.f32 %v4245, %v4175
    %v4251 = vmul.f32 %v4246, %v4176
    %v4252 = vmul.f32 %v4247, %v4177
    %v4253 = vmul.f32 %v4248, %v4178
    %v4254 = vmul.f32 %v4249, 1.442695
    %v4255 = vpow.pop %v4254
    %v4256 = vmul.f32 %v4250, 1.442695
    %v4257 = vpow.pop %v4256
    %v4258 = vmul.f32 %v4251, 1.442695
    %v4259 = vpow.pop %v4258
    %v4260 = vmul.f32 %v4252, 1.442695
    %v4261 = vpow.pop %v4260
    %v4262 = vmul.f32 %v4253, 1.442695
    %v4263 = vpow.pop %v4262
    %v4264 = vmul.f32 %v4239, %v4255
    %v4265 = vmul.f32 %v4240, %v4257
    %v4266 = vmul.f32 %v4241, %v4259
    %v4267 = vmul.f32 %v4242, %v4261
    %v4268 = vmul.f32 %v4243, %v4263
    %v4269 = vsub.f32 1.0, %v4264
    %v4270 = vsub.f32 1.0, %v4265
    %v4271 = vsub.f32 1.0, %v4266
    %v4272 = vsub.f32 1.0, %v4267
    %v4273 = vsub.f32 1.0, %v4268
    %v4274 = vmul.f32 %v4169, %v4269
    %v4275 = vmul.f32 %v4170, %v4270
    %v4276 = vmul.f32 %v4171, %v4271
    %v4277 = vmul.f32 %v4172, %v4272
    %v4278 = vmul.f32 %v4173, %v4273
    %v4279 = vadd.f32 %v4274, 1.0
    %v4280 = vadd.f32 %v4275, 1.0
    %v4281 = vadd.f32 %v4276, 1.0
    %v4282 = vadd.f32 %v4277, 1.0
    %v4283 = vadd.f32 %v4278, 1.0
    %v4284 = vmul.f32 %v4154, %v4279
    %v4285 = vmul.f32 %v4155, %v4280
    %v4286 = vmul.f32 %v4156, %v4281
    %v4287 = vmul.f32 %v4157, %v4282
    %v4288 = vmul.f32 %v4158, %v4283
    %v4289 = vlaneseq
    %v4290 = vshrl.u32 %v4289, 7
    %v4291 = vsub.s32 0, %v4290
    %v4292 = vrot.slane %v4044, %v4291
    %4293 = vmatprep.subr.mxu0 0.0
    %4294 = vmatpush1.msra.mxu0 %v4043
    %4295 = vmatprep.subr.mxu0 0.0
    %4296 = vmatpush1.msra.mxu0 %v4042
    %4297 = vmatprep.subr.mxu0 0.0
    %4298 = vmatpush1.msra.mxu0 %v4041
    %4299 = vmatprep.subr.mxu0 0.0
    %4300 = vmatpush1.msra.mxu0 %v4040
    %4301 = vmatprep.subr.mxu0 0.0
    %4302 = vmatpush1.msra.mxu0 %v4039
    %4303 = vmatprep.subr.mxu0 0.0
    %4304 = vmatpush1.msra.mxu0 %v4038
    %4305 = vmatprep.subr.mxu0 0.0
    %4306 = vmatpush1.msra.mxu0 %v4037
    %4307 = vmatprep.subr.mxu0 0.0
    %4308 = vmatpush1.msra.mxu0 %v4036
    %4309 = vmatprep.subr.mxu0 0.0
    %4310 = vmatpush1.msra.mxu0 %v4035
    %4311 = vmatprep.subr.mxu0 0.0
    %4312 = vmatpush1.msra.mxu0 %v4034
    %4313 = vmatprep.subr.mxu0 0.0
    %4314 = vmatpush1.msra.mxu0 %v4033
    %4315 = vmatprep.subr.mxu0 0.0
    %4316 = vmatpush1.msra.mxu0 %v4032
    %4317 = vmatprep.subr.mxu0 0.0
    %4318 = vmatpush1.msra.mxu0 %v4031
    %4319 = vmatprep.subr.mxu0 0.0
    %4320 = vmatpush1.msra.mxu0 %v4030
    %4321 = vmatprep.subr.mxu0 0.0
    %4322 = vmatpush1.msra.mxu0 %v4029
    %4323 = vmatprep.subr.mxu0 0.0
    %4324 = vmatpush1.msra.mxu0 %v4028
    %4325 = vmatprep.subr.mxu0 0.0
    %4326 = vmatpush2.msra.mxu0 0.0
    %4327 = vmatprep.subr.mxu0 0.0
    %4328 = vmatpush2.msra.mxu0 0.0
    %4329 = vmatprep.subr.mxu0 0.0
    %4330 = vmatpush2.msra.mxu0 0.0
    %4331 = vmatprep.subr.mxu0 0.0
    %4332 = vmatpush2.msra.mxu0 0.0
    %4333 = vmatprep.subr.mxu0 0.0
    %4334 = vmatpush2.msra.mxu0 0.0
    %4335 = vmatprep.subr.mxu0 0.0
    %4336 = vmatpush2.msra.mxu0 0.0
    %4337 = vmatprep.subr.mxu0 0.0
    %4338 = vmatpush2.msra.mxu0 0.0
    %4339 = vmatprep.subr.mxu0 0.0
    %4340 = vmatpush2.msra.mxu0 0.0
    %4341 = vmatprep.subr.mxu0 0.0
    %4342 = vmatpush2.msra.mxu0 0.0
    %4343 = vmatprep.subr.mxu0 0.0
    %4344 = vmatpush2.msra.mxu0 0.0
    %4345 = vmatprep.subr.mxu0 0.0
    %4346 = vmatpush2.msra.mxu0 0.0
    %4347 = vmatprep.subr.mxu0 0.0
    %4348 = vmatpush2.msra.mxu0 0.0
    %4349 = vmatprep.subr.mxu0 0.0
    %4350 = vmatpush2.msra.mxu0 0.0
    %4351 = vmatprep.subr.mxu0 0.0
    %4352 = vmatpush2.msra.mxu0 0.0
    %4353 = vmatprep.subr.mxu0 0.0
    %4354 = vmatpush2.msra.mxu0 0.0
    %4355 = vmatprep.subr.mxu0 0.0
    %4356 = vmatpush2.msra.mxu0 0.0
    %4357 = vmatprep.mubr.f32.mxu0 0.0
    %4358 = vmatmul.mubr.f32.gmra.mxu0 %v4284
    %v4359 = vpop.f32.mrf.mxu0
    %v4360 = vadd.f32 %v4292, %v4359
    %v4361 = vpop.f32.mrf.mxu0
    %4362 = vmatprep.mubr.f32.mxu0 0.0
    %4363 = vmatmul.mubr.f32.gmra.mxu0 %v4285
    %v4364 = vpop.f32.mrf.mxu0
    %v4365 = vpop.f32.mrf.mxu0
    %4366 = vmatprep.mubr.f32.mxu0 0.0
    %4367 = vmatmul.mubr.f32.gmra.mxu0 %v4286
    %v4368 = vpop.f32.mrf.mxu0
    %v4369 = vpop.f32.mrf.mxu0
    %4370 = vmatprep.mubr.f32.mxu0 0.0
    %4371 = vmatmul.mubr.f32.gmra.mxu0 %v4287
    %v4372 = vpop.f32.mrf.mxu0
    %v4373 = vpop.f32.mrf.mxu0
    %4374 = vmatprep.mubr.f32.mxu0 0.0
    %4375 = vmatmul.mubr.f32.gmra.mxu0 %v4288
    %v4376 = vpop.f32.mrf.mxu0
    %v4377 = vpop.f32.mrf.mxu0
    %4378 = vdwg.mxu0
    %v4379 = vadd.f32 %v3933, %v4360
    %v4380 = vld [vmem:[%s5 + $0x350] sm:$0x1]
    %v4381 = vld [vmem:[%s5 + $0x358] sm:$0x1]
    %v4382 = vsel %vm188, %v4379, 0.0
    %4383 = vadd.xlane.f32.xlu0 %v4382
    %v4384 = vpop.xlane.xlu0 %4383
    %v4385 = vmul.f32 %v4384, %v204
    %v4386 = vsub.f32 %v4379, %v4385
    %v4387 = vmul.f32 %v4386, %v4386
    %v4388 = vsel %vm188, %v4387, 0.0
    %4389 = vadd.xlane.f32.xlu0 %v4388
    %v4390 = vpop.xlane.xlu0 %4389
    %v4391 = vmul.f32 %v4390, %v204
    %v4392 = vadd.f32 %v4391, 1e-06
    %v4393 = vrsqrt.pop %v4392
    %v4394 = vmul.f32 %v4386, %v4393
    %v4395 = vlaneseq
    %v4396 = vshrl.u32 %v4395, 7
    %v4397 = vsub.s32 0, %v4396
    %v4398 = vrot.slane %v4380, %v4397
    %v4399 = vmul.f32 %v4394, %v4398
    %v4400 = vlaneseq
    %v4401 = vshrl.u32 %v4400, 7
    %v4402 = vsub.s32 0, %v4401
    %v4403 = vrot.slane %v4381, %v4402
    %v4404 = vadd.f32 %v4399, %v4403
    %v4405 = vld [vmem:[%s5 + $0x360] sm:$0xff]
    %v4406 = vld [vmem:[%s5 + $0x368] sm:$0xff]
    %v4407 = vld [vmem:[%s5 + $0x370] sm:$0xff]
    %v4408 = vld [vmem:[%s5 + $0x378] sm:$0xff]
    %v4409 = vld [vmem:[%s5 + $0x380] sm:$0x1]
    %v4410 = vlaneseq
    %v4411 = vshrl.u32 %v4410, 7
    %v4412 = vsub.s32 0, %v4411
    %v4413 = vrot.slane %v4409, %v4412
    %v4415 = vsel %vm188, %v4404, 0
    %4417 = vmatprep.subr.mxu0 0.0
    %4418 = vmatpush1.msra.mxu0 0.0
    %4419 = vmatprep.subr.mxu0 0.0
    %4420 = vmatpush1.msra.mxu0 0.0
    %4421 = vmatprep.subr.mxu0 0.0
    %4422 = vmatpush1.msra.mxu0 0.0
    %4423 = vmatprep.subr.mxu0 0.0
    %4424 = vmatpush1.msra.mxu0 0.0
    %4425 = vmatprep.subr.mxu0 0.0
    %4426 = vmatpush1.msra.mxu0 0.0
    %4427 = vmatprep.subr.mxu0 0.0
    %4428 = vmatpush1.msra.mxu0 0.0
    %4429 = vmatprep.subr.mxu0 0.0
    %4430 = vmatpush1.msra.mxu0 0.0
    %4431 = vmatprep.subr.mxu0 0.0
    %4432 = vmatpush1.msra.mxu0 0.0
    %4433 = vmatprep.subr.mxu0 0.0
    %4434 = vmatpush1.msra.mxu0 0.0
    %4435 = vmatprep.subr.mxu0 0.0
    %4436 = vmatpush1.msra.mxu0 0.0
    %4437 = vmatprep.subr.mxu0 0.0
    %4438 = vmatpush1.msra.mxu0 0.0
    %4439 = vmatprep.subr.mxu0 0.0
    %4440 = vmatpush1.msra.mxu0 0.0
    %4441 = vmatprep.subr.mxu0 0.0
    %4442 = vmatpush1.msra.mxu0 %v4408
    %4443 = vmatprep.subr.mxu0 0.0
    %4444 = vmatpush1.msra.mxu0 %v4407
    %4445 = vmatprep.subr.mxu0 0.0
    %4446 = vmatpush1.msra.mxu0 %v4406
    %4447 = vmatprep.subr.mxu0 0.0
    %4448 = vmatpush1.msra.mxu0 %v4405
    %4449 = vmatprep.subr.mxu0 0.0
    %4450 = vmatpush2.msra.mxu0 0.0
    %4451 = vmatprep.subr.mxu0 0.0
    %4452 = vmatpush2.msra.mxu0 0.0
    %4453 = vmatprep.subr.mxu0 0.0
    %4454 = vmatpush2.msra.mxu0 0.0
    %4455 = vmatprep.subr.mxu0 0.0
    %4456 = vmatpush2.msra.mxu0 0.0
    %4457 = vmatprep.subr.mxu0 0.0
    %4458 = vmatpush2.msra.mxu0 0.0
    %4459 = vmatprep.subr.mxu0 0.0
    %4460 = vmatpush2.msra.mxu0 0.0
    %4461 = vmatprep.subr.mxu0 0.0
    %4462 = vmatpush2.msra.mxu0 0.0
    %4463 = vmatprep.subr.mxu0 0.0
    %4464 = vmatpush2.msra.mxu0 0.0
    %4465 = vmatprep.subr.mxu0 0.0
    %4466 = vmatpush2.msra.mxu0 0.0
    %4467 = vmatprep.subr.mxu0 0.0
    %4468 = vmatpush2.msra.mxu0 0.0
    %4469 = vmatprep.subr.mxu0 0.0
    %4470 = vmatpush2.msra.mxu0 0.0
    %4471 = vmatprep.subr.mxu0 0.0
    %4472 = vmatpush2.msra.mxu0 0.0
    %4473 = vmatprep.subr.mxu0 0.0
    %4474 = vmatpush2.msra.mxu0 0.0
    %4475 = vmatprep.subr.mxu0 0.0
    %4476 = vmatpush2.msra.mxu0 0.0
    %4477 = vmatprep.subr.mxu0 0.0
    %4478 = vmatpush2.msra.mxu0 0.0
    %4479 = vmatprep.subr.mxu0 0.0
    %4480 = vmatpush2.msra.mxu0 0.0
    %4481 = vmatprep.mubr.f32.mxu0 0.0
    %4482 = vmatmul.mubr.f32.gmra.mxu0 %v4415
    %v4483 = vpop.f32.mrf.mxu0
    %v4484 = vadd.f32 %v4413, %v4483
    %v4485 = vpop.f32.mrf.mxu0
    %4486 = vdwg.mxu0
    %v4487 = vlaneseq
    %v4488 = vand.u32 %v4487, 127
    %v4489 = vld [vmem:[%s1] sm:$0xff]
    %v4490 = vld [vmem:[%s1 + $0x8] sm:$0xf]
    %4491 = vset.pattern.permute.xlu0 0
    %4492 = vperm.xlu0 %4491, %v4489
    %v4493 = vpop.permute.xlu0 %4492
    %4494 = vset.pattern.permute.xlu0 0
    %4495 = vperm.xlu0 %4494, %v4490
    %v4496 = vpop.permute.xlu0 %4495
    %vm4497 = vcmp.eq.s32.totalorder %v4488, %v4493
    %vm4498 = vcmp.eq.s32.totalorder %v4488, %v4496
    %v4499 = vsel %vm4497, 1, 0
    %v4500 = vsel %vm4498, 1, 0
    %v4501 = vcvt.s32.f32 %v4499
    %v4502 = vcvt.s32.f32 %v4500
    %v4503 = vld [vmem:[%s5 + $0x388] sm:$0xff]
    %v4504 = vld [vmem:[%s5 + $0x390] sm:$0xff]
    %v4505 = vld [vmem:[%s5 + $0x398] sm:$0xff]
    %v4506 = vld [vmem:[%s5 + $0x3a0] sm:$0x3f]
    %v4507 = vld [vmem:[%s5 + $0x3a8] sm:$0xff]
    %v4508 = vld [vmem:[%s5 + $0x3b0] sm:$0xf]
    %vm4509 = vcmask 244736
    %v4511 = vsel %vm4509, %v4501, 0
    %v4514 = vsel %vm4509, %v4502, 0
    %vm4516 = vcmask 1045504
    %v4518 = vsel %vm4516, %v4506, 0
    %4520 = vmatprep.subr.mxu0 0.0
    %4521 = vmatpush1.msra.mxu0 0.0
    %4522 = vmatprep.subr.mxu0 0.0
    %4523 = vmatpush1.msra.mxu0 0.0
    %4524 = vmatprep.subr.mxu0 0.0
    %4525 = vmatpush1.msra.mxu0 0.0
    %4526 = vmatprep.subr.mxu0 0.0
    %4527 = vmatpush1.msra.mxu0 0.0
    %4528 = vmatprep.subr.mxu0 0.0
    %4529 = vmatpush1.msra.mxu0 0.0
    %4530 = vmatprep.subr.mxu0 0.0
    %4531 = vmatpush1.msra.mxu0 0.0
    %4532 = vmatprep.subr.mxu0 0.0
    %4533 = vmatpush1.msra.mxu0 0.0
    %4534 = vmatprep.subr.mxu0 0.0
    %4535 = vmatpush1.msra.mxu0 0.0
    %4536 = vmatprep.subr.mxu0 0.0
    %4537 = vmatpush1.msra.mxu0 0.0
    %4538 = vmatprep.subr.mxu0 0.0
    %4539 = vmatpush1.msra.mxu0 0.0
    %4540 = vmatprep.subr.mxu0 0.0
    %4541 = vmatpush1.msra.mxu0 0.0
    %4542 = vmatprep.subr.mxu0 0.0
    %4543 = vmatpush1.msra.mxu0 0.0
    %4544 = vmatprep.subr.mxu0 0.0
    %4545 = vmatpush1.msra.mxu0 %v4518
    %4546 = vmatprep.subr.mxu0 0.0
    %4547 = vmatpush1.msra.mxu0 %v4505
    %4548 = vmatprep.subr.mxu0 0.0
    %4549 = vmatpush1.msra.mxu0 %v4504
    %4550 = vmatprep.subr.mxu0 0.0
    %4551 = vmatpush1.msra.mxu0 %v4503
    %4552 = vmatprep.subr.mxu0 0.0
    %4553 = vmatpush2.msra.mxu0 0.0
    %4554 = vmatprep.subr.mxu0 0.0
    %4555 = vmatpush2.msra.mxu0 0.0
    %4556 = vmatprep.subr.mxu0 0.0
    %4557 = vmatpush2.msra.mxu0 0.0
    %4558 = vmatprep.subr.mxu0 0.0
    %4559 = vmatpush2.msra.mxu0 0.0
    %4560 = vmatprep.subr.mxu0 0.0
    %4561 = vmatpush2.msra.mxu0 0.0
    %4562 = vmatprep.subr.mxu0 0.0
    %4563 = vmatpush2.msra.mxu0 0.0
    %4564 = vmatprep.subr.mxu0 0.0
    %4565 = vmatpush2.msra.mxu0 0.0
    %4566 = vmatprep.subr.mxu0 0.0
    %4567 = vmatpush2.msra.mxu0 0.0
    %4568 = vmatprep.subr.mxu0 0.0
    %4569 = vmatpush2.msra.mxu0 0.0
    %4570 = vmatprep.subr.mxu0 0.0
    %4571 = vmatpush2.msra.mxu0 0.0
    %4572 = vmatprep.subr.mxu0 0.0
    %4573 = vmatpush2.msra.mxu0 0.0
    %4574 = vmatprep.subr.mxu0 0.0
    %4575 = vmatpush2.msra.mxu0 0.0
    %4576 = vmatprep.subr.mxu0 0.0
    %4577 = vmatpush2.msra.mxu0 0.0
    %4578 = vmatprep.subr.mxu0 0.0
    %4579 = vmatpush2.msra.mxu0 0.0
    %4580 = vmatprep.subr.mxu0 0.0
    %4581 = vmatpush2.msra.mxu0 0.0
    %4582 = vmatprep.subr.mxu0 0.0
    %4583 = vmatpush2.msra.mxu0 0.0
    %4584 = vmatprep.mubr.f32.mxu0 0.0
    %4585 = vmatmul.mubr.f32.gmra.mxu0 %v4511
    %v4586 = vpop.f32.mrf.mxu0
    %v4587 = vadd.f32 %v4507, %v4586
    %v4588 = vpop.f32.mrf.mxu0
    %4589 = vmatprep.mubr.f32.mxu0 0.0
    %4590 = vmatmul.mubr.f32.gmra.mxu0 %v4514
    %v4591 = vpop.f32.mrf.mxu0
    %v4592 = vadd.f32 %v4508, %v4591
    %v4593 = vpop.f32.mrf.mxu0
    %4594 = vdwg.mxu0
    %v4595 = vld [vmem:[%s5 + $0x3b8] sm:$0x1]
    %v4596 = vld [vmem:[%s5 + $0x3c0] sm:$0x1]
    %v4597 = vsel %vm188, %v4587, 0.0
    %4598 = vadd.xlane.f32.xlu0 %v4597
    %v4599 = vpop.xlane.xlu0 %4598
    %vm4600 = vcmask 257024
    %v4601 = vsel %vm4600, %v4592, 0.0
    %4602 = vadd.xlane.f32.xlu0 %v4601
    %v4603 = vpop.xlane.xlu0 %4602
    %v4604 = vmul.f32 %v4599, %v204
    %v4605 = vmul.f32 %v4603, %v204
    %v4606 = vsub.f32 %v4587, %v4604
    %v4607 = vsub.f32 %v4592, %v4605
    %v4608 = vmul.f32 %v4606, %v4606
    %v4609 = vmul.f32 %v4607, %v4607
    %v4610 = vsel %vm188, %v4608, 0.0
    %4611 = vadd.xlane.f32.xlu0 %v4610
    %v4612 = vpop.xlane.xlu0 %4611
    %v4613 = vsel %vm4600, %v4609, 0.0
    %4614 = vadd.xlane.f32.xlu0 %v4613
    %v4615 = vpop.xlane.xlu0 %4614
    %v4616 = vmul.f32 %v4612, %v204
    %v4617 = vmul.f32 %v4615, %v204
    %v4618 = vadd.f32 %v4616, 1e-12
    %v4619 = vadd.f32 %v4617, 1e-12
    %v4620 = vrsqrt.pop %v4618
    %v4621 = vrsqrt.pop %v4619
    %v4622 = vmul.f32 %v4606, %v4620
    %v4623 = vmul.f32 %v4607, %v4621
    %v4624 = vlaneseq
    %v4625 = vshrl.u32 %v4624, 7
    %v4626 = vsub.s32 0, %v4625
    %v4627 = vrot.slane %v4595, %v4626
    %v4628 = vmul.f32 %v4622, %v4627
    %v4629 = vmul.f32 %v4623, %v4627
    %v4630 = vlaneseq
    %v4631 = vshrl.u32 %v4630, 7
    %v4632 = vsub.s32 0, %v4631
    %v4633 = vrot.slane %v4596, %v4632
    %v4634 = vadd.f32 %v4628, %v4633
    %v4635 = vadd.f32 %v4629, %v4633
    %v4636 = vld [vmem:[%s5 + $0x3c8] sm:$0xff]
    %v4637 = vld [vmem:[%s5 + $0x3d0] sm:$0xf]
    %v4639 = vsel %vm407, %v4636, 0
    %v4642 = vsel %vm407, %v4637, 0
    %4644 = vmatprep.subr.mxu0 0.0
    %4645 = vmatpush1.msra.mxu0 0.0
    %4646 = vmatprep.subr.mxu0 0.0
    %4647 = vmatpush1.msra.mxu0 0.0
    %4648 = vmatprep.subr.mxu0 0.0
    %4649 = vmatpush1.msra.mxu0 0.0
    %4650 = vmatprep.subr.mxu0 0.0
    %4651 = vmatpush1.msra.mxu0 0.0
    %4652 = vmatprep.subr.mxu0 0.0
    %4653 = vmatpush1.msra.mxu0 0.0
    %4654 = vmatprep.subr.mxu0 0.0
    %4655 = vmatpush1.msra.mxu0 0.0
    %4656 = vmatprep.subr.mxu0 0.0
    %4657 = vmatpush1.msra.mxu0 0.0
    %4658 = vmatprep.subr.mxu0 0.0
    %4659 = vmatpush1.msra.mxu0 0.0
    %4660 = vmatprep.subr.mxu0 0.0
    %4661 = vmatpush1.msra.mxu0 0.0
    %4662 = vmatprep.subr.mxu0 0.0
    %4663 = vmatpush1.msra.mxu0 0.0
    %4664 = vmatprep.subr.mxu0 0.0
    %4665 = vmatpush1.msra.mxu0 0.0
    %4666 = vmatprep.subr.mxu0 0.0
    %4667 = vmatpush1.msra.mxu0 0.0
    %4668 = vmatprep.subr.mxu0 0.0
    %4669 = vmatpush1.msra.mxu0 0.0
    %4670 = vmatprep.subr.mxu0 0.0
    %4671 = vmatpush1.msra.mxu0 0.0
    %4672 = vmatprep.subr.mxu0 0.0
    %4673 = vmatpush1.msra.mxu0 0.0
    %4674 = vmatprep.subr.mxu0 0.0
    %4675 = vmatpush1.msra.mxu0 %v4404
    %4676 = vmatprep.subr.mxu0 0.0
    %4677 = vmatpush2.msra.mxu0 0.0
    %4678 = vmatprep.subr.mxu0 0.0
    %4679 = vmatpush2.msra.mxu0 0.0
    %4680 = vmatprep.subr.mxu0 0.0
    %4681 = vmatpush2.msra.mxu0 0.0
    %4682 = vmatprep.subr.mxu0 0.0
    %4683 = vmatpush2.msra.mxu0 0.0
    %4684 = vmatprep.subr.mxu0 0.0
    %4685 = vmatpush2.msra.mxu0 0.0
    %4686 = vmatprep.subr.mxu0 0.0
    %4687 = vmatpush2.msra.mxu0 0.0
    %4688 = vmatprep.subr.mxu0 0.0
    %4689 = vmatpush2.msra.mxu0 0.0
    %4690 = vmatprep.subr.mxu0 0.0
    %4691 = vmatpush2.msra.mxu0 0.0
    %4692 = vmatprep.subr.mxu0 0.0
    %4693 = vmatpush2.msra.mxu0 0.0
    %4694 = vmatprep.subr.mxu0 0.0
    %4695 = vmatpush2.msra.mxu0 0.0
    %4696 = vmatprep.subr.mxu0 0.0
    %4697 = vmatpush2.msra.mxu0 0.0
    %4698 = vmatprep.subr.mxu0 0.0
    %4699 = vmatpush2.msra.mxu0 0.0
    %4700 = vmatprep.subr.mxu0 0.0
    %4701 = vmatpush2.msra.mxu0 0.0
    %4702 = vmatprep.subr.mxu0 0.0
    %4703 = vmatpush2.msra.mxu0 0.0
    %4704 = vmatprep.subr.mxu0 0.0
    %4705 = vmatpush2.msra.mxu0 0.0
    %4706 = vmatprep.subr.mxu0 0.0
    %4707 = vmatpush2.msra.mxu0 0.0
    %4708 = vmatprep.mubr.f32.mxu0 0.0
    %4709 = vmatmul.mubr.f32.gmra.mxu0 %v4639
    %v4710 = vpop.f32.mrf.mxu0
    %v4711 = vadd.f32 0.0, %v4710
    %v4712 = vpop.f32.mrf.mxu0
    %4713 = vmatprep.mubr.f32.mxu0 0.0
    %4714 = vmatmul.mubr.f32.gmra.mxu0 %v4642
    %v4715 = vpop.f32.mrf.mxu0
    %v4716 = vadd.f32 0.0, %v4715
    %v4717 = vpop.f32.mrf.mxu0
    %4718 = vdwg.mxu0
    %s4719 = sld [smem:[#allocation2]]
    %v4720 = vstv %s4719
    %v4721 = vmul.f32 %v4720, %v4634
    %v4722 = vmul.f32 %v4720, %v4635
    %s4723 = ssub.f32 1.0, %s4719
    %v4724 = vstv %s4723
    %v4725 = vmul.f32 %v4724, %v4711
    %v4726 = vmul.f32 %v4724, %v4716
    %v4727 = vadd.f32 %v4721, %v4725
    %v4728 = vadd.f32 %v4722, %v4726
    %v4729 = vld [vmem:[%s2] sm:$0xff]
    %v4730 = vld [vmem:[%s2 + $0x8] sm:$0xf]
    %v4731 = vld [vmem:[%s5 + $0x3e0] sm:$0xff]
    %v4732 = vld [vmem:[%s5 + $0x3e8] sm:$0xff]
    %v4733 = vld [vmem:[%s5 + $0x3f0] sm:$0xff]
    %v4734 = vld [vmem:[%s5 + $0x3f8] sm:$0xff]
    %v4735 = vld [vmem:[%s5 + $0x400] sm:$0x1]
    %v4736 = vld [vmem:[%s5 + $0x408] sm:$0xff]
    %v4737 = vld [vmem:[%s5 + $0x410] sm:$0xff]
    %v4738 = vld [vmem:[%s5 + $0x418] sm:$0xff]
    %v4739 = vld [vmem:[%s5 + $0x420] sm:$0xff]
    %v4740 = vld [vmem:[%s5 + $0x428] sm:$0x1]
    %v4741 = vlaneseq
    %v4742 = vshrl.u32 %v4741, 7
    %v4743 = vsub.s32 0, %v4742
    %v4744 = vrot.slane %v4735, %v4743
    %v4746 = vsel %vm188, %v4727, 0
    %v4749 = vsel %vm188, %v4728, 0
    %4751 = vmatprep.subr.mxu0 0.0
    %4752 = vmatpush1.msra.mxu0 0.0
    %4753 = vmatprep.subr.mxu0 0.0
    %4754 = vmatpush1.msra.mxu0 0.0
    %4755 = vmatprep.subr.mxu0 0.0
    %4756 = vmatpush1.msra.mxu0 0.0
    %4757 = vmatprep.subr.mxu0 0.0
    %4758 = vmatpush1.msra.mxu0 0.0
    %4759 = vmatprep.subr.mxu0 0.0
    %4760 = vmatpush1.msra.mxu0 0.0
    %4761 = vmatprep.subr.mxu0 0.0
    %4762 = vmatpush1.msra.mxu0 0.0
    %4763 = vmatprep.subr.mxu0 0.0
    %4764 = vmatpush1.msra.mxu0 0.0
    %4765 = vmatprep.subr.mxu0 0.0
    %4766 = vmatpush1.msra.mxu0 0.0
    %4767 = vmatprep.subr.mxu0 0.0
    %4768 = vmatpush1.msra.mxu0 0.0
    %4769 = vmatprep.subr.mxu0 0.0
    %4770 = vmatpush1.msra.mxu0 0.0
    %4771 = vmatprep.subr.mxu0 0.0
    %4772 = vmatpush1.msra.mxu0 0.0
    %4773 = vmatprep.subr.mxu0 0.0
    %4774 = vmatpush1.msra.mxu0 0.0
    %4775 = vmatprep.subr.mxu0 0.0
    %4776 = vmatpush1.msra.mxu0 %v4734
    %4777 = vmatprep.subr.mxu0 0.0
    %4778 = vmatpush1.msra.mxu0 %v4733
    %4779 = vmatprep.subr.mxu0 0.0
    %4780 = vmatpush1.msra.mxu0 %v4732
    %4781 = vmatprep.subr.mxu0 0.0
    %4782 = vmatpush1.msra.mxu0 %v4731
    %4783 = vmatprep.subr.mxu0 0.0
    %4784 = vmatpush2.msra.mxu0 0.0
    %4785 = vmatprep.subr.mxu0 0.0
    %4786 = vmatpush2.msra.mxu0 0.0
    %4787 = vmatprep.subr.mxu0 0.0
    %4788 = vmatpush2.msra.mxu0 0.0
    %4789 = vmatprep.subr.mxu0 0.0
    %4790 = vmatpush2.msra.mxu0 0.0
    %4791 = vmatprep.subr.mxu0 0.0
    %4792 = vmatpush2.msra.mxu0 0.0
    %4793 = vmatprep.subr.mxu0 0.0
    %4794 = vmatpush2.msra.mxu0 0.0
    %4795 = vmatprep.subr.mxu0 0.0
    %4796 = vmatpush2.msra.mxu0 0.0
    %4797 = vmatprep.subr.mxu0 0.0
    %4798 = vmatpush2.msra.mxu0 0.0
    %4799 = vmatprep.subr.mxu0 0.0
    %4800 = vmatpush2.msra.mxu0 0.0
    %4801 = vmatprep.subr.mxu0 0.0
    %4802 = vmatpush2.msra.mxu0 0.0
    %4803 = vmatprep.subr.mxu0 0.0
    %4804 = vmatpush2.msra.mxu0 0.0
    %4805 = vmatprep.subr.mxu0 0.0
    %4806 = vmatpush2.msra.mxu0 0.0
    %4807 = vmatprep.subr.mxu0 0.0
    %4808 = vmatpush2.msra.mxu0 0.0
    %4809 = vmatprep.subr.mxu0 0.0
    %4810 = vmatpush2.msra.mxu0 0.0
    %4811 = vmatprep.subr.mxu0 0.0
    %4812 = vmatpush2.msra.mxu0 0.0
    %4813 = vmatprep.subr.mxu0 0.0
    %4814 = vmatpush2.msra.mxu0 0.0
    %4815 = vmatprep.mubr.f32.mxu0 0.0
    %4816 = vmatmul.mubr.f32.gmra.mxu0 %v4746
    %v4817 = vpop.f32.mrf.mxu0
    %v4818 = vadd.f32 %v4744, %v4817
    %v4819 = vpop.f32.mrf.mxu0
    %4820 = vmatprep.mubr.f32.mxu0 0.0
    %4821 = vmatmul.mubr.f32.gmra.mxu0 %v4749
    %v4822 = vpop.f32.mrf.mxu0
    %v4823 = vadd.f32 %v4744, %v4822
    %v4824 = vpop.f32.mrf.mxu0
    %4825 = vdwg.mxu0
    %4828 = vrot.lane.b32.xlu0 %v4818, 96
    %v4829 = vpop.permute.xlu0 %4828
    %4830 = vrot.lane.b32.xlu0 %v4823, 96
    %v4831 = vpop.permute.xlu0 %4830
    %v4832 = vsel %vm407, %v4818, 0
    %v4834 = vsel %vm407, %v4823, 0
    %v4836 = vsel %vm407, %v4829, 0
    %v4838 = vsel %vm407, %v4831, 0
    %4840 = vmatprep.subr.mxu0 0.0
    %4841 = vmatpush1.xpose.msra.mxu0 0.0
    %4842 = vmatprep.subr.mxu0 0.0
    %4843 = vmatpush1.xpose.msra.mxu0 0.0
    %4844 = vmatprep.subr.mxu0 0.0
    %4845 = vmatpush1.xpose.msra.mxu0 0.0
    %4846 = vmatprep.subr.mxu0 0.0
    %4847 = vmatpush1.xpose.msra.mxu0 0.0
    %4848 = vmatprep.subr.mxu0 0.0
    %4849 = vmatpush1.xpose.msra.mxu0 0.0
    %4850 = vmatprep.subr.mxu0 0.0
    %4851 = vmatpush1.xpose.msra.mxu0 0.0
    %4852 = vmatprep.subr.mxu0 0.0
    %4853 = vmatpush1.xpose.msra.mxu0 0.0
    %4854 = vmatprep.subr.mxu0 0.0
    %4855 = vmatpush1.xpose.msra.mxu0 0.0
    %4856 = vmatprep.subr.mxu0 0.0
    %4857 = vmatpush1.xpose.msra.mxu0 0.0
    %4858 = vmatprep.subr.mxu0 0.0
    %4859 = vmatpush1.xpose.msra.mxu0 0.0
    %4860 = vmatprep.subr.mxu0 0.0
    %4861 = vmatpush1.xpose.msra.mxu0 0.0
    %4862 = vmatprep.subr.mxu0 0.0
    %4863 = vmatpush1.xpose.msra.mxu0 0.0
    %4864 = vmatprep.subr.mxu0 0.0
    %4865 = vmatpush1.xpose.msra.mxu0 0.0
    %4866 = vmatprep.subr.mxu0 0.0
    %4867 = vmatpush1.xpose.msra.mxu0 0.0
    %4868 = vmatprep.subr.mxu0 0.0
    %4869 = vmatpush1.xpose.msra.mxu0 %v4838
    %4870 = vmatprep.subr.mxu0 0.0
    %4871 = vmatpush1.xpose.msra.mxu0 %v4836
    %4872 = vmatprep.subr.mxu0 0.0
    %4873 = vmatpush2.xpose.msra.mxu0 0.0
    %4874 = vmatprep.subr.mxu0 0.0
    %4875 = vmatpush2.xpose.msra.mxu0 0.0
    %4876 = vmatprep.subr.mxu0 0.0
    %4877 = vmatpush2.xpose.msra.mxu0 0.0
    %4878 = vmatprep.subr.mxu0 0.0
    %4879 = vmatpush2.xpose.msra.mxu0 0.0
    %4880 = vmatprep.subr.mxu0 0.0
    %4881 = vmatpush2.xpose.msra.mxu0 0.0
    %4882 = vmatprep.subr.mxu0 0.0
    %4883 = vmatpush2.xpose.msra.mxu0 0.0
    %4884 = vmatprep.subr.mxu0 0.0
    %4885 = vmatpush2.xpose.msra.mxu0 0.0
    %4886 = vmatprep.subr.mxu0 0.0
    %4887 = vmatpush2.xpose.msra.mxu0 0.0
    %4888 = vmatprep.subr.mxu0 0.0
    %4889 = vmatpush2.xpose.msra.mxu0 0.0
    %4890 = vmatprep.subr.mxu0 0.0
    %4891 = vmatpush2.xpose.msra.mxu0 0.0
    %4892 = vmatprep.subr.mxu0 0.0
    %4893 = vmatpush2.xpose.msra.mxu0 0.0
    %4894 = vmatprep.subr.mxu0 0.0
    %4895 = vmatpush2.xpose.msra.mxu0 0.0
    %4896 = vmatprep.subr.mxu0 0.0
    %4897 = vmatpush2.xpose.msra.mxu0 0.0
    %4898 = vmatprep.subr.mxu0 0.0
    %4899 = vmatpush2.xpose.msra.mxu0 0.0
    %4900 = vmatprep.subr.mxu0 0.0
    %4901 = vmatpush2.xpose.msra.mxu0 0.0
    %4902 = vmatprep.subr.mxu0 0.0
    %4903 = vmatpush2.xpose.msra.mxu0 0.0
    %4904 = vmatprep.mubr.f32.mxu0 0.0
    %4905 = vmatmul.mubr.f32.gmra.mxu0 %v4832
    %v4906 = vpop.f32.mrf.mxu0
    %v4907 = vadd.f32 0.0, %v4906
    %v4908 = vpop.f32.mrf.mxu0
    %4909 = vmatprep.mubr.f32.mxu0 0.0
    %4910 = vmatmul.mubr.f32.gmra.mxu0 %v4834
    %v4911 = vpop.f32.mrf.mxu0
    %v4912 = vadd.f32 0.0, %v4911
    %v4913 = vpop.f32.mrf.mxu0
    %4914 = vdwg.mxu0
    %v4915 = vmul.f32 %v4907, 0.35355338
    %v4916 = vmul.f32 %v4912, 0.35355338
    %v4917 = vadd.f32 %v4915, %v4729
    %v4918 = vadd.f32 %v4916, %v4730
    %vm4919 = vcmask 97280
    %v4920 = vsel %vm4919, %v4917, -inf
    %4921 = vmax.xlane.f32.xlu0 %v4920
    %v4922 = vpop.xlane.xlu0 %4921
    %vm4923 = vcmask 93184
    %v4924 = vsel %vm4923, %v4918, -inf
    %4925 = vmax.xlane.f32.xlu0 %v4924
    %v4926 = vpop.xlane.xlu0 %4925
    %v4927 = vsub.f32 %v4917, %v4922
    %v4928 = vsub.f32 %v4918, %v4926
    %v4929 = vmul.f32 %v4927, 1.442695
    %v4930 = vpow.pop %v4929
    %v4931 = vmul.f32 %v4928, 1.442695
    %v4932 = vpow.pop %v4931
    %v4933 = vsel %vm4919, %v4930, 0.0
    %4934 = vadd.xlane.f32.xlu0 %v4933
    %v4935 = vpop.xlane.xlu0 %4934
    %v4936 = vsel %vm4923, %v4932, 0.0
    %4937 = vadd.xlane.f32.xlu0 %v4936
    %v4938 = vpop.xlane.xlu0 %4937
    %v4939 = vrcp.pop %v4935
    %v4940 = vrcp.pop %v4938
    %v4941 = vmul.f32 %v4930, %v4939
    %v4942 = vmul.f32 %v4932, %v4940
    %4943 = vrot.lane.b32.xlu0 %v4818, 64
    %v4944 = vpop.permute.xlu0 %4943
    %4945 = vrot.lane.b32.xlu0 %v4823, 64
    %v4946 = vpop.permute.xlu0 %4945
    %v4949 = vsel %vm4919, %v4941, 0
    %v4952 = vsel %vm4919, %v4942, 0
    %vm4954 = vcmask 1043456
    %v4955 = vsel %vm4954, %v4946, 0
    %4957 = vmatprep.subr.mxu0 0.0
    %4958 = vmatpush1.msra.mxu0 0.0
    %4959 = vmatprep.subr.mxu0 0.0
    %4960 = vmatpush1.msra.mxu0 0.0
    %4961 = vmatprep.subr.mxu0 0.0
    %4962 = vmatpush1.msra.mxu0 0.0
    %4963 = vmatprep.subr.mxu0 0.0
    %4964 = vmatpush1.msra.mxu0 0.0
    %4965 = vmatprep.subr.mxu0 0.0
    %4966 = vmatpush1.msra.mxu0 0.0
    %4967 = vmatprep.subr.mxu0 0.0
    %4968 = vmatpush1.msra.mxu0 0.0
    %4969 = vmatprep.subr.mxu0 0.0
    %4970 = vmatpush1.msra.mxu0 0.0
    %4971 = vmatprep.subr.mxu0 0.0
    %4972 = vmatpush1.msra.mxu0 0.0
    %4973 = vmatprep.subr.mxu0 0.0
    %4974 = vmatpush1.msra.mxu0 0.0
    %4975 = vmatprep.subr.mxu0 0.0
    %4976 = vmatpush1.msra.mxu0 0.0
    %4977 = vmatprep.subr.mxu0 0.0
    %4978 = vmatpush1.msra.mxu0 0.0
    %4979 = vmatprep.subr.mxu0 0.0
    %4980 = vmatpush1.msra.mxu0 0.0
    %4981 = vmatprep.subr.mxu0 0.0
    %4982 = vmatpush1.msra.mxu0 0.0
    %4983 = vmatprep.subr.mxu0 0.0
    %4984 = vmatpush1.msra.mxu0 0.0
    %4985 = vmatprep.subr.mxu0 0.0
    %4986 = vmatpush1.msra.mxu0 %v4955
    %4987 = vmatprep.subr.mxu0 0.0
    %4988 = vmatpush1.msra.mxu0 %v4944
    %4989 = vmatprep.subr.mxu0 0.0
    %4990 = vmatpush2.msra.mxu0 0.0
    %4991 = vmatprep.subr.mxu0 0.0
    %4992 = vmatpush2.msra.mxu0 0.0
    %4993 = vmatprep.subr.mxu0 0.0
    %4994 = vmatpush2.msra.mxu0 0.0
    %4995 = vmatprep.subr.mxu0 0.0
    %4996 = vmatpush2.msra.mxu0 0.0
    %4997 = vmatprep.subr.mxu0 0.0
    %4998 = vmatpush2.msra.mxu0 0.0
    %4999 = vmatprep.subr.mxu0 0.0
    %5000 = vmatpush2.msra.mxu0 0.0
    %5001 = vmatprep.subr.mxu0 0.0
    %5002 = vmatpush2.msra.mxu0 0.0
    %5003 = vmatprep.subr.mxu0 0.0
    %5004 = vmatpush2.msra.mxu0 0.0
    %5005 = vmatprep.subr.mxu0 0.0
    %5006 = vmatpush2.msra.mxu0 0.0
    %5007 = vmatprep.subr.mxu0 0.0
    %5008 = vmatpush2.msra.mxu0 0.0
    %5009 = vmatprep.subr.mxu0 0.0
    %5010 = vmatpush2.msra.mxu0 0.0
    %5011 = vmatprep.subr.mxu0 0.0
    %5012 = vmatpush2.msra.mxu0 0.0
    %5013 = vmatprep.subr.mxu0 0.0
    %5014 = vmatpush2.msra.mxu0 0.0
    %5015 = vmatprep.subr.mxu0 0.0
    %5016 = vmatpush2.msra.mxu0 0.0
    %5017 = vmatprep.subr.mxu0 0.0
    %5018 = vmatpush2.msra.mxu0 0.0
    %5019 = vmatprep.subr.mxu0 0.0
    %5020 = vmatpush2.msra.mxu0 0.0
    %5021 = vmatprep.mubr.f32.mxu0 0.0
    %5022 = vmatmul.mubr.f32.gmra.mxu0 %v4949
    %v5023 = vpop.f32.mrf.mxu0
    %v5024 = vadd.f32 0.0, %v5023
    %v5025 = vpop.f32.mrf.mxu0
    %5026 = vmatprep.mubr.f32.mxu0 0.0
    %5027 = vmatmul.mubr.f32.gmra.mxu0 %v4952
    %v5028 = vpop.f32.mrf.mxu0
    %v5029 = vadd.f32 0.0, %v5028
    %v5030 = vpop.f32.mrf.mxu0
    %5031 = vdwg.mxu0
    %5032 = vrot.lane.b32.xlu0 %v4818, 120
    %v5033 = vpop.permute.xlu0 %5032
    %5034 = vrot.lane.b32.xlu0 %v4823, 120
    %v5035 = vpop.permute.xlu0 %5034
    %5036 = vrot.lane.b32.xlu0 %v4818, 88
    %v5037 = vpop.permute.xlu0 %5036
    %5038 = vrot.lane.b32.xlu0 %v4823, 88
    %v5039 = vpop.permute.xlu0 %5038
    %v5040 = vsel %vm407, %v5033, 0
    %v5042 = vsel %vm407, %v5035, 0
    %v5044 = vsel %vm407, %v5037, 0
    %v5046 = vsel %vm407, %v5039, 0
    %5048 = vmatprep.subr.mxu0 0.0
    %5049 = vmatpush1.xpose.msra.mxu0 0.0
    %5050 = vmatprep.subr.mxu0 0.0
    %5051 = vmatpush1.xpose.msra.mxu0 0.0
    %5052 = vmatprep.subr.mxu0 0.0
    %5053 = vmatpush1.xpose.msra.mxu0 0.0
    %5054 = vmatprep.subr.mxu0 0.0
    %5055 = vmatpush1.xpose.msra.mxu0 0.0
    %5056 = vmatprep.subr.mxu0 0.0
    %5057 = vmatpush1.xpose.msra.mxu0 0.0
    %5058 = vmatprep.subr.mxu0 0.0
    %5059 = vmatpush1.xpose.msra.mxu0 0.0
    %5060 = vmatprep.subr.mxu0 0.0
    %5061 = vmatpush1.xpose.msra.mxu0 0.0
    %5062 = vmatprep.subr.mxu0 0.0
    %5063 = vmatpush1.xpose.msra.mxu0 0.0
    %5064 = vmatprep.subr.mxu0 0.0
    %5065 = vmatpush1.xpose.msra.mxu0 0.0
    %5066 = vmatprep.subr.mxu0 0.0
    %5067 = vmatpush1.xpose.msra.mxu0 0.0
    %5068 = vmatprep.subr.mxu0 0.0
    %5069 = vmatpush1.xpose.msra.mxu0 0.0
    %5070 = vmatprep.subr.mxu0 0.0
    %5071 = vmatpush1.xpose.msra.mxu0 0.0
    %5072 = vmatprep.subr.mxu0 0.0
    %5073 = vmatpush1.xpose.msra.mxu0 0.0
    %5074 = vmatprep.subr.mxu0 0.0
    %5075 = vmatpush1.xpose.msra.mxu0 0.0
    %5076 = vmatprep.subr.mxu0 0.0
    %5077 = vmatpush1.xpose.msra.mxu0 %v5046
    %5078 = vmatprep.subr.mxu0 0.0
    %5079 = vmatpush1.xpose.msra.mxu0 %v5044
    %5080 = vmatprep.subr.mxu0 0.0
    %5081 = vmatpush2.xpose.msra.mxu0 0.0
    %5082 = vmatprep.subr.mxu0 0.0
    %5083 = vmatpush2.xpose.msra.mxu0 0.0
    %5084 = vmatprep.subr.mxu0 0.0
    %5085 = vmatpush2.xpose.msra.mxu0 0.0
    %5086 = vmatprep.subr.mxu0 0.0
    %5087 = vmatpush2.xpose.msra.mxu0 0.0
    %5088 = vmatprep.subr.mxu0 0.0
    %5089 = vmatpush2.xpose.msra.mxu0 0.0
    %5090 = vmatprep.subr.mxu0 0.0
    %5091 = vmatpush2.xpose.msra.mxu0 0.0
    %5092 = vmatprep.subr.mxu0 0.0
    %5093 = vmatpush2.xpose.msra.mxu0 0.0
    %5094 = vmatprep.subr.mxu0 0.0
    %5095 = vmatpush2.xpose.msra.mxu0 0.0
    %5096 = vmatprep.subr.mxu0 0.0
    %5097 = vmatpush2.xpose.msra.mxu0 0.0
    %5098 = vmatprep.subr.mxu0 0.0
    %5099 = vmatpush2.xpose.msra.mxu0 0.0
    %5100 = vmatprep.subr.mxu0 0.0
    %5101 = vmatpush2.xpose.msra.mxu0 0.0
    %5102 = vmatprep.subr.mxu0 0.0
    %5103 = vmatpush2.xpose.msra.mxu0 0.0
    %5104 = vmatprep.subr.mxu0 0.0
    %5105 = vmatpush2.xpose.msra.mxu0 0.0
    %5106 = vmatprep.subr.mxu0 0.0
    %5107 = vmatpush2.xpose.msra.mxu0 0.0
    %5108 = vmatprep.subr.mxu0 0.0
    %5109 = vmatpush2.xpose.msra.mxu0 0.0
    %5110 = vmatprep.subr.mxu0 0.0
    %5111 = vmatpush2.xpose.msra.mxu0 0.0
    %5112 = vmatprep.mubr.f32.mxu0 0.0
    %5113 = vmatmul.mubr.f32.gmra.mxu0 %v5040
    %v5114 = vpop.f32.mrf.mxu0
    %v5115 = vadd.f32 0.0, %v5114
    %v5116 = vpop.f32.mrf.mxu0
    %5117 = vmatprep.mubr.f32.mxu0 0.0
    %5118 = vmatmul.mubr.f32.gmra.mxu0 %v5042
    %v5119 = vpop.f32.mrf.mxu0
    %v5120 = vadd.f32 0.0, %v5119
    %v5121 = vpop.f32.mrf.mxu0
    %5122 = vdwg.mxu0
    %v5123 = vmul.f32 %v5115, 0.35355338
    %v5124 = vmul.f32 %v5120, 0.35355338
    %v5125 = vadd.f32 %v5123, %v4729
    %v5126 = vadd.f32 %v5124, %v4730
    %v5127 = vsel %vm4919, %v5125, -inf
    %5128 = vmax.xlane.f32.xlu0 %v5127
    %v5129 = vpop.xlane.xlu0 %5128
    %v5130 = vsel %vm4923, %v5126, -inf
    %5131 = vmax.xlane.f32.xlu0 %v5130
    %v5132 = vpop.xlane.xlu0 %5131
    %v5133 = vsub.f32 %v5125, %v5129
    %v5134 = vsub.f32 %v5126, %v5132
    %v5135 = vmul.f32 %v5133, 1.442695
    %v5136 = vpow.pop %v5135
    %v5137 = vmul.f32 %v5134, 1.442695
    %v5138 = vpow.pop %v5137
    %v5139 = vsel %vm4919, %v5136, 0.0
    %5140 = vadd.xlane.f32.xlu0 %v5139
    %v5141 = vpop.xlane.xlu0 %5140
    %v5142 = vsel %vm4923, %v5138, 0.0
    %5143 = vadd.xlane.f32.xlu0 %v5142
    %v5144 = vpop.xlane.xlu0 %5143
    %v5145 = vrcp.pop %v5141
    %v5146 = vrcp.pop %v5144
    %v5147 = vmul.f32 %v5136, %v5145
    %v5148 = vmul.f32 %v5138, %v5146
    %5149 = vrot.lane.b32.xlu0 %v4818, 56
    %v5150 = vpop.permute.xlu0 %5149
    %5151 = vrot.lane.b32.xlu0 %v4823, 56
    %v5152 = vpop.permute.xlu0 %5151
    %v5155 = vsel %vm4919, %v5147, 0
    %v5158 = vsel %vm4919, %v5148, 0
    %v5160 = vsel %vm4954, %v5152, 0
    %5162 = vmatprep.subr.mxu0 0.0
    %5163 = vmatpush1.msra.mxu0 0.0
    %5164 = vmatprep.subr.mxu0 0.0
    %5165 = vmatpush1.msra.mxu0 0.0
    %5166 = vmatprep.subr.mxu0 0.0
    %5167 = vmatpush1.msra.mxu0 0.0
    %5168 = vmatprep.subr.mxu0 0.0
    %5169 = vmatpush1.msra.mxu0 0.0
    %5170 = vmatprep.subr.mxu0 0.0
    %5171 = vmatpush1.msra.mxu0 0.0
    %5172 = vmatprep.subr.mxu0 0.0
    %5173 = vmatpush1.msra.mxu0 0.0
    %5174 = vmatprep.subr.mxu0 0.0
    %5175 = vmatpush1.msra.mxu0 0.0
    %5176 = vmatprep.subr.mxu0 0.0
    %5177 = vmatpush1.msra.mxu0 0.0
    %5178 = vmatprep.subr.mxu0 0.0
    %5179 = vmatpush1.msra.mxu0 0.0
    %5180 = vmatprep.subr.mxu0 0.0
    %5181 = vmatpush1.msra.mxu0 0.0
    %5182 = vmatprep.subr.mxu0 0.0
    %5183 = vmatpush1.msra.mxu0 0.0
    %5184 = vmatprep.subr.mxu0 0.0
    %5185 = vmatpush1.msra.mxu0 0.0
    %5186 = vmatprep.subr.mxu0 0.0
    %5187 = vmatpush1.msra.mxu0 0.0
    %5188 = vmatprep.subr.mxu0 0.0
    %5189 = vmatpush1.msra.mxu0 0.0
    %5190 = vmatprep.subr.mxu0 0.0
    %5191 = vmatpush1.msra.mxu0 %v5160
    %5192 = vmatprep.subr.mxu0 0.0
    %5193 = vmatpush1.msra.mxu0 %v5150
    %5194 = vmatprep.subr.mxu0 0.0
    %5195 = vmatpush2.msra.mxu0 0.0
    %5196 = vmatprep.subr.mxu0 0.0
    %5197 = vmatpush2.msra.mxu0 0.0
    %5198 = vmatprep.subr.mxu0 0.0
    %5199 = vmatpush2.msra.mxu0 0.0
    %5200 = vmatprep.subr.mxu0 0.0
    %5201 = vmatpush2.msra.mxu0 0.0
    %5202 = vmatprep.subr.mxu0 0.0
    %5203 = vmatpush2.msra.mxu0 0.0
    %5204 = vmatprep.subr.mxu0 0.0
    %5205 = vmatpush2.msra.mxu0 0.0
    %5206 = vmatprep.subr.mxu0 0.0
    %5207 = vmatpush2.msra.mxu0 0.0
    %5208 = vmatprep.subr.mxu0 0.0
    %5209 = vmatpush2.msra.mxu0 0.0
    %5210 = vmatprep.subr.mxu0 0.0
    %5211 = vmatpush2.msra.mxu0 0.0
    %5212 = vmatprep.subr.mxu0 0.0
    %5213 = vmatpush2.msra.mxu0 0.0
    %5214 = vmatprep.subr.mxu0 0.0
    %5215 = vmatpush2.msra.mxu0 0.0
    %5216 = vmatprep.subr.mxu0 0.0
    %5217 = vmatpush2.msra.mxu0 0.0
    %5218 = vmatprep.subr.mxu0 0.0
    %5219 = vmatpush2.msra.mxu0 0.0
    %5220 = vmatprep.subr.mxu0 0.0
    %5221 = vmatpush2.msra.mxu0 0.0
    %5222 = vmatprep.subr.mxu0 0.0
    %5223 = vmatpush2.msra.mxu0 0.0
    %5224 = vmatprep.subr.mxu0 0.0
    %5225 = vmatpush2.msra.mxu0 0.0
    %5226 = vmatprep.mubr.f32.mxu0 0.0
    %5227 = vmatmul.mubr.f32.gmra.mxu0 %v5155
    %v5228 = vpop.f32.mrf.mxu0
    %v5229 = vadd.f32 0.0, %v5228
    %v5230 = vpop.f32.mrf.mxu0
    %5231 = vmatprep.mubr.f32.mxu0 0.0
    %5232 = vmatmul.mubr.f32.gmra.mxu0 %v5158
    %v5233 = vpop.f32.mrf.mxu0
    %v5234 = vadd.f32 0.0, %v5233
    %v5235 = vpop.f32.mrf.mxu0
    %5236 = vdwg.mxu0
    %5237 = vrot.lane.b32.xlu0 %v4818, 112
    %v5238 = vpop.permute.xlu0 %5237
    %5239 = vrot.lane.b32.xlu0 %v4823, 112
    %v5240 = vpop.permute.xlu0 %5239
    %5241 = vrot.lane.b32.xlu0 %v4818, 80
    %v5242 = vpop.permute.xlu0 %5241
    %5243 = vrot.lane.b32.xlu0 %v4823, 80
    %v5244 = vpop.permute.xlu0 %5243
    %v5245 = vsel %vm407, %v5238, 0
    %v5247 = vsel %vm407, %v5240, 0
    %v5249 = vsel %vm407, %v5242, 0
    %v5251 = vsel %vm407, %v5244, 0
    %5253 = vmatprep.subr.mxu0 0.0
    %5254 = vmatpush1.xpose.msra.mxu0 0.0
    %5255 = vmatprep.subr.mxu0 0.0
    %5256 = vmatpush1.xpose.msra.mxu0 0.0
    %5257 = vmatprep.subr.mxu0 0.0
    %5258 = vmatpush1.xpose.msra.mxu0 0.0
    %5259 = vmatprep.subr.mxu0 0.0
    %5260 = vmatpush1.xpose.msra.mxu0 0.0
    %5261 = vmatprep.subr.mxu0 0.0
    %5262 = vmatpush1.xpose.msra.mxu0 0.0
    %5263 = vmatprep.subr.mxu0 0.0
    %5264 = vmatpush1.xpose.msra.mxu0 0.0
    %5265 = vmatprep.subr.mxu0 0.0
    %5266 = vmatpush1.xpose.msra.mxu0 0.0
    %5267 = vmatprep.subr.mxu0 0.0
    %5268 = vmatpush1.xpose.msra.mxu0 0.0
    %5269 = vmatprep.subr.mxu0 0.0
    %5270 = vmatpush1.xpose.msra.mxu0 0.0
    %5271 = vmatprep.subr.mxu0 0.0
    %5272 = vmatpush1.xpose.msra.mxu0 0.0
    %5273 = vmatprep.subr.mxu0 0.0
    %5274 = vmatpush1.xpose.msra.mxu0 0.0
    %5275 = vmatprep.subr.mxu0 0.0
    %5276 = vmatpush1.xpose.msra.mxu0 0.0
    %5277 = vmatprep.subr.mxu0 0.0
    %5278 = vmatpush1.xpose.msra.mxu0 0.0
    %5279 = vmatprep.subr.mxu0 0.0
    %5280 = vmatpush1.xpose.msra.mxu0 0.0
    %5281 = vmatprep.subr.mxu0 0.0
    %5282 = vmatpush1.xpose.msra.mxu0 %v5251
    %5283 = vmatprep.subr.mxu0 0.0
    %5284 = vmatpush1.xpose.msra.mxu0 %v5249
    %5285 = vmatprep.subr.mxu0 0.0
    %5286 = vmatpush2.xpose.msra.mxu0 0.0
    %5287 = vmatprep.subr.mxu0 0.0
    %5288 = vmatpush2.xpose.msra.mxu0 0.0
    %5289 = vmatprep.subr.mxu0 0.0
    %5290 = vmatpush2.xpose.msra.mxu0 0.0
    %5291 = vmatprep.subr.mxu0 0.0
    %5292 = vmatpush2.xpose.msra.mxu0 0.0
    %5293 = vmatprep.subr.mxu0 0.0
    %5294 = vmatpush2.xpose.msra.mxu0 0.0
    %5295 = vmatprep.subr.mxu0 0.0
    %5296 = vmatpush2.xpose.msra.mxu0 0.0
    %5297 = vmatprep.subr.mxu0 0.0
    %5298 = vmatpush2.xpose.msra.mxu0 0.0
    %5299 = vmatprep.subr.mxu0 0.0
    %5300 = vmatpush2.xpose.msra.mxu0 0.0
    %5301 = vmatprep.subr.mxu0 0.0
    %5302 = vmatpush2.xpose.msra.mxu0 0.0
    %5303 = vmatprep.subr.mxu0 0.0
    %5304 = vmatpush2.xpose.msra.mxu0 0.0
    %5305 = vmatprep.subr.mxu0 0.0
    %5306 = vmatpush2.xpose.msra.mxu0 0.0
    %5307 = vmatprep.subr.mxu0 0.0
    %5308 = vmatpush2.xpose.msra.mxu0 0.0
    %5309 = vmatprep.subr.mxu0 0.0
    %5310 = vmatpush2.xpose.msra.mxu0 0.0
    %5311 = vmatprep.subr.mxu0 0.0
    %5312 = vmatpush2.xpose.msra.mxu0 0.0
    %5313 = vmatprep.subr.mxu0 0.0
    %5314 = vmatpush2.xpose.msra.mxu0 0.0
    %5315 = vmatprep.subr.mxu0 0.0
    %5316 = vmatpush2.xpose.msra.mxu0 0.0
    %5317 = vmatprep.mubr.f32.mxu0 0.0
    %5318 = vmatmul.mubr.f32.gmra.mxu0 %v5245
    %v5319 = vpop.f32.mrf.mxu0
    %v5320 = vadd.f32 0.0, %v5319
    %v5321 = vpop.f32.mrf.mxu0
    %5322 = vmatprep.mubr.f32.mxu0 0.0
    %5323 = vmatmul.mubr.f32.gmra.mxu0 %v5247
    %v5324 = vpop.f32.mrf.mxu0
    %v5325 = vadd.f32 0.0, %v5324
    %v5326 = vpop.f32.mrf.mxu0
    %5327 = vdwg.mxu0
    %v5328 = vmul.f32 %v5320, 0.35355338
    %v5329 = vmul.f32 %v5325, 0.35355338
    %v5330 = vadd.f32 %v5328, %v4729
    %v5331 = vadd.f32 %v5329, %v4730
    %v5332 = vsel %vm4919, %v5330, -inf
    %5333 = vmax.xlane.f32.xlu0 %v5332
    %v5334 = vpop.xlane.xlu0 %5333
    %v5335 = vsel %vm4923, %v5331, -inf
    %5336 = vmax.xlane.f32.xlu0 %v5335
    %v5337 = vpop.xlane.xlu0 %5336
    %v5338 = vsub.f32 %v5330, %v5334
    %v5339 = vsub.f32 %v5331, %v5337
    %v5340 = vmul.f32 %v5338, 1.442695
    %v5341 = vpow.pop %v5340
    %v5342 = vmul.f32 %v5339, 1.442695
    %v5343 = vpow.pop %v5342
    %v5344 = vsel %vm4919, %v5341, 0.0
    %5345 = vadd.xlane.f32.xlu0 %v5344
    %v5346 = vpop.xlane.xlu0 %5345
    %v5347 = vsel %vm4923, %v5343, 0.0
    %5348 = vadd.xlane.f32.xlu0 %v5347
    %v5349 = vpop.xlane.xlu0 %5348
    %v5350 = vrcp.pop %v5346
    %v5351 = vrcp.pop %v5349
    %v5352 = vmul.f32 %v5341, %v5350
    %v5353 = vmul.f32 %v5343, %v5351
    %5354 = vrot.lane.b32.xlu0 %v4818, 48
    %v5355 = vpop.permute.xlu0 %5354
    %5356 = vrot.lane.b32.xlu0 %v4823, 48
    %v5357 = vpop.permute.xlu0 %5356
    %v5360 = vsel %vm4919, %v5352, 0
    %v5363 = vsel %vm4919, %v5353, 0
    %v5365 = vsel %vm4954, %v5357, 0
    %5367 = vmatprep.subr.mxu0 0.0
    %5368 = vmatpush1.msra.mxu0 0.0
    %5369 = vmatprep.subr.mxu0 0.0
    %5370 = vmatpush1.msra.mxu0 0.0
    %5371 = vmatprep.subr.mxu0 0.0
    %5372 = vmatpush1.msra.mxu0 0.0
    %5373 = vmatprep.subr.mxu0 0.0
    %5374 = vmatpush1.msra.mxu0 0.0
    %5375 = vmatprep.subr.mxu0 0.0
    %5376 = vmatpush1.msra.mxu0 0.0
    %5377 = vmatprep.subr.mxu0 0.0
    %5378 = vmatpush1.msra.mxu0 0.0
    %5379 = vmatprep.subr.mxu0 0.0
    %5380 = vmatpush1.msra.mxu0 0.0
    %5381 = vmatprep.subr.mxu0 0.0
    %5382 = vmatpush1.msra.mxu0 0.0
    %5383 = vmatprep.subr.mxu0 0.0
    %5384 = vmatpush1.msra.mxu0 0.0
    %5385 = vmatprep.subr.mxu0 0.0
    %5386 = vmatpush1.msra.mxu0 0.0
    %5387 = vmatprep.subr.mxu0 0.0
    %5388 = vmatpush1.msra.mxu0 0.0
    %5389 = vmatprep.subr.mxu0 0.0
    %5390 = vmatpush1.msra.mxu0 0.0
    %5391 = vmatprep.subr.mxu0 0.0
    %5392 = vmatpush1.msra.mxu0 0.0
    %5393 = vmatprep.subr.mxu0 0.0
    %5394 = vmatpush1.msra.mxu0 0.0
    %5395 = vmatprep.subr.mxu0 0.0
    %5396 = vmatpush1.msra.mxu0 %v5365
    %5397 = vmatprep.subr.mxu0 0.0
    %5398 = vmatpush1.msra.mxu0 %v5355
    %5399 = vmatprep.subr.mxu0 0.0
    %5400 = vmatpush2.msra.mxu0 0.0
    %5401 = vmatprep.subr.mxu0 0.0
    %5402 = vmatpush2.msra.mxu0 0.0
    %5403 = vmatprep.subr.mxu0 0.0
    %5404 = vmatpush2.msra.mxu0 0.0
    %5405 = vmatprep.subr.mxu0 0.0
    %5406 = vmatpush2.msra.mxu0 0.0
    %5407 = vmatprep.subr.mxu0 0.0
    %5408 = vmatpush2.msra.mxu0 0.0
    %5409 = vmatprep.subr.mxu0 0.0
    %5410 = vmatpush2.msra.mxu0 0.0
    %5411 = vmatprep.subr.mxu0 0.0
    %5412 = vmatpush2.msra.mxu0 0.0
    %5413 = vmatprep.subr.mxu0 0.0
    %5414 = vmatpush2.msra.mxu0 0.0
    %5415 = vmatprep.subr.mxu0 0.0
    %5416 = vmatpush2.msra.mxu0 0.0
    %5417 = vmatprep.subr.mxu0 0.0
    %5418 = vmatpush2.msra.mxu0 0.0
    %5419 = vmatprep.subr.mxu0 0.0
    %5420 = vmatpush2.msra.mxu0 0.0
    %5421 = vmatprep.subr.mxu0 0.0
    %5422 = vmatpush2.msra.mxu0 0.0
    %5423 = vmatprep.subr.mxu0 0.0
    %5424 = vmatpush2.msra.mxu0 0.0
    %5425 = vmatprep.subr.mxu0 0.0
    %5426 = vmatpush2.msra.mxu0 0.0
    %5427 = vmatprep.subr.mxu0 0.0
    %5428 = vmatpush2.msra.mxu0 0.0
    %5429 = vmatprep.subr.mxu0 0.0
    %5430 = vmatpush2.msra.mxu0 0.0
    %5431 = vmatprep.mubr.f32.mxu0 0.0
    %5432 = vmatmul.mubr.f32.gmra.mxu0 %v5360
    %v5433 = vpop.f32.mrf.mxu0
    %v5434 = vadd.f32 0.0, %v5433
    %v5435 = vpop.f32.mrf.mxu0
    %5436 = vmatprep.mubr.f32.mxu0 0.0
    %5437 = vmatmul.mubr.f32.gmra.mxu0 %v5363
    %v5438 = vpop.f32.mrf.mxu0
    %v5439 = vadd.f32 0.0, %v5438
    %v5440 = vpop.f32.mrf.mxu0
    %5441 = vdwg.mxu0
    %5442 = vrot.lane.b32.xlu0 %v4818, 104
    %v5443 = vpop.permute.xlu0 %5442
    %5444 = vrot.lane.b32.xlu0 %v4823, 104
    %v5445 = vpop.permute.xlu0 %5444
    %5446 = vrot.lane.b32.xlu0 %v4818, 72
    %v5447 = vpop.permute.xlu0 %5446
    %5448 = vrot.lane.b32.xlu0 %v4823, 72
    %v5449 = vpop.permute.xlu0 %5448
    %v5450 = vsel %vm407, %v5443, 0
    %v5452 = vsel %vm407, %v5445, 0
    %v5454 = vsel %vm407, %v5447, 0
    %v5456 = vsel %vm407, %v5449, 0
    %5458 = vmatprep.subr.mxu0 0.0
    %5459 = vmatpush1.xpose.msra.mxu0 0.0
    %5460 = vmatprep.subr.mxu0 0.0
    %5461 = vmatpush1.xpose.msra.mxu0 0.0
    %5462 = vmatprep.subr.mxu0 0.0
    %5463 = vmatpush1.xpose.msra.mxu0 0.0
    %5464 = vmatprep.subr.mxu0 0.0
    %5465 = vmatpush1.xpose.msra.mxu0 0.0
    %5466 = vmatprep.subr.mxu0 0.0
    %5467 = vmatpush1.xpose.msra.mxu0 0.0
    %5468 = vmatprep.subr.mxu0 0.0
    %5469 = vmatpush1.xpose.msra.mxu0 0.0
    %5470 = vmatprep.subr.mxu0 0.0
    %5471 = vmatpush1.xpose.msra.mxu0 0.0
    %5472 = vmatprep.subr.mxu0 0.0
    %5473 = vmatpush1.xpose.msra.mxu0 0.0
    %5474 = vmatprep.subr.mxu0 0.0
    %5475 = vmatpush1.xpose.msra.mxu0 0.0
    %5476 = vmatprep.subr.mxu0 0.0
    %5477 = vmatpush1.xpose.msra.mxu0 0.0
    %5478 = vmatprep.subr.mxu0 0.0
    %5479 = vmatpush1.xpose.msra.mxu0 0.0
    %5480 = vmatprep.subr.mxu0 0.0
    %5481 = vmatpush1.xpose.msra.mxu0 0.0
    %5482 = vmatprep.subr.mxu0 0.0
    %5483 = vmatpush1.xpose.msra.mxu0 0.0
    %5484 = vmatprep.subr.mxu0 0.0
    %5485 = vmatpush1.xpose.msra.mxu0 0.0
    %5486 = vmatprep.subr.mxu0 0.0
    %5487 = vmatpush1.xpose.msra.mxu0 %v5456
    %5488 = vmatprep.subr.mxu0 0.0
    %5489 = vmatpush1.xpose.msra.mxu0 %v5454
    %5490 = vmatprep.subr.mxu0 0.0
    %5491 = vmatpush2.xpose.msra.mxu0 0.0
    %5492 = vmatprep.subr.mxu0 0.0
    %5493 = vmatpush2.xpose.msra.mxu0 0.0
    %5494 = vmatprep.subr.mxu0 0.0
    %5495 = vmatpush2.xpose.msra.mxu0 0.0
    %5496 = vmatprep.subr.mxu0 0.0
    %5497 = vmatpush2.xpose.msra.mxu0 0.0
    %5498 = vmatprep.subr.mxu0 0.0
    %5499 = vmatpush2.xpose.msra.mxu0 0.0
    %5500 = vmatprep.subr.mxu0 0.0
    %5501 = vmatpush2.xpose.msra.mxu0 0.0
    %5502 = vmatprep.subr.mxu0 0.0
    %5503 = vmatpush2.xpose.msra.mxu0 0.0
    %5504 = vmatprep.subr.mxu0 0.0
    %5505 = vmatpush2.xpose.msra.mxu0 0.0
    %5506 = vmatprep.subr.mxu0 0.0
    %5507 = vmatpush2.xpose.msra.mxu0 0.0
    %5508 = vmatprep.subr.mxu0 0.0
    %5509 = vmatpush2.xpose.msra.mxu0 0.0
    %5510 = vmatprep.subr.mxu0 0.0
    %5511 = vmatpush2.xpose.msra.mxu0 0.0
    %5512 = vmatprep.subr.mxu0 0.0
    %5513 = vmatpush2.xpose.msra.mxu0 0.0
    %5514 = vmatprep.subr.mxu0 0.0
    %5515 = vmatpush2.xpose.msra.mxu0 0.0
    %5516 = vmatprep.subr.mxu0 0.0
    %5517 = vmatpush2.xpose.msra.mxu0 0.0
    %5518 = vmatprep.subr.mxu0 0.0
    %5519 = vmatpush2.xpose.msra.mxu0 0.0
    %5520 = vmatprep.subr.mxu0 0.0
    %5521 = vmatpush2.xpose.msra.mxu0 0.0
    %5522 = vmatprep.mubr.f32.mxu0 0.0
    %5523 = vmatmul.mubr.f32.gmra.mxu0 %v5450
    %v5524 = vpop.f32.mrf.mxu0
    %v5525 = vadd.f32 0.0, %v5524
    %v5526 = vpop.f32.mrf.mxu0
    %5527 = vmatprep.mubr.f32.mxu0 0.0
    %5528 = vmatmul.mubr.f32.gmra.mxu0 %v5452
    %v5529 = vpop.f32.mrf.mxu0
    %v5530 = vadd.f32 0.0, %v5529
    %v5531 = vpop.f32.mrf.mxu0
    %5532 = vdwg.mxu0
    %v5533 = vmul.f32 %v5525, 0.35355338
    %v5534 = vmul.f32 %v5530, 0.35355338
    %v5535 = vadd.f32 %v5533, %v4729
    %v5536 = vadd.f32 %v5534, %v4730
    %v5537 = vsel %vm4919, %v5535, -inf
    %5538 = vmax.xlane.f32.xlu0 %v5537
    %v5539 = vpop.xlane.xlu0 %5538
    %v5540 = vsel %vm4923, %v5536, -inf
    %5541 = vmax.xlane.f32.xlu0 %v5540
    %v5542 = vpop.xlane.xlu0 %5541
    %v5543 = vsub.f32 %v5535, %v5539
    %v5544 = vsub.f32 %v5536, %v5542
    %v5545 = vmul.f32 %v5543, 1.442695
    %v5546 = vpow.pop %v5545
    %v5547 = vmul.f32 %v5544, 1.442695
    %v5548 = vpow.pop %v5547
    %v5549 = vsel %vm4919, %v5546, 0.0
    %5550 = vadd.xlane.f32.xlu0 %v5549
    %v5551 = vpop.xlane.xlu0 %5550
    %v5552 = vsel %vm4923, %v5548, 0.0
    %5553 = vadd.xlane.f32.xlu0 %v5552
    %v5554 = vpop.xlane.xlu0 %5553
    %v5555 = vrcp.pop %v5551
    %v5556 = vrcp.pop %v5554
    %v5557 = vmul.f32 %v5546, %v5555
    %v5558 = vmul.f32 %v5548, %v5556
    %5559 = vrot.lane.b32.xlu0 %v4818, 40
    %v5560 = vpop.permute.xlu0 %5559
    %5561 = vrot.lane.b32.xlu0 %v4823, 40
    %v5562 = vpop.permute.xlu0 %5561
    %v5565 = vsel %vm4919, %v5557, 0
    %v5568 = vsel %vm4919, %v5558, 0
    %v5570 = vsel %vm4954, %v5562, 0
    %5572 = vmatprep.subr.mxu0 0.0
    %5573 = vmatpush1.msra.mxu0 0.0
    %5574 = vmatprep.subr.mxu0 0.0
    %5575 = vmatpush1.msra.mxu0 0.0
    %5576 = vmatprep.subr.mxu0 0.0
    %5577 = vmatpush1.msra.mxu0 0.0
    %5578 = vmatprep.subr.mxu0 0.0
    %5579 = vmatpush1.msra.mxu0 0.0
    %5580 = vmatprep.subr.mxu0 0.0
    %5581 = vmatpush1.msra.mxu0 0.0
    %5582 = vmatprep.subr.mxu0 0.0
    %5583 = vmatpush1.msra.mxu0 0.0
    %5584 = vmatprep.subr.mxu0 0.0
    %5585 = vmatpush1.msra.mxu0 0.0
    %5586 = vmatprep.subr.mxu0 0.0
    %5587 = vmatpush1.msra.mxu0 0.0
    %5588 = vmatprep.subr.mxu0 0.0
    %5589 = vmatpush1.msra.mxu0 0.0
    %5590 = vmatprep.subr.mxu0 0.0
    %5591 = vmatpush1.msra.mxu0 0.0
    %5592 = vmatprep.subr.mxu0 0.0
    %5593 = vmatpush1.msra.mxu0 0.0
    %5594 = vmatprep.subr.mxu0 0.0
    %5595 = vmatpush1.msra.mxu0 0.0
    %5596 = vmatprep.subr.mxu0 0.0
    %5597 = vmatpush1.msra.mxu0 0.0
    %5598 = vmatprep.subr.mxu0 0.0
    %5599 = vmatpush1.msra.mxu0 0.0
    %5600 = vmatprep.subr.mxu0 0.0
    %5601 = vmatpush1.msra.mxu0 %v5570
    %5602 = vmatprep.subr.mxu0 0.0
    %5603 = vmatpush1.msra.mxu0 %v5560
    %5604 = vmatprep.subr.mxu0 0.0
    %5605 = vmatpush2.msra.mxu0 0.0
    %5606 = vmatprep.subr.mxu0 0.0
    %5607 = vmatpush2.msra.mxu0 0.0
    %5608 = vmatprep.subr.mxu0 0.0
    %5609 = vmatpush2.msra.mxu0 0.0
    %5610 = vmatprep.subr.mxu0 0.0
    %5611 = vmatpush2.msra.mxu0 0.0
    %5612 = vmatprep.subr.mxu0 0.0
    %5613 = vmatpush2.msra.mxu0 0.0
    %5614 = vmatprep.subr.mxu0 0.0
    %5615 = vmatpush2.msra.mxu0 0.0
    %5616 = vmatprep.subr.mxu0 0.0
    %5617 = vmatpush2.msra.mxu0 0.0
    %5618 = vmatprep.subr.mxu0 0.0
    %5619 = vmatpush2.msra.mxu0 0.0
    %5620 = vmatprep.subr.mxu0 0.0
    %5621 = vmatpush2.msra.mxu0 0.0
    %5622 = vmatprep.subr.mxu0 0.0
    %5623 = vmatpush2.msra.mxu0 0.0
    %5624 = vmatprep.subr.mxu0 0.0
    %5625 = vmatpush2.msra.mxu0 0.0
    %5626 = vmatprep.subr.mxu0 0.0
    %5627 = vmatpush2.msra.mxu0 0.0
    %5628 = vmatprep.subr.mxu0 0.0
    %5629 = vmatpush2.msra.mxu0 0.0
    %5630 = vmatprep.subr.mxu0 0.0
    %5631 = vmatpush2.msra.mxu0 0.0
    %5632 = vmatprep.subr.mxu0 0.0
    %5633 = vmatpush2.msra.mxu0 0.0
    %5634 = vmatprep.subr.mxu0 0.0
    %5635 = vmatpush2.msra.mxu0 0.0
    %5636 = vmatprep.mubr.f32.mxu0 0.0
    %5637 = vmatmul.mubr.f32.gmra.mxu0 %v5565
    %v5638 = vpop.f32.mrf.mxu0
    %v5639 = vadd.f32 0.0, %v5638
    %v5640 = vpop.f32.mrf.mxu0
    %5641 = vmatprep.mubr.f32.mxu0 0.0
    %5642 = vmatmul.mubr.f32.gmra.mxu0 %v5568
    %v5643 = vpop.f32.mrf.mxu0
    %v5644 = vadd.f32 0.0, %v5643
    %v5645 = vpop.f32.mrf.mxu0
    %5646 = vdwg.mxu0
    %5649 = vrot.lane.b32.xlu0 %v5229, 8
    %v5650 = vpop.permute.xlu0 %5649
    %5651 = vrot.lane.b32.xlu0 %v5234, 8
    %v5652 = vpop.permute.xlu0 %5651
    %5657 = vrot.lane.b32.xlu0 %v5434, 16
    %v5658 = vpop.permute.xlu0 %5657
    %5659 = vrot.lane.b32.xlu0 %v5439, 16
    %v5660 = vpop.permute.xlu0 %5659
    %5665 = vrot.lane.b32.xlu0 %v5639, 24
    %v5666 = vpop.permute.xlu0 %5665
    %5667 = vrot.lane.b32.xlu0 %v5644, 24
    %v5668 = vpop.permute.xlu0 %5667
    %v5671 = vsel %vm407, %v5024, %v5650
    %v5672 = vsel %vm407, %v5029, %v5652
    %v5673 = vsel %vm1714, %v5671, %v5658
    %v5674 = vsel %vm1714, %v5672, %v5660
    %v5675 = vsel %vm1720, %v5673, %v5666
    %v5676 = vsel %vm1720, %v5674, %v5668
    %v5677 = vlaneseq
    %v5678 = vshrl.u32 %v5677, 7
    %v5679 = vsub.s32 0, %v5678
    %v5680 = vrot.slane %v4740, %v5679
    %v5682 = vsel %vm188, %v5675, 0
    %v5685 = vsel %vm188, %v5676, 0
    %5687 = vmatprep.subr.mxu0 0.0
    %5688 = vmatpush1.msra.mxu0 0.0
    %5689 = vmatprep.subr.mxu0 0.0
    %5690 = vmatpush1.msra.mxu0 0.0
    %5691 = vmatprep.subr.mxu0 0.0
    %5692 = vmatpush1.msra.mxu0 0.0
    %5693 = vmatprep.subr.mxu0 0.0
    %5694 = vmatpush1.msra.mxu0 0.0
    %5695 = vmatprep.subr.mxu0 0.0
    %5696 = vmatpush1.msra.mxu0 0.0
    %5697 = vmatprep.subr.mxu0 0.0
    %5698 = vmatpush1.msra.mxu0 0.0
    %5699 = vmatprep.subr.mxu0 0.0
    %5700 = vmatpush1.msra.mxu0 0.0
    %5701 = vmatprep.subr.mxu0 0.0
    %5702 = vmatpush1.msra.mxu0 0.0
    %5703 = vmatprep.subr.mxu0 0.0
    %5704 = vmatpush1.msra.mxu0 0.0
    %5705 = vmatprep.subr.mxu0 0.0
    %5706 = vmatpush1.msra.mxu0 0.0
    %5707 = vmatprep.subr.mxu0 0.0
    %5708 = vmatpush1.msra.mxu0 0.0
    %5709 = vmatprep.subr.mxu0 0.0
    %5710 = vmatpush1.msra.mxu0 0.0
    %5711 = vmatprep.subr.mxu0 0.0
    %5712 = vmatpush1.msra.mxu0 %v4739
    %5713 = vmatprep.subr.mxu0 0.0
    %5714 = vmatpush1.msra.mxu0 %v4738
    %5715 = vmatprep.subr.mxu0 0.0
    %5716 = vmatpush1.msra.mxu0 %v4737
    %5717 = vmatprep.subr.mxu0 0.0
    %5718 = vmatpush1.msra.mxu0 %v4736
    %5719 = vmatprep.subr.mxu0 0.0
    %5720 = vmatpush2.msra.mxu0 0.0
    %5721 = vmatprep.subr.mxu0 0.0
    %5722 = vmatpush2.msra.mxu0 0.0
    %5723 = vmatprep.subr.mxu0 0.0
    %5724 = vmatpush2.msra.mxu0 0.0
    %5725 = vmatprep.subr.mxu0 0.0
    %5726 = vmatpush2.msra.mxu0 0.0
    %5727 = vmatprep.subr.mxu0 0.0
    %5728 = vmatpush2.msra.mxu0 0.0
    %5729 = vmatprep.subr.mxu0 0.0
    %5730 = vmatpush2.msra.mxu0 0.0
    %5731 = vmatprep.subr.mxu0 0.0
    %5732 = vmatpush2.msra.mxu0 0.0
    %5733 = vmatprep.subr.mxu0 0.0
    %5734 = vmatpush2.msra.mxu0 0.0
    %5735 = vmatprep.subr.mxu0 0.0
    %5736 = vmatpush2.msra.mxu0 0.0
    %5737 = vmatprep.subr.mxu0 0.0
    %5738 = vmatpush2.msra.mxu0 0.0
    %5739 = vmatprep.subr.mxu0 0.0
    %5740 = vmatpush2.msra.mxu0 0.0
    %5741 = vmatprep.subr.mxu0 0.0
    %5742 = vmatpush2.msra.mxu0 0.0
    %5743 = vmatprep.subr.mxu0 0.0
    %5744 = vmatpush2.msra.mxu0 0.0
    %5745 = vmatprep.subr.mxu0 0.0
    %5746 = vmatpush2.msra.mxu0 0.0
    %5747 = vmatprep.subr.mxu0 0.0
    %5748 = vmatpush2.msra.mxu0 0.0
    %5749 = vmatprep.subr.mxu0 0.0
    %5750 = vmatpush2.msra.mxu0 0.0
    %5751 = vmatprep.mubr.f32.mxu0 0.0
    %5752 = vmatmul.mubr.f32.gmra.mxu0 %v5682
    %v5753 = vpop.f32.mrf.mxu0
    %v5754 = vadd.f32 %v5680, %v5753
    %v5755 = vpop.f32.mrf.mxu0
    %5756 = vmatprep.mubr.f32.mxu0 0.0
    %5757 = vmatmul.mubr.f32.gmra.mxu0 %v5685
    %v5758 = vpop.f32.mrf.mxu0
    %v5759 = vadd.f32 %v5680, %v5758
    %v5760 = vpop.f32.mrf.mxu0
    %5761 = vdwg.mxu0
    %v5762 = vadd.f32 %v5754, %v4727
    %v5763 = vadd.f32 %v5759, %v4728
    %v5764 = vld [vmem:[%s5 + $0x430] sm:$0x1]
    %v5765 = vld [vmem:[%s5 + $0x438] sm:$0x1]
    %v5766 = vsel %vm188, %v5762, 0.0
    %5767 = vadd.xlane.f32.xlu0 %v5766
    %v5768 = vpop.xlane.xlu0 %5767
    %v5769 = vsel %vm4600, %v5763, 0.0
    %5770 = vadd.xlane.f32.xlu0 %v5769
    %v5771 = vpop.xlane.xlu0 %5770
    %v5772 = vmul.f32 %v5768, %v204
    %v5773 = vmul.f32 %v5771, %v204
    %v5774 = vsub.f32 %v5762, %v5772
    %v5775 = vsub.f32 %v5763, %v5773
    %v5776 = vmul.f32 %v5774, %v5774
    %v5777 = vmul.f32 %v5775, %v5775
    %v5778 = vsel %vm188, %v5776, 0.0
    %5779 = vadd.xlane.f32.xlu0 %v5778
    %v5780 = vpop.xlane.xlu0 %5779
    %v5781 = vsel %vm4600, %v5777, 0.0
    %5782 = vadd.xlane.f32.xlu0 %v5781
    %v5783 = vpop.xlane.xlu0 %5782
    %v5784 = vmul.f32 %v5780, %v204
    %v5785 = vmul.f32 %v5783, %v204
    %v5786 = vadd.f32 %v5784, 1e-12
    %v5787 = vadd.f32 %v5785, 1e-12
    %v5788 = vrsqrt.pop %v5786
    %v5789 = vrsqrt.pop %v5787
    %v5790 = vmul.f32 %v5774, %v5788
    %v5791 = vmul.f32 %v5775, %v5789
    %v5792 = vlaneseq
    %v5793 = vshrl.u32 %v5792, 7
    %v5794 = vsub.s32 0, %v5793
    %v5795 = vrot.slane %v5764, %v5794
    %v5796 = vmul.f32 %v5790, %v5795
    %v5797 = vmul.f32 %v5791, %v5795
    %v5798 = vlaneseq
    %v5799 = vshrl.u32 %v5798, 7
    %v5800 = vsub.s32 0, %v5799
    %v5801 = vrot.slane %v5765, %v5800
    %v5802 = vadd.f32 %v5796, %v5801
    %v5803 = vadd.f32 %v5797, %v5801
    %v5804 = vld [vmem:[%s5 + $0x440] sm:$0xff]
    %v5805 = vld [vmem:[%s5 + $0x448] sm:$0xff]
    %v5806 = vld [vmem:[%s5 + $0x450] sm:$0xff]
    %v5807 = vld [vmem:[%s5 + $0x458] sm:$0xff]
    %v5808 = vld [vmem:[%s5 + $0x460] sm:$0x1]
    %v5809 = vld [vmem:[%s5 + $0x468] sm:$0xff]
    %v5810 = vld [vmem:[%s5 + $0x470] sm:$0xff]
    %v5811 = vld [vmem:[%s5 + $0x478] sm:$0xff]
    %v5812 = vld [vmem:[%s5 + $0x480] sm:$0xff]
    %v5813 = vld [vmem:[%s5 + $0x488] sm:$0xff]
    %v5814 = vld [vmem:[%s5 + $0x490] sm:$0xff]
    %v5815 = vld [vmem:[%s5 + $0x498] sm:$0xff]
    %v5816 = vld [vmem:[%s5 + $0x4a0] sm:$0xff]
    %v5817 = vld [vmem:[%s5 + $0x4a8] sm:$0x1]
    %v5818 = vlaneseq
    %v5819 = vshrl.u32 %v5818, 7
    %v5820 = vsub.s32 0, %v5819
    %v5821 = vrot.slane %v5808, %v5820
    %v5823 = vsel %vm188, %v5802, 0
    %v5826 = vsel %vm188, %v5803, 0
    %5828 = vmatprep.subr.mxu0 0.0
    %5829 = vmatpush1.msra.mxu0 0.0
    %5830 = vmatprep.subr.mxu0 0.0
    %5831 = vmatpush1.msra.mxu0 0.0
    %5832 = vmatprep.subr.mxu0 0.0
    %5833 = vmatpush1.msra.mxu0 0.0
    %5834 = vmatprep.subr.mxu0 0.0
    %5835 = vmatpush1.msra.mxu0 0.0
    %5836 = vmatprep.subr.mxu0 0.0
    %5837 = vmatpush1.msra.mxu0 0.0
    %5838 = vmatprep.subr.mxu0 0.0
    %5839 = vmatpush1.msra.mxu0 0.0
    %5840 = vmatprep.subr.mxu0 0.0
    %5841 = vmatpush1.msra.mxu0 0.0
    %5842 = vmatprep.subr.mxu0 0.0
    %5843 = vmatpush1.msra.mxu0 0.0
    %5844 = vmatprep.subr.mxu0 0.0
    %5845 = vmatpush1.msra.mxu0 0.0
    %5846 = vmatprep.subr.mxu0 0.0
    %5847 = vmatpush1.msra.mxu0 0.0
    %5848 = vmatprep.subr.mxu0 0.0
    %5849 = vmatpush1.msra.mxu0 0.0
    %5850 = vmatprep.subr.mxu0 0.0
    %5851 = vmatpush1.msra.mxu0 0.0
    %5852 = vmatprep.subr.mxu0 0.0
    %5853 = vmatpush1.msra.mxu0 %v5807
    %5854 = vmatprep.subr.mxu0 0.0
    %5855 = vmatpush1.msra.mxu0 %v5806
    %5856 = vmatprep.subr.mxu0 0.0
    %5857 = vmatpush1.msra.mxu0 %v5805
    %5858 = vmatprep.subr.mxu0 0.0
    %5859 = vmatpush1.msra.mxu0 %v5804
    %5860 = vmatprep.subr.mxu0 0.0
    %5861 = vmatpush2.msra.mxu0 0.0
    %5862 = vmatprep.subr.mxu0 0.0
    %5863 = vmatpush2.msra.mxu0 0.0
    %5864 = vmatprep.subr.mxu0 0.0
    %5865 = vmatpush2.msra.mxu0 0.0
    %5866 = vmatprep.subr.mxu0 0.0
    %5867 = vmatpush2.msra.mxu0 0.0
    %5868 = vmatprep.subr.mxu0 0.0
    %5869 = vmatpush2.msra.mxu0 0.0
    %5870 = vmatprep.subr.mxu0 0.0
    %5871 = vmatpush2.msra.mxu0 0.0
    %5872 = vmatprep.subr.mxu0 0.0
    %5873 = vmatpush2.msra.mxu0 0.0
    %5874 = vmatprep.subr.mxu0 0.0
    %5875 = vmatpush2.msra.mxu0 0.0
    %5876 = vmatprep.subr.mxu0 0.0
    %5877 = vmatpush2.msra.mxu0 0.0
    %5878 = vmatprep.subr.mxu0 0.0
    %5879 = vmatpush2.msra.mxu0 0.0
    %5880 = vmatprep.subr.mxu0 0.0
    %5881 = vmatpush2.msra.mxu0 0.0
    %5882 = vmatprep.subr.mxu0 0.0
    %5883 = vmatpush2.msra.mxu0 0.0
    %5884 = vmatprep.subr.mxu0 0.0
    %5885 = vmatpush2.msra.mxu0 0.0
    %5886 = vmatprep.subr.mxu0 0.0
    %5887 = vmatpush2.msra.mxu0 0.0
    %5888 = vmatprep.subr.mxu0 0.0
    %5889 = vmatpush2.msra.mxu0 0.0
    %5890 = vmatprep.subr.mxu0 0.0
    %5891 = vmatpush2.msra.mxu0 0.0
    %5892 = vmatprep.mubr.f32.mxu0 0.0
    %5893 = vmatmul.mubr.f32.gmra.mxu0 %v5823
    %v5894 = vpop.f32.mrf.mxu0
    %v5895 = vadd.f32 %v5821, %v5894
    %v5896 = vpop.f32.mrf.mxu0
    %5897 = vmatprep.mubr.f32.mxu0 0.0
    %5898 = vmatmul.mubr.f32.gmra.mxu0 %v5826
    %v5899 = vpop.f32.mrf.mxu0
    %v5900 = vadd.f32 %v5821, %v5899
    %v5901 = vpop.f32.mrf.mxu0
    %5902 = vdwg.mxu0
    %v5903 = vmul.f32 %v5895, 0.5
    %v5904 = vmul.f32 %v5900, 0.5
    %v5905 = vmul.f32 %v5895, 0.70710677
    %v5906 = vmul.f32 %v5900, 0.70710677
    %vm5907 = vcmp.ge.f32.partialorder %v5905, 0.0
    %vm5908 = vcmp.ge.f32.partialorder %v5906, 0.0
    %v5909 = vsel %vm5907, 1.0, -1.0
    %v5910 = vsel %vm5908, 1.0, -1.0
    %v5911 = vand.u32 2147483647, %v5905
    %v5912 = vand.u32 2147483647, %v5906
    %v5913 = vmul.f32 %v5911, 0.3275911
    %v5914 = vmul.f32 %v5912, 0.3275911
    %v5915 = vadd.f32 %v5913, 1.0
    %v5916 = vadd.f32 %v5914, 1.0
    %v5917 = vrcp.pop %v5915
    %v5918 = vmul.f32 1.0, %v5917
    %v5919 = vrcp.pop %v5916
    %v5920 = vmul.f32 1.0, %v5919
    %v5921 = vmul.f32 %v5918, 1.0614054
    %v5922 = vmul.f32 %v5920, 1.0614054
    %v5923 = vadd.f32 %v5921, -1.4531521
    %v5924 = vadd.f32 %v5922, -1.4531521
    %v5925 = vmul.f32 %v5923, %v5918
    %v5926 = vmul.f32 %v5924, %v5920
    %v5927 = vadd.f32 %v5925, 1.4214138
    %v5928 = vadd.f32 %v5926, 1.4214138
    %v5929 = vmul.f32 %v5927, %v5918
    %v5930 = vmul.f32 %v5928, %v5920
    %v5931 = vadd.f32 %v5929, -0.28449672
    %v5932 = vadd.f32 %v5930, -0.28449672
    %v5933 = vmul.f32 %v5931, %v5918
    %v5934 = vmul.f32 %v5932, %v5920
    %v5935 = vadd.f32 %v5933, 0.2548296
    %v5936 = vadd.f32 %v5934, 0.2548296
    %v5937 = vmul.f32 %v5935, %v5918
    %v5938 = vmul.f32 %v5936, %v5920
    %v5939 = vsub.f32 0.0, %v5911
    %v5940 = vsub.f32 0.0, %v5912
    %v5941 = vmul.f32 %v5939, %v5911
    %v5942 = vmul.f32 %v5940, %v5912
    %v5943 = vmul.f32 %v5941, 1.442695
    %v5944 = vpow.pop %v5943
    %v5945 = vmul.f32 %v5942, 1.442695
    %v5946 = vpow.pop %v5945
    %v5947 = vmul.f32 %v5937, %v5944
    %v5948 = vmul.f32 %v5938, %v5946
    %v5949 = vsub.f32 1.0, %v5947
    %v5950 = vsub.f32 1.0, %v5948
    %v5951 = vmul.f32 %v5909, %v5949
    %v5952 = vmul.f32 %v5910, %v5950
    %v5953 = vadd.f32 %v5951, 1.0
    %v5954 = vadd.f32 %v5952, 1.0
    %v5955 = vmul.f32 %v5903, %v5953
    %v5956 = vmul.f32 %v5904, %v5954
    %v5957 = vlaneseq
    %v5958 = vshrl.u32 %v5957, 7
    %v5959 = vsub.s32 0, %v5958
    %v5960 = vrot.slane %v5817, %v5959
    %v5962 = vsel %vm75, %v5955, 0
    %v5965 = vsel %vm75, %v5956, 0
    %5967 = vmatprep.subr.mxu0 0.0
    %5968 = vmatpush1.msra.mxu0 0.0
    %5969 = vmatprep.subr.mxu0 0.0
    %5970 = vmatpush1.msra.mxu0 0.0
    %5971 = vmatprep.subr.mxu0 0.0
    %5972 = vmatpush1.msra.mxu0 0.0
    %5973 = vmatprep.subr.mxu0 0.0
    %5974 = vmatpush1.msra.mxu0 0.0
    %5975 = vmatprep.subr.mxu0 0.0
    %5976 = vmatpush1.msra.mxu0 0.0
    %5977 = vmatprep.subr.mxu0 0.0
    %5978 = vmatpush1.msra.mxu0 0.0
    %5979 = vmatprep.subr.mxu0 0.0
    %5980 = vmatpush1.msra.mxu0 0.0
    %5981 = vmatprep.subr.mxu0 0.0
    %5982 = vmatpush1.msra.mxu0 0.0
    %5983 = vmatprep.subr.mxu0 0.0
    %5984 = vmatpush1.msra.mxu0 %v5816
    %5985 = vmatprep.subr.mxu0 0.0
    %5986 = vmatpush1.msra.mxu0 %v5815
    %5987 = vmatprep.subr.mxu0 0.0
    %5988 = vmatpush1.msra.mxu0 %v5814
    %5989 = vmatprep.subr.mxu0 0.0
    %5990 = vmatpush1.msra.mxu0 %v5813
    %5991 = vmatprep.subr.mxu0 0.0
    %5992 = vmatpush1.msra.mxu0 %v5812
    %5993 = vmatprep.subr.mxu0 0.0
    %5994 = vmatpush1.msra.mxu0 %v5811
    %5995 = vmatprep.subr.mxu0 0.0
    %5996 = vmatpush1.msra.mxu0 %v5810
    %5997 = vmatprep.subr.mxu0 0.0
    %5998 = vmatpush1.msra.mxu0 %v5809
    %5999 = vmatprep.subr.mxu0 0.0
    %6000 = vmatpush2.msra.mxu0 0.0
    %6001 = vmatprep.subr.mxu0 0.0
    %6002 = vmatpush2.msra.mxu0 0.0
    %6003 = vmatprep.subr.mxu0 0.0
    %6004 = vmatpush2.msra.mxu0 0.0
    %6005 = vmatprep.subr.mxu0 0.0
    %6006 = vmatpush2.msra.mxu0 0.0
    %6007 = vmatprep.subr.mxu0 0.0
    %6008 = vmatpush2.msra.mxu0 0.0
    %6009 = vmatprep.subr.mxu0 0.0
    %6010 = vmatpush2.msra.mxu0 0.0
    %6011 = vmatprep.subr.mxu0 0.0
    %6012 = vmatpush2.msra.mxu0 0.0
    %6013 = vmatprep.subr.mxu0 0.0
    %6014 = vmatpush2.msra.mxu0 0.0
    %6015 = vmatprep.subr.mxu0 0.0
    %6016 = vmatpush2.msra.mxu0 0.0
    %6017 = vmatprep.subr.mxu0 0.0
    %6018 = vmatpush2.msra.mxu0 0.0
    %6019 = vmatprep.subr.mxu0 0.0
    %6020 = vmatpush2.msra.mxu0 0.0
    %6021 = vmatprep.subr.mxu0 0.0
    %6022 = vmatpush2.msra.mxu0 0.0
    %6023 = vmatprep.subr.mxu0 0.0
    %6024 = vmatpush2.msra.mxu0 0.0
    %6025 = vmatprep.subr.mxu0 0.0
    %6026 = vmatpush2.msra.mxu0 0.0
    %6027 = vmatprep.subr.mxu0 0.0
    %6028 = vmatpush2.msra.mxu0 0.0
    %6029 = vmatprep.subr.mxu0 0.0
    %6030 = vmatpush2.msra.mxu0 0.0
    %6031 = vmatprep.mubr.f32.mxu0 0.0
    %6032 = vmatmul.mubr.f32.gmra.mxu0 %v5962
    %v6033 = vpop.f32.mrf.mxu0
    %v6034 = vadd.f32 %v5960, %v6033
    %v6035 = vpop.f32.mrf.mxu0
    %6036 = vmatprep.mubr.f32.mxu0 0.0
    %6037 = vmatmul.mubr.f32.gmra.mxu0 %v5965
    %v6038 = vpop.f32.mrf.mxu0
    %v6039 = vadd.f32 %v5960, %v6038
    %v6040 = vpop.f32.mrf.mxu0
    %6041 = vdwg.mxu0
    %v6042 = vadd.f32 %v6034, %v5802
    %v6043 = vadd.f32 %v6039, %v5803
    %v6044 = vld [vmem:[%s5 + $0x4b0] sm:$0x1]
    %v6045 = vld [vmem:[%s5 + $0x4b8] sm:$0x1]
    %v6046 = vsel %vm188, %v6042, 0.0
    %6047 = vadd.xlane.f32.xlu0 %v6046
    %v6048 = vpop.xlane.xlu0 %6047
    %v6049 = vsel %vm4600, %v6043, 0.0
    %6050 = vadd.xlane.f32.xlu0 %v6049
    %v6051 = vpop.xlane.xlu0 %6050
    %v6052 = vmul.f32 %v6048, %v204
    %v6053 = vmul.f32 %v6051, %v204
    %v6054 = vsub.f32 %v6042, %v6052
    %v6055 = vsub.f32 %v6043, %v6053
    %v6056 = vmul.f32 %v6054, %v6054
    %v6057 = vmul.f32 %v6055, %v6055
    %v6058 = vsel %vm188, %v6056, 0.0
    %6059 = vadd.xlane.f32.xlu0 %v6058
    %v6060 = vpop.xlane.xlu0 %6059
    %v6061 = vsel %vm4600, %v6057, 0.0
    %6062 = vadd.xlane.f32.xlu0 %v6061
    %v6063 = vpop.xlane.xlu0 %6062
    %v6064 = vmul.f32 %v6060, %v204
    %v6065 = vmul.f32 %v6063, %v204
    %v6066 = vadd.f32 %v6064, 1e-12
    %v6067 = vadd.f32 %v6065, 1e-12
    %v6068 = vrsqrt.pop %v6066
    %v6069 = vrsqrt.pop %v6067
    %v6070 = vmul.f32 %v6054, %v6068
    %v6071 = vmul.f32 %v6055, %v6069
    %v6072 = vlaneseq
    %v6073 = vshrl.u32 %v6072, 7
    %v6074 = vsub.s32 0, %v6073
    %v6075 = vrot.slane %v6044, %v6074
    %v6076 = vmul.f32 %v6070, %v6075
    %v6077 = vmul.f32 %v6071, %v6075
    %v6078 = vlaneseq
    %v6079 = vshrl.u32 %v6078, 7
    %v6080 = vsub.s32 0, %v6079
    %v6081 = vrot.slane %v6045, %v6080
    %v6082 = vadd.f32 %v6076, %v6081
    %v6083 = vadd.f32 %v6077, %v6081
    %v6084 = vld [vmem:[%s5 + $0x4c0] sm:$0xff]
    %v6085 = vld [vmem:[%s5 + $0x4c8] sm:$0xff]
    %v6086 = vld [vmem:[%s5 + $0x4d0] sm:$0xff]
    %v6087 = vld [vmem:[%s5 + $0x4d8] sm:$0xff]
    %v6088 = vld [vmem:[%s5 + $0x4e0] sm:$0x1]
    %v6089 = vld [vmem:[%s5 + $0x4e8] sm:$0xff]
    %v6090 = vld [vmem:[%s5 + $0x4f0] sm:$0xff]
    %v6091 = vld [vmem:[%s5 + $0x4f8] sm:$0xff]
    %v6092 = vld [vmem:[%s5 + $0x500] sm:$0xff]
    %v6093 = vld [vmem:[%s5 + $0x508] sm:$0x1]
    %v6094 = vlaneseq
    %v6095 = vshrl.u32 %v6094, 7
    %v6096 = vsub.s32 0, %v6095
    %v6097 = vrot.slane %v6088, %v6096
    %v6099 = vsel %vm188, %v6082, 0
    %v6102 = vsel %vm188, %v6083, 0
    %6104 = vmatprep.subr.mxu0 0.0
    %6105 = vmatpush1.msra.mxu0 0.0
    %6106 = vmatprep.subr.mxu0 0.0
    %6107 = vmatpush1.msra.mxu0 0.0
    %6108 = vmatprep.subr.mxu0 0.0
    %6109 = vmatpush1.msra.mxu0 0.0
    %6110 = vmatprep.subr.mxu0 0.0
    %6111 = vmatpush1.msra.mxu0 0.0
    %6112 = vmatprep.subr.mxu0 0.0
    %6113 = vmatpush1.msra.mxu0 0.0
    %6114 = vmatprep.subr.mxu0 0.0
    %6115 = vmatpush1.msra.mxu0 0.0
    %6116 = vmatprep.subr.mxu0 0.0
    %6117 = vmatpush1.msra.mxu0 0.0
    %6118 = vmatprep.subr.mxu0 0.0
    %6119 = vmatpush1.msra.mxu0 0.0
    %6120 = vmatprep.subr.mxu0 0.0
    %6121 = vmatpush1.msra.mxu0 0.0
    %6122 = vmatprep.subr.mxu0 0.0
    %6123 = vmatpush1.msra.mxu0 0.0
    %6124 = vmatprep.subr.mxu0 0.0
    %6125 = vmatpush1.msra.mxu0 0.0
    %6126 = vmatprep.subr.mxu0 0.0
    %6127 = vmatpush1.msra.mxu0 0.0
    %6128 = vmatprep.subr.mxu0 0.0
    %6129 = vmatpush1.msra.mxu0 %v6087
    %6130 = vmatprep.subr.mxu0 0.0
    %6131 = vmatpush1.msra.mxu0 %v6086
    %6132 = vmatprep.subr.mxu0 0.0
    %6133 = vmatpush1.msra.mxu0 %v6085
    %6134 = vmatprep.subr.mxu0 0.0
    %6135 = vmatpush1.msra.mxu0 %v6084
    %6136 = vmatprep.subr.mxu0 0.0
    %6137 = vmatpush2.msra.mxu0 0.0
    %6138 = vmatprep.subr.mxu0 0.0
    %6139 = vmatpush2.msra.mxu0 0.0
    %6140 = vmatprep.subr.mxu0 0.0
    %6141 = vmatpush2.msra.mxu0 0.0
    %6142 = vmatprep.subr.mxu0 0.0
    %6143 = vmatpush2.msra.mxu0 0.0
    %6144 = vmatprep.subr.mxu0 0.0
    %6145 = vmatpush2.msra.mxu0 0.0
    %6146 = vmatprep.subr.mxu0 0.0
    %6147 = vmatpush2.msra.mxu0 0.0
    %6148 = vmatprep.subr.mxu0 0.0
    %6149 = vmatpush2.msra.mxu0 0.0
    %6150 = vmatprep.subr.mxu0 0.0
    %6151 = vmatpush2.msra.mxu0 0.0
    %6152 = vmatprep.subr.mxu0 0.0
    %6153 = vmatpush2.msra.mxu0 0.0
    %6154 = vmatprep.subr.mxu0 0.0
    %6155 = vmatpush2.msra.mxu0 0.0
    %6156 = vmatprep.subr.mxu0 0.0
    %6157 = vmatpush2.msra.mxu0 0.0
    %6158 = vmatprep.subr.mxu0 0.0
    %6159 = vmatpush2.msra.mxu0 0.0
    %6160 = vmatprep.subr.mxu0 0.0
    %6161 = vmatpush2.msra.mxu0 0.0
    %6162 = vmatprep.subr.mxu0 0.0
    %6163 = vmatpush2.msra.mxu0 0.0
    %6164 = vmatprep.subr.mxu0 0.0
    %6165 = vmatpush2.msra.mxu0 0.0
    %6166 = vmatprep.subr.mxu0 0.0
    %6167 = vmatpush2.msra.mxu0 0.0
    %6168 = vmatprep.mubr.f32.mxu0 0.0
    %6169 = vmatmul.mubr.f32.gmra.mxu0 %v6099
    %v6170 = vpop.f32.mrf.mxu0
    %v6171 = vadd.f32 %v6097, %v6170
    %v6172 = vpop.f32.mrf.mxu0
    %6173 = vmatprep.mubr.f32.mxu0 0.0
    %6174 = vmatmul.mubr.f32.gmra.mxu0 %v6102
    %v6175 = vpop.f32.mrf.mxu0
    %v6176 = vadd.f32 %v6097, %v6175
    %v6177 = vpop.f32.mrf.mxu0
    %6178 = vdwg.mxu0
    %6181 = vrot.lane.b32.xlu0 %v6171, 96
    %v6182 = vpop.permute.xlu0 %6181
    %6183 = vrot.lane.b32.xlu0 %v6176, 96
    %v6184 = vpop.permute.xlu0 %6183
    %v6185 = vsel %vm407, %v6171, 0
    %v6187 = vsel %vm407, %v6176, 0
    %v6189 = vsel %vm407, %v6182, 0
    %v6191 = vsel %vm407, %v6184, 0
    %6193 = vmatprep.subr.mxu0 0.0
    %6194 = vmatpush1.xpose.msra.mxu0 0.0
    %6195 = vmatprep.subr.mxu0 0.0
    %6196 = vmatpush1.xpose.msra.mxu0 0.0
    %6197 = vmatprep.subr.mxu0 0.0
    %6198 = vmatpush1.xpose.msra.mxu0 0.0
    %6199 = vmatprep.subr.mxu0 0.0
    %6200 = vmatpush1.xpose.msra.mxu0 0.0
    %6201 = vmatprep.subr.mxu0 0.0
    %6202 = vmatpush1.xpose.msra.mxu0 0.0
    %6203 = vmatprep.subr.mxu0 0.0
    %6204 = vmatpush1.xpose.msra.mxu0 0.0
    %6205 = vmatprep.subr.mxu0 0.0
    %6206 = vmatpush1.xpose.msra.mxu0 0.0
    %6207 = vmatprep.subr.mxu0 0.0
    %6208 = vmatpush1.xpose.msra.mxu0 0.0
    %6209 = vmatprep.subr.mxu0 0.0
    %6210 = vmatpush1.xpose.msra.mxu0 0.0
    %6211 = vmatprep.subr.mxu0 0.0
    %6212 = vmatpush1.xpose.msra.mxu0 0.0
    %6213 = vmatprep.subr.mxu0 0.0
    %6214 = vmatpush1.xpose.msra.mxu0 0.0
    %6215 = vmatprep.subr.mxu0 0.0
    %6216 = vmatpush1.xpose.msra.mxu0 0.0
    %6217 = vmatprep.subr.mxu0 0.0
    %6218 = vmatpush1.xpose.msra.mxu0 0.0
    %6219 = vmatprep.subr.mxu0 0.0
    %6220 = vmatpush1.xpose.msra.mxu0 0.0
    %6221 = vmatprep.subr.mxu0 0.0
    %6222 = vmatpush1.xpose.msra.mxu0 %v6191
    %6223 = vmatprep.subr.mxu0 0.0
    %6224 = vmatpush1.xpose.msra.mxu0 %v6189
    %6225 = vmatprep.subr.mxu0 0.0
    %6226 = vmatpush2.xpose.msra.mxu0 0.0
    %6227 = vmatprep.subr.mxu0 0.0
    %6228 = vmatpush2.xpose.msra.mxu0 0.0
    %6229 = vmatprep.subr.mxu0 0.0
    %6230 = vmatpush2.xpose.msra.mxu0 0.0
    %6231 = vmatprep.subr.mxu0 0.0
    %6232 = vmatpush2.xpose.msra.mxu0 0.0
    %6233 = vmatprep.subr.mxu0 0.0
    %6234 = vmatpush2.xpose.msra.mxu0 0.0
    %6235 = vmatprep.subr.mxu0 0.0
    %6236 = vmatpush2.xpose.msra.mxu0 0.0
    %6237 = vmatprep.subr.mxu0 0.0
    %6238 = vmatpush2.xpose.msra.mxu0 0.0
    %6239 = vmatprep.subr.mxu0 0.0
    %6240 = vmatpush2.xpose.msra.mxu0 0.0
    %6241 = vmatprep.subr.mxu0 0.0
    %6242 = vmatpush2.xpose.msra.mxu0 0.0
    %6243 = vmatprep.subr.mxu0 0.0
    %6244 = vmatpush2.xpose.msra.mxu0 0.0
    %6245 = vmatprep.subr.mxu0 0.0
    %6246 = vmatpush2.xpose.msra.mxu0 0.0
    %6247 = vmatprep.subr.mxu0 0.0
    %6248 = vmatpush2.xpose.msra.mxu0 0.0
    %6249 = vmatprep.subr.mxu0 0.0
    %6250 = vmatpush2.xpose.msra.mxu0 0.0
    %6251 = vmatprep.subr.mxu0 0.0
    %6252 = vmatpush2.xpose.msra.mxu0 0.0
    %6253 = vmatprep.subr.mxu0 0.0
    %6254 = vmatpush2.xpose.msra.mxu0 0.0
    %6255 = vmatprep.subr.mxu0 0.0
    %6256 = vmatpush2.xpose.msra.mxu0 0.0
    %6257 = vmatprep.mubr.f32.mxu0 0.0
    %6258 = vmatmul.mubr.f32.gmra.mxu0 %v6185
    %v6259 = vpop.f32.mrf.mxu0
    %v6260 = vadd.f32 0.0, %v6259
    %v6261 = vpop.f32.mrf.mxu0
    %6262 = vmatprep.mubr.f32.mxu0 0.0
    %6263 = vmatmul.mubr.f32.gmra.mxu0 %v6187
    %v6264 = vpop.f32.mrf.mxu0
    %v6265 = vadd.f32 0.0, %v6264
    %v6266 = vpop.f32.mrf.mxu0
    %6267 = vdwg.mxu0
    %v6268 = vmul.f32 %v6260, 0.35355338
    %v6269 = vmul.f32 %v6265, 0.35355338
    %v6270 = vadd.f32 %v6268, %v4729
    %v6271 = vadd.f32 %v6269, %v4730
    %v6272 = vsel %vm4919, %v6270, -inf
    %6273 = vmax.xlane.f32.xlu0 %v6272
    %v6274 = vpop.xlane.xlu0 %6273
    %v6275 = vsel %vm4923, %v6271, -inf
    %6276 = vmax.xlane.f32.xlu0 %v6275
    %v6277 = vpop.xlane.xlu0 %6276
    %v6278 = vsub.f32 %v6270, %v6274
    %v6279 = vsub.f32 %v6271, %v6277
    %v6280 = vmul.f32 %v6278, 1.442695
    %v6281 = vpow.pop %v6280
    %v6282 = vmul.f32 %v6279, 1.442695
    %v6283 = vpow.pop %v6282
    %v6284 = vsel %vm4919, %v6281, 0.0
    %6285 = vadd.xlane.f32.xlu0 %v6284
    %v6286 = vpop.xlane.xlu0 %6285
    %v6287 = vsel %vm4923, %v6283, 0.0
    %6288 = vadd.xlane.f32.xlu0 %v6287
    %v6289 = vpop.xlane.xlu0 %6288
    %v6290 = vrcp.pop %v6286
    %v6291 = vrcp.pop %v6289
    %v6292 = vmul.f32 %v6281, %v6290
    %v6293 = vmul.f32 %v6283, %v6291
    %6294 = vrot.lane.b32.xlu0 %v6171, 64
    %v6295 = vpop.permute.xlu0 %6294
    %6296 = vrot.lane.b32.xlu0 %v6176, 64
    %v6297 = vpop.permute.xlu0 %6296
    %v6300 = vsel %vm4919, %v6292, 0
    %v6303 = vsel %vm4919, %v6293, 0
    %v6305 = vsel %vm4954, %v6297, 0
    %6307 = vmatprep.subr.mxu0 0.0
    %6308 = vmatpush1.msra.mxu0 0.0
    %6309 = vmatprep.subr.mxu0 0.0
    %6310 = vmatpush1.msra.mxu0 0.0
    %6311 = vmatprep.subr.mxu0 0.0
    %6312 = vmatpush1.msra.mxu0 0.0
    %6313 = vmatprep.subr.mxu0 0.0
    %6314 = vmatpush1.msra.mxu0 0.0
    %6315 = vmatprep.subr.mxu0 0.0
    %6316 = vmatpush1.msra.mxu0 0.0
    %6317 = vmatprep.subr.mxu0 0.0
    %6318 = vmatpush1.msra.mxu0 0.0
    %6319 = vmatprep.subr.mxu0 0.0
    %6320 = vmatpush1.msra.mxu0 0.0
    %6321 = vmatprep.subr.mxu0 0.0
    %6322 = vmatpush1.msra.mxu0 0.0
    %6323 = vmatprep.subr.mxu0 0.0
    %6324 = vmatpush1.msra.mxu0 0.0
    %6325 = vmatprep.subr.mxu0 0.0
    %6326 = vmatpush1.msra.mxu0 0.0
    %6327 = vmatprep.subr.mxu0 0.0
    %6328 = vmatpush1.msra.mxu0 0.0
    %6329 = vmatprep.subr.mxu0 0.0
    %6330 = vmatpush1.msra.mxu0 0.0
    %6331 = vmatprep.subr.mxu0 0.0
    %6332 = vmatpush1.msra.mxu0 0.0
    %6333 = vmatprep.subr.mxu0 0.0
    %6334 = vmatpush1.msra.mxu0 0.0
    %6335 = vmatprep.subr.mxu0 0.0
    %6336 = vmatpush1.msra.mxu0 %v6305
    %6337 = vmatprep.subr.mxu0 0.0
    %6338 = vmatpush1.msra.mxu0 %v6295
    %6339 = vmatprep.subr.mxu0 0.0
    %6340 = vmatpush2.msra.mxu0 0.0
    %6341 = vmatprep.subr.mxu0 0.0
    %6342 = vmatpush2.msra.mxu0 0.0
    %6343 = vmatprep.subr.mxu0 0.0
    %6344 = vmatpush2.msra.mxu0 0.0
    %6345 = vmatprep.subr.mxu0 0.0
    %6346 = vmatpush2.msra.mxu0 0.0
    %6347 = vmatprep.subr.mxu0 0.0
    %6348 = vmatpush2.msra.mxu0 0.0
    %6349 = vmatprep.subr.mxu0 0.0
    %6350 = vmatpush2.msra.mxu0 0.0
    %6351 = vmatprep.subr.mxu0 0.0
    %6352 = vmatpush2.msra.mxu0 0.0
    %6353 = vmatprep.subr.mxu0 0.0
    %6354 = vmatpush2.msra.mxu0 0.0
    %6355 = vmatprep.subr.mxu0 0.0
    %6356 = vmatpush2.msra.mxu0 0.0
    %6357 = vmatprep.subr.mxu0 0.0
    %6358 = vmatpush2.msra.mxu0 0.0
    %6359 = vmatprep.subr.mxu0 0.0
    %6360 = vmatpush2.msra.mxu0 0.0
    %6361 = vmatprep.subr.mxu0 0.0
    %6362 = vmatpush2.msra.mxu0 0.0
    %6363 = vmatprep.subr.mxu0 0.0
    %6364 = vmatpush2.msra.mxu0 0.0
    %6365 = vmatprep.subr.mxu0 0.0
    %6366 = vmatpush2.msra.mxu0 0.0
    %6367 = vmatprep.subr.mxu0 0.0
    %6368 = vmatpush2.msra.mxu0 0.0
    %6369 = vmatprep.subr.mxu0 0.0
    %6370 = vmatpush2.msra.mxu0 0.0
    %6371 = vmatprep.mubr.f32.mxu0 0.0
    %6372 = vmatmul.mubr.f32.gmra.mxu0 %v6300
    %v6373 = vpop.f32.mrf.mxu0
    %v6374 = vadd.f32 0.0, %v6373
    %v6375 = vpop.f32.mrf.mxu0
    %6376 = vmatprep.mubr.f32.mxu0 0.0
    %6377 = vmatmul.mubr.f32.gmra.mxu0 %v6303
    %v6378 = vpop.f32.mrf.mxu0
    %v6379 = vadd.f32 0.0, %v6378
    %v6380 = vpop.f32.mrf.mxu0
    %6381 = vdwg.mxu0
    %6382 = vrot.lane.b32.xlu0 %v6171, 120
    %v6383 = vpop.permute.xlu0 %6382
    %6384 = vrot.lane.b32.xlu0 %v6176, 120
    %v6385 = vpop.permute.xlu0 %6384
    %6386 = vrot.lane.b32.xlu0 %v6171, 88
    %v6387 = vpop.permute.xlu0 %6386
    %6388 = vrot.lane.b32.xlu0 %v6176, 88
    %v6389 = vpop.permute.xlu0 %6388
    %v6390 = vsel %vm407, %v6383, 0
    %v6392 = vsel %vm407, %v6385, 0
    %v6394 = vsel %vm407, %v6387, 0
    %v6396 = vsel %vm407, %v6389, 0
    %6398 = vmatprep.subr.mxu0 0.0
    %6399 = vmatpush1.xpose.msra.mxu0 0.0
    %6400 = vmatprep.subr.mxu0 0.0
    %6401 = vmatpush1.xpose.msra.mxu0 0.0
    %6402 = vmatprep.subr.mxu0 0.0
    %6403 = vmatpush1.xpose.msra.mxu0 0.0
    %6404 = vmatprep.subr.mxu0 0.0
    %6405 = vmatpush1.xpose.msra.mxu0 0.0
    %6406 = vmatprep.subr.mxu0 0.0
    %6407 = vmatpush1.xpose.msra.mxu0 0.0
    %6408 = vmatprep.subr.mxu0 0.0
    %6409 = vmatpush1.xpose.msra.mxu0 0.0
    %6410 = vmatprep.subr.mxu0 0.0
    %6411 = vmatpush1.xpose.msra.mxu0 0.0
    %6412 = vmatprep.subr.mxu0 0.0
    %6413 = vmatpush1.xpose.msra.mxu0 0.0
    %6414 = vmatprep.subr.mxu0 0.0
    %6415 = vmatpush1.xpose.msra.mxu0 0.0
    %6416 = vmatprep.subr.mxu0 0.0
    %6417 = vmatpush1.xpose.msra.mxu0 0.0
    %6418 = vmatprep.subr.mxu0 0.0
    %6419 = vmatpush1.xpose.msra.mxu0 0.0
    %6420 = vmatprep.subr.mxu0 0.0
    %6421 = vmatpush1.xpose.msra.mxu0 0.0
    %6422 = vmatprep.subr.mxu0 0.0
    %6423 = vmatpush1.xpose.msra.mxu0 0.0
    %6424 = vmatprep.subr.mxu0 0.0
    %6425 = vmatpush1.xpose.msra.mxu0 0.0
    %6426 = vmatprep.subr.mxu0 0.0
    %6427 = vmatpush1.xpose.msra.mxu0 %v6396
    %6428 = vmatprep.subr.mxu0 0.0
    %6429 = vmatpush1.xpose.msra.mxu0 %v6394
    %6430 = vmatprep.subr.mxu0 0.0
    %6431 = vmatpush2.xpose.msra.mxu0 0.0
    %6432 = vmatprep.subr.mxu0 0.0
    %6433 = vmatpush2.xpose.msra.mxu0 0.0
    %6434 = vmatprep.subr.mxu0 0.0
    %6435 = vmatpush2.xpose.msra.mxu0 0.0
    %6436 = vmatprep.subr.mxu0 0.0
    %6437 = vmatpush2.xpose.msra.mxu0 0.0
    %6438 = vmatprep.subr.mxu0 0.0
    %6439 = vmatpush2.xpose.msra.mxu0 0.0
    %6440 = vmatprep.subr.mxu0 0.0
    %6441 = vmatpush2.xpose.msra.mxu0 0.0
    %6442 = vmatprep.subr.mxu0 0.0
    %6443 = vmatpush2.xpose.msra.mxu0 0.0
    %6444 = vmatprep.subr.mxu0 0.0
    %6445 = vmatpush2.xpose.msra.mxu0 0.0
    %6446 = vmatprep.subr.mxu0 0.0
    %6447 = vmatpush2.xpose.msra.mxu0 0.0
    %6448 = vmatprep.subr.mxu0 0.0
    %6449 = vmatpush2.xpose.msra.mxu0 0.0
    %6450 = vmatprep.subr.mxu0 0.0
    %6451 = vmatpush2.xpose.msra.mxu0 0.0
    %6452 = vmatprep.subr.mxu0 0.0
    %6453 = vmatpush2.xpose.msra.mxu0 0.0
    %6454 = vmatprep.subr.mxu0 0.0
    %6455 = vmatpush2.xpose.msra.mxu0 0.0
    %6456 = vmatprep.subr.mxu0 0.0
    %6457 = vmatpush2.xpose.msra.mxu0 0.0
    %6458 = vmatprep.subr.mxu0 0.0
    %6459 = vmatpush2.xpose.msra.mxu0 0.0
    %6460 = vmatprep.subr.mxu0 0.0
    %6461 = vmatpush2.xpose.msra.mxu0 0.0
    %6462 = vmatprep.mubr.f32.mxu0 0.0
    %6463 = vmatmul.mubr.f32.gmra.mxu0 %v6390
    %v6464 = vpop.f32.mrf.mxu0
    %v6465 = vadd.f32 0.0, %v6464
    %v6466 = vpop.f32.mrf.mxu0
    %6467 = vmatprep.mubr.f32.mxu0 0.0
    %6468 = vmatmul.mubr.f32.gmra.mxu0 %v6392
    %v6469 = vpop.f32.mrf.mxu0
    %v6470 = vadd.f32 0.0, %v6469
    %v6471 = vpop.f32.mrf.mxu0
    %6472 = vdwg.mxu0
    %v6473 = vmul.f32 %v6465, 0.35355338
    %v6474 = vmul.f32 %v6470, 0.35355338
    %v6475 = vadd.f32 %v6473, %v4729
    %v6476 = vadd.f32 %v6474, %v4730
    %v6477 = vsel %vm4919, %v6475, -inf
    %6478 = vmax.xlane.f32.xlu0 %v6477
    %v6479 = vpop.xlane.xlu0 %6478
    %v6480 = vsel %vm4923, %v6476, -inf
    %6481 = vmax.xlane.f32.xlu0 %v6480
    %v6482 = vpop.xlane.xlu0 %6481
    %v6483 = vsub.f32 %v6475, %v6479
    %v6484 = vsub.f32 %v6476, %v6482
    %v6485 = vmul.f32 %v6483, 1.442695
    %v6486 = vpow.pop %v6485
    %v6487 = vmul.f32 %v6484, 1.442695
    %v6488 = vpow.pop %v6487
    %v6489 = vsel %vm4919, %v6486, 0.0
    %6490 = vadd.xlane.f32.xlu0 %v6489
    %v6491 = vpop.xlane.xlu0 %6490
    %v6492 = vsel %vm4923, %v6488, 0.0
    %6493 = vadd.xlane.f32.xlu0 %v6492
    %v6494 = vpop.xlane.xlu0 %6493
    %v6495 = vrcp.pop %v6491
    %v6496 = vrcp.pop %v6494
    %v6497 = vmul.f32 %v6486, %v6495
    %v6498 = vmul.f32 %v6488, %v6496
    %6499 = vrot.lane.b32.xlu0 %v6171, 56
    %v6500 = vpop.permute.xlu0 %6499
    %6501 = vrot.lane.b32.xlu0 %v6176, 56
    %v6502 = vpop.permute.xlu0 %6501
    %v6505 = vsel %vm4919, %v6497, 0
    %v6508 = vsel %vm4919, %v6498, 0
    %v6510 = vsel %vm4954, %v6502, 0
    %6512 = vmatprep.subr.mxu0 0.0
    %6513 = vmatpush1.msra.mxu0 0.0
    %6514 = vmatprep.subr.mxu0 0.0
    %6515 = vmatpush1.msra.mxu0 0.0
    %6516 = vmatprep.subr.mxu0 0.0
    %6517 = vmatpush1.msra.mxu0 0.0
    %6518 = vmatprep.subr.mxu0 0.0
    %6519 = vmatpush1.msra.mxu0 0.0
    %6520 = vmatprep.subr.mxu0 0.0
    %6521 = vmatpush1.msra.mxu0 0.0
    %6522 = vmatprep.subr.mxu0 0.0
    %6523 = vmatpush1.msra.mxu0 0.0
    %6524 = vmatprep.subr.mxu0 0.0
    %6525 = vmatpush1.msra.mxu0 0.0
    %6526 = vmatprep.subr.mxu0 0.0
    %6527 = vmatpush1.msra.mxu0 0.0
    %6528 = vmatprep.subr.mxu0 0.0
    %6529 = vmatpush1.msra.mxu0 0.0
    %6530 = vmatprep.subr.mxu0 0.0
    %6531 = vmatpush1.msra.mxu0 0.0
    %6532 = vmatprep.subr.mxu0 0.0
    %6533 = vmatpush1.msra.mxu0 0.0
    %6534 = vmatprep.subr.mxu0 0.0
    %6535 = vmatpush1.msra.mxu0 0.0
    %6536 = vmatprep.subr.mxu0 0.0
    %6537 = vmatpush1.msra.mxu0 0.0
    %6538 = vmatprep.subr.mxu0 0.0
    %6539 = vmatpush1.msra.mxu0 0.0
    %6540 = vmatprep.subr.mxu0 0.0
    %6541 = vmatpush1.msra.mxu0 %v6510
    %6542 = vmatprep.subr.mxu0 0.0
    %6543 = vmatpush1.msra.mxu0 %v6500
    %6544 = vmatprep.subr.mxu0 0.0
    %6545 = vmatpush2.msra.mxu0 0.0
    %6546 = vmatprep.subr.mxu0 0.0
    %6547 = vmatpush2.msra.mxu0 0.0
    %6548 = vmatprep.subr.mxu0 0.0
    %6549 = vmatpush2.msra.mxu0 0.0
    %6550 = vmatprep.subr.mxu0 0.0
    %6551 = vmatpush2.msra.mxu0 0.0
    %6552 = vmatprep.subr.mxu0 0.0
    %6553 = vmatpush2.msra.mxu0 0.0
    %6554 = vmatprep.subr.mxu0 0.0
    %6555 = vmatpush2.msra.mxu0 0.0
    %6556 = vmatprep.subr.mxu0 0.0
    %6557 = vmatpush2.msra.mxu0 0.0
    %6558 = vmatprep.subr.mxu0 0.0
    %6559 = vmatpush2.msra.mxu0 0.0
    %6560 = vmatprep.subr.mxu0 0.0
    %6561 = vmatpush2.msra.mxu0 0.0
    %6562 = vmatprep.subr.mxu0 0.0
    %6563 = vmatpush2.msra.mxu0 0.0
    %6564 = vmatprep.subr.mxu0 0.0
    %6565 = vmatpush2.msra.mxu0 0.0
    %6566 = vmatprep.subr.mxu0 0.0
    %6567 = vmatpush2.msra.mxu0 0.0
    %6568 = vmatprep.subr.mxu0 0.0
    %6569 = vmatpush2.msra.mxu0 0.0
    %6570 = vmatprep.subr.mxu0 0.0
    %6571 = vmatpush2.msra.mxu0 0.0
    %6572 = vmatprep.subr.mxu0 0.0
    %6573 = vmatpush2.msra.mxu0 0.0
    %6574 = vmatprep.subr.mxu0 0.0
    %6575 = vmatpush2.msra.mxu0 0.0
    %6576 = vmatprep.mubr.f32.mxu0 0.0
    %6577 = vmatmul.mubr.f32.gmra.mxu0 %v6505
    %v6578 = vpop.f32.mrf.mxu0
    %v6579 = vadd.f32 0.0, %v6578
    %v6580 = vpop.f32.mrf.mxu0
    %6581 = vmatprep.mubr.f32.mxu0 0.0
    %6582 = vmatmul.mubr.f32.gmra.mxu0 %v6508
    %v6583 = vpop.f32.mrf.mxu0
    %v6584 = vadd.f32 0.0, %v6583
    %v6585 = vpop.f32.mrf.mxu0
    %6586 = vdwg.mxu0
    %6587 = vrot.lane.b32.xlu0 %v6171, 112
    %v6588 = vpop.permute.xlu0 %6587
    %6589 = vrot.lane.b32.xlu0 %v6176, 112
    %v6590 = vpop.permute.xlu0 %6589
    %6591 = vrot.lane.b32.xlu0 %v6171, 80
    %v6592 = vpop.permute.xlu0 %6591
    %6593 = vrot.lane.b32.xlu0 %v6176, 80
    %v6594 = vpop.permute.xlu0 %6593
    %v6595 = vsel %vm407, %v6588, 0
    %v6597 = vsel %vm407, %v6590, 0
    %v6599 = vsel %vm407, %v6592, 0
    %v6601 = vsel %vm407, %v6594, 0
    %6603 = vmatprep.subr.mxu0 0.0
    %6604 = vmatpush1.xpose.msra.mxu0 0.0
    %6605 = vmatprep.subr.mxu0 0.0
    %6606 = vmatpush1.xpose.msra.mxu0 0.0
    %6607 = vmatprep.subr.mxu0 0.0
    %6608 = vmatpush1.xpose.msra.mxu0 0.0
    %6609 = vmatprep.subr.mxu0 0.0
    %6610 = vmatpush1.xpose.msra.mxu0 0.0
    %6611 = vmatprep.subr.mxu0 0.0
    %6612 = vmatpush1.xpose.msra.mxu0 0.0
    %6613 = vmatprep.subr.mxu0 0.0
    %6614 = vmatpush1.xpose.msra.mxu0 0.0
    %6615 = vmatprep.subr.mxu0 0.0
    %6616 = vmatpush1.xpose.msra.mxu0 0.0
    %6617 = vmatprep.subr.mxu0 0.0
    %6618 = vmatpush1.xpose.msra.mxu0 0.0
    %6619 = vmatprep.subr.mxu0 0.0
    %6620 = vmatpush1.xpose.msra.mxu0 0.0
    %6621 = vmatprep.subr.mxu0 0.0
    %6622 = vmatpush1.xpose.msra.mxu0 0.0
    %6623 = vmatprep.subr.mxu0 0.0
    %6624 = vmatpush1.xpose.msra.mxu0 0.0
    %6625 = vmatprep.subr.mxu0 0.0
    %6626 = vmatpush1.xpose.msra.mxu0 0.0
    %6627 = vmatprep.subr.mxu0 0.0
    %6628 = vmatpush1.xpose.msra.mxu0 0.0
    %6629 = vmatprep.subr.mxu0 0.0
    %6630 = vmatpush1.xpose.msra.mxu0 0.0
    %6631 = vmatprep.subr.mxu0 0.0
    %6632 = vmatpush1.xpose.msra.mxu0 %v6601
    %6633 = vmatprep.subr.mxu0 0.0
    %6634 = vmatpush1.xpose.msra.mxu0 %v6599
    %6635 = vmatprep.subr.mxu0 0.0
    %6636 = vmatpush2.xpose.msra.mxu0 0.0
    %6637 = vmatprep.subr.mxu0 0.0
    %6638 = vmatpush2.xpose.msra.mxu0 0.0
    %6639 = vmatprep.subr.mxu0 0.0
    %6640 = vmatpush2.xpose.msra.mxu0 0.0
    %6641 = vmatprep.subr.mxu0 0.0
    %6642 = vmatpush2.xpose.msra.mxu0 0.0
    %6643 = vmatprep.subr.mxu0 0.0
    %6644 = vmatpush2.xpose.msra.mxu0 0.0
    %6645 = vmatprep.subr.mxu0 0.0
    %6646 = vmatpush2.xpose.msra.mxu0 0.0
    %6647 = vmatprep.subr.mxu0 0.0
    %6648 = vmatpush2.xpose.msra.mxu0 0.0
    %6649 = vmatprep.subr.mxu0 0.0
    %6650 = vmatpush2.xpose.msra.mxu0 0.0
    %6651 = vmatprep.subr.mxu0 0.0
    %6652 = vmatpush2.xpose.msra.mxu0 0.0
    %6653 = vmatprep.subr.mxu0 0.0
    %6654 = vmatpush2.xpose.msra.mxu0 0.0
    %6655 = vmatprep.subr.mxu0 0.0
    %6656 = vmatpush2.xpose.msra.mxu0 0.0
    %6657 = vmatprep.subr.mxu0 0.0
    %6658 = vmatpush2.xpose.msra.mxu0 0.0
    %6659 = vmatprep.subr.mxu0 0.0
    %6660 = vmatpush2.xpose.msra.mxu0 0.0
    %6661 = vmatprep.subr.mxu0 0.0
    %6662 = vmatpush2.xpose.msra.mxu0 0.0
    %6663 = vmatprep.subr.mxu0 0.0
    %6664 = vmatpush2.xpose.msra.mxu0 0.0
    %6665 = vmatprep.subr.mxu0 0.0
    %6666 = vmatpush2.xpose.msra.mxu0 0.0
    %6667 = vmatprep.mubr.f32.mxu0 0.0
    %6668 = vmatmul.mubr.f32.gmra.mxu0 %v6595
    %v6669 = vpop.f32.mrf.mxu0
    %v6670 = vadd.f32 0.0, %v6669
    %v6671 = vpop.f32.mrf.mxu0
    %6672 = vmatprep.mubr.f32.mxu0 0.0
    %6673 = vmatmul.mubr.f32.gmra.mxu0 %v6597
    %v6674 = vpop.f32.mrf.mxu0
    %v6675 = vadd.f32 0.0, %v6674
    %v6676 = vpop.f32.mrf.mxu0
    %6677 = vdwg.mxu0
    %v6678 = vmul.f32 %v6670, 0.35355338
    %v6679 = vmul.f32 %v6675, 0.35355338
    %v6680 = vadd.f32 %v6678, %v4729
    %v6681 = vadd.f32 %v6679, %v4730
    %v6682 = vsel %vm4919, %v6680, -inf
    %6683 = vmax.xlane.f32.xlu0 %v6682
    %v6684 = vpop.xlane.xlu0 %6683
    %v6685 = vsel %vm4923, %v6681, -inf
    %6686 = vmax.xlane.f32.xlu0 %v6685
    %v6687 = vpop.xlane.xlu0 %6686
    %v6688 = vsub.f32 %v6680, %v6684
    %v6689 = vsub.f32 %v6681, %v6687
    %v6690 = vmul.f32 %v6688, 1.442695
    %v6691 = vpow.pop %v6690
    %v6692 = vmul.f32 %v6689, 1.442695
    %v6693 = vpow.pop %v6692
    %v6694 = vsel %vm4919, %v6691, 0.0
    %6695 = vadd.xlane.f32.xlu0 %v6694
    %v6696 = vpop.xlane.xlu0 %6695
    %v6697 = vsel %vm4923, %v6693, 0.0
    %6698 = vadd.xlane.f32.xlu0 %v6697
    %v6699 = vpop.xlane.xlu0 %6698
    %v6700 = vrcp.pop %v6696
    %v6701 = vrcp.pop %v6699
    %v6702 = vmul.f32 %v6691, %v6700
    %v6703 = vmul.f32 %v6693, %v6701
    %6704 = vrot.lane.b32.xlu0 %v6171, 48
    %v6705 = vpop.permute.xlu0 %6704
    %6706 = vrot.lane.b32.xlu0 %v6176, 48
    %v6707 = vpop.permute.xlu0 %6706
    %v6710 = vsel %vm4919, %v6702, 0
    %v6713 = vsel %vm4919, %v6703, 0
    %v6715 = vsel %vm4954, %v6707, 0
    %6717 = vmatprep.subr.mxu0 0.0
    %6718 = vmatpush1.msra.mxu0 0.0
    %6719 = vmatprep.subr.mxu0 0.0
    %6720 = vmatpush1.msra.mxu0 0.0
    %6721 = vmatprep.subr.mxu0 0.0
    %6722 = vmatpush1.msra.mxu0 0.0
    %6723 = vmatprep.subr.mxu0 0.0
    %6724 = vmatpush1.msra.mxu0 0.0
    %6725 = vmatprep.subr.mxu0 0.0
    %6726 = vmatpush1.msra.mxu0 0.0
    %6727 = vmatprep.subr.mxu0 0.0
    %6728 = vmatpush1.msra.mxu0 0.0
    %6729 = vmatprep.subr.mxu0 0.0
    %6730 = vmatpush1.msra.mxu0 0.0
    %6731 = vmatprep.subr.mxu0 0.0
    %6732 = vmatpush1.msra.mxu0 0.0
    %6733 = vmatprep.subr.mxu0 0.0
    %6734 = vmatpush1.msra.mxu0 0.0
    %6735 = vmatprep.subr.mxu0 0.0
    %6736 = vmatpush1.msra.mxu0 0.0
    %6737 = vmatprep.subr.mxu0 0.0
    %6738 = vmatpush1.msra.mxu0 0.0
    %6739 = vmatprep.subr.mxu0 0.0
    %6740 = vmatpush1.msra.mxu0 0.0
    %6741 = vmatprep.subr.mxu0 0.0
    %6742 = vmatpush1.msra.mxu0 0.0
    %6743 = vmatprep.subr.mxu0 0.0
    %6744 = vmatpush1.msra.mxu0 0.0
    %6745 = vmatprep.subr.mxu0 0.0
    %6746 = vmatpush1.msra.mxu0 %v6715
    %6747 = vmatprep.subr.mxu0 0.0
    %6748 = vmatpush1.msra.mxu0 %v6705
    %6749 = vmatprep.subr.mxu0 0.0
    %6750 = vmatpush2.msra.mxu0 0.0
    %6751 = vmatprep.subr.mxu0 0.0
    %6752 = vmatpush2.msra.mxu0 0.0
    %6753 = vmatprep.subr.mxu0 0.0
    %6754 = vmatpush2.msra.mxu0 0.0
    %6755 = vmatprep.subr.mxu0 0.0
    %6756 = vmatpush2.msra.mxu0 0.0
    %6757 = vmatprep.subr.mxu0 0.0
    %6758 = vmatpush2.msra.mxu0 0.0
    %6759 = vmatprep.subr.mxu0 0.0
    %6760 = vmatpush2.msra.mxu0 0.0
    %6761 = vmatprep.subr.mxu0 0.0
    %6762 = vmatpush2.msra.mxu0 0.0
    %6763 = vmatprep.subr.mxu0 0.0
    %6764 = vmatpush2.msra.mxu0 0.0
    %6765 = vmatprep.subr.mxu0 0.0
    %6766 = vmatpush2.msra.mxu0 0.0
    %6767 = vmatprep.subr.mxu0 0.0
    %6768 = vmatpush2.msra.mxu0 0.0
    %6769 = vmatprep.subr.mxu0 0.0
    %6770 = vmatpush2.msra.mxu0 0.0
    %6771 = vmatprep.subr.mxu0 0.0
    %6772 = vmatpush2.msra.mxu0 0.0
    %6773 = vmatprep.subr.mxu0 0.0
    %6774 = vmatpush2.msra.mxu0 0.0
    %6775 = vmatprep.subr.mxu0 0.0
    %6776 = vmatpush2.msra.mxu0 0.0
    %6777 = vmatprep.subr.mxu0 0.0
    %6778 = vmatpush2.msra.mxu0 0.0
    %6779 = vmatprep.subr.mxu0 0.0
    %6780 = vmatpush2.msra.mxu0 0.0
    %6781 = vmatprep.mubr.f32.mxu0 0.0
    %6782 = vmatmul.mubr.f32.gmra.mxu0 %v6710
    %v6783 = vpop.f32.mrf.mxu0
    %v6784 = vadd.f32 0.0, %v6783
    %v6785 = vpop.f32.mrf.mxu0
    %6786 = vmatprep.mubr.f32.mxu0 0.0
    %6787 = vmatmul.mubr.f32.gmra.mxu0 %v6713
    %v6788 = vpop.f32.mrf.mxu0
    %v6789 = vadd.f32 0.0, %v6788
    %v6790 = vpop.f32.mrf.mxu0
    %6791 = vdwg.mxu0
    %6792 = vrot.lane.b32.xlu0 %v6171, 104
    %v6793 = vpop.permute.xlu0 %6792
    %6794 = vrot.lane.b32.xlu0 %v6176, 104
    %v6795 = vpop.permute.xlu0 %6794
    %6796 = vrot.lane.b32.xlu0 %v6171, 72
    %v6797 = vpop.permute.xlu0 %6796
    %6798 = vrot.lane.b32.xlu0 %v6176, 72
    %v6799 = vpop.permute.xlu0 %6798
    %v6800 = vsel %vm407, %v6793, 0
    %v6802 = vsel %vm407, %v6795, 0
    %v6804 = vsel %vm407, %v6797, 0
    %v6806 = vsel %vm407, %v6799, 0
    %6808 = vmatprep.subr.mxu0 0.0
    %6809 = vmatpush1.xpose.msra.mxu0 0.0
    %6810 = vmatprep.subr.mxu0 0.0
    %6811 = vmatpush1.xpose.msra.mxu0 0.0
    %6812 = vmatprep.subr.mxu0 0.0
    %6813 = vmatpush1.xpose.msra.mxu0 0.0
    %6814 = vmatprep.subr.mxu0 0.0
    %6815 = vmatpush1.xpose.msra.mxu0 0.0
    %6816 = vmatprep.subr.mxu0 0.0
    %6817 = vmatpush1.xpose.msra.mxu0 0.0
    %6818 = vmatprep.subr.mxu0 0.0
    %6819 = vmatpush1.xpose.msra.mxu0 0.0
    %6820 = vmatprep.subr.mxu0 0.0
    %6821 = vmatpush1.xpose.msra.mxu0 0.0
    %6822 = vmatprep.subr.mxu0 0.0
    %6823 = vmatpush1.xpose.msra.mxu0 0.0
    %6824 = vmatprep.subr.mxu0 0.0
    %6825 = vmatpush1.xpose.msra.mxu0 0.0
    %6826 = vmatprep.subr.mxu0 0.0
    %6827 = vmatpush1.xpose.msra.mxu0 0.0
    %6828 = vmatprep.subr.mxu0 0.0
    %6829 = vmatpush1.xpose.msra.mxu0 0.0
    %6830 = vmatprep.subr.mxu0 0.0
    %6831 = vmatpush1.xpose.msra.mxu0 0.0
    %6832 = vmatprep.subr.mxu0 0.0
    %6833 = vmatpush1.xpose.msra.mxu0 0.0
    %6834 = vmatprep.subr.mxu0 0.0
    %6835 = vmatpush1.xpose.msra.mxu0 0.0
    %6836 = vmatprep.subr.mxu0 0.0
    %6837 = vmatpush1.xpose.msra.mxu0 %v6806
    %6838 = vmatprep.subr.mxu0 0.0
    %6839 = vmatpush1.xpose.msra.mxu0 %v6804
    %6840 = vmatprep.subr.mxu0 0.0
    %6841 = vmatpush2.xpose.msra.mxu0 0.0
    %6842 = vmatprep.subr.mxu0 0.0
    %6843 = vmatpush2.xpose.msra.mxu0 0.0
    %6844 = vmatprep.subr.mxu0 0.0
    %6845 = vmatpush2.xpose.msra.mxu0 0.0
    %6846 = vmatprep.subr.mxu0 0.0
    %6847 = vmatpush2.xpose.msra.mxu0 0.0
    %6848 = vmatprep.subr.mxu0 0.0
    %6849 = vmatpush2.xpose.msra.mxu0 0.0
    %6850 = vmatprep.subr.mxu0 0.0
    %6851 = vmatpush2.xpose.msra.mxu0 0.0
    %6852 = vmatprep.subr.mxu0 0.0
    %6853 = vmatpush2.xpose.msra.mxu0 0.0
    %6854 = vmatprep.subr.mxu0 0.0
    %6855 = vmatpush2.xpose.msra.mxu0 0.0
    %6856 = vmatprep.subr.mxu0 0.0
    %6857 = vmatpush2.xpose.msra.mxu0 0.0
    %6858 = vmatprep.subr.mxu0 0.0
    %6859 = vmatpush2.xpose.msra.mxu0 0.0
    %6860 = vmatprep.subr.mxu0 0.0
    %6861 = vmatpush2.xpose.msra.mxu0 0.0
    %6862 = vmatprep.subr.mxu0 0.0
    %6863 = vmatpush2.xpose.msra.mxu0 0.0
    %6864 = vmatprep.subr.mxu0 0.0
    %6865 = vmatpush2.xpose.msra.mxu0 0.0
    %6866 = vmatprep.subr.mxu0 0.0
    %6867 = vmatpush2.xpose.msra.mxu0 0.0
    %6868 = vmatprep.subr.mxu0 0.0
    %6869 = vmatpush2.xpose.msra.mxu0 0.0
    %6870 = vmatprep.subr.mxu0 0.0
    %6871 = vmatpush2.xpose.msra.mxu0 0.0
    %6872 = vmatprep.mubr.f32.mxu0 0.0
    %6873 = vmatmul.mubr.f32.gmra.mxu0 %v6800
    %v6874 = vpop.f32.mrf.mxu0
    %v6875 = vadd.f32 0.0, %v6874
    %v6876 = vpop.f32.mrf.mxu0
    %6877 = vmatprep.mubr.f32.mxu0 0.0
    %6878 = vmatmul.mubr.f32.gmra.mxu0 %v6802
    %v6879 = vpop.f32.mrf.mxu0
    %v6880 = vadd.f32 0.0, %v6879
    %v6881 = vpop.f32.mrf.mxu0
    %6882 = vdwg.mxu0
    %v6883 = vmul.f32 %v6875, 0.35355338
    %v6884 = vmul.f32 %v6880, 0.35355338
    %v6885 = vadd.f32 %v6883, %v4729
    %v6886 = vadd.f32 %v6884, %v4730
    %v6887 = vsel %vm4919, %v6885, -inf
    %6888 = vmax.xlane.f32.xlu0 %v6887
    %v6889 = vpop.xlane.xlu0 %6888
    %v6890 = vsel %vm4923, %v6886, -inf
    %6891 = vmax.xlane.f32.xlu0 %v6890
    %v6892 = vpop.xlane.xlu0 %6891
    %v6893 = vsub.f32 %v6885, %v6889
    %v6894 = vsub.f32 %v6886, %v6892
    %v6895 = vmul.f32 %v6893, 1.442695
    %v6896 = vpow.pop %v6895
    %v6897 = vmul.f32 %v6894, 1.442695
    %v6898 = vpow.pop %v6897
    %v6899 = vsel %vm4919, %v6896, 0.0
    %6900 = vadd.xlane.f32.xlu0 %v6899
    %v6901 = vpop.xlane.xlu0 %6900
    %v6902 = vsel %vm4923, %v6898, 0.0
    %6903 = vadd.xlane.f32.xlu0 %v6902
    %v6904 = vpop.xlane.xlu0 %6903
    %v6905 = vrcp.pop %v6901
    %v6906 = vrcp.pop %v6904
    %v6907 = vmul.f32 %v6896, %v6905
    %v6908 = vmul.f32 %v6898, %v6906
    %6909 = vrot.lane.b32.xlu0 %v6171, 40
    %v6910 = vpop.permute.xlu0 %6909
    %6911 = vrot.lane.b32.xlu0 %v6176, 40
    %v6912 = vpop.permute.xlu0 %6911
    %v6915 = vsel %vm4919, %v6907, 0
    %v6918 = vsel %vm4919, %v6908, 0
    %v6920 = vsel %vm4954, %v6912, 0
    %6922 = vmatprep.subr.mxu0 0.0
    %6923 = vmatpush1.msra.mxu0 0.0
    %6924 = vmatprep.subr.mxu0 0.0
    %6925 = vmatpush1.msra.mxu0 0.0
    %6926 = vmatprep.subr.mxu0 0.0
    %6927 = vmatpush1.msra.mxu0 0.0
    %6928 = vmatprep.subr.mxu0 0.0
    %6929 = vmatpush1.msra.mxu0 0.0
    %6930 = vmatprep.subr.mxu0 0.0
    %6931 = vmatpush1.msra.mxu0 0.0
    %6932 = vmatprep.subr.mxu0 0.0
    %6933 = vmatpush1.msra.mxu0 0.0
    %6934 = vmatprep.subr.mxu0 0.0
    %6935 = vmatpush1.msra.mxu0 0.0
    %6936 = vmatprep.subr.mxu0 0.0
    %6937 = vmatpush1.msra.mxu0 0.0
    %6938 = vmatprep.subr.mxu0 0.0
    %6939 = vmatpush1.msra.mxu0 0.0
    %6940 = vmatprep.subr.mxu0 0.0
    %6941 = vmatpush1.msra.mxu0 0.0
    %6942 = vmatprep.subr.mxu0 0.0
    %6943 = vmatpush1.msra.mxu0 0.0
    %6944 = vmatprep.subr.mxu0 0.0
    %6945 = vmatpush1.msra.mxu0 0.0
    %6946 = vmatprep.subr.mxu0 0.0
    %6947 = vmatpush1.msra.mxu0 0.0
    %6948 = vmatprep.subr.mxu0 0.0
    %6949 = vmatpush1.msra.mxu0 0.0
    %6950 = vmatprep.subr.mxu0 0.0
    %6951 = vmatpush1.msra.mxu0 %v6920
    %6952 = vmatprep.subr.mxu0 0.0
    %6953 = vmatpush1.msra.mxu0 %v6910
    %6954 = vmatprep.subr.mxu0 0.0
    %6955 = vmatpush2.msra.mxu0 0.0
    %6956 = vmatprep.subr.mxu0 0.0
    %6957 = vmatpush2.msra.mxu0 0.0
    %6958 = vmatprep.subr.mxu0 0.0
    %6959 = vmatpush2.msra.mxu0 0.0
    %6960 = vmatprep.subr.mxu0 0.0
    %6961 = vmatpush2.msra.mxu0 0.0
    %6962 = vmatprep.subr.mxu0 0.0
    %6963 = vmatpush2.msra.mxu0 0.0
    %6964 = vmatprep.subr.mxu0 0.0
    %6965 = vmatpush2.msra.mxu0 0.0
    %6966 = vmatprep.subr.mxu0 0.0
    %6967 = vmatpush2.msra.mxu0 0.0
    %6968 = vmatprep.subr.mxu0 0.0
    %6969 = vmatpush2.msra.mxu0 0.0
    %6970 = vmatprep.subr.mxu0 0.0
    %6971 = vmatpush2.msra.mxu0 0.0
    %6972 = vmatprep.subr.mxu0 0.0
    %6973 = vmatpush2.msra.mxu0 0.0
    %6974 = vmatprep.subr.mxu0 0.0
    %6975 = vmatpush2.msra.mxu0 0.0
    %6976 = vmatprep.subr.mxu0 0.0
    %6977 = vmatpush2.msra.mxu0 0.0
    %6978 = vmatprep.subr.mxu0 0.0
    %6979 = vmatpush2.msra.mxu0 0.0
    %6980 = vmatprep.subr.mxu0 0.0
    %6981 = vmatpush2.msra.mxu0 0.0
    %6982 = vmatprep.subr.mxu0 0.0
    %6983 = vmatpush2.msra.mxu0 0.0
    %6984 = vmatprep.subr.mxu0 0.0
    %6985 = vmatpush2.msra.mxu0 0.0
    %6986 = vmatprep.mubr.f32.mxu0 0.0
    %6987 = vmatmul.mubr.f32.gmra.mxu0 %v6915
    %v6988 = vpop.f32.mrf.mxu0
    %v6989 = vadd.f32 0.0, %v6988
    %v6990 = vpop.f32.mrf.mxu0
    %6991 = vmatprep.mubr.f32.mxu0 0.0
    %6992 = vmatmul.mubr.f32.gmra.mxu0 %v6918
    %v6993 = vpop.f32.mrf.mxu0
    %v6994 = vadd.f32 0.0, %v6993
    %v6995 = vpop.f32.mrf.mxu0
    %6996 = vdwg.mxu0
    %6999 = vrot.lane.b32.xlu0 %v6579, 8
    %v7000 = vpop.permute.xlu0 %6999
    %7001 = vrot.lane.b32.xlu0 %v6584, 8
    %v7002 = vpop.permute.xlu0 %7001
    %7007 = vrot.lane.b32.xlu0 %v6784, 16
    %v7008 = vpop.permute.xlu0 %7007
    %7009 = vrot.lane.b32.xlu0 %v6789, 16
    %v7010 = vpop.permute.xlu0 %7009
    %7015 = vrot.lane.b32.xlu0 %v6989, 24
    %v7016 = vpop.permute.xlu0 %7015
    %7017 = vrot.lane.b32.xlu0 %v6994, 24
    %v7018 = vpop.permute.xlu0 %7017
    %v7021 = vsel %vm407, %v6374, %v7000
    %v7022 = vsel %vm407, %v6379, %v7002
    %v7023 = vsel %vm1714, %v7021, %v7008
    %v7024 = vsel %vm1714, %v7022, %v7010
    %v7025 = vsel %vm1720, %v7023, %v7016
    %v7026 = vsel %vm1720, %v7024, %v7018
    %v7027 = vlaneseq
    %v7028 = vshrl.u32 %v7027, 7
    %v7029 = vsub.s32 0, %v7028
    %v7030 = vrot.slane %v6093, %v7029
    %v7032 = vsel %vm188, %v7025, 0
    %v7035 = vsel %vm188, %v7026, 0
    %7037 = vmatprep.subr.mxu0 0.0
    %7038 = vmatpush1.msra.mxu0 0.0
    %7039 = vmatprep.subr.mxu0 0.0
    %7040 = vmatpush1.msra.mxu0 0.0
    %7041 = vmatprep.subr.mxu0 0.0
    %7042 = vmatpush1.msra.mxu0 0.0
    %7043 = vmatprep.subr.mxu0 0.0
    %7044 = vmatpush1.msra.mxu0 0.0
    %7045 = vmatprep.subr.mxu0 0.0
    %7046 = vmatpush1.msra.mxu0 0.0
    %7047 = vmatprep.subr.mxu0 0.0
    %7048 = vmatpush1.msra.mxu0 0.0
    %7049 = vmatprep.subr.mxu0 0.0
    %7050 = vmatpush1.msra.mxu0 0.0
    %7051 = vmatprep.subr.mxu0 0.0
    %7052 = vmatpush1.msra.mxu0 0.0
    %7053 = vmatprep.subr.mxu0 0.0
    %7054 = vmatpush1.msra.mxu0 0.0
    %7055 = vmatprep.subr.mxu0 0.0
    %7056 = vmatpush1.msra.mxu0 0.0
    %7057 = vmatprep.subr.mxu0 0.0
    %7058 = vmatpush1.msra.mxu0 0.0
    %7059 = vmatprep.subr.mxu0 0.0
    %7060 = vmatpush1.msra.mxu0 0.0
    %7061 = vmatprep.subr.mxu0 0.0
    %7062 = vmatpush1.msra.mxu0 %v6092
    %7063 = vmatprep.subr.mxu0 0.0
    %7064 = vmatpush1.msra.mxu0 %v6091
    %7065 = vmatprep.subr.mxu0 0.0
    %7066 = vmatpush1.msra.mxu0 %v6090
    %7067 = vmatprep.subr.mxu0 0.0
    %7068 = vmatpush1.msra.mxu0 %v6089
    %7069 = vmatprep.subr.mxu0 0.0
    %7070 = vmatpush2.msra.mxu0 0.0
    %7071 = vmatprep.subr.mxu0 0.0
    %7072 = vmatpush2.msra.mxu0 0.0
    %7073 = vmatprep.subr.mxu0 0.0
    %7074 = vmatpush2.msra.mxu0 0.0
    %7075 = vmatprep.subr.mxu0 0.0
    %7076 = vmatpush2.msra.mxu0 0.0
    %7077 = vmatprep.subr.mxu0 0.0
    %7078 = vmatpush2.msra.mxu0 0.0
    %7079 = vmatprep.subr.mxu0 0.0
    %7080 = vmatpush2.msra.mxu0 0.0
    %7081 = vmatprep.subr.mxu0 0.0
    %7082 = vmatpush2.msra.mxu0 0.0
    %7083 = vmatprep.subr.mxu0 0.0
    %7084 = vmatpush2.msra.mxu0 0.0
    %7085 = vmatprep.subr.mxu0 0.0
    %7086 = vmatpush2.msra.mxu0 0.0
    %7087 = vmatprep.subr.mxu0 0.0
    %7088 = vmatpush2.msra.mxu0 0.0
    %7089 = vmatprep.subr.mxu0 0.0
    %7090 = vmatpush2.msra.mxu0 0.0
    %7091 = vmatprep.subr.mxu0 0.0
    %7092 = vmatpush2.msra.mxu0 0.0
    %7093 = vmatprep.subr.mxu0 0.0
    %7094 = vmatpush2.msra.mxu0 0.0
    %7095 = vmatprep.subr.mxu0 0.0
    %7096 = vmatpush2.msra.mxu0 0.0
    %7097 = vmatprep.subr.mxu0 0.0
    %7098 = vmatpush2.msra.mxu0 0.0
    %7099 = vmatprep.subr.mxu0 0.0
    %7100 = vmatpush2.msra.mxu0 0.0
    %7101 = vmatprep.mubr.f32.mxu0 0.0
    %7102 = vmatmul.mubr.f32.gmra.mxu0 %v7032
    %v7103 = vpop.f32.mrf.mxu0
    %v7104 = vadd.f32 %v7030, %v7103
    %v7105 = vpop.f32.mrf.mxu0
    %7106 = vmatprep.mubr.f32.mxu0 0.0
    %7107 = vmatmul.mubr.f32.gmra.mxu0 %v7035
    %v7108 = vpop.f32.mrf.mxu0
    %v7109 = vadd.f32 %v7030, %v7108
    %v7110 = vpop.f32.mrf.mxu0
    %7111 = vdwg.mxu0
    %v7112 = vadd.f32 %v7104, %v6082
    %v7113 = vadd.f32 %v7109, %v6083
    %v7114 = vld [vmem:[%s5 + $0x510] sm:$0x1]
    %v7115 = vld [vmem:[%s5 + $0x518] sm:$0x1]
    %v7116 = vsel %vm188, %v7112, 0.0
    %7117 = vadd.xlane.f32.xlu0 %v7116
    %v7118 = vpop.xlane.xlu0 %7117
    %v7119 = vsel %vm4600, %v7113, 0.0
    %7120 = vadd.xlane.f32.xlu0 %v7119
    %v7121 = vpop.xlane.xlu0 %7120
    %v7122 = vmul.f32 %v7118, %v204
    %v7123 = vmul.f32 %v7121, %v204
    %v7124 = vsub.f32 %v7112, %v7122
    %v7125 = vsub.f32 %v7113, %v7123
    %v7126 = vmul.f32 %v7124, %v7124
    %v7127 = vmul.f32 %v7125, %v7125
    %v7128 = vsel %vm188, %v7126, 0.0
    %7129 = vadd.xlane.f32.xlu0 %v7128
    %v7130 = vpop.xlane.xlu0 %7129
    %v7131 = vsel %vm4600, %v7127, 0.0
    %7132 = vadd.xlane.f32.xlu0 %v7131
    %v7133 = vpop.xlane.xlu0 %7132
    %v7134 = vmul.f32 %v7130, %v204
    %v7135 = vmul.f32 %v7133, %v204
    %v7136 = vadd.f32 %v7134, 1e-12
    %v7137 = vadd.f32 %v7135, 1e-12
    %v7138 = vrsqrt.pop %v7136
    %v7139 = vrsqrt.pop %v7137
    %v7140 = vmul.f32 %v7124, %v7138
    %v7141 = vmul.f32 %v7125, %v7139
    %v7142 = vlaneseq
    %v7143 = vshrl.u32 %v7142, 7
    %v7144 = vsub.s32 0, %v7143
    %v7145 = vrot.slane %v7114, %v7144
    %v7146 = vmul.f32 %v7140, %v7145
    %v7147 = vmul.f32 %v7141, %v7145
    %v7148 = vlaneseq
    %v7149 = vshrl.u32 %v7148, 7
    %v7150 = vsub.s32 0, %v7149
    %v7151 = vrot.slane %v7115, %v7150
    %v7152 = vadd.f32 %v7146, %v7151
    %v7153 = vadd.f32 %v7147, %v7151
    %v7154 = vld [vmem:[%s5 + $0x520] sm:$0xff]
    %v7155 = vld [vmem:[%s5 + $0x528] sm:$0xff]
    %v7156 = vld [vmem:[%s5 + $0x530] sm:$0xff]
    %v7157 = vld [vmem:[%s5 + $0x538] sm:$0xff]
    %v7158 = vld [vmem:[%s5 + $0x540] sm:$0x1]
    %v7159 = vld [vmem:[%s5 + $0x548] sm:$0xff]
    %v7160 = vld [vmem:[%s5 + $0x550] sm:$0xff]
    %v7161 = vld [vmem:[%s5 + $0x558] sm:$0xff]
    %v7162 = vld [vmem:[%s5 + $0x560] sm:$0xff]
    %v7163 = vld [vmem:[%s5 + $0x568] sm:$0xff]
    %v7164 = vld [vmem:[%s5 + $0x570] sm:$0xff]
    %v7165 = vld [vmem:[%s5 + $0x578] sm:$0xff]
    %v7166 = vld [vmem:[%s5 + $0x580] sm:$0xff]
    %v7167 = vld [vmem:[%s5 + $0x588] sm:$0x1]
    %v7168 = vlaneseq
    %v7169 = vshrl.u32 %v7168, 7
    %v7170 = vsub.s32 0, %v7169
    %v7171 = vrot.slane %v7158, %v7170
    %v7173 = vsel %vm188, %v7152, 0
    %v7176 = vsel %vm188, %v7153, 0
    %7178 = vmatprep.subr.mxu0 0.0
    %7179 = vmatpush1.msra.mxu0 0.0
    %7180 = vmatprep.subr.mxu0 0.0
    %7181 = vmatpush1.msra.mxu0 0.0
    %7182 = vmatprep.subr.mxu0 0.0
    %7183 = vmatpush1.msra.mxu0 0.0
    %7184 = vmatprep.subr.mxu0 0.0
    %7185 = vmatpush1.msra.mxu0 0.0
    %7186 = vmatprep.subr.mxu0 0.0
    %7187 = vmatpush1.msra.mxu0 0.0
    %7188 = vmatprep.subr.mxu0 0.0
    %7189 = vmatpush1.msra.mxu0 0.0
    %7190 = vmatprep.subr.mxu0 0.0
    %7191 = vmatpush1.msra.mxu0 0.0
    %7192 = vmatprep.subr.mxu0 0.0
    %7193 = vmatpush1.msra.mxu0 0.0
    %7194 = vmatprep.subr.mxu0 0.0
    %7195 = vmatpush1.msra.mxu0 0.0
    %7196 = vmatprep.subr.mxu0 0.0
    %7197 = vmatpush1.msra.mxu0 0.0
    %7198 = vmatprep.subr.mxu0 0.0
    %7199 = vmatpush1.msra.mxu0 0.0
    %7200 = vmatprep.subr.mxu0 0.0
    %7201 = vmatpush1.msra.mxu0 0.0
    %7202 = vmatprep.subr.mxu0 0.0
    %7203 = vmatpush1.msra.mxu0 %v7157
    %7204 = vmatprep.subr.mxu0 0.0
    %7205 = vmatpush1.msra.mxu0 %v7156
    %7206 = vmatprep.subr.mxu0 0.0
    %7207 = vmatpush1.msra.mxu0 %v7155
    %7208 = vmatprep.subr.mxu0 0.0
    %7209 = vmatpush1.msra.mxu0 %v7154
    %7210 = vmatprep.subr.mxu0 0.0
    %7211 = vmatpush2.msra.mxu0 0.0
    %7212 = vmatprep.subr.mxu0 0.0
    %7213 = vmatpush2.msra.mxu0 0.0
    %7214 = vmatprep.subr.mxu0 0.0
    %7215 = vmatpush2.msra.mxu0 0.0
    %7216 = vmatprep.subr.mxu0 0.0
    %7217 = vmatpush2.msra.mxu0 0.0
    %7218 = vmatprep.subr.mxu0 0.0
    %7219 = vmatpush2.msra.mxu0 0.0
    %7220 = vmatprep.subr.mxu0 0.0
    %7221 = vmatpush2.msra.mxu0 0.0
    %7222 = vmatprep.subr.mxu0 0.0
    %7223 = vmatpush2.msra.mxu0 0.0
    %7224 = vmatprep.subr.mxu0 0.0
    %7225 = vmatpush2.msra.mxu0 0.0
    %7226 = vmatprep.subr.mxu0 0.0
    %7227 = vmatpush2.msra.mxu0 0.0
    %7228 = vmatprep.subr.mxu0 0.0
    %7229 = vmatpush2.msra.mxu0 0.0
    %7230 = vmatprep.subr.mxu0 0.0
    %7231 = vmatpush2.msra.mxu0 0.0
    %7232 = vmatprep.subr.mxu0 0.0
    %7233 = vmatpush2.msra.mxu0 0.0
    %7234 = vmatprep.subr.mxu0 0.0
    %7235 = vmatpush2.msra.mxu0 0.0
    %7236 = vmatprep.subr.mxu0 0.0
    %7237 = vmatpush2.msra.mxu0 0.0
    %7238 = vmatprep.subr.mxu0 0.0
    %7239 = vmatpush2.msra.mxu0 0.0
    %7240 = vmatprep.subr.mxu0 0.0
    %7241 = vmatpush2.msra.mxu0 0.0
    %7242 = vmatprep.mubr.f32.mxu0 0.0
    %7243 = vmatmul.mubr.f32.gmra.mxu0 %v7173
    %v7244 = vpop.f32.mrf.mxu0
    %v7245 = vadd.f32 %v7171, %v7244
    %v7246 = vpop.f32.mrf.mxu0
    %7247 = vmatprep.mubr.f32.mxu0 0.0
    %7248 = vmatmul.mubr.f32.gmra.mxu0 %v7176
    %v7249 = vpop.f32.mrf.mxu0
    %v7250 = vadd.f32 %v7171, %v7249
    %v7251 = vpop.f32.mrf.mxu0
    %7252 = vdwg.mxu0
    %v7253 = vmul.f32 %v7245, 0.5
    %v7254 = vmul.f32 %v7250, 0.5
    %v7255 = vmul.f32 %v7245, 0.70710677
    %v7256 = vmul.f32 %v7250, 0.70710677
    %vm7257 = vcmp.ge.f32.partialorder %v7255, 0.0
    %vm7258 = vcmp.ge.f32.partialorder %v7256, 0.0
    %v7259 = vsel %vm7257, 1.0, -1.0
    %v7260 = vsel %vm7258, 1.0, -1.0
    %v7261 = vand.u32 2147483647, %v7255
    %v7262 = vand.u32 2147483647, %v7256
    %v7263 = vmul.f32 %v7261, 0.3275911
    %v7264 = vmul.f32 %v7262, 0.3275911
    %v7265 = vadd.f32 %v7263, 1.0
    %v7266 = vadd.f32 %v7264, 1.0
    %v7267 = vrcp.pop %v7265
    %v7268 = vmul.f32 1.0, %v7267
    %v7269 = vrcp.pop %v7266
    %v7270 = vmul.f32 1.0, %v7269
    %v7271 = vmul.f32 %v7268, 1.0614054
    %v7272 = vmul.f32 %v7270, 1.0614054
    %v7273 = vadd.f32 %v7271, -1.4531521
    %v7274 = vadd.f32 %v7272, -1.4531521
    %v7275 = vmul.f32 %v7273, %v7268
    %v7276 = vmul.f32 %v7274, %v7270
    %v7277 = vadd.f32 %v7275, 1.4214138
    %v7278 = vadd.f32 %v7276, 1.4214138
    %v7279 = vmul.f32 %v7277, %v7268
    %v7280 = vmul.f32 %v7278, %v7270
    %v7281 = vadd.f32 %v7279, -0.28449672
    %v7282 = vadd.f32 %v7280, -0.28449672
    %v7283 = vmul.f32 %v7281, %v7268
    %v7284 = vmul.f32 %v7282, %v7270
    %v7285 = vadd.f32 %v7283, 0.2548296
    %v7286 = vadd.f32 %v7284, 0.2548296
    %v7287 = vmul.f32 %v7285, %v7268
    %v7288 = vmul.f32 %v7286, %v7270
    %v7289 = vsub.f32 0.0, %v7261
    %v7290 = vsub.f32 0.0, %v7262
    %v7291 = vmul.f32 %v7289, %v7261
    %v7292 = vmul.f32 %v7290, %v7262
    %v7293 = vmul.f32 %v7291, 1.442695
    %v7294 = vpow.pop %v7293
    %v7295 = vmul.f32 %v7292, 1.442695
    %v7296 = vpow.pop %v7295
    %v7297 = vmul.f32 %v7287, %v7294
    %v7298 = vmul.f32 %v7288, %v7296
    %v7299 = vsub.f32 1.0, %v7297
    %v7300 = vsub.f32 1.0, %v7298
    %v7301 = vmul.f32 %v7259, %v7299
    %v7302 = vmul.f32 %v7260, %v7300
    %v7303 = vadd.f32 %v7301, 1.0
    %v7304 = vadd.f32 %v7302, 1.0
    %v7305 = vmul.f32 %v7253, %v7303
    %v7306 = vmul.f32 %v7254, %v7304
    %v7307 = vlaneseq
    %v7308 = vshrl.u32 %v7307, 7
    %v7309 = vsub.s32 0, %v7308
    %v7310 = vrot.slane %v7167, %v7309
    %v7312 = vsel %vm75, %v7305, 0
    %v7315 = vsel %vm75, %v7306, 0
    %7317 = vmatprep.subr.mxu0 0.0
    %7318 = vmatpush1.msra.mxu0 0.0
    %7319 = vmatprep.subr.mxu0 0.0
    %7320 = vmatpush1.msra.mxu0 0.0
    %7321 = vmatprep.subr.mxu0 0.0
    %7322 = vmatpush1.msra.mxu0 0.0
    %7323 = vmatprep.subr.mxu0 0.0
    %7324 = vmatpush1.msra.mxu0 0.0
    %7325 = vmatprep.subr.mxu0 0.0
    %7326 = vmatpush1.msra.mxu0 0.0
    %7327 = vmatprep.subr.mxu0 0.0
    %7328 = vmatpush1.msra.mxu0 0.0
    %7329 = vmatprep.subr.mxu0 0.0
    %7330 = vmatpush1.msra.mxu0 0.0
    %7331 = vmatprep.subr.mxu0 0.0
    %7332 = vmatpush1.msra.mxu0 0.0
    %7333 = vmatprep.subr.mxu0 0.0
    %7334 = vmatpush1.msra.mxu0 %v7166
    %7335 = vmatprep.subr.mxu0 0.0
    %7336 = vmatpush1.msra.mxu0 %v7165
    %7337 = vmatprep.subr.mxu0 0.0
    %7338 = vmatpush1.msra.mxu0 %v7164
    %7339 = vmatprep.subr.mxu0 0.0
    %7340 = vmatpush1.msra.mxu0 %v7163
    %7341 = vmatprep.subr.mxu0 0.0
    %7342 = vmatpush1.msra.mxu0 %v7162
    %7343 = vmatprep.subr.mxu0 0.0
    %7344 = vmatpush1.msra.mxu0 %v7161
    %7345 = vmatprep.subr.mxu0 0.0
    %7346 = vmatpush1.msra.mxu0 %v7160
    %7347 = vmatprep.subr.mxu0 0.0
    %7348 = vmatpush1.msra.mxu0 %v7159
    %7349 = vmatprep.subr.mxu0 0.0
    %7350 = vmatpush2.msra.mxu0 0.0
    %7351 = vmatprep.subr.mxu0 0.0
    %7352 = vmatpush2.msra.mxu0 0.0
    %7353 = vmatprep.subr.mxu0 0.0
    %7354 = vmatpush2.msra.mxu0 0.0
    %7355 = vmatprep.subr.mxu0 0.0
    %7356 = vmatpush2.msra.mxu0 0.0
    %7357 = vmatprep.subr.mxu0 0.0
    %7358 = vmatpush2.msra.mxu0 0.0
    %7359 = vmatprep.subr.mxu0 0.0
    %7360 = vmatpush2.msra.mxu0 0.0
    %7361 = vmatprep.subr.mxu0 0.0
    %7362 = vmatpush2.msra.mxu0 0.0
    %7363 = vmatprep.subr.mxu0 0.0
    %7364 = vmatpush2.msra.mxu0 0.0
    %7365 = vmatprep.subr.mxu0 0.0
    %7366 = vmatpush2.msra.mxu0 0.0
    %7367 = vmatprep.subr.mxu0 0.0
    %7368 = vmatpush2.msra.mxu0 0.0
    %7369 = vmatprep.subr.mxu0 0.0
    %7370 = vmatpush2.msra.mxu0 0.0
    %7371 = vmatprep.subr.mxu0 0.0
    %7372 = vmatpush2.msra.mxu0 0.0
    %7373 = vmatprep.subr.mxu0 0.0
    %7374 = vmatpush2.msra.mxu0 0.0
    %7375 = vmatprep.subr.mxu0 0.0
    %7376 = vmatpush2.msra.mxu0 0.0
    %7377 = vmatprep.subr.mxu0 0.0
    %7378 = vmatpush2.msra.mxu0 0.0
    %7379 = vmatprep.subr.mxu0 0.0
    %7380 = vmatpush2.msra.mxu0 0.0
    %7381 = vmatprep.mubr.f32.mxu0 0.0
    %7382 = vmatmul.mubr.f32.gmra.mxu0 %v7312
    %v7383 = vpop.f32.mrf.mxu0
    %v7384 = vadd.f32 %v7310, %v7383
    %v7385 = vpop.f32.mrf.mxu0
    %7386 = vmatprep.mubr.f32.mxu0 0.0
    %7387 = vmatmul.mubr.f32.gmra.mxu0 %v7315
    %v7388 = vpop.f32.mrf.mxu0
    %v7389 = vadd.f32 %v7310, %v7388
    %v7390 = vpop.f32.mrf.mxu0
    %7391 = vdwg.mxu0
    %v7392 = vadd.f32 %v7384, %v7152
    %v7393 = vadd.f32 %v7389, %v7153
    %v7394 = vld [vmem:[%s5 + $0x590] sm:$0x1]
    %v7395 = vld [vmem:[%s5 + $0x598] sm:$0x1]
    %v7396 = vsel %vm188, %v7392, 0.0
    %7397 = vadd.xlane.f32.xlu0 %v7396
    %v7398 = vpop.xlane.xlu0 %7397
    %v7399 = vsel %vm4600, %v7393, 0.0
    %7400 = vadd.xlane.f32.xlu0 %v7399
    %v7401 = vpop.xlane.xlu0 %7400
    %v7402 = vmul.f32 %v7398, %v204
    %v7403 = vmul.f32 %v7401, %v204
    %v7404 = vsub.f32 %v7392, %v7402
    %v7405 = vsub.f32 %v7393, %v7403
    %v7406 = vmul.f32 %v7404, %v7404
    %v7407 = vmul.f32 %v7405, %v7405
    %v7408 = vsel %vm188, %v7406, 0.0
    %7409 = vadd.xlane.f32.xlu0 %v7408
    %v7410 = vpop.xlane.xlu0 %7409
    %v7411 = vsel %vm4600, %v7407, 0.0
    %7412 = vadd.xlane.f32.xlu0 %v7411
    %v7413 = vpop.xlane.xlu0 %7412
    %v7414 = vmul.f32 %v7410, %v204
    %v7415 = vmul.f32 %v7413, %v204
    %v7416 = vadd.f32 %v7414, 1e-12
    %v7417 = vadd.f32 %v7415, 1e-12
    %v7418 = vrsqrt.pop %v7416
    %v7419 = vrsqrt.pop %v7417
    %v7420 = vmul.f32 %v7404, %v7418
    %v7421 = vmul.f32 %v7405, %v7419
    %v7422 = vlaneseq
    %v7423 = vshrl.u32 %v7422, 7
    %v7424 = vsub.s32 0, %v7423
    %v7425 = vrot.slane %v7394, %v7424
    %v7426 = vmul.f32 %v7420, %v7425
    %v7427 = vmul.f32 %v7421, %v7425
    %v7428 = vlaneseq
    %v7429 = vshrl.u32 %v7428, 7
    %v7430 = vsub.s32 0, %v7429
    %v7431 = vrot.slane %v7395, %v7430
    %v7432 = vadd.f32 %v7426, %v7431
    %v7433 = vadd.f32 %v7427, %v7431
    %v7434 = vld [vmem:[%s5 + $0x5a0] sm:$0xff]
    %v7435 = vld [vmem:[%s5 + $0x5a8] sm:$0xff]
    %v7436 = vld [vmem:[%s5 + $0x5b0] sm:$0xff]
    %v7437 = vld [vmem:[%s5 + $0x5b8] sm:$0xff]
    %v7438 = vld [vmem:[%s5 + $0x5c0] sm:$0x1]
    %v7439 = vlaneseq
    %v7440 = vshrl.u32 %v7439, 7
    %v7441 = vsub.s32 0, %v7440
    %v7442 = vrot.slane %v7438, %v7441
    %v7444 = vsel %vm188, %v7432, 0
    %v7447 = vsel %vm188, %v7433, 0
    %7449 = vmatprep.subr.mxu0 0.0
    %7450 = vmatpush1.msra.mxu0 0.0
    %7451 = vmatprep.subr.mxu0 0.0
    %7452 = vmatpush1.msra.mxu0 0.0
    %7453 = vmatprep.subr.mxu0 0.0
    %7454 = vmatpush1.msra.mxu0 0.0
    %7455 = vmatprep.subr.mxu0 0.0
    %7456 = vmatpush1.msra.mxu0 0.0
    %7457 = vmatprep.subr.mxu0 0.0
    %7458 = vmatpush1.msra.mxu0 0.0
    %7459 = vmatprep.subr.mxu0 0.0
    %7460 = vmatpush1.msra.mxu0 0.0
    %7461 = vmatprep.subr.mxu0 0.0
    %7462 = vmatpush1.msra.mxu0 0.0
    %7463 = vmatprep.subr.mxu0 0.0
    %7464 = vmatpush1.msra.mxu0 0.0
    %7465 = vmatprep.subr.mxu0 0.0
    %7466 = vmatpush1.msra.mxu0 0.0
    %7467 = vmatprep.subr.mxu0 0.0
    %7468 = vmatpush1.msra.mxu0 0.0
    %7469 = vmatprep.subr.mxu0 0.0
    %7470 = vmatpush1.msra.mxu0 0.0
    %7471 = vmatprep.subr.mxu0 0.0
    %7472 = vmatpush1.msra.mxu0 0.0
    %7473 = vmatprep.subr.mxu0 0.0
    %7474 = vmatpush1.msra.mxu0 %v7437
    %7475 = vmatprep.subr.mxu0 0.0
    %7476 = vmatpush1.msra.mxu0 %v7436
    %7477 = vmatprep.subr.mxu0 0.0
    %7478 = vmatpush1.msra.mxu0 %v7435
    %7479 = vmatprep.subr.mxu0 0.0
    %7480 = vmatpush1.msra.mxu0 %v7434
    %7481 = vmatprep.subr.mxu0 0.0
    %7482 = vmatpush2.msra.mxu0 0.0
    %7483 = vmatprep.subr.mxu0 0.0
    %7484 = vmatpush2.msra.mxu0 0.0
    %7485 = vmatprep.subr.mxu0 0.0
    %7486 = vmatpush2.msra.mxu0 0.0
    %7487 = vmatprep.subr.mxu0 0.0
    %7488 = vmatpush2.msra.mxu0 0.0
    %7489 = vmatprep.subr.mxu0 0.0
    %7490 = vmatpush2.msra.mxu0 0.0
    %7491 = vmatprep.subr.mxu0 0.0
    %7492 = vmatpush2.msra.mxu0 0.0
    %7493 = vmatprep.subr.mxu0 0.0
    %7494 = vmatpush2.msra.mxu0 0.0
    %7495 = vmatprep.subr.mxu0 0.0
    %7496 = vmatpush2.msra.mxu0 0.0
    %7497 = vmatprep.subr.mxu0 0.0
    %7498 = vmatpush2.msra.mxu0 0.0
    %7499 = vmatprep.subr.mxu0 0.0
    %7500 = vmatpush2.msra.mxu0 0.0
    %7501 = vmatprep.subr.mxu0 0.0
    %7502 = vmatpush2.msra.mxu0 0.0
    %7503 = vmatprep.subr.mxu0 0.0
    %7504 = vmatpush2.msra.mxu0 0.0
    %7505 = vmatprep.subr.mxu0 0.0
    %7506 = vmatpush2.msra.mxu0 0.0
    %7507 = vmatprep.subr.mxu0 0.0
    %7508 = vmatpush2.msra.mxu0 0.0
    %7509 = vmatprep.subr.mxu0 0.0
    %7510 = vmatpush2.msra.mxu0 0.0
    %7511 = vmatprep.subr.mxu0 0.0
    %7512 = vmatpush2.msra.mxu0 0.0
    %7513 = vmatprep.mubr.f32.mxu0 0.0
    %7514 = vmatmul.mubr.f32.gmra.mxu0 %v7444
    %v7515 = vpop.f32.mrf.mxu0
    %v7516 = vadd.f32 %v7442, %v7515
    %v7517 = vpop.f32.mrf.mxu0
    %7518 = vmatprep.mubr.f32.mxu0 0.0
    %7519 = vmatmul.mubr.f32.gmra.mxu0 %v7447
    %v7520 = vpop.f32.mrf.mxu0
    %v7521 = vadd.f32 %v7442, %v7520
    %v7522 = vpop.f32.mrf.mxu0
    %7523 = vdwg.mxu0
    %v7524 = vld [vmem:[%s5 + $0x3d8] sm:$0xff]
    %v7526 = vsel %vm4919, %v7524, 0
    %v7529 = vsel %vm4954, %v7521, 0
    %7531 = vmatprep.subr.mxu0 0.0
    %7532 = vmatpush1.msra.mxu0 0.0
    %7533 = vmatprep.subr.mxu0 0.0
    %7534 = vmatpush1.msra.mxu0 0.0
    %7535 = vmatprep.subr.mxu0 0.0
    %7536 = vmatpush1.msra.mxu0 0.0
    %7537 = vmatprep.subr.mxu0 0.0
    %7538 = vmatpush1.msra.mxu0 0.0
    %7539 = vmatprep.subr.mxu0 0.0
    %7540 = vmatpush1.msra.mxu0 0.0
    %7541 = vmatprep.subr.mxu0 0.0
    %7542 = vmatpush1.msra.mxu0 0.0
    %7543 = vmatprep.subr.mxu0 0.0
    %7544 = vmatpush1.msra.mxu0 0.0
    %7545 = vmatprep.subr.mxu0 0.0
    %7546 = vmatpush1.msra.mxu0 0.0
    %7547 = vmatprep.subr.mxu0 0.0
    %7548 = vmatpush1.msra.mxu0 0.0
    %7549 = vmatprep.subr.mxu0 0.0
    %7550 = vmatpush1.msra.mxu0 0.0
    %7551 = vmatprep.subr.mxu0 0.0
    %7552 = vmatpush1.msra.mxu0 0.0
    %7553 = vmatprep.subr.mxu0 0.0
    %7554 = vmatpush1.msra.mxu0 0.0
    %7555 = vmatprep.subr.mxu0 0.0
    %7556 = vmatpush1.msra.mxu0 0.0
    %7557 = vmatprep.subr.mxu0 0.0
    %7558 = vmatpush1.msra.mxu0 0.0
    %7559 = vmatprep.subr.mxu0 0.0
    %7560 = vmatpush1.msra.mxu0 %v7529
    %7561 = vmatprep.subr.mxu0 0.0
    %7562 = vmatpush1.msra.mxu0 %v7516
    %7563 = vmatprep.subr.mxu0 0.0
    %7564 = vmatpush2.msra.mxu0 0.0
    %7565 = vmatprep.subr.mxu0 0.0
    %7566 = vmatpush2.msra.mxu0 0.0
    %7567 = vmatprep.subr.mxu0 0.0
    %7568 = vmatpush2.msra.mxu0 0.0
    %7569 = vmatprep.subr.mxu0 0.0
    %7570 = vmatpush2.msra.mxu0 0.0
    %7571 = vmatprep.subr.mxu0 0.0
    %7572 = vmatpush2.msra.mxu0 0.0
    %7573 = vmatprep.subr.mxu0 0.0
    %7574 = vmatpush2.msra.mxu0 0.0
    %7575 = vmatprep.subr.mxu0 0.0
    %7576 = vmatpush2.msra.mxu0 0.0
    %7577 = vmatprep.subr.mxu0 0.0
    %7578 = vmatpush2.msra.mxu0 0.0
    %7579 = vmatprep.subr.mxu0 0.0
    %7580 = vmatpush2.msra.mxu0 0.0
    %7581 = vmatprep.subr.mxu0 0.0
    %7582 = vmatpush2.msra.mxu0 0.0
    %7583 = vmatprep.subr.mxu0 0.0
    %7584 = vmatpush2.msra.mxu0 0.0
    %7585 = vmatprep.subr.mxu0 0.0
    %7586 = vmatpush2.msra.mxu0 0.0
    %7587 = vmatprep.subr.mxu0 0.0
    %7588 = vmatpush2.msra.mxu0 0.0
    %7589 = vmatprep.subr.mxu0 0.0
    %7590 = vmatpush2.msra.mxu0 0.0
    %7591 = vmatprep.subr.mxu0 0.0
    %7592 = vmatpush2.msra.mxu0 0.0
    %7593 = vmatprep.subr.mxu0 0.0
    %7594 = vmatpush2.msra.mxu0 0.0
    %7595 = vmatprep.mubr.f32.mxu0 0.0
    %7596 = vmatmul.mubr.f32.gmra.mxu0 %v7526
    %v7597 = vpop.f32.mrf.mxu0
    %v7598 = vadd.f32 0.0, %v7597
    %v7599 = vpop.f32.mrf.mxu0
    %7600 = vdwg.mxu0
    %s7601 = sld [smem:[#allocation2 + $0x1]]
    %v7602 = vstv %s7601
    %v7603 = vmul.f32 %v7602, %v4484
    %s7604 = ssub.f32 1.0, %s7601
    %v7605 = vstv %s7604
    %v7606 = vmul.f32 %v7605, %v7598
    %v7607 = vadd.f32 %v7603, %v7606
    %v7608 = vld [vmem:[%s3] sm:$0xff]
    %vm7609 = vcmp.ne.s32.totalorder %v7608, 4294967196
    %v7610 = vsel %vm7609, 1, 0
    %v7611 = vcvt.s32.f32 %v7610
    %vm7612 = vcmask 7168
    %v7613 = vsel %vm7612, %v7611, 0.0
    %v7614 = vrot.slane %v7613, 4
    %v7615 = vadd.f32 %v7613, %v7614
    %v7616 = vrot.slane %v7615, 2
    %v7617 = vadd.f32 %v7615, %v7616
    %v7618 = vrot.slane %v7617, 1
    %v7619 = vadd.f32 %v7617, %v7618
    %v7620 = vmax.f32 %v7619, 1.0
    %7621 = vset.pattern.permute.xlu0 0
    %7622 = vperm.xlu0 %7621, %v7608
    %v7623 = vpop.permute.xlu0 %7622
    %vm7624 = vcmp.eq.s32.totalorder %v4488, %v7623
    %v7625 = vsel %vm7624, 1, 0
    %v7626 = vcvt.s32.f32 %v7625
    %v7627 = vld [vmem:[%s5 + $0x5c8] sm:$0x1]
    %v7628 = vlaneseq
    %v7629 = vshrl.u32 %v7628, 7
    %v7630 = vsub.s32 0, %v7629
    %v7631 = vrot.slane %v7627, %v7630
    %v7632 = vadd.f32 %v7607, %v7631
    %7633 = vmax.xlane.f32.xlu0 %v7632
    %v7634 = vpop.xlane.xlu0 %7633
    %v7635 = vsub.f32 %v7632, %v7634
    %v7636 = vmul.f32 %v7635, 1.442695
    %v7637 = vpow.pop %v7636
    %7638 = vadd.xlane.f32.xlu0 %v7637
    %v7639 = vpop.xlane.xlu0 %7638
    %v7640 = vlog2.pop %v7639
    %v7641 = vmul.f32 %v7640, 0.6931472
    %v7642 = vadd.f32 %v7641, %v7634
    %v7643 = vmul.f32 %v7607, %v7626
    %7644 = vadd.xlane.f32.xlu0 %v7643
    %v7645 = vpop.xlane.xlu0 %7644
    %v7646 = vsub.f32 %v7642, %v7645
    %v7647 = vmul.f32 %v7646, %v7611
    %v7648 = vsel %vm7612, %v7647, 0.0
    %v7649 = vrot.slane %v7648, 4
    %v7650 = vadd.f32 %v7648, %v7649
    %v7651 = vrot.slane %v7650, 2
    %v7652 = vadd.f32 %v7650, %v7651
    %v7653 = vrot.slane %v7652, 1
    %v7654 = vadd.f32 %v7652, %v7653
    %v7655 = vrcp.pop %v7620
    %v7656 = vmul.f32 %v7654, %v7655
    %v7657 = vadd.f32 %v4484, %v7631
    %7658 = vmax.xlane.f32.xlu0 %v7657
    %v7659 = vpop.xlane.xlu0 %7658
    %v7660 = vsub.f32 %v7657, %v7659
    %v7661 = vmul.f32 %v7660, 1.442695
    %v7662 = vpow.pop %v7661
    %7663 = vadd.xlane.f32.xlu0 %v7662
    %v7664 = vpop.xlane.xlu0 %7663
    %v7665 = vlog2.pop %v7664
    %v7666 = vmul.f32 %v7665, 0.6931472
    %v7667 = vadd.f32 %v7666, %v7659
    %v7668 = vmul.f32 %v4484, %v7626
    %7669 = vadd.xlane.f32.xlu0 %v7668
    %v7670 = vpop.xlane.xlu0 %7669
    %v7671 = vsub.f32 %v7667, %v7670
    %v7672 = vmul.f32 %v7671, %v7611
    %v7673 = vsel %vm7612, %v7672, 0.0
    %v7674 = vrot.slane %v7673, 4
    %v7675 = vadd.f32 %v7673, %v7674
    %v7676 = vrot.slane %v7675, 2
    %v7677 = vadd.f32 %v7675, %v7676
    %v7678 = vrot.slane %v7677, 1
    %v7679 = vadd.f32 %v7677, %v7678
    %v7680 = vmul.f32 %v7679, %v7655
    %v7681 = vadd.f32 %v7598, %v7631
    %7682 = vmax.xlane.f32.xlu0 %v7681
    %v7683 = vpop.xlane.xlu0 %7682
    %v7684 = vsub.f32 %v7681, %v7683
    %v7685 = vmul.f32 %v7684, 1.442695
    %v7686 = vpow.pop %v7685
    %7687 = vadd.xlane.f32.xlu0 %v7686
    %v7688 = vpop.xlane.xlu0 %7687
    %v7689 = vlog2.pop %v7688
    %v7690 = vmul.f32 %v7689, 0.6931472
    %v7691 = vadd.f32 %v7690, %v7683
    %v7692 = vmul.f32 %v7598, %v7626
    %7693 = vadd.xlane.f32.xlu0 %v7692
    %v7694 = vpop.xlane.xlu0 %7693
    %v7695 = vsub.f32 %v7691, %v7694
    %v7696 = vmul.f32 %v7695, %v7611
    %v7697 = vsel %vm7612, %v7696, 0.0
    %v7698 = vrot.slane %v7697, 4
    %v7699 = vadd.f32 %v7697, %v7698
    %v7700 = vrot.slane %v7699, 2
    %v7701 = vadd.f32 %v7699, %v7700
    %v7702 = vrot.slane %v7701, 1
    %v7703 = vadd.f32 %v7701, %v7702
    %v7704 = vmul.f32 %v7703, %v7655
    %7705 = vst [vmem:[%s6] sm:$0xff] %v7607
    %v7706 = vlaneseq
    %v7707 = vshrl.u32 %v7706, 7
    %vm7708 = vcmp.eq.s32.totalorder %v7707, 0
    %vm7709 = vcmp.eq.s32.totalorder %v4488, 0
    %vm7710 = vmand %vm7708, %vm7709
    %7712 = vset.pattern.permute.xlu0 0
    %7713 = vperm.xlu0 %7712, %v7656
    %v7714 = vpop.permute.xlu0 %7713
    %v7716 = vsel %vm7710, %v7714, 0.0
    %vm7717 = vcmp.eq.s32.totalorder %v4488, 1
    %vm7718 = vmand %vm7708, %vm7717
    %7720 = vset.pattern.permute.xlu0 0
    %7721 = vperm.xlu0 %7720, %v7680
    %v7722 = vpop.permute.xlu0 %7721
    %v7724 = vsel %vm7718, %v7722, 0.0
    %v7725 = vadd.f32 %v7716, %v7724
    %vm7726 = vcmp.eq.s32.totalorder %v4488, 2
    %vm7727 = vmand %vm7708, %vm7726
    %7729 = vset.pattern.permute.xlu0 0
    %7730 = vperm.xlu0 %7729, %v7704
    %v7731 = vpop.permute.xlu0 %7730
    %v7733 = vsel %vm7727, %v7731, 0.0
    %v7734 = vadd.f32 %v7725, %v7733
    %7735 = vst [vmem:[%s6 + $0x8] sm:$0xff] %v7734
    // Predicated region
    $region30: #{vit_bert_forward.1} parent=1 // pred_check
      _
    $region31: #{vit_bert_forward.1} parent=1 // pred_check_branch
      %7737 = sbr.rel (0) target = $region33
    $region32: #{vit_bert_forward.1} parent=1 // pred_region
      _
    $region33: #{vit_bert_forward.1} parent=1 // pred_fallthru
      _
    // Predicated region
    $region34: #{vit_bert_forward.1} parent=1 // pred_check
      _
    $region35: #{vit_bert_forward.1} parent=1 // pred_check_branch
      %7739 = sbr.rel (0) target = $region37
    $region36: #{vit_bert_forward.1} parent=1 // pred_region
      _
    $region37: #{vit_bert_forward.1} parent=1 // pred_fallthru
      _
    %7740 = vsyncpa [#allocation3], 1

</llo_original>
